<compile_context>
chip_gen: v7x
topology: tpu7x:2x2x1
jax: 0.10.0
libtpu: 0.0.40
codegen_flags: <defaults>
</compile_context>

<pallas_src>
from functools import partial

import numpy as np
import jax
import jax.numpy as jnp
from jax.experimental import pallas as pl
from jax.experimental.pallas import tpu as pltpu


# ----------------------------------------------------------------------------
# Kernel 1: fused 2-layer bidirectional LSTM (eval mode)
# ----------------------------------------------------------------------------
def _bilstm2_kernel(u_ref, wz0_ref, bz0_ref, wz1_ref, bz1_ref, out_ref,
                    sf0, sb0, sf1, sb1, h_sc, c_sc, *, T, H):
    """Gate columns are interleaved per-gate as [i_f i_b f_f f_b g_f g_b o_f o_b]
    (each H wide) so both directions share one dot per step.  At loop step t the
    forward direction processes time t and the backward direction time T-1-t."""
    H2 = 2 * H

    def run_layer(get_x, wz_ref, bz_ref, dst_f, dst_b):
        h_sc[...] = jnp.zeros_like(h_sc)
        c_sc[...] = jnp.zeros_like(c_sc)
        for t in range(T):                       # static unroll (T is small)
            tb = T - 1 - t
            # z = [x_fwd(t) | x_bwd(tb) | h_f | h_b]  -> one 128-lane matmul
            z = jnp.concatenate([get_x(t), get_x(tb), h_sc[...]], axis=-1)
            gates = (jnp.dot(z, wz_ref[...], preferred_element_type=jnp.float32)
                     + bz_ref[...])
            i = jax.nn.sigmoid(gates[:, 0 * H2:1 * H2])
            f = jax.nn.sigmoid(gates[:, 1 * H2:2 * H2])
            g = jnp.tanh(gates[:, 2 * H2:3 * H2])
            o = jax.nn.sigmoid(gates[:, 3 * H2:4 * H2])
            c = f * c_sc[...] + i * g
            h = o * jnp.tanh(c)
            c_sc[...] = c
            h_sc[...] = h
            dst_f[t] = h[:, 0:H]                 # forward hidden at time t
            dst_b[tb] = h[:, H:H2]               # backward hidden at time T-1-t

    # layer 0: input is the raw utterance features
    run_layer(lambda t: u_ref[t], wz0_ref, bz0_ref, sf0, sb0)
    # layer 1: input is [h_f^0(t) | h_b^0(t)]  (inter-layer dropout = identity)
    run_layer(lambda t: jnp.concatenate([sf0[t], sb0[t]], axis=-1),
              wz1_ref, bz1_ref, sf1, sb1)
    out_ref[...] = jnp.concatenate([sf1[...], sb1[...]], axis=-1)


def bilstm2_pallas(U, wz0, bz0, wz1, bz1):
    T, B, D_m = U.shape
    H = bz0.shape[1] // 8
    return pl.pallas_call(
        partial(_bilstm2_kernel, T=T, H=H),
        grid=(1,),
        out_shape=jax.ShapeDtypeStruct((T, B, 2 * H), jnp.float32),
        in_specs=[pl.BlockSpec((T, B, D_m), lambda i: (0, 0, 0)),
                  pl.BlockSpec(wz0.shape, lambda i: (0, 0)),
                  pl.BlockSpec((1, 8 * H), lambda i: (0, 0)),
                  pl.BlockSpec(wz1.shape, lambda i: (0, 0)),
                  pl.BlockSpec((1, 8 * H), lambda i: (0, 0))],
        out_specs=pl.BlockSpec((T, B, 2 * H), lambda i: (0, 0, 0)),
        scratch_shapes=[pltpu.VMEM((T, B, H), jnp.float32),   # layer0 fwd seq
                        pltpu.VMEM((T, B, H), jnp.float32),   # layer0 bwd seq
                        pltpu.VMEM((T, B, H), jnp.float32),   # layer1 fwd seq
                        pltpu.VMEM((T, B, H), jnp.float32),   # layer1 bwd seq
                        pltpu.VMEM((B, 2 * H), jnp.float32),  # h state [f|b]
                        pltpu.VMEM((B, 2 * H), jnp.float32)], # c state [f|b]
        compiler_params=pltpu.CompilerParams(
            dimension_semantics=("arbitrary",)),
    )(U.astype(jnp.float32), wz0, bz0, wz1, bz1)


# ----------------------------------------------------------------------------
# Kernel 2: MaskedEdgeAttention 'attn1'  (all dialogues in one grid step)
# ----------------------------------------------------------------------------
def _edge_attn_kernel(mt_ref, ws_ref, mask_ref, maskc_ref, out_ref, *, B):
    ws = ws_ref[...]                                         # (L, D)
    for b in range(B):                                       # static, B small
        sc = jnp.dot(ws, mt_ref[b],
                     preferred_element_type=jnp.float32)     # (L, T)
        mx = jnp.max(sc, axis=-1, keepdims=True)
        e = jnp.exp(sc - mx)
        alpha = e * pl.reciprocal(jnp.sum(e, axis=-1, keepdims=True),
                                  approx=True)               # softmax over T
        masked = alpha * mask_ref[b]
        sums = jnp.sum(masked, axis=-1, keepdims=True)
        out_ref[b] = masked * pl.reciprocal(sums, approx=True) * maskc_ref[b]


def edge_attention_pallas(Mt, ws, mask, mask_copy):
    B, D, T = Mt.shape
    L = ws.shape[0]
    return pl.pallas_call(
        partial(_edge_attn_kernel, B=B),
        grid=(1,),
        out_shape=jax.ShapeDtypeStruct((B, L, T), jnp.float32),
        in_specs=[pl.BlockSpec((B, D, T), lambda i: (0, 0, 0)),
                  pl.BlockSpec((L, D), lambda i: (0, 0)),
                  pl.BlockSpec((B, L, T), lambda i: (0, 0, 0)),
                  pl.BlockSpec((B, L, T), lambda i: (0, 0, 0))],
        out_specs=pl.BlockSpec((B, L, T), lambda i: (0, 0, 0)),
        compiler_params=pltpu.CompilerParams(
            dimension_semantics=("arbitrary",)),
    )(Mt.astype(jnp.float32), ws, mask, mask_copy)


# ----------------------------------------------------------------------------
# Kernel 3: fused RGCNConv + GraphConv
# ----------------------------------------------------------------------------
def _graphnet_kernel(x_ref, arel_ref, wall_ref, root_ref, rb_ref, dinv_ref,
                     aall_ref, gcw_ref, gclw_ref, gclb_ref, out_ref,
                     *, R, Dout):
    x = x_ref[...]                                           # (N, Din)
    # all relation weights folded into one lane-dense matmul: (N, R*Dout)
    xw = jnp.dot(x, wall_ref[...], preferred_element_type=jnp.float32)
    agg = jnp.dot(arel_ref[0], xw[:, 0:Dout],
                  preferred_element_type=jnp.float32)
    for r in range(1, R):                                    # static unroll
        agg = agg + jnp.dot(arel_ref[r], xw[:, r * Dout:(r + 1) * Dout],
                            preferred_element_type=jnp.float32)
    # RGCN 'mean' aggregation over all incoming messages + root transform
    out1 = (dinv_ref[...] * agg
            + jnp.dot(x, root_ref[...], preferred_element_type=jnp.float32)
            + rb_ref[...])
    # GraphConv (add aggregation) fused in-kernel: out1 never leaves VMEM
    h = jnp.dot(out1, gcw_ref[...], preferred_element_type=jnp.float32)
    out_ref[...] = (jnp.dot(aall_ref[...], h, preferred_element_type=jnp.float32)
                    + jnp.dot(out1, gclw_ref[...],
                              preferred_element_type=jnp.float32)
                    + gclb_ref[...])


def graph_net_pallas(x, a_rel, w_all, root, rgcn_b, deg_inv, a_all,
                     gc_w, gc_lw, gc_lb, Dout):
    # TODO(synk): at large N (>~2000) tile the dense (N, N) adjacency rows and
    # set vmem_limit_bytes for v7x's 64 MiB VMEM; trivial at demo sizes.
    N, Din = x.shape
    R = a_rel.shape[0]
    return pl.pallas_call(
        partial(_graphnet_kernel, R=R, Dout=Dout),
        grid=(1,),
        out_shape=jax.ShapeDtypeStruct((N, Dout), jnp.float32),
        in_specs=[pl.BlockSpec((N, Din), lambda i: (0, 0)),
                  pl.BlockSpec((R, N, N), lambda i: (0, 0, 0)),
                  pl.BlockSpec((Din, R * Dout), lambda i: (0, 0)),
                  pl.BlockSpec((Din, Dout), lambda i: (0, 0)),
                  pl.BlockSpec((1, Dout), lambda i: (0, 0)),
                  pl.BlockSpec((N, 1), lambda i: (0, 0)),
                  pl.BlockSpec((N, N), lambda i: (0, 0)),
                  pl.BlockSpec((Dout, Dout), lambda i: (0, 0)),
                  pl.BlockSpec((Dout, Dout), lambda i: (0, 0)),
                  pl.BlockSpec((1, Dout), lambda i: (0, 0))],
        out_specs=pl.BlockSpec((N, Dout), lambda i: (0, 0)),
        compiler_params=pltpu.CompilerParams(
            dimension_semantics=("arbitrary",)),
    )(x.astype(jnp.float32), a_rel, w_all, root, rgcn_b, deg_inv, a_all,
      gc_w, gc_lw, gc_lb)


# ----------------------------------------------------------------------------
# Kernel 4: MatchingAttention 'general2' + linear + relu + smax + log_softmax
# ----------------------------------------------------------------------------
def _matchatt_classify_kernel(em_ref, umr_ref, umc_ref, wt_ref, bt_ref,
                              wl_ref, bl_ref, ws_ref, bs_ref, out_ref, *, B):
    wt = wt_ref[...]; bt = bt_ref[...]
    wl = wl_ref[...]; bl = bl_ref[...]
    ws = ws_ref[...]; bs = bs_ref[...]          # padded to 128 classes
    for b in range(B):                          # static, B small
        em = em_ref[b]                          # (L, D) padded node features
        umr = umr_ref[b]                        # (1, L) utterance mask (row)
        umc = umc_ref[b]                        # (L, 1) utterance mask (col)
        xt = jnp.dot(em, wt, preferred_element_type=jnp.float32) + bt
        mb = em * umc                           # masked memory
        a = jnp.dot(xt, jnp.transpose(mb),
                    preferred_element_type=jnp.float32)       # (L, L)
        a = jnp.tanh(a * umr)
        mx = jnp.max(a, axis=1, keepdims=True)
        e = jnp.exp(a - mx)
        a = e * pl.reciprocal(jnp.sum(e, axis=1, keepdims=True), approx=True)
        a = a * umr
        a = a * pl.reciprocal(jnp.sum(a, axis=1, keepdims=True), approx=True)
        att = jnp.dot(a, em, preferred_element_type=jnp.float32)       # (L, D)
        hid = jnp.maximum(
            jnp.dot(att, wl, preferred_element_type=jnp.float32) + bl, 0.0)
        logits = jnp.dot(hid, ws, preferred_element_type=jnp.float32) + bs
        lmx = jnp.max(logits, axis=1, keepdims=True)
        lse = lmx + jnp.log(jnp.sum(jnp.exp(logits - lmx), axis=1,
                                    keepdims=True))
        out_ref[b] = logits - lse               # lane-dense (L, 128) store


def matchatt_classify_pallas(em_pad, um_row, um_col, wt, bt, wl, bl, ws, bs):
    B, L, D = em_pad.shape
    H = wl.shape[1]
    CP = ws.shape[1]
    return pl.pallas_call(
        partial(_matchatt_classify_kernel, B=B),
        grid=(1,),
        out_shape=jax.ShapeDtypeStruct((B, L, CP), jnp.float32),
        in_specs=[pl.BlockSpec((B, L, D), lambda i: (0, 0, 0)),
                  pl.BlockSpec((B, 1, L), lambda i: (0, 0, 0)),
                  pl.BlockSpec((B, L, 1), lambda i: (0, 0, 0)),
                  pl.BlockSpec((D, D), lambda i: (0, 0)),
                  pl.BlockSpec((1, D), lambda i: (0, 0)),
                  pl.BlockSpec((D, H), lambda i: (0, 0)),
                  pl.BlockSpec((1, H), lambda i: (0, 0)),
                  pl.BlockSpec((H, CP), lambda i: (0, 0)),
                  pl.BlockSpec((1, CP), lambda i: (0, 0))],
        out_specs=pl.BlockSpec((B, L, CP), lambda i: (0, 0, 0)),
        compiler_params=pltpu.CompilerParams(
            dimension_semantics=("arbitrary",)),
    )(em_pad.astype(jnp.float32), um_row, um_col, wt, bt, wl, bl, ws, bs)


# ----------------------------------------------------------------------------
# Host-side one-time preparation (edges, masks, adjacency, weight packing)
# ----------------------------------------------------------------------------
def edge_perms(l, window_past, window_future):
    all_perms = set()
    array = np.arange(l)
    for j in range(l):
        if window_past == -1 and window_future == -1:
            eff_array = array
        elif window_past == -1:
            eff_array = array[:min(l, j + window_future + 1)]
        elif window_future == -1:
            eff_array = array[max(0, j - window_past):]
        else:
            eff_array = array[max(0, j - window_past):
                              min(l, j + window_future + 1)]
        for item in eff_array:
            all_perms.add((j, int(item)))
    # TODO(synk): PyTorch iterates an unordered python set here; edge ORDER is
    # not canonical, so we sort for determinism (edge values are identical).
    return sorted(all_perms)


def build_edge_type_mapping(n_speakers):
    m = {}
    for j in range(n_speakers):
        for k in range(n_speakers):
            m[str(j) + str(k) + '0'] = len(m)
            m[str(j) + str(k) + '1'] = len(m)
    return m


def build_graph_structures(qmask_np, seq_lengths, window_past, window_future,
                           n_speakers, max_seq_len, T, B):
    """Host-side edge/mask/adjacency construction (static per length config)."""
    edge_type_mapping = build_edge_type_mapping(n_speakers)
    n_relations = 2 * n_speakers ** 2
    edge_src, edge_dst, edge_types = [], [], []
    eb, es, ed = [], [], []
    edge_index_lengths = []
    length_sum = 0
    for j in range(B):
        perms = edge_perms(seq_lengths[j], window_past, window_future)
        edge_index_lengths.append(len(perms))
        for (s, d) in perms:
            edge_src.append(s + length_sum)
            edge_dst.append(d + length_sum)
            eb.append(j); es.append(s); ed.append(d)
            sp0 = int(np.nonzero(qmask_np[s, j, :] == 1)[0][0])
            sp1 = int(np.nonzero(qmask_np[d, j, :] == 1)[0][0])
            sfx = '0' if s < d else '1'
            edge_types.append(edge_type_mapping[str(sp0) + str(sp1) + sfx])
        length_sum += seq_lengths[j]
    N = length_sum

    mask = np.full((B, max_seq_len, T), 1e-10, np.float32)
    mask_copy = np.zeros((B, max_seq_len, T), np.float32)
    mask[eb, es, ed] = 1.0
    mask_copy[eb, es, ed] = 1.0

    a_rel = np.zeros((n_relations, N, N), np.float32)
    a_all = np.zeros((N, N), np.float32)
    for (s, d, t) in zip(edge_src, edge_dst, edge_types):
        a_rel[t, d, s] += 1.0            # messages flow source -> target
        a_all[d, s] += 1.0
    deg = a_all.sum(axis=1, keepdims=True)
    deg_inv = np.where(deg > 0, 1.0 / np.maximum(deg, 1.0), 0.0).astype(np.float32)

    gconst = dict(mask=jnp.asarray(mask), mask_copy=jnp.asarray(mask_copy),
                  a_rel=jnp.asarray(a_rel), a_all=jnp.asarray(a_all),
                  deg_inv=jnp.asarray(deg_inv),
                  eb=jnp.asarray(eb, jnp.int32),
                  es=jnp.asarray(es, jnp.int32),
                  ed=jnp.asarray(ed, jnp.int32))
    meta = dict(edge_src=edge_src, edge_dst=edge_dst, edge_types=edge_types,
                edge_index_lengths=edge_index_lengths, N=N)
    return gconst, meta


def init_params(key, D_m, D_e, graph_hidden, n_speakers, max_seq_len,
                n_classes, num_bases=30):
    n_relations = 2 * n_speakers ** 2
    D2e = 2 * D_e
    D_cat = D2e + graph_hidden
    keys = iter(jax.random.split(key, 64))

    def nrm(shape, scale=0.1):
        return (scale * jax.random.normal(next(keys), shape)).astype(jnp.float32)

    params = {}
    lstm = []
    for layer in range(2):
        in_dim = D_m if layer == 0 else 2 * D_e
        dirs = []
        for _ in range(2):
            dirs.append(dict(w_ih=nrm((4 * D_e, in_dim)),
                             w_hh=nrm((4 * D_e, D_e)),
                             b_ih=nrm((4 * D_e,)),
                             b_hh=nrm((4 * D_e,))))
        lstm.append(dirs)
    params['lstm'] = lstm
    params['att_scalar_w'] = nrm((max_seq_len, D2e))      # Linear(2*D_e->L), no bias
    params['rgcn_basis'] = nrm((num_bases, D2e, graph_hidden))
    params['rgcn_comp'] = nrm((n_relations, num_bases))
    params['rgcn_root'] = nrm((D2e, graph_hidden))
    params['rgcn_bias'] = nrm((graph_hidden,))
    params['gc_weight'] = nrm((graph_hidden, graph_hidden))
    params['gc_lin_w'] = nrm((graph_hidden, graph_hidden))  # torch Linear (out,in)
    params['gc_lin_b'] = nrm((graph_hidden,))
    params['matchatt_w'] = nrm((D_cat, D_cat))              # transform (mem,cand)
    params['matchatt_b'] = nrm((D_cat,))
    params['linear_w'] = nrm((graph_hidden, D_cat))
    params['linear_b'] = nrm((graph_hidden,))
    params['smax_w'] = nrm((n_classes, graph_hidden))
    params['smax_b'] = nrm((n_classes,))
    return params


def prepare_params(params, D_m, D_e, graph_hidden, n_classes, c_pad=128):
    """One-time packing of module parameters into kernel-friendly layouts."""
    H = D_e

    def pack_bilstm_layer(dirs, Din):
        # fused weight: rows [x_fwd | x_bwd | h_f | h_b], cols interleaved
        # per gate as [i_f i_b f_f f_b g_f g_b o_f o_b] (each H wide).
        wz = np.zeros((2 * Din + 2 * H, 8 * H), np.float32)
        bz = np.zeros((8 * H,), np.float32)
        pf, pb = dirs
        wif = np.asarray(pf['w_ih']); whf = np.asarray(pf['w_hh'])
        bif = np.asarray(pf['b_ih']) + np.asarray(pf['b_hh'])
        wib = np.asarray(pb['w_ih']); whb = np.asarray(pb['w_hh'])
        bib = np.asarray(pb['b_ih']) + np.asarray(pb['b_hh'])
        for g in range(4):                       # PyTorch gate order i, f, g, o
            rg = slice(g * H, (g + 1) * H)
            cf = slice(2 * g * H, (2 * g + 1) * H)
            cb = slice((2 * g + 1) * H, (2 * g + 2) * H)
            wz[0:Din, cf] = wif[rg, :].T
            wz[Din:2 * Din, cb] = wib[rg, :].T
            wz[2 * Din:2 * Din + H, cf] = whf[rg, :].T
            wz[2 * Din + H:2 * Din + 2 * H, cb] = whb[rg, :].T
            bz[cf] = bif[rg]
            bz[cb] = bib[rg]
        return jnp.asarray(wz), jnp.asarray(bz).reshape(1, -1)

    wz0, bz0 = pack_bilstm_layer(params['lstm'][0], D_m)
    wz1, bz1 = pack_bilstm_layer(params['lstm'][1], 2 * D_e)

    D2e = 2 * D_e
    # TODO(synk): RGCNConv / GraphConv follow PyG-1.x semantics (basis
    # decomposition, 'mean' aggregation over all incoming messages, GraphConv
    # 'add' aggregation + root linear); per the given GraphNetwork.forward,
    # edge_norm is computed/returned but NOT passed into conv1.
    w_rel = jnp.einsum('rb,bio->rio', params['rgcn_comp'], params['rgcn_basis'])
    R = w_rel.shape[0]
    w_all = jnp.transpose(w_rel, (1, 0, 2)).reshape(D2e, R * graph_hidden)

    ws_pad = np.zeros((graph_hidden, c_pad), np.float32)
    bs_pad = np.full((c_pad,), -1e30, np.float32)       # pad classes -> exp()==0
    ws_pad[:, :n_classes] = np.asarray(params['smax_w']).T
    bs_pad[:n_classes] = np.asarray(params['smax_b'])

    return dict(
        wz0=wz0, bz0=bz0, wz1=wz1, bz1=bz1,
        att_w=params['att_scalar_w'].astype(jnp.float32),          # (L, 2*D_e)
        w_all=w_all.astype(jnp.float32),
        root=params['rgcn_root'].astype(jnp.float32),
        rgcn_b=params['rgcn_bias'].reshape(1, -1).astype(jnp.float32),
        gc_w=params['gc_weight'].astype(jnp.float32),
        gc_lw=params['gc_lin_w'].T.astype(jnp.float32),
        gc_lb=params['gc_lin_b'].reshape(1, -1).astype(jnp.float32),
        matt_w=params['matchatt_w'].T.astype(jnp.float32),
        matt_b=params['matchatt_b'].reshape(1, -1).astype(jnp.float32),
        lin_w=params['linear_w'].T.astype(jnp.float32),
        lin_b=params['linear_b'].reshape(1, -1).astype(jnp.float32),
        smax_w=jnp.asarray(ws_pad),
        smax_b=jnp.asarray(bs_pad).reshape(1, -1),
    )


# ----------------------------------------------------------------------------
# Jitted device forward (4 fused pallas_calls back-to-back)
# ----------------------------------------------------------------------------
@partial(jax.jit, static_argnames=("seq_lengths", "dims"))
def _forward_device(prep, gconst, U, umask, *, seq_lengths, dims):
    (T, B, D_m, D_e, graph_hidden, n_classes, max_seq_len) = dims

    # ---- base encoder (base_model == 'LSTM'); dropout = identity in eval ----
    emotions = bilstm2_pallas(U, prep['wz0'], prep['bz0'],
                              prep['wz1'], prep['bz1'])        # (T, B, 2*D_e)

    # ---- MaskedEdgeAttention 'attn1' (host transpose fuses into XLA) ----
    Mt = jnp.transpose(emotions, (1, 2, 0))                    # (B, 2*D_e, T)
    scores = edge_attention_pallas(Mt, prep['att_w'],
                                   gconst['mask'], gconst['mask_copy'])
    edge_norm = scores[gconst['eb'], gconst['es'], gconst['ed']]

    node_features = jnp.concatenate(
        [emotions[:seq_lengths[j], j, :] for j in range(B)], axis=0)  # (N, 2De)

    # ---- fused RGCNConv + GraphConv ----
    out2 = graph_net_pallas(node_features, gconst['a_rel'], prep['w_all'],
                            prep['root'], prep['rgcn_b'], gconst['deg_inv'],
                            gconst['a_all'], prep['gc_w'], prep['gc_lw'],
                            prep['gc_lb'], graph_hidden)
    feats = jnp.concatenate([node_features, out2], axis=-1)    # (N, D_cat)

    # ---- nodal attention + classification ----
    max_len = max(seq_lengths)
    chunks, off = [], 0
    for l in seq_lengths:
        chunks.append(jnp.pad(feats[off:off + l], ((0, max_len - l), (0, 0))))
        off += l
    em_pad = jnp.stack(chunks, axis=0)                         # (B, max_len, D_cat)
    um_row = umask[:, :max_len].reshape(B, 1, max_len).astype(jnp.float32)
    um_col = jnp.transpose(um_row, (0, 2, 1))

    logp_pad = matchatt_classify_pallas(
        em_pad, um_row, um_col, prep['matt_w'], prep['matt_b'],
        prep['lin_w'], prep['lin_b'], prep['smax_w'], prep['smax_b'])

    log_prob = jnp.concatenate(
        [logp_pad[j, :seq_lengths[j], :n_classes] for j in range(B)], axis=0)
    return log_prob, edge_norm


def dialogue_gcn_forward(params, U, qmask, umask, seq_lengths,
                         window_past, window_future, n_speakers,
                         max_seq_len, D_e, graph_hidden, n_classes,
                         visuf=None, acouf=None):
    T, B, D_m = U.shape
    # one-time static prep (cacheable across calls with identical lengths)
    gconst, meta = build_graph_structures(np.asarray(qmask), list(seq_lengths),
                                          window_past, window_future,
                                          n_speakers, max_seq_len, T, B)
    prep = prepare_params(params, D_m, D_e, graph_hidden, n_classes)
    dims = (T, B, D_m, D_e, graph_hidden, n_classes, max_seq_len)

    log_prob, edge_norm = _forward_device(
        prep, gconst, U.astype(jnp.float32), umask.astype(jnp.float32),
        seq_lengths=tuple(int(l) for l in seq_lengths), dims=dims)

    edge_index = jnp.stack([jnp.asarray(meta['edge_src'], dtype=jnp.int32),
                            jnp.asarray(meta['edge_dst'], dtype=jnp.int32)],
                           axis=0)
    edge_type = jnp.asarray(meta['edge_types'], dtype=jnp.int32)
    return log_prob, edge_index, edge_norm, edge_type, meta['edge_index_lengths']


# ----------------------------------------------------------------------------
if __name__ == "__main__":
    D_m, D_e, graph_hidden = 16, 16, 32
    n_speakers, max_seq_len = 2, 8
    window_past, window_future = 2, 2
    n_classes = 7
    T, B = 8, 2
    seq_lengths = [8, 6]

    key = jax.random.PRNGKey(0)
    kU, kq, kp = jax.random.split(key, 3)

    U = jax.random.normal(kU, (T, B, D_m), jnp.float32)
    speakers = jax.random.randint(kq, (T, B), 0, n_speakers)
    qmask = jax.nn.one_hot(speakers, n_speakers, dtype=jnp.float32)  # (T, B, party)
    umask_np = np.zeros((B, T), np.float32)
    for j, l in enumerate(seq_lengths):
        umask_np[j, :l] = 1.0
    umask = jnp.asarray(umask_np)

    params = init_params(kp, D_m, D_e, graph_hidden, n_speakers,
                         max_seq_len, n_classes)

    log_prob, edge_index, edge_norm, edge_type, edge_index_lengths = \
        dialogue_gcn_forward(params, U, qmask, umask, seq_lengths,
                             window_past, window_future, n_speakers,
                             max_seq_len, D_e, graph_hidden, n_classes)

    jax.block_until_ready((log_prob, edge_norm, edge_index, edge_type))
    assert log_prob.shape == (sum(seq_lengths), n_classes)
    assert bool(jnp.all(jnp.isfinite(log_prob)))
    assert edge_index.shape[0] == 2
    assert edge_norm.shape[0] == edge_index.shape[1] == edge_type.shape[0]
    print("KERNEL_OK")
</pallas_src>

<mosaic_0001>
module attributes {stable_mosaic.version = 11 : i64} {
  func.func @_bilstm2_kernel(%arg0: i32, %arg1: memref<8x2x16xf32, #tpu.memory_space<vmem>>, %arg2: memref<64x128xf32, #tpu.memory_space<vmem>>, %arg3: memref<1x128xf32, #tpu.memory_space<vmem>>, %arg4: memref<96x128xf32, #tpu.memory_space<vmem>>, %arg5: memref<1x128xf32, #tpu.memory_space<vmem>>, %arg6: memref<8x2x32xf32, #tpu.memory_space<vmem>>, %arg7: memref<8x2x16xf32, #tpu.memory_space<vmem>>, %arg8: memref<8x2x16xf32, #tpu.memory_space<vmem>>, %arg9: memref<8x2x16xf32, #tpu.memory_space<vmem>>, %arg10: memref<8x2x16xf32, #tpu.memory_space<vmem>>, %arg11: memref<2x32xf32, #tpu.memory_space<vmem>>, %arg12: memref<2x32xf32, #tpu.memory_space<vmem>>) attributes {dimension_semantics = [#tpu.dimension_semantics<arbitrary>], iteration_bounds = array<i64: 1>, scalar_prefetch = 0 : i64, scratch_operands = 6 : i64, tpu.core_type = #tpu.core_type<tc>, window_params = [{pipeline_mode = #tpu.pipeline_mode<synchronous>, transform_indices = @transform_0, window_bounds = array<i64: 8, 2, 16>}, {pipeline_mode = #tpu.pipeline_mode<synchronous>, transform_indices = @transform_1, window_bounds = array<i64: 64, 128>}, {pipeline_mode = #tpu.pipeline_mode<synchronous>, transform_indices = @transform_2, window_bounds = array<i64: 1, 128>}, {pipeline_mode = #tpu.pipeline_mode<synchronous>, transform_indices = @transform_3, window_bounds = array<i64: 96, 128>}, {pipeline_mode = #tpu.pipeline_mode<synchronous>, transform_indices = @transform_4, window_bounds = array<i64: 1, 128>}, {pipeline_mode = #tpu.pipeline_mode<synchronous>, transform_indices = @transform_5, window_bounds = array<i64: 8, 2, 32>}]} {
    %cst = arith.constant 0.000000e+00 : f32
    %0 = vector.broadcast %cst : f32 to vector<2x32xf32>
    %c0 = arith.constant 0 : index
    %c0_0 = arith.constant 0 : index
    %1 = vector.load %arg11[%c0, %c0_0] : memref<2x32xf32, #tpu.memory_space<vmem>>, vector<2x32xf32>
    tpu.vector_store %arg11[%c0, %c0_0], %0 {strides = array<i32>} : memref<2x32xf32, #tpu.memory_space<vmem>>, vector<2x32xf32>,
    %cst_1 = arith.constant 0.000000e+00 : f32
    %2 = vector.broadcast %cst_1 : f32 to vector<2x32xf32>
    %c0_2 = arith.constant 0 : index
    %c0_3 = arith.constant 0 : index
    %3 = vector.load %arg12[%c0_2, %c0_3] : memref<2x32xf32, #tpu.memory_space<vmem>>, vector<2x32xf32>
    tpu.vector_store %arg12[%c0_2, %c0_3], %2 {strides = array<i32>} : memref<2x32xf32, #tpu.memory_space<vmem>>, vector<2x32xf32>,
    %c0_4 = arith.constant 0 : index
    %c0_5 = arith.constant 0 : index
    %c0_6 = arith.constant 0 : index
    %4 = vector.load %arg1[%c0_4, %c0_5, %c0_6] : memref<8x2x16xf32, #tpu.memory_space<vmem>>, vector<1x2x16xf32>
    %5 = vector.shape_cast %4 : vector<1x2x16xf32> to vector<2x16xf32>
    %c7 = arith.constant 7 : index
    %c0_7 = arith.constant 0 : index
    %c0_8 = arith.constant 0 : index
    %6 = vector.load %arg1[%c7, %c0_7, %c0_8] : memref<8x2x16xf32, #tpu.memory_space<vmem>>, vector<1x2x16xf32>
    %7 = vector.shape_cast %6 : vector<1x2x16xf32> to vector<2x16xf32>
    %c0_9 = arith.constant 0 : index
    %c0_10 = arith.constant 0 : index
    %8 = vector.load %arg11[%c0_9, %c0_10] : memref<2x32xf32, #tpu.memory_space<vmem>>, vector<2x32xf32>
    %9 = tpu.concatenate %5, %7, %8 in 1 : vector<2x16xf32>, vector<2x16xf32>, vector<2x32xf32> -> vector<2x64xf32>
    %c0_11 = arith.constant 0 : index
    %c0_12 = arith.constant 0 : index
    %10 = vector.load %arg2[%c0_11, %c0_12] : memref<64x128xf32, #tpu.memory_space<vmem>>, vector<64x128xf32>
    %cst_13 = arith.constant dense<0.000000e+00> : vector<2x128xf32>
    %11 = tpu.matmul %9, %10, %cst_13 {dimension_numbers = #tpu.dot_dimension_numbers<[1], [0], [0], [1], [0, 0, 1, 1], [], []>} : vector<2x64xf32>, vector<64x128xf32>, vector<2x128xf32> -> vector<2x128xf32>
    %c0_14 = arith.constant 0 : index
    %c0_15 = arith.constant 0 : index
    %12 = vector.load %arg3[%c0_14, %c0_15] : memref<1x128xf32, #tpu.memory_space<vmem>>, vector<1x128xf32>
    %13 = vector.broadcast %12 : vector<1x128xf32> to vector<2x128xf32>
    %14 = arith.addf %11, %13 : vector<2x128xf32>
    %15 = vector.extract_strided_slice %14 {offsets = [0, 0], sizes = [2, 32], strides = [1, 1]} : vector<2x128xf32> to vector<2x32xf32>
    %16 = arith.negf %15 : vector<2x32xf32>
    %17 = math.exp %16 : vector<2x32xf32>
    %cst_16 = arith.constant 1.000000e+00 : f32
    %18 = vector.broadcast %cst_16 : f32 to vector<2x32xf32>
    %19 = arith.addf %18, %17 : vector<2x32xf32>
    %20 = arith.divf %18, %19 : vector<2x32xf32>
    %21 = vector.extract_strided_slice %14 {offsets = [0, 32], sizes = [2, 32], strides = [1, 1]} : vector<2x128xf32> to vector<2x32xf32>
    %22 = arith.negf %21 : vector<2x32xf32>
    %23 = math.exp %22 : vector<2x32xf32>
    %cst_17 = arith.constant 1.000000e+00 : f32
    %24 = vector.broadcast %cst_17 : f32 to vector<2x32xf32>
    %25 = arith.addf %24, %23 : vector<2x32xf32>
    %26 = arith.divf %24, %25 : vector<2x32xf32>
    %27 = vector.extract_strided_slice %14 {offsets = [0, 64], sizes = [2, 32], strides = [1, 1]} : vector<2x128xf32> to vector<2x32xf32>
    %28 = math.tanh %27 : vector<2x32xf32>
    %29 = vector.extract_strided_slice %14 {offsets = [0, 96], sizes = [2, 32], strides = [1, 1]} : vector<2x128xf32> to vector<2x32xf32>
    %30 = arith.negf %29 : vector<2x32xf32>
    %31 = math.exp %30 : vector<2x32xf32>
    %cst_18 = arith.constant 1.000000e+00 : f32
    %32 = vector.broadcast %cst_18 : f32 to vector<2x32xf32>
    %33 = arith.addf %32, %31 : vector<2x32xf32>
    %34 = arith.divf %32, %33 : vector<2x32xf32>
    %c0_19 = arith.constant 0 : index
    %c0_20 = arith.constant 0 : index
    %35 = vector.load %arg12[%c0_19, %c0_20] : memref<2x32xf32, #tpu.memory_space<vmem>>, vector<2x32xf32>
    %36 = arith.mulf %26, %35 : vector<2x32xf32>
    %37 = arith.mulf %20, %28 : vector<2x32xf32>
    %38 = arith.addf %36, %37 : vector<2x32xf32>
    %39 = math.tanh %38 : vector<2x32xf32>
    %40 = arith.mulf %34, %39 : vector<2x32xf32>
    %c0_21 = arith.constant 0 : index
    %c0_22 = arith.constant 0 : index
    %41 = vector.load %arg12[%c0_21, %c0_22] : memref<2x32xf32, #tpu.memory_space<vmem>>, vector<2x32xf32>
    tpu.vector_store %arg12[%c0_21, %c0_22], %38 {strides = array<i32>} : memref<2x32xf32, #tpu.memory_space<vmem>>, vector<2x32xf32>,
    %c0_23 = arith.constant 0 : index
    %c0_24 = arith.constant 0 : index
    %42 = vector.load %arg11[%c0_23, %c0_24] : memref<2x32xf32, #tpu.memory_space<vmem>>, vector<2x32xf32>
    tpu.vector_store %arg11[%c0_23, %c0_24], %40 {strides = array<i32>} : memref<2x32xf32, #tpu.memory_space<vmem>>, vector<2x32xf32>,
    %43 = vector.extract_strided_slice %40 {offsets = [0, 0], sizes = [2, 16], strides = [1, 1]} : vector<2x32xf32> to vector<2x16xf32>
    %c0_25 = arith.constant 0 : index
    %c0_26 = arith.constant 0 : index
    %c0_27 = arith.constant 0 : index
    %44 = vector.load %arg7[%c0_25, %c0_26, %c0_27] : memref<8x2x16xf32, #tpu.memory_space<vmem>>, vector<1x2x16xf32>
    %45 = vector.shape_cast %44 : vector<1x2x16xf32> to vector<2x16xf32>
    %46 = vector.shape_cast %43 : vector<2x16xf32> to vector<1x2x16xf32>
    tpu.vector_store %arg7[%c0_25, %c0_26, %c0_27], %46 {strides = array<i32>} : memref<8x2x16xf32, #tpu.memory_space<vmem>>, vector<1x2x16xf32>,
    %47 = vector.extract_strided_slice %40 {offsets = [0, 16], sizes = [2, 16], strides = [1, 1]} : vector<2x32xf32> to vector<2x16xf32>
    %c7_28 = arith.constant 7 : index
    %c0_29 = arith.constant 0 : index
    %c0_30 = arith.constant 0 : index
    %48 = vector.load %arg8[%c7_28, %c0_29, %c0_30] : memref<8x2x16xf32, #tpu.memory_space<vmem>>, vector<1x2x16xf32>
    %49 = vector.shape_cast %48 : vector<1x2x16xf32> to vector<2x16xf32>
    %50 = vector.shape_cast %47 : vector<2x16xf32> to vector<1x2x16xf32>
    tpu.vector_store %arg8[%c7_28, %c0_29, %c0_30], %50 {strides = array<i32>} : memref<8x2x16xf32, #tpu.memory_space<vmem>>, vector<1x2x16xf32>,
    %c1 = arith.constant 1 : index
    %c0_31 = arith.constant 0 : index
    %c0_32 = arith.constant 0 : index
    %51 = vector.load %arg1[%c1, %c0_31, %c0_32] : memref<8x2x16xf32, #tpu.memory_space<vmem>>, vector<1x2x16xf32>
    %52 = vector.shape_cast %51 : vector<1x2x16xf32> to vector<2x16xf32>
    %c6 = arith.constant 6 : index
    %c0_33 = arith.constant 0 : index
    %c0_34 = arith.constant 0 : index
    %53 = vector.load %arg1[%c6, %c0_33, %c0_34] : memref<8x2x16xf32, #tpu.memory_space<vmem>>, vector<1x2x16xf32>
    %54 = vector.shape_cast %53 : vector<1x2x16xf32> to vector<2x16xf32>
    %c0_35 = arith.constant 0 : index
    %c0_36 = arith.constant 0 : index
    %55 = vector.load %arg11[%c0_35, %c0_36] : memref<2x32xf32, #tpu.memory_space<vmem>>, vector<2x32xf32>
    %56 = tpu.concatenate %52, %54, %55 in 1 : vector<2x16xf32>, vector<2x16xf32>, vector<2x32xf32> -> vector<2x64xf32>
    %c0_37 = arith.constant 0 : index
    %c0_38 = arith.constant 0 : index
    %57 = vector.load %arg2[%c0_37, %c0_38] : memref<64x128xf32, #tpu.memory_space<vmem>>, vector<64x128xf32>
    %cst_39 = arith.constant dense<0.000000e+00> : vector<2x128xf32>
    %58 = tpu.matmul %56, %57, %cst_39 {dimension_numbers = #tpu.dot_dimension_numbers<[1], [0], [0], [1], [0, 0, 1, 1], [], []>} : vector<2x64xf32>, vector<64x128xf32>, vector<2x128xf32> -> vector<2x128xf32>
    %c0_40 = arith.constant 0 : index
    %c0_41 = arith.constant 0 : index
    %59 = vector.load %arg3[%c0_40, %c0_41] : memref<1x128xf32, #tpu.memory_space<vmem>>, vector<1x128xf32>
    %60 = vector.broadcast %59 : vector<1x128xf32> to vector<2x128xf32>
    %61 = arith.addf %58, %60 : vector<2x128xf32>
    %62 = vector.extract_strided_slice %61 {offsets = [0, 0], sizes = [2, 32], strides = [1, 1]} : vector<2x128xf32> to vector<2x32xf32>
    %63 = arith.negf %62 : vector<2x32xf32>
    %64 = math.exp %63 : vector<2x32xf32>
    %cst_42 = arith.constant 1.000000e+00 : f32
    %65 = vector.broadcast %cst_42 : f32 to vector<2x32xf32>
    %66 = arith.addf %65, %64 : vector<2x32xf32>
    %67 = arith.divf %65, %66 : vector<2x32xf32>
    %68 = vector.extract_strided_slice %61 {offsets = [0, 32], sizes = [2, 32], strides = [1, 1]} : vector<2x128xf32> to vector<2x32xf32>
    %69 = arith.negf %68 : vector<2x32xf32>
    %70 = math.exp %69 : vector<2x32xf32>
    %cst_43 = arith.constant 1.000000e+00 : f32
    %71 = vector.broadcast %cst_43 : f32 to vector<2x32xf32>
    %72 = arith.addf %71, %70 : vector<2x32xf32>
    %73 = arith.divf %71, %72 : vector<2x32xf32>
    %74 = vector.extract_strided_slice %61 {offsets = [0, 64], sizes = [2, 32], strides = [1, 1]} : vector<2x128xf32> to vector<2x32xf32>
    %75 = math.tanh %74 : vector<2x32xf32>
    %76 = vector.extract_strided_slice %61 {offsets = [0, 96], sizes = [2, 32], strides = [1, 1]} : vector<2x128xf32> to vector<2x32xf32>
    %77 = arith.negf %76 : vector<2x32xf32>
    %78 = math.exp %77 : vector<2x32xf32>
    %cst_44 = arith.constant 1.000000e+00 : f32
    %79 = vector.broadcast %cst_44 : f32 to vector<2x32xf32>
    %80 = arith.addf %79, %78 : vector<2x32xf32>
    %81 = arith.divf %79, %80 : vector<2x32xf32>
    %c0_45 = arith.constant 0 : index
    %c0_46 = arith.constant 0 : index
    %82 = vector.load %arg12[%c0_45, %c0_46] : memref<2x32xf32, #tpu.memory_space<vmem>>, vector<2x32xf32>
    %83 = arith.mulf %73, %82 : vector<2x32xf32>
    %84 = arith.mulf %67, %75 : vector<2x32xf32>
    %85 = arith.addf %83, %84 : vector<2x32xf32>
    %86 = math.tanh %85 : vector<2x32xf32>
    %87 = arith.mulf %81, %86 : vector<2x32xf32>
    %c0_47 = arith.constant 0 : index
    %c0_48 = arith.constant 0 : index
    %88 = vector.load %arg12[%c0_47, %c0_48] : memref<2x32xf32, #tpu.memory_space<vmem>>, vector<2x32xf32>
    tpu.vector_store %arg12[%c0_47, %c0_48], %85 {strides = array<i32>} : memref<2x32xf32, #tpu.memory_space<vmem>>, vector<2x32xf32>,
    %c0_49 = arith.constant 0 : index
    %c0_50 = arith.constant 0 : index
    %89 = vector.load %arg11[%c0_49, %c0_50] : memref<2x32xf32, #tpu.memory_space<vmem>>, vector<2x32xf32>
    tpu.vector_store %arg11[%c0_49, %c0_50], %87 {strides = array<i32>} : memref<2x32xf32, #tpu.memory_space<vmem>>, vector<2x32xf32>,
    %90 = vector.extract_strided_slice %87 {offsets = [0, 0], sizes = [2, 16], strides = [1, 1]} : vector<2x32xf32> to vector<2x16xf32>
    %c1_51 = arith.constant 1 : index
    %c0_52 = arith.constant 0 : index
    %c0_53 = arith.constant 0 : index
    %91 = vector.load %arg7[%c1_51, %c0_52, %c0_53] : memref<8x2x16xf32, #tpu.memory_space<vmem>>, vector<1x2x16xf32>
    %92 = vector.shape_cast %91 : vector<1x2x16xf32> to vector<2x16xf32>
    %93 = vector.shape_cast %90 : vector<2x16xf32> to vector<1x2x16xf32>
    tpu.vector_store %arg7[%c1_51, %c0_52, %c0_53], %93 {strides = array<i32>} : memref<8x2x16xf32, #tpu.memory_space<vmem>>, vector<1x2x16xf32>,
    %94 = vector.extract_strided_slice %87 {offsets = [0, 16], sizes = [2, 16], strides = [1, 1]} : vector<2x32xf32> to vector<2x16xf32>
    %c6_54 = arith.constant 6 : index
    %c0_55 = arith.constant 0 : index
    %c0_56 = arith.constant 0 : index
    %95 = vector.load %arg8[%c6_54, %c0_55, %c0_56] : memref<8x2x16xf32, #tpu.memory_space<vmem>>, vector<1x2x16xf32>
    %96 = vector.shape_cast %95 : vector<1x2x16xf32> to vector<2x16xf32>
    %97 = vector.shape_cast %94 : vector<2x16xf32> to vector<1x2x16xf32>
    tpu.vector_store %arg8[%c6_54, %c0_55, %c0_56], %97 {strides = array<i32>} : memref<8x2x16xf32, #tpu.memory_space<vmem>>, vector<1x2x16xf32>,
    %c2 = arith.constant 2 : index
    %c0_57 = arith.constant 0 : index
    %c0_58 = arith.constant 0 : index
    %98 = vector.load %arg1[%c2, %c0_57, %c0_58] : memref<8x2x16xf32, #tpu.memory_space<vmem>>, vector<1x2x16xf32>
    %99 = vector.shape_cast %98 : vector<1x2x16xf32> to vector<2x16xf32>
    %c5 = arith.constant 5 : index
    %c0_59 = arith.constant 0 : index
    %c0_60 = arith.constant 0 : index
    %100 = vector.load %arg1[%c5, %c0_59, %c0_60] : memref<8x2x16xf32, #tpu.memory_space<vmem>>, vector<1x2x16xf32>
    %101 = vector.shape_cast %100 : vector<1x2x16xf32> to vector<2x16xf32>
    %c0_61 = arith.constant 0 : index
    %c0_62 = arith.constant 0 : index
    %102 = vector.load %arg11[%c0_61, %c0_62] : memref<2x32xf32, #tpu.memory_space<vmem>>, vector<2x32xf32>
    %103 = tpu.concatenate %99, %101, %102 in 1 : vector<2x16xf32>, vector<2x16xf32>, vector<2x32xf32> -> vector<2x64xf32>
    %c0_63 = arith.constant 0 : index
    %c0_64 = arith.constant 0 : index
    %104 = vector.load %arg2[%c0_63, %c0_64] : memref<64x128xf32, #tpu.memory_space<vmem>>, vector<64x128xf32>
    %cst_65 = arith.constant dense<0.000000e+00> : vector<2x128xf32>
    %105 = tpu.matmul %103, %104, %cst_65 {dimension_numbers = #tpu.dot_dimension_numbers<[1], [0], [0], [1], [0, 0, 1, 1], [], []>} : vector<2x64xf32>, vector<64x128xf32>, vector<2x128xf32> -> vector<2x128xf32>
    %c0_66 = arith.constant 0 : index
    %c0_67 = arith.constant 0 : index
    %106 = vector.load %arg3[%c0_66, %c0_67] : memref<1x128xf32, #tpu.memory_space<vmem>>, vector<1x128xf32>
    %107 = vector.broadcast %106 : vector<1x128xf32> to vector<2x128xf32>
    %108 = arith.addf %105, %107 : vector<2x128xf32>
    %109 = vector.extract_strided_slice %108 {offsets = [0, 0], sizes = [2, 32], strides = [1, 1]} : vector<2x128xf32> to vector<2x32xf32>
    %110 = arith.negf %109 : vector<2x32xf32>
    %111 = math.exp %110 : vector<2x32xf32>
    %cst_68 = arith.constant 1.000000e+00 : f32
    %112 = vector.broadcast %cst_68 : f32 to vector<2x32xf32>
    %113 = arith.addf %112, %111 : vector<2x32xf32>
    %114 = arith.divf %112, %113 : vector<2x32xf32>
    %115 = vector.extract_strided_slice %108 {offsets = [0, 32], sizes = [2, 32], strides = [1, 1]} : vector<2x128xf32> to vector<2x32xf32>
    %116 = arith.negf %115 : vector<2x32xf32>
    %117 = math.exp %116 : vector<2x32xf32>
    %cst_69 = arith.constant 1.000000e+00 : f32
    %118 = vector.broadcast %cst_69 : f32 to vector<2x32xf32>
    %119 = arith.addf %118, %117 : vector<2x32xf32>
    %120 = arith.divf %118, %119 : vector<2x32xf32>
    %121 = vector.extract_strided_slice %108 {offsets = [0, 64], sizes = [2, 32], strides = [1, 1]} : vector<2x128xf32> to vector<2x32xf32>
    %122 = math.tanh %121 : vector<2x32xf32>
    %123 = vector.extract_strided_slice %108 {offsets = [0, 96], sizes = [2, 32], strides = [1, 1]} : vector<2x128xf32> to vector<2x32xf32>
    %124 = arith.negf %123 : vector<2x32xf32>
    %125 = math.exp %124 : vector<2x32xf32>
    %cst_70 = arith.constant 1.000000e+00 : f32
    %126 = vector.broadcast %cst_70 : f32 to vector<2x32xf32>
    %127 = arith.addf %126, %125 : vector<2x32xf32>
    %128 = arith.divf %126, %127 : vector<2x32xf32>
    %c0_71 = arith.constant 0 : index
    %c0_72 = arith.constant 0 : index
    %129 = vector.load %arg12[%c0_71, %c0_72] : memref<2x32xf32, #tpu.memory_space<vmem>>, vector<2x32xf32>
    %130 = arith.mulf %120, %129 : vector<2x32xf32>
    %131 = arith.mulf %114, %122 : vector<2x32xf32>
    %132 = arith.addf %130, %131 : vector<2x32xf32>
    %133 = math.tanh %132 : vector<2x32xf32>
    %134 = arith.mulf %128, %133 : vector<2x32xf32>
    %c0_73 = arith.constant 0 : index
    %c0_74 = arith.constant 0 : index
    %135 = vector.load %arg12[%c0_73, %c0_74] : memref<2x32xf32, #tpu.memory_space<vmem>>, vector<2x32xf32>
    tpu.vector_store %arg12[%c0_73, %c0_74], %132 {strides = array<i32>} : memref<2x32xf32, #tpu.memory_space<vmem>>, vector<2x32xf32>,
    %c0_75 = arith.constant 0 : index
    %c0_76 = arith.constant 0 : index
    %136 = vector.load %arg11[%c0_75, %c0_76] : memref<2x32xf32, #tpu.memory_space<vmem>>, vector<2x32xf32>
    tpu.vector_store %arg11[%c0_75, %c0_76], %134 {strides = array<i32>} : memref<2x32xf32, #tpu.memory_space<vmem>>, vector<2x32xf32>,
    %137 = vector.extract_strided_slice %134 {offsets = [0, 0], sizes = [2, 16], strides = [1, 1]} : vector<2x32xf32> to vector<2x16xf32>
    %c2_77 = arith.constant 2 : index
    %c0_78 = arith.constant 0 : index
    %c0_79 = arith.constant 0 : index
    %138 = vector.load %arg7[%c2_77, %c0_78, %c0_79] : memref<8x2x16xf32, #tpu.memory_space<vmem>>, vector<1x2x16xf32>
    %139 = vector.shape_cast %138 : vector<1x2x16xf32> to vector<2x16xf32>
    %140 = vector.shape_cast %137 : vector<2x16xf32> to vector<1x2x16xf32>
    tpu.vector_store %arg7[%c2_77, %c0_78, %c0_79], %140 {strides = array<i32>} : memref<8x2x16xf32, #tpu.memory_space<vmem>>, vector<1x2x16xf32>,
    %141 = vector.extract_strided_slice %134 {offsets = [0, 16], sizes = [2, 16], strides = [1, 1]} : vector<2x32xf32> to vector<2x16xf32>
    %c5_80 = arith.constant 5 : index
    %c0_81 = arith.constant 0 : index
    %c0_82 = arith.constant 0 : index
    %142 = vector.load %arg8[%c5_80, %c0_81, %c0_82] : memref<8x2x16xf32, #tpu.memory_space<vmem>>, vector<1x2x16xf32>
    %143 = vector.shape_cast %142 : vector<1x2x16xf32> to vector<2x16xf32>
    %144 = vector.shape_cast %141 : vector<2x16xf32> to vector<1x2x16xf32>
    tpu.vector_store %arg8[%c5_80, %c0_81, %c0_82], %144 {strides = array<i32>} : memref<8x2x16xf32, #tpu.memory_space<vmem>>, vector<1x2x16xf32>,
    %c3 = arith.constant 3 : index
    %c0_83 = arith.constant 0 : index
    %c0_84 = arith.constant 0 : index
    %145 = vector.load %arg1[%c3, %c0_83, %c0_84] : memref<8x2x16xf32, #tpu.memory_space<vmem>>, vector<1x2x16xf32>
    %146 = vector.shape_cast %145 : vector<1x2x16xf32> to vector<2x16xf32>
    %c4 = arith.constant 4 : index
    %c0_85 = arith.constant 0 : index
    %c0_86 = arith.constant 0 : index
    %147 = vector.load %arg1[%c4, %c0_85, %c0_86] : memref<8x2x16xf32, #tpu.memory_space<vmem>>, vector<1x2x16xf32>
    %148 = vector.shape_cast %147 : vector<1x2x16xf32> to vector<2x16xf32>
    %c0_87 = arith.constant 0 : index
    %c0_88 = arith.constant 0 : index
    %149 = vector.load %arg11[%c0_87, %c0_88] : memref<2x32xf32, #tpu.memory_space<vmem>>, vector<2x32xf32>
    %150 = tpu.concatenate %146, %148, %149 in 1 : vector<2x16xf32>, vector<2x16xf32>, vector<2x32xf32> -> vector<2x64xf32>
    %c0_89 = arith.constant 0 : index
    %c0_90 = arith.constant 0 : index
    %151 = vector.load %arg2[%c0_89, %c0_90] : memref<64x128xf32, #tpu.memory_space<vmem>>, vector<64x128xf32>
    %cst_91 = arith.constant dense<0.000000e+00> : vector<2x128xf32>
    %152 = tpu.matmul %150, %151, %cst_91 {dimension_numbers = #tpu.dot_dimension_numbers<[1], [0], [0], [1], [0, 0, 1, 1], [], []>} : vector<2x64xf32>, vector<64x128xf32>, vector<2x128xf32> -> vector<2x128xf32>
    %c0_92 = arith.constant 0 : index
    %c0_93 = arith.constant 0 : index
    %153 = vector.load %arg3[%c0_92, %c0_93] : memref<1x128xf32, #tpu.memory_space<vmem>>, vector<1x128xf32>
    %154 = vector.broadcast %153 : vector<1x128xf32> to vector<2x128xf32>
    %155 = arith.addf %152, %154 : vector<2x128xf32>
    %156 = vector.extract_strided_slice %155 {offsets = [0, 0], sizes = [2, 32], strides = [1, 1]} : vector<2x128xf32> to vector<2x32xf32>
    %157 = arith.negf %156 : vector<2x32xf32>
    %158 = math.exp %157 : vector<2x32xf32>
    %cst_94 = arith.constant 1.000000e+00 : f32
    %159 = vector.broadcast %cst_94 : f32 to vector<2x32xf32>
    %160 = arith.addf %159, %158 : vector<2x32xf32>
    %161 = arith.divf %159, %160 : vector<2x32xf32>
    %162 = vector.extract_strided_slice %155 {offsets = [0, 32], sizes = [2, 32], strides = [1, 1]} : vector<2x128xf32> to vector<2x32xf32>
    %163 = arith.negf %162 : vector<2x32xf32>
    %164 = math.exp %163 : vector<2x32xf32>
    %cst_95 = arith.constant 1.000000e+00 : f32
    %165 = vector.broadcast %cst_95 : f32 to vector<2x32xf32>
    %166 = arith.addf %165, %164 : vector<2x32xf32>
    %167 = arith.divf %165, %166 : vector<2x32xf32>
    %168 = vector.extract_strided_slice %155 {offsets = [0, 64], sizes = [2, 32], strides = [1, 1]} : vector<2x128xf32> to vector<2x32xf32>
    %169 = math.tanh %168 : vector<2x32xf32>
    %170 = vector.extract_strided_slice %155 {offsets = [0, 96], sizes = [2, 32], strides = [1, 1]} : vector<2x128xf32> to vector<2x32xf32>
    %171 = arith.negf %170 : vector<2x32xf32>
    %172 = math.exp %171 : vector<2x32xf32>
    %cst_96 = arith.constant 1.000000e+00 : f32
    %173 = vector.broadcast %cst_96 : f32 to vector<2x32xf32>
    %174 = arith.addf %173, %172 : vector<2x32xf32>
    %175 = arith.divf %173, %174 : vector<2x32xf32>
    %c0_97 = arith.constant 0 : index
    %c0_98 = arith.constant 0 : index
    %176 = vector.load %arg12[%c0_97, %c0_98] : memref<2x32xf32, #tpu.memory_space<vmem>>, vector<2x32xf32>
    %177 = arith.mulf %167, %176 : vector<2x32xf32>
    %178 = arith.mulf %161, %169 : vector<2x32xf32>
    %179 = arith.addf %177, %178 : vector<2x32xf32>
    %180 = math.tanh %179 : vector<2x32xf32>
    %181 = arith.mulf %175, %180 : vector<2x32xf32>
    %c0_99 = arith.constant 0 : index
    %c0_100 = arith.constant 0 : index
    %182 = vector.load %arg12[%c0_99, %c0_100] : memref<2x32xf32, #tpu.memory_space<vmem>>, vector<2x32xf32>
    tpu.vector_store %arg12[%c0_99, %c0_100], %179 {strides = array<i32>} : memref<2x32xf32, #tpu.memory_space<vmem>>, vector<2x32xf32>,
    %c0_101 = arith.constant 0 : index
    %c0_102 = arith.constant 0 : index
    %183 = vector.load %arg11[%c0_101, %c0_102] : memref<2x32xf32, #tpu.memory_space<vmem>>, vector<2x32xf32>
    tpu.vector_store %arg11[%c0_101, %c0_102], %181 {strides = array<i32>} : memref<2x32xf32, #tpu.memory_space<vmem>>, vector<2x32xf32>,
    %184 = vector.extract_strided_slice %181 {offsets = [0, 0], sizes = [2, 16], strides = [1, 1]} : vector<2x32xf32> to vector<2x16xf32>
    %c3_103 = arith.constant 3 : index
    %c0_104 = arith.constant 0 : index
    %c0_105 = arith.constant 0 : index
    %185 = vector.load %arg7[%c3_103, %c0_104, %c0_105] : memref<8x2x16xf32, #tpu.memory_space<vmem>>, vector<1x2x16xf32>
    %186 = vector.shape_cast %185 : vector<1x2x16xf32> to vector<2x16xf32>
    %187 = vector.shape_cast %184 : vector<2x16xf32> to vector<1x2x16xf32>
    tpu.vector_store %arg7[%c3_103, %c0_104, %c0_105], %187 {strides = array<i32>} : memref<8x2x16xf32, #tpu.memory_space<vmem>>, vector<1x2x16xf32>,
    %188 = vector.extract_strided_slice %181 {offsets = [0, 16], sizes = [2, 16], strides = [1, 1]} : vector<2x32xf32> to vector<2x16xf32>
    %c4_106 = arith.constant 4 : index
    %c0_107 = arith.constant 0 : index
    %c0_108 = arith.constant 0 : index
    %189 = vector.load %arg8[%c4_106, %c0_107, %c0_108] : memref<8x2x16xf32, #tpu.memory_space<vmem>>, vector<1x2x16xf32>
    %190 = vector.shape_cast %189 : vector<1x2x16xf32> to vector<2x16xf32>
    %191 = vector.shape_cast %188 : vector<2x16xf32> to vector<1x2x16xf32>
    tpu.vector_store %arg8[%c4_106, %c0_107, %c0_108], %191 {strides = array<i32>} : memref<8x2x16xf32, #tpu.memory_space<vmem>>, vector<1x2x16xf32>,
    %c4_109 = arith.constant 4 : index
    %c0_110 = arith.constant 0 : index
    %c0_111 = arith.constant 0 : index
    %192 = vector.load %arg1[%c4_109, %c0_110, %c0_111] : memref<8x2x16xf32, #tpu.memory_space<vmem>>, vector<1x2x16xf32>
    %193 = vector.shape_cast %192 : vector<1x2x16xf32> to vector<2x16xf32>
    %c3_112 = arith.constant 3 : index
    %c0_113 = arith.constant 0 : index
    %c0_114 = arith.constant 0 : index
    %194 = vector.load %arg1[%c3_112, %c0_113, %c0_114] : memref<8x2x16xf32, #tpu.memory_space<vmem>>, vector<1x2x16xf32>
    %195 = vector.shape_cast %194 : vector<1x2x16xf32> to vector<2x16xf32>
    %c0_115 = arith.constant 0 : index
    %c0_116 = arith.constant 0 : index
    %196 = vector.load %arg11[%c0_115, %c0_116] : memref<2x32xf32, #tpu.memory_space<vmem>>, vector<2x32xf32>
    %197 = tpu.concatenate %193, %195, %196 in 1 : vector<2x16xf32>, vector<2x16xf32>, vector<2x32xf32> -> vector<2x64xf32>
    %c0_117 = arith.constant 0 : index
    %c0_118 = arith.constant 0 : index
    %198 = vector.load %arg2[%c0_117, %c0_118] : memref<64x128xf32, #tpu.memory_space<vmem>>, vector<64x128xf32>
    %cst_119 = arith.constant dense<0.000000e+00> : vector<2x128xf32>
    %199 = tpu.matmul %197, %198, %cst_119 {dimension_numbers = #tpu.dot_dimension_numbers<[1], [0], [0], [1], [0, 0, 1, 1], [], []>} : vector<2x64xf32>, vector<64x128xf32>, vector<2x128xf32> -> vector<2x128xf32>
    %c0_120 = arith.constant 0 : index
    %c0_121 = arith.constant 0 : index
    %200 = vector.load %arg3[%c0_120, %c0_121] : memref<1x128xf32, #tpu.memory_space<vmem>>, vector<1x128xf32>
    %201 = vector.broadcast %200 : vector<1x128xf32> to vector<2x128xf32>
    %202 = arith.addf %199, %201 : vector<2x128xf32>
    %203 = vector.extract_strided_slice %202 {offsets = [0, 0], sizes = [2, 32], strides = [1, 1]} : vector<2x128xf32> to vector<2x32xf32>
    %204 = arith.negf %203 : vector<2x32xf32>
    %205 = math.exp %204 : vector<2x32xf32>
    %cst_122 = arith.constant 1.000000e+00 : f32
    %206 = vector.broadcast %cst_122 : f32 to vector<2x32xf32>
    %207 = arith.addf %206, %205 : vector<2x32xf32>
    %208 = arith.divf %206, %207 : vector<2x32xf32>
    %209 = vector.extract_strided_slice %202 {offsets = [0, 32], sizes = [2, 32], strides = [1, 1]} : vector<2x128xf32> to vector<2x32xf32>
    %210 = arith.negf %209 : vector<2x32xf32>
    %211 = math.exp %210 : vector<2x32xf32>
    %cst_123 = arith.constant 1.000000e+00 : f32
    %212 = vector.broadcast %cst_123 : f32 to vector<2x32xf32>
    %213 = arith.addf %212, %211 : vector<2x32xf32>
    %214 = arith.divf %212, %213 : vector<2x32xf32>
    %215 = vector.extract_strided_slice %202 {offsets = [0, 64], sizes = [2, 32], strides = [1, 1]} : vector<2x128xf32> to vector<2x32xf32>
    %216 = math.tanh %215 : vector<2x32xf32>
    %217 = vector.extract_strided_slice %202 {offsets = [0, 96], sizes = [2, 32], strides = [1, 1]} : vector<2x128xf32> to vector<2x32xf32>
    %218 = arith.negf %217 : vector<2x32xf32>
    %219 = math.exp %218 : vector<2x32xf32>
    %cst_124 = arith.constant 1.000000e+00 : f32
    %220 = vector.broadcast %cst_124 : f32 to vector<2x32xf32>
    %221 = arith.addf %220, %219 : vector<2x32xf32>
    %222 = arith.divf %220, %221 : vector<2x32xf32>
    %c0_125 = arith.constant 0 : index
    %c0_126 = arith.constant 0 : index
    %223 = vector.load %arg12[%c0_125, %c0_126] : memref<2x32xf32, #tpu.memory_space<vmem>>, vector<2x32xf32>
    %224 = arith.mulf %214, %223 : vector<2x32xf32>
    %225 = arith.mulf %208, %216 : vector<2x32xf32>
    %226 = arith.addf %224, %225 : vector<2x32xf32>
    %227 = math.tanh %226 : vector<2x32xf32>
    %228 = arith.mulf %222, %227 : vector<2x32xf32>
    %c0_127 = arith.constant 0 : index
    %c0_128 = arith.constant 0 : index
    %229 = vector.load %arg12[%c0_127, %c0_128] : memref<2x32xf32, #tpu.memory_space<vmem>>, vector<2x32xf32>
    tpu.vector_store %arg12[%c0_127, %c0_128], %226 {strides = array<i32>} : memref<2x32xf32, #tpu.memory_space<vmem>>, vector<2x32xf32>,
    %c0_129 = arith.constant 0 : index
    %c0_130 = arith.constant 0 : index
    %230 = vector.load %arg11[%c0_129, %c0_130] : memref<2x32xf32, #tpu.memory_space<vmem>>, vector<2x32xf32>
    tpu.vector_store %arg11[%c0_129, %c0_130], %228 {strides = array<i32>} : memref<2x32xf32, #tpu.memory_space<vmem>>, vector<2x32xf32>,
    %231 = vector.extract_strided_slice %228 {offsets = [0, 0], sizes = [2, 16], strides = [1, 1]} : vector<2x32xf32> to vector<2x16xf32>
    %c4_131 = arith.constant 4 : index
    %c0_132 = arith.constant 0 : index
    %c0_133 = arith.constant 0 : index
    %232 = vector.load %arg7[%c4_131, %c0_132, %c0_133] : memref<8x2x16xf32, #tpu.memory_space<vmem>>, vector<1x2x16xf32>
    %233 = vector.shape_cast %232 : vector<1x2x16xf32> to vector<2x16xf32>
    %234 = vector.shape_cast %231 : vector<2x16xf32> to vector<1x2x16xf32>
    tpu.vector_store %arg7[%c4_131, %c0_132, %c0_133], %234 {strides = array<i32>} : memref<8x2x16xf32, #tpu.memory_space<vmem>>, vector<1x2x16xf32>,
    %235 = vector.extract_strided_slice %228 {offsets = [0, 16], sizes = [2, 16], strides = [1, 1]} : vector<2x32xf32> to vector<2x16xf32>
    %c3_134 = arith.constant 3 : index
    %c0_135 = arith.constant 0 : index
    %c0_136 = arith.constant 0 : index
    %236 = vector.load %arg8[%c3_134, %c0_135, %c0_136] : memref<8x2x16xf32, #tpu.memory_space<vmem>>, vector<1x2x16xf32>
    %237 = vector.shape_cast %236 : vector<1x2x16xf32> to vector<2x16xf32>
    %238 = vector.shape_cast %235 : vector<2x16xf32> to vector<1x2x16xf32>
    tpu.vector_store %arg8[%c3_134, %c0_135, %c0_136], %238 {strides = array<i32>} : memref<8x2x16xf32, #tpu.memory_space<vmem>>, vector<1x2x16xf32>,
    %c5_137 = arith.constant 5 : index
    %c0_138 = arith.constant 0 : index
    %c0_139 = arith.constant 0 : index
    %239 = vector.load %arg1[%c5_137, %c0_138, %c0_139] : memref<8x2x16xf32, #tpu.memory_space<vmem>>, vector<1x2x16xf32>
    %240 = vector.shape_cast %239 : vector<1x2x16xf32> to vector<2x16xf32>
    %c2_140 = arith.constant 2 : index
    %c0_141 = arith.constant 0 : index
    %c0_142 = arith.constant 0 : index
    %241 = vector.load %arg1[%c2_140, %c0_141, %c0_142] : memref<8x2x16xf32, #tpu.memory_space<vmem>>, vector<1x2x16xf32>
    %242 = vector.shape_cast %241 : vector<1x2x16xf32> to vector<2x16xf32>
    %c0_143 = arith.constant 0 : index
    %c0_144 = arith.constant 0 : index
    %243 = vector.load %arg11[%c0_143, %c0_144] : memref<2x32xf32, #tpu.memory_space<vmem>>, vector<2x32xf32>
    %244 = tpu.concatenate %240, %242, %243 in 1 : vector<2x16xf32>, vector<2x16xf32>, vector<2x32xf32> -> vector<2x64xf32>
    %c0_145 = arith.constant 0 : index
    %c0_146 = arith.constant 0 : index
    %245 = vector.load %arg2[%c0_145, %c0_146] : memref<64x128xf32, #tpu.memory_space<vmem>>, vector<64x128xf32>
    %cst_147 = arith.constant dense<0.000000e+00> : vector<2x128xf32>
    %246 = tpu.matmul %244, %245, %cst_147 {dimension_numbers = #tpu.dot_dimension_numbers<[1], [0], [0], [1], [0, 0, 1, 1], [], []>} : vector<2x64xf32>, vector<64x128xf32>, vector<2x128xf32> -> vector<2x128xf32>
    %c0_148 = arith.constant 0 : index
    %c0_149 = arith.constant 0 : index
    %247 = vector.load %arg3[%c0_148, %c0_149] : memref<1x128xf32, #tpu.memory_space<vmem>>, vector<1x128xf32>
    %248 = vector.broadcast %247 : vector<1x128xf32> to vector<2x128xf32>
    %249 = arith.addf %246, %248 : vector<2x128xf32>
    %250 = vector.extract_strided_slice %249 {offsets = [0, 0], sizes = [2, 32], strides = [1, 1]} : vector<2x128xf32> to vector<2x32xf32>
    %251 = arith.negf %250 : vector<2x32xf32>
    %252 = math.exp %251 : vector<2x32xf32>
    %cst_150 = arith.constant 1.000000e+00 : f32
    %253 = vector.broadcast %cst_150 : f32 to vector<2x32xf32>
    %254 = arith.addf %253, %252 : vector<2x32xf32>
    %255 = arith.divf %253, %254 : vector<2x32xf32>
    %256 = vector.extract_strided_slice %249 {offsets = [0, 32], sizes = [2, 32], strides = [1, 1]} : vector<2x128xf32> to vector<2x32xf32>
    %257 = arith.negf %256 : vector<2x32xf32>
    %258 = math.exp %257 : vector<2x32xf32>
    %cst_151 = arith.constant 1.000000e+00 : f32
    %259 = vector.broadcast %cst_151 : f32 to vector<2x32xf32>
    %260 = arith.addf %259, %258 : vector<2x32xf32>
    %261 = arith.divf %259, %260 : vector<2x32xf32>
    %262 = vector.extract_strided_slice %249 {offsets = [0, 64], sizes = [2, 32], strides = [1, 1]} : vector<2x128xf32> to vector<2x32xf32>
    %263 = math.tanh %262 : vector<2x32xf32>
    %264 = vector.extract_strided_slice %249 {offsets = [0, 96], sizes = [2, 32], strides = [1, 1]} : vector<2x128xf32> to vector<2x32xf32>
    %265 = arith.negf %264 : vector<2x32xf32>
    %266 = math.exp %265 : vector<2x32xf32>
    %cst_152 = arith.constant 1.000000e+00 : f32
    %267 = vector.broadcast %cst_152 : f32 to vector<2x32xf32>
    %268 = arith.addf %267, %266 : vector<2x32xf32>
    %269 = arith.divf %267, %268 : vector<2x32xf32>
    %c0_153 = arith.constant 0 : index
    %c0_154 = arith.constant 0 : index
    %270 = vector.load %arg12[%c0_153, %c0_154] : memref<2x32xf32, #tpu.memory_space<vmem>>, vector<2x32xf32>
    %271 = arith.mulf %261, %270 : vector<2x32xf32>
    %272 = arith.mulf %255, %263 : vector<2x32xf32>
    %273 = arith.addf %271, %272 : vector<2x32xf32>
    %274 = math.tanh %273 : vector<2x32xf32>
    %275 = arith.mulf %269, %274 : vector<2x32xf32>
    %c0_155 = arith.constant 0 : index
    %c0_156 = arith.constant 0 : index
    %276 = vector.load %arg12[%c0_155, %c0_156] : memref<2x32xf32, #tpu.memory_space<vmem>>, vector<2x32xf32>
    tpu.vector_store %arg12[%c0_155, %c0_156], %273 {strides = array<i32>} : memref<2x32xf32, #tpu.memory_space<vmem>>, vector<2x32xf32>,
    %c0_157 = arith.constant 0 : index
    %c0_158 = arith.constant 0 : index
    %277 = vector.load %arg11[%c0_157, %c0_158] : memref<2x32xf32, #tpu.memory_space<vmem>>, vector<2x32xf32>
    tpu.vector_store %arg11[%c0_157, %c0_158], %275 {strides = array<i32>} : memref<2x32xf32, #tpu.memory_space<vmem>>, vector<2x32xf32>,
    %278 = vector.extract_strided_slice %275 {offsets = [0, 0], sizes = [2, 16], strides = [1, 1]} : vector<2x32xf32> to vector<2x16xf32>
    %c5_159 = arith.constant 5 : index
    %c0_160 = arith.constant 0 : index
    %c0_161 = arith.constant 0 : index
    %279 = vector.load %arg7[%c5_159, %c0_160, %c0_161] : memref<8x2x16xf32, #tpu.memory_space<vmem>>, vector<1x2x16xf32>
    %280 = vector.shape_cast %279 : vector<1x2x16xf32> to vector<2x16xf32>
    %281 = vector.shape_cast %278 : vector<2x16xf32> to vector<1x2x16xf32>
    tpu.vector_store %arg7[%c5_159, %c0_160, %c0_161], %281 {strides = array<i32>} : memref<8x2x16xf32, #tpu.memory_space<vmem>>, vector<1x2x16xf32>,
    %282 = vector.extract_strided_slice %275 {offsets = [0, 16], sizes = [2, 16], strides = [1, 1]} : vector<2x32xf32> to vector<2x16xf32>
    %c2_162 = arith.constant 2 : index
    %c0_163 = arith.constant 0 : index
    %c0_164 = arith.constant 0 : index
    %283 = vector.load %arg8[%c2_162, %c0_163, %c0_164] : memref<8x2x16xf32, #tpu.memory_space<vmem>>, vector<1x2x16xf32>
    %284 = vector.shape_cast %283 : vector<1x2x16xf32> to vector<2x16xf32>
    %285 = vector.shape_cast %282 : vector<2x16xf32> to vector<1x2x16xf32>
    tpu.vector_store %arg8[%c2_162, %c0_163, %c0_164], %285 {strides = array<i32>} : memref<8x2x16xf32, #tpu.memory_space<vmem>>, vector<1x2x16xf32>,
    %c6_165 = arith.constant 6 : index
    %c0_166 = arith.constant 0 : index
    %c0_167 = arith.constant 0 : index
    %286 = vector.load %arg1[%c6_165, %c0_166, %c0_167] : memref<8x2x16xf32, #tpu.memory_space<vmem>>, vector<1x2x16xf32>
    %287 = vector.shape_cast %286 : vector<1x2x16xf32> to vector<2x16xf32>
    %c1_168 = arith.constant 1 : index
    %c0_169 = arith.constant 0 : index
    %c0_170 = arith.constant 0 : index
    %288 = vector.load %arg1[%c1_168, %c0_169, %c0_170] : memref<8x2x16xf32, #tpu.memory_space<vmem>>, vector<1x2x16xf32>
    %289 = vector.shape_cast %288 : vector<1x2x16xf32> to vector<2x16xf32>
    %c0_171 = arith.constant 0 : index
    %c0_172 = arith.constant 0 : index
    %290 = vector.load %arg11[%c0_171, %c0_172] : memref<2x32xf32, #tpu.memory_space<vmem>>, vector<2x32xf32>
    %291 = tpu.concatenate %287, %289, %290 in 1 : vector<2x16xf32>, vector<2x16xf32>, vector<2x32xf32> -> vector<2x64xf32>
    %c0_173 = arith.constant 0 : index
    %c0_174 = arith.constant 0 : index
    %292 = vector.load %arg2[%c0_173, %c0_174] : memref<64x128xf32, #tpu.memory_space<vmem>>, vector<64x128xf32>
    %cst_175 = arith.constant dense<0.000000e+00> : vector<2x128xf32>
    %293 = tpu.matmul %291, %292, %cst_175 {dimension_numbers = #tpu.dot_dimension_numbers<[1], [0], [0], [1], [0, 0, 1, 1], [], []>} : vector<2x64xf32>, vector<64x128xf32>, vector<2x128xf32> -> vector<2x128xf32>
    %c0_176 = arith.constant 0 : index
    %c0_177 = arith.constant 0 : index
    %294 = vector.load %arg3[%c0_176, %c0_177] : memref<1x128xf32, #tpu.memory_space<vmem>>, vector<1x128xf32>
    %295 = vector.broadcast %294 : vector<1x128xf32> to vector<2x128xf32>
    %296 = arith.addf %293, %295 : vector<2x128xf32>
    %297 = vector.extract_strided_slice %296 {offsets = [0, 0], sizes = [2, 32], strides = [1, 1]} : vector<2x128xf32> to vector<2x32xf32>
    %298 = arith.negf %297 : vector<2x32xf32>
    %299 = math.exp %298 : vector<2x32xf32>
    %cst_178 = arith.constant 1.000000e+00 : f32
    %300 = vector.broadcast %cst_178 : f32 to vector<2x32xf32>
    %301 = arith.addf %300, %299 : vector<2x32xf32>
    %302 = arith.divf %300, %301 : vector<2x32xf32>
    %303 = vector.extract_strided_slice %296 {offsets = [0, 32], sizes = [2, 32], strides = [1, 1]} : vector<2x128xf32> to vector<2x32xf32>
    %304 = arith.negf %303 : vector<2x32xf32>
    %305 = math.exp %304 : vector<2x32xf32>
    %cst_179 = arith.constant 1.000000e+00 : f32
    %306 = vector.broadcast %cst_179 : f32 to vector<2x32xf32>
    %307 = arith.addf %306, %305 : vector<2x32xf32>
    %308 = arith.divf %306, %307 : vector<2x32xf32>
    %309 = vector.extract_strided_slice %296 {offsets = [0, 64], sizes = [2, 32], strides = [1, 1]} : vector<2x128xf32> to vector<2x32xf32>
    %310 = math.tanh %309 : vector<2x32xf32>
    %311 = vector.extract_strided_slice %296 {offsets = [0, 96], sizes = [2, 32], strides = [1, 1]} : vector<2x128xf32> to vector<2x32xf32>
    %312 = arith.negf %311 : vector<2x32xf32>
    %313 = math.exp %312 : vector<2x32xf32>
    %cst_180 = arith.constant 1.000000e+00 : f32
    %314 = vector.broadcast %cst_180 : f32 to vector<2x32xf32>
    %315 = arith.addf %314, %313 : vector<2x32xf32>
    %316 = arith.divf %314, %315 : vector<2x32xf32>
    %c0_181 = arith.constant 0 : index
    %c0_182 = arith.constant 0 : index
    %317 = vector.load %arg12[%c0_181, %c0_182] : memref<2x32xf32, #tpu.memory_space<vmem>>, vector<2x32xf32>
    %318 = arith.mulf %308, %317 : vector<2x32xf32>
    %319 = arith.mulf %302, %310 : vector<2x32xf32>
    %320 = arith.addf %318, %319 : vector<2x32xf32>
    %321 = math.tanh %320 : vector<2x32xf32>
    %322 = arith.mulf %316, %321 : vector<2x32xf32>
    %c0_183 = arith.constant 0 : index
    %c0_184 = arith.constant 0 : index
    %323 = vector.load %arg12[%c0_183, %c0_184] : memref<2x32xf32, #tpu.memory_space<vmem>>, vector<2x32xf32>
    tpu.vector_store %arg12[%c0_183, %c0_184], %320 {strides = array<i32>} : memref<2x32xf32, #tpu.memory_space<vmem>>, vector<2x32xf32>,
    %c0_185 = arith.constant 0 : index
    %c0_186 = arith.constant 0 : index
    %324 = vector.load %arg11[%c0_185, %c0_186] : memref<2x32xf32, #tpu.memory_space<vmem>>, vector<2x32xf32>
    tpu.vector_store %arg11[%c0_185, %c0_186], %322 {strides = array<i32>} : memref<2x32xf32, #tpu.memory_space<vmem>>, vector<2x32xf32>,
    %325 = vector.extract_strided_slice %322 {offsets = [0, 0], sizes = [2, 16], strides = [1, 1]} : vector<2x32xf32> to vector<2x16xf32>
    %c6_187 = arith.constant 6 : index
    %c0_188 = arith.constant 0 : index
    %c0_189 = arith.constant 0 : index
    %326 = vector.load %arg7[%c6_187, %c0_188, %c0_189] : memref<8x2x16xf32, #tpu.memory_space<vmem>>, vector<1x2x16xf32>
    %327 = vector.shape_cast %326 : vector<1x2x16xf32> to vector<2x16xf32>
    %328 = vector.shape_cast %325 : vector<2x16xf32> to vector<1x2x16xf32>
    tpu.vector_store %arg7[%c6_187, %c0_188, %c0_189], %328 {strides = array<i32>} : memref<8x2x16xf32, #tpu.memory_space<vmem>>, vector<1x2x16xf32>,
    %329 = vector.extract_strided_slice %322 {offsets = [0, 16], sizes = [2, 16], strides = [1, 1]} : vector<2x32xf32> to vector<2x16xf32>
    %c1_190 = arith.constant 1 : index
    %c0_191 = arith.constant 0 : index
    %c0_192 = arith.constant 0 : index
    %330 = vector.load %arg8[%c1_190, %c0_191, %c0_192] : memref<8x2x16xf32, #tpu.memory_space<vmem>>, vector<1x2x16xf32>
    %331 = vector.shape_cast %330 : vector<1x2x16xf32> to vector<2x16xf32>
    %332 = vector.shape_cast %329 : vector<2x16xf32> to vector<1x2x16xf32>
    tpu.vector_store %arg8[%c1_190, %c0_191, %c0_192], %332 {strides = array<i32>} : memref<8x2x16xf32, #tpu.memory_space<vmem>>, vector<1x2x16xf32>,
    %c7_193 = arith.constant 7 : index
    %c0_194 = arith.constant 0 : index
    %c0_195 = arith.constant 0 : index
    %333 = vector.load %arg1[%c7_193, %c0_194, %c0_195] : memref<8x2x16xf32, #tpu.memory_space<vmem>>, vector<1x2x16xf32>
    %334 = vector.shape_cast %333 : vector<1x2x16xf32> to vector<2x16xf32>
    %c0_196 = arith.constant 0 : index
    %c0_197 = arith.constant 0 : index
    %c0_198 = arith.constant 0 : index
    %335 = vector.load %arg1[%c0_196, %c0_197, %c0_198] : memref<8x2x16xf32, #tpu.memory_space<vmem>>, vector<1x2x16xf32>
    %336 = vector.shape_cast %335 : vector<1x2x16xf32> to vector<2x16xf32>
    %c0_199 = arith.constant 0 : index
    %c0_200 = arith.constant 0 : index
    %337 = vector.load %arg11[%c0_199, %c0_200] : memref<2x32xf32, #tpu.memory_space<vmem>>, vector<2x32xf32>
    %338 = tpu.concatenate %334, %336, %337 in 1 : vector<2x16xf32>, vector<2x16xf32>, vector<2x32xf32> -> vector<2x64xf32>
    %c0_201 = arith.constant 0 : index
    %c0_202 = arith.constant 0 : index
    %339 = vector.load %arg2[%c0_201, %c0_202] : memref<64x128xf32, #tpu.memory_space<vmem>>, vector<64x128xf32>
    %cst_203 = arith.constant dense<0.000000e+00> : vector<2x128xf32>
    %340 = tpu.matmul %338, %339, %cst_203 {dimension_numbers = #tpu.dot_dimension_numbers<[1], [0], [0], [1], [0, 0, 1, 1], [], []>} : vector<2x64xf32>, vector<64x128xf32>, vector<2x128xf32> -> vector<2x128xf32>
    %c0_204 = arith.constant 0 : index
    %c0_205 = arith.constant 0 : index
    %341 = vector.load %arg3[%c0_204, %c0_205] : memref<1x128xf32, #tpu.memory_space<vmem>>, vector<1x128xf32>
    %342 = vector.broadcast %341 : vector<1x128xf32> to vector<2x128xf32>
    %343 = arith.addf %340, %342 : vector<2x128xf32>
    %344 = vector.extract_strided_slice %343 {offsets = [0, 0], sizes = [2, 32], strides = [1, 1]} : vector<2x128xf32> to vector<2x32xf32>
    %345 = arith.negf %344 : vector<2x32xf32>
    %346 = math.exp %345 : vector<2x32xf32>
    %cst_206 = arith.constant 1.000000e+00 : f32
    %347 = vector.broadcast %cst_206 : f32 to vector<2x32xf32>
    %348 = arith.addf %347, %346 : vector<2x32xf32>
    %349 = arith.divf %347, %348 : vector<2x32xf32>
    %350 = vector.extract_strided_slice %343 {offsets = [0, 32], sizes = [2, 32], strides = [1, 1]} : vector<2x128xf32> to vector<2x32xf32>
    %351 = arith.negf %350 : vector<2x32xf32>
    %352 = math.exp %351 : vector<2x32xf32>
    %cst_207 = arith.constant 1.000000e+00 : f32
    %353 = vector.broadcast %cst_207 : f32 to vector<2x32xf32>
    %354 = arith.addf %353, %352 : vector<2x32xf32>
    %355 = arith.divf %353, %354 : vector<2x32xf32>
    %356 = vector.extract_strided_slice %343 {offsets = [0, 64], sizes = [2, 32], strides = [1, 1]} : vector<2x128xf32> to vector<2x32xf32>
    %357 = math.tanh %356 : vector<2x32xf32>
    %358 = vector.extract_strided_slice %343 {offsets = [0, 96], sizes = [2, 32], strides = [1, 1]} : vector<2x128xf32> to vector<2x32xf32>
    %359 = arith.negf %358 : vector<2x32xf32>
    %360 = math.exp %359 : vector<2x32xf32>
    %cst_208 = arith.constant 1.000000e+00 : f32
    %361 = vector.broadcast %cst_208 : f32 to vector<2x32xf32>
    %362 = arith.addf %361, %360 : vector<2x32xf32>
    %363 = arith.divf %361, %362 : vector<2x32xf32>
    %c0_209 = arith.constant 0 : index
    %c0_210 = arith.constant 0 : index
    %364 = vector.load %arg12[%c0_209, %c0_210] : memref<2x32xf32, #tpu.memory_space<vmem>>, vector<2x32xf32>
    %365 = arith.mulf %355, %364 : vector<2x32xf32>
    %366 = arith.mulf %349, %357 : vector<2x32xf32>
    %367 = arith.addf %365, %366 : vector<2x32xf32>
    %368 = math.tanh %367 : vector<2x32xf32>
    %369 = arith.mulf %363, %368 : vector<2x32xf32>
    %c0_211 = arith.constant 0 : index
    %c0_212 = arith.constant 0 : index
    %370 = vector.load %arg12[%c0_211, %c0_212] : memref<2x32xf32, #tpu.memory_space<vmem>>, vector<2x32xf32>
    tpu.vector_store %arg12[%c0_211, %c0_212], %367 {strides = array<i32>} : memref<2x32xf32, #tpu.memory_space<vmem>>, vector<2x32xf32>,
    %c0_213 = arith.constant 0 : index
    %c0_214 = arith.constant 0 : index
    %371 = vector.load %arg11[%c0_213, %c0_214] : memref<2x32xf32, #tpu.memory_space<vmem>>, vector<2x32xf32>
    tpu.vector_store %arg11[%c0_213, %c0_214], %369 {strides = array<i32>} : memref<2x32xf32, #tpu.memory_space<vmem>>, vector<2x32xf32>,
    %372 = vector.extract_strided_slice %369 {offsets = [0, 0], sizes = [2, 16], strides = [1, 1]} : vector<2x32xf32> to vector<2x16xf32>
    %c7_215 = arith.constant 7 : index
    %c0_216 = arith.constant 0 : index
    %c0_217 = arith.constant 0 : index
    %373 = vector.load %arg7[%c7_215, %c0_216, %c0_217] : memref<8x2x16xf32, #tpu.memory_space<vmem>>, vector<1x2x16xf32>
    %374 = vector.shape_cast %373 : vector<1x2x16xf32> to vector<2x16xf32>
    %375 = vector.shape_cast %372 : vector<2x16xf32> to vector<1x2x16xf32>
    tpu.vector_store %arg7[%c7_215, %c0_216, %c0_217], %375 {strides = array<i32>} : memref<8x2x16xf32, #tpu.memory_space<vmem>>, vector<1x2x16xf32>,
    %376 = vector.extract_strided_slice %369 {offsets = [0, 16], sizes = [2, 16], strides = [1, 1]} : vector<2x32xf32> to vector<2x16xf32>
    %c0_218 = arith.constant 0 : index
    %c0_219 = arith.constant 0 : index
    %c0_220 = arith.constant 0 : index
    %377 = vector.load %arg8[%c0_218, %c0_219, %c0_220] : memref<8x2x16xf32, #tpu.memory_space<vmem>>, vector<1x2x16xf32>
    %378 = vector.shape_cast %377 : vector<1x2x16xf32> to vector<2x16xf32>
    %379 = vector.shape_cast %376 : vector<2x16xf32> to vector<1x2x16xf32>
    tpu.vector_store %arg8[%c0_218, %c0_219, %c0_220], %379 {strides = array<i32>} : memref<8x2x16xf32, #tpu.memory_space<vmem>>, vector<1x2x16xf32>,
    %cst_221 = arith.constant 0.000000e+00 : f32
    %380 = vector.broadcast %cst_221 : f32 to vector<2x32xf32>
    %c0_222 = arith.constant 0 : index
    %c0_223 = arith.constant 0 : index
    %381 = vector.load %arg11[%c0_222, %c0_223] : memref<2x32xf32, #tpu.memory_space<vmem>>, vector<2x32xf32>
    tpu.vector_store %arg11[%c0_222, %c0_223], %380 {strides = array<i32>} : memref<2x32xf32, #tpu.memory_space<vmem>>, vector<2x32xf32>,
    %cst_224 = arith.constant 0.000000e+00 : f32
    %382 = vector.broadcast %cst_224 : f32 to vector<2x32xf32>
    %c0_225 = arith.constant 0 : index
    %c0_226 = arith.constant 0 : index
    %383 = vector.load %arg12[%c0_225, %c0_226] : memref<2x32xf32, #tpu.memory_space<vmem>>, vector<2x32xf32>
    tpu.vector_store %arg12[%c0_225, %c0_226], %382 {strides = array<i32>} : memref<2x32xf32, #tpu.memory_space<vmem>>, vector<2x32xf32>,
    %c0_227 = arith.constant 0 : index
    %c0_228 = arith.constant 0 : index
    %c0_229 = arith.constant 0 : index
    %384 = vector.load %arg7[%c0_227, %c0_228, %c0_229] : memref<8x2x16xf32, #tpu.memory_space<vmem>>, vector<1x2x16xf32>
    %385 = vector.shape_cast %384 : vector<1x2x16xf32> to vector<2x16xf32>
    %c0_230 = arith.constant 0 : index
    %c0_231 = arith.constant 0 : index
    %c0_232 = arith.constant 0 : index
    %386 = vector.load %arg8[%c0_230, %c0_231, %c0_232] : memref<8x2x16xf32, #tpu.memory_space<vmem>>, vector<1x2x16xf32>
    %387 = vector.shape_cast %386 : vector<1x2x16xf32> to vector<2x16xf32>
    %388 = tpu.concatenate %385, %387 in 1 : vector<2x16xf32>, vector<2x16xf32> -> vector<2x32xf32>
    %c7_233 = arith.constant 7 : index
    %c0_234 = arith.constant 0 : index
    %c0_235 = arith.constant 0 : index
    %389 = vector.load %arg7[%c7_233, %c0_234, %c0_235] : memref<8x2x16xf32, #tpu.memory_space<vmem>>, vector<1x2x16xf32>
    %390 = vector.shape_cast %389 : vector<1x2x16xf32> to vector<2x16xf32>
    %c7_236 = arith.constant 7 : index
    %c0_237 = arith.constant 0 : index
    %c0_238 = arith.constant 0 : index
    %391 = vector.load %arg8[%c7_236, %c0_237, %c0_238] : memref<8x2x16xf32, #tpu.memory_space<vmem>>, vector<1x2x16xf32>
    %392 = vector.shape_cast %391 : vector<1x2x16xf32> to vector<2x16xf32>
    %393 = tpu.concatenate %390, %392 in 1 : vector<2x16xf32>, vector<2x16xf32> -> vector<2x32xf32>
    %c0_239 = arith.constant 0 : index
    %c0_240 = arith.constant 0 : index
    %394 = vector.load %arg11[%c0_239, %c0_240] : memref<2x32xf32, #tpu.memory_space<vmem>>, vector<2x32xf32>
    %395 = tpu.concatenate %388, %393, %394 in 1 : vector<2x32xf32>, vector<2x32xf32>, vector<2x32xf32> -> vector<2x96xf32>
    %c0_241 = arith.constant 0 : index
    %c0_242 = arith.constant 0 : index
    %396 = vector.load %arg4[%c0_241, %c0_242] : memref<96x128xf32, #tpu.memory_space<vmem>>, vector<96x128xf32>
    %cst_243 = arith.constant dense<0.000000e+00> : vector<2x128xf32>
    %397 = tpu.matmul %395, %396, %cst_243 {dimension_numbers = #tpu.dot_dimension_numbers<[1], [0], [0], [1], [0, 0, 1, 1], [], []>} : vector<2x96xf32>, vector<96x128xf32>, vector<2x128xf32> -> vector<2x128xf32>
    %c0_244 = arith.constant 0 : index
    %c0_245 = arith.constant 0 : index
    %398 = vector.load %arg5[%c0_244, %c0_245] : memref<1x128xf32, #tpu.memory_space<vmem>>, vector<1x128xf32>
    %399 = vector.broadcast %398 : vector<1x128xf32> to vector<2x128xf32>
    %400 = arith.addf %397, %399 : vector<2x128xf32>
    %401 = vector.extract_strided_slice %400 {offsets = [0, 0], sizes = [2, 32], strides = [1, 1]} : vector<2x128xf32> to vector<2x32xf32>
    %402 = arith.negf %401 : vector<2x32xf32>
    %403 = math.exp %402 : vector<2x32xf32>
    %cst_246 = arith.constant 1.000000e+00 : f32
    %404 = vector.broadcast %cst_246 : f32 to vector<2x32xf32>
    %405 = arith.addf %404, %403 : vector<2x32xf32>
    %406 = arith.divf %404, %405 : vector<2x32xf32>
    %407 = vector.extract_strided_slice %400 {offsets = [0, 32], sizes = [2, 32], strides = [1, 1]} : vector<2x128xf32> to vector<2x32xf32>
    %408 = arith.negf %407 : vector<2x32xf32>
    %409 = math.exp %408 : vector<2x32xf32>
    %cst_247 = arith.constant 1.000000e+00 : f32
    %410 = vector.broadcast %cst_247 : f32 to vector<2x32xf32>
    %411 = arith.addf %410, %409 : vector<2x32xf32>
    %412 = arith.divf %410, %411 : vector<2x32xf32>
    %413 = vector.extract_strided_slice %400 {offsets = [0, 64], sizes = [2, 32], strides = [1, 1]} : vector<2x128xf32> to vector<2x32xf32>
    %414 = math.tanh %413 : vector<2x32xf32>
    %415 = vector.extract_strided_slice %400 {offsets = [0, 96], sizes = [2, 32], strides = [1, 1]} : vector<2x128xf32> to vector<2x32xf32>
    %416 = arith.negf %415 : vector<2x32xf32>
    %417 = math.exp %416 : vector<2x32xf32>
    %cst_248 = arith.constant 1.000000e+00 : f32
    %418 = vector.broadcast %cst_248 : f32 to vector<2x32xf32>
    %419 = arith.addf %418, %417 : vector<2x32xf32>
    %420 = arith.divf %418, %419 : vector<2x32xf32>
    %c0_249 = arith.constant 0 : index
    %c0_250 = arith.constant 0 : index
    %421 = vector.load %arg12[%c0_249, %c0_250] : memref<2x32xf32, #tpu.memory_space<vmem>>, vector<2x32xf32>
    %422 = arith.mulf %412, %421 : vector<2x32xf32>
    %423 = arith.mulf %406, %414 : vector<2x32xf32>
    %424 = arith.addf %422, %423 : vector<2x32xf32>
    %425 = math.tanh %424 : vector<2x32xf32>
    %426 = arith.mulf %420, %425 : vector<2x32xf32>
    %c0_251 = arith.constant 0 : index
    %c0_252 = arith.constant 0 : index
    %427 = vector.load %arg12[%c0_251, %c0_252] : memref<2x32xf32, #tpu.memory_space<vmem>>, vector<2x32xf32>
    tpu.vector_store %arg12[%c0_251, %c0_252], %424 {strides = array<i32>} : memref<2x32xf32, #tpu.memory_space<vmem>>, vector<2x32xf32>,
    %c0_253 = arith.constant 0 : index
    %c0_254 = arith.constant 0 : index
    %428 = vector.load %arg11[%c0_253, %c0_254] : memref<2x32xf32, #tpu.memory_space<vmem>>, vector<2x32xf32>
    tpu.vector_store %arg11[%c0_253, %c0_254], %426 {strides = array<i32>} : memref<2x32xf32, #tpu.memory_space<vmem>>, vector<2x32xf32>,
    %429 = vector.extract_strided_slice %426 {offsets = [0, 0], sizes = [2, 16], strides = [1, 1]} : vector<2x32xf32> to vector<2x16xf32>
    %c0_255 = arith.constant 0 : index
    %c0_256 = arith.constant 0 : index
    %c0_257 = arith.constant 0 : index
    %430 = vector.load %arg9[%c0_255, %c0_256, %c0_257] : memref<8x2x16xf32, #tpu.memory_space<vmem>>, vector<1x2x16xf32>
    %431 = vector.shape_cast %430 : vector<1x2x16xf32> to vector<2x16xf32>
    %432 = vector.shape_cast %429 : vector<2x16xf32> to vector<1x2x16xf32>
    tpu.vector_store %arg9[%c0_255, %c0_256, %c0_257], %432 {strides = array<i32>} : memref<8x2x16xf32, #tpu.memory_space<vmem>>, vector<1x2x16xf32>,
    %433 = vector.extract_strided_slice %426 {offsets = [0, 16], sizes = [2, 16], strides = [1, 1]} : vector<2x32xf32> to vector<2x16xf32>
    %c7_258 = arith.constant 7 : index
    %c0_259 = arith.constant 0 : index
    %c0_260 = arith.constant 0 : index
    %434 = vector.load %arg10[%c7_258, %c0_259, %c0_260] : memref<8x2x16xf32, #tpu.memory_space<vmem>>, vector<1x2x16xf32>
    %435 = vector.shape_cast %434 : vector<1x2x16xf32> to vector<2x16xf32>
    %436 = vector.shape_cast %433 : vector<2x16xf32> to vector<1x2x16xf32>
    tpu.vector_store %arg10[%c7_258, %c0_259, %c0_260], %436 {strides = array<i32>} : memref<8x2x16xf32, #tpu.memory_space<vmem>>, vector<1x2x16xf32>,
    %c1_261 = arith.constant 1 : index
    %c0_262 = arith.constant 0 : index
    %c0_263 = arith.constant 0 : index
    %437 = vector.load %arg7[%c1_261, %c0_262, %c0_263] : memref<8x2x16xf32, #tpu.memory_space<vmem>>, vector<1x2x16xf32>
    %438 = vector.shape_cast %437 : vector<1x2x16xf32> to vector<2x16xf32>
    %c1_264 = arith.constant 1 : index
    %c0_265 = arith.constant 0 : index
    %c0_266 = arith.constant 0 : index
    %439 = vector.load %arg8[%c1_264, %c0_265, %c0_266] : memref<8x2x16xf32, #tpu.memory_space<vmem>>, vector<1x2x16xf32>
    %440 = vector.shape_cast %439 : vector<1x2x16xf32> to vector<2x16xf32>
    %441 = tpu.concatenate %438, %440 in 1 : vector<2x16xf32>, vector<2x16xf32> -> vector<2x32xf32>
    %c6_267 = arith.constant 6 : index
    %c0_268 = arith.constant 0 : index
    %c0_269 = arith.constant 0 : index
    %442 = vector.load %arg7[%c6_267, %c0_268, %c0_269] : memref<8x2x16xf32, #tpu.memory_space<vmem>>, vector<1x2x16xf32>
    %443 = vector.shape_cast %442 : vector<1x2x16xf32> to vector<2x16xf32>
    %c6_270 = arith.constant 6 : index
    %c0_271 = arith.constant 0 : index
    %c0_272 = arith.constant 0 : index
    %444 = vector.load %arg8[%c6_270, %c0_271, %c0_272] : memref<8x2x16xf32, #tpu.memory_space<vmem>>, vector<1x2x16xf32>
    %445 = vector.shape_cast %444 : vector<1x2x16xf32> to vector<2x16xf32>
    %446 = tpu.concatenate %443, %445 in 1 : vector<2x16xf32>, vector<2x16xf32> -> vector<2x32xf32>
    %c0_273 = arith.constant 0 : index
    %c0_274 = arith.constant 0 : index
    %447 = vector.load %arg11[%c0_273, %c0_274] : memref<2x32xf32, #tpu.memory_space<vmem>>, vector<2x32xf32>
    %448 = tpu.concatenate %441, %446, %447 in 1 : vector<2x32xf32>, vector<2x32xf32>, vector<2x32xf32> -> vector<2x96xf32>
    %c0_275 = arith.constant 0 : index
    %c0_276 = arith.constant 0 : index
    %449 = vector.load %arg4[%c0_275, %c0_276] : memref<96x128xf32, #tpu.memory_space<vmem>>, vector<96x128xf32>
    %cst_277 = arith.constant dense<0.000000e+00> : vector<2x128xf32>
    %450 = tpu.matmul %448, %449, %cst_277 {dimension_numbers = #tpu.dot_dimension_numbers<[1], [0], [0], [1], [0, 0, 1, 1], [], []>} : vector<2x96xf32>, vector<96x128xf32>, vector<2x128xf32> -> vector<2x128xf32>
    %c0_278 = arith.constant 0 : index
    %c0_279 = arith.constant 0 : index
    %451 = vector.load %arg5[%c0_278, %c0_279] : memref<1x128xf32, #tpu.memory_space<vmem>>, vector<1x128xf32>
    %452 = vector.broadcast %451 : vector<1x128xf32> to vector<2x128xf32>
    %453 = arith.addf %450, %452 : vector<2x128xf32>
    %454 = vector.extract_strided_slice %453 {offsets = [0, 0], sizes = [2, 32], strides = [1, 1]} : vector<2x128xf32> to vector<2x32xf32>
    %455 = arith.negf %454 : vector<2x32xf32>
    %456 = math.exp %455 : vector<2x32xf32>
    %cst_280 = arith.constant 1.000000e+00 : f32
    %457 = vector.broadcast %cst_280 : f32 to vector<2x32xf32>
    %458 = arith.addf %457, %456 : vector<2x32xf32>
    %459 = arith.divf %457, %458 : vector<2x32xf32>
    %460 = vector.extract_strided_slice %453 {offsets = [0, 32], sizes = [2, 32], strides = [1, 1]} : vector<2x128xf32> to vector<2x32xf32>
    %461 = arith.negf %460 : vector<2x32xf32>
    %462 = math.exp %461 : vector<2x32xf32>
    %cst_281 = arith.constant 1.000000e+00 : f32
    %463 = vector.broadcast %cst_281 : f32 to vector<2x32xf32>
    %464 = arith.addf %463, %462 : vector<2x32xf32>
    %465 = arith.divf %463, %464 : vector<2x32xf32>
    %466 = vector.extract_strided_slice %453 {offsets = [0, 64], sizes = [2, 32], strides = [1, 1]} : vector<2x128xf32> to vector<2x32xf32>
    %467 = math.tanh %466 : vector<2x32xf32>
    %468 = vector.extract_strided_slice %453 {offsets = [0, 96], sizes = [2, 32], strides = [1, 1]} : vector<2x128xf32> to vector<2x32xf32>
    %469 = arith.negf %468 : vector<2x32xf32>
    %470 = math.exp %469 : vector<2x32xf32>
    %cst_282 = arith.constant 1.000000e+00 : f32
    %471 = vector.broadcast %cst_282 : f32 to vector<2x32xf32>
    %472 = arith.addf %471, %470 : vector<2x32xf32>
    %473 = arith.divf %471, %472 : vector<2x32xf32>
    %c0_283 = arith.constant 0 : index
    %c0_284 = arith.constant 0 : index
    %474 = vector.load %arg12[%c0_283, %c0_284] : memref<2x32xf32, #tpu.memory_space<vmem>>, vector<2x32xf32>
    %475 = arith.mulf %465, %474 : vector<2x32xf32>
    %476 = arith.mulf %459, %467 : vector<2x32xf32>
    %477 = arith.addf %475, %476 : vector<2x32xf32>
    %478 = math.tanh %477 : vector<2x32xf32>
    %479 = arith.mulf %473, %478 : vector<2x32xf32>
    %c0_285 = arith.constant 0 : index
    %c0_286 = arith.constant 0 : index
    %480 = vector.load %arg12[%c0_285, %c0_286] : memref<2x32xf32, #tpu.memory_space<vmem>>, vector<2x32xf32>
    tpu.vector_store %arg12[%c0_285, %c0_286], %477 {strides = array<i32>} : memref<2x32xf32, #tpu.memory_space<vmem>>, vector<2x32xf32>,
    %c0_287 = arith.constant 0 : index
    %c0_288 = arith.constant 0 : index
    %481 = vector.load %arg11[%c0_287, %c0_288] : memref<2x32xf32, #tpu.memory_space<vmem>>, vector<2x32xf32>
    tpu.vector_store %arg11[%c0_287, %c0_288], %479 {strides = array<i32>} : memref<2x32xf32, #tpu.memory_space<vmem>>, vector<2x32xf32>,
    %482 = vector.extract_strided_slice %479 {offsets = [0, 0], sizes = [2, 16], strides = [1, 1]} : vector<2x32xf32> to vector<2x16xf32>
    %c1_289 = arith.constant 1 : index
    %c0_290 = arith.constant 0 : index
    %c0_291 = arith.constant 0 : index
    %483 = vector.load %arg9[%c1_289, %c0_290, %c0_291] : memref<8x2x16xf32, #tpu.memory_space<vmem>>, vector<1x2x16xf32>
    %484 = vector.shape_cast %483 : vector<1x2x16xf32> to vector<2x16xf32>
    %485 = vector.shape_cast %482 : vector<2x16xf32> to vector<1x2x16xf32>
    tpu.vector_store %arg9[%c1_289, %c0_290, %c0_291], %485 {strides = array<i32>} : memref<8x2x16xf32, #tpu.memory_space<vmem>>, vector<1x2x16xf32>,
    %486 = vector.extract_strided_slice %479 {offsets = [0, 16], sizes = [2, 16], strides = [1, 1]} : vector<2x32xf32> to vector<2x16xf32>
    %c6_292 = arith.constant 6 : index
    %c0_293 = arith.constant 0 : index
    %c0_294 = arith.constant 0 : index
    %487 = vector.load %arg10[%c6_292, %c0_293, %c0_294] : memref<8x2x16xf32, #tpu.memory_space<vmem>>, vector<1x2x16xf32>
    %488 = vector.shape_cast %487 : vector<1x2x16xf32> to vector<2x16xf32>
    %489 = vector.shape_cast %486 : vector<2x16xf32> to vector<1x2x16xf32>
    tpu.vector_store %arg10[%c6_292, %c0_293, %c0_294], %489 {strides = array<i32>} : memref<8x2x16xf32, #tpu.memory_space<vmem>>, vector<1x2x16xf32>,
    %c2_295 = arith.constant 2 : index
    %c0_296 = arith.constant 0 : index
    %c0_297 = arith.constant 0 : index
    %490 = vector.load %arg7[%c2_295, %c0_296, %c0_297] : memref<8x2x16xf32, #tpu.memory_space<vmem>>, vector<1x2x16xf32>
    %491 = vector.shape_cast %490 : vector<1x2x16xf32> to vector<2x16xf32>
    %c2_298 = arith.constant 2 : index
    %c0_299 = arith.constant 0 : index
    %c0_300 = arith.constant 0 : index
    %492 = vector.load %arg8[%c2_298, %c0_299, %c0_300] : memref<8x2x16xf32, #tpu.memory_space<vmem>>, vector<1x2x16xf32>
    %493 = vector.shape_cast %492 : vector<1x2x16xf32> to vector<2x16xf32>
    %494 = tpu.concatenate %491, %493 in 1 : vector<2x16xf32>, vector<2x16xf32> -> vector<2x32xf32>
    %c5_301 = arith.constant 5 : index
    %c0_302 = arith.constant 0 : index
    %c0_303 = arith.constant 0 : index
    %495 = vector.load %arg7[%c5_301, %c0_302, %c0_303] : memref<8x2x16xf32, #tpu.memory_space<vmem>>, vector<1x2x16xf32>
    %496 = vector.shape_cast %495 : vector<1x2x16xf32> to vector<2x16xf32>
    %c5_304 = arith.constant 5 : index
    %c0_305 = arith.constant 0 : index
    %c0_306 = arith.constant 0 : index
    %497 = vector.load %arg8[%c5_304, %c0_305, %c0_306] : memref<8x2x16xf32, #tpu.memory_space<vmem>>, vector<1x2x16xf32>
    %498 = vector.shape_cast %497 : vector<1x2x16xf32> to vector<2x16xf32>
    %499 = tpu.concatenate %496, %498 in 1 : vector<2x16xf32>, vector<2x16xf32> -> vector<2x32xf32>
    %c0_307 = arith.constant 0 : index
    %c0_308 = arith.constant 0 : index
    %500 = vector.load %arg11[%c0_307, %c0_308] : memref<2x32xf32, #tpu.memory_space<vmem>>, vector<2x32xf32>
    %501 = tpu.concatenate %494, %499, %500 in 1 : vector<2x32xf32>, vector<2x32xf32>, vector<2x32xf32> -> vector<2x96xf32>
    %c0_309 = arith.constant 0 : index
    %c0_310 = arith.constant 0 : index
    %502 = vector.load %arg4[%c0_309, %c0_310] : memref<96x128xf32, #tpu.memory_space<vmem>>, vector<96x128xf32>
    %cst_311 = arith.constant dense<0.000000e+00> : vector<2x128xf32>
    %503 = tpu.matmul %501, %502, %cst_311 {dimension_numbers = #tpu.dot_dimension_numbers<[1], [0], [0], [1], [0, 0, 1, 1], [], []>} : vector<2x96xf32>, vector<96x128xf32>, vector<2x128xf32> -> vector<2x128xf32>
    %c0_312 = arith.constant 0 : index
    %c0_313 = arith.constant 0 : index
    %504 = vector.load %arg5[%c0_312, %c0_313] : memref<1x128xf32, #tpu.memory_space<vmem>>, vector<1x128xf32>
    %505 = vector.broadcast %504 : vector<1x128xf32> to vector<2x128xf32>
    %506 = arith.addf %503, %505 : vector<2x128xf32>
    %507 = vector.extract_strided_slice %506 {offsets = [0, 0], sizes = [2, 32], strides = [1, 1]} : vector<2x128xf32> to vector<2x32xf32>
    %508 = arith.negf %507 : vector<2x32xf32>
    %509 = math.exp %508 : vector<2x32xf32>
    %cst_314 = arith.constant 1.000000e+00 : f32
    %510 = vector.broadcast %cst_314 : f32 to vector<2x32xf32>
    %511 = arith.addf %510, %509 : vector<2x32xf32>
    %512 = arith.divf %510, %511 : vector<2x32xf32>
    %513 = vector.extract_strided_slice %506 {offsets = [0, 32], sizes = [2, 32], strides = [1, 1]} : vector<2x128xf32> to vector<2x32xf32>
    %514 = arith.negf %513 : vector<2x32xf32>
    %515 = math.exp %514 : vector<2x32xf32>
    %cst_315 = arith.constant 1.000000e+00 : f32
    %516 = vector.broadcast %cst_315 : f32 to vector<2x32xf32>
    %517 = arith.addf %516, %515 : vector<2x32xf32>
    %518 = arith.divf %516, %517 : vector<2x32xf32>
    %519 = vector.extract_strided_slice %506 {offsets = [0, 64], sizes = [2, 32], strides = [1, 1]} : vector<2x128xf32> to vector<2x32xf32>
    %520 = math.tanh %519 : vector<2x32xf32>
    %521 = vector.extract_strided_slice %506 {offsets = [0, 96], sizes = [2, 32], strides = [1, 1]} : vector<2x128xf32> to vector<2x32xf32>
    %522 = arith.negf %521 : vector<2x32xf32>
    %523 = math.exp %522 : vector<2x32xf32>
    %cst_316 = arith.constant 1.000000e+00 : f32
    %524 = vector.broadcast %cst_316 : f32 to vector<2x32xf32>
    %525 = arith.addf %524, %523 : vector<2x32xf32>
    %526 = arith.divf %524, %525 : vector<2x32xf32>
    %c0_317 = arith.constant 0 : index
    %c0_318 = arith.constant 0 : index
    %527 = vector.load %arg12[%c0_317, %c0_318] : memref<2x32xf32, #tpu.memory_space<vmem>>, vector<2x32xf32>
    %528 = arith.mulf %518, %527 : vector<2x32xf32>
    %529 = arith.mulf %512, %520 : vector<2x32xf32>
    %530 = arith.addf %528, %529 : vector<2x32xf32>
    %531 = math.tanh %530 : vector<2x32xf32>
    %532 = arith.mulf %526, %531 : vector<2x32xf32>
    %c0_319 = arith.constant 0 : index
    %c0_320 = arith.constant 0 : index
    %533 = vector.load %arg12[%c0_319, %c0_320] : memref<2x32xf32, #tpu.memory_space<vmem>>, vector<2x32xf32>
    tpu.vector_store %arg12[%c0_319, %c0_320], %530 {strides = array<i32>} : memref<2x32xf32, #tpu.memory_space<vmem>>, vector<2x32xf32>,
    %c0_321 = arith.constant 0 : index
    %c0_322 = arith.constant 0 : index
    %534 = vector.load %arg11[%c0_321, %c0_322] : memref<2x32xf32, #tpu.memory_space<vmem>>, vector<2x32xf32>
    tpu.vector_store %arg11[%c0_321, %c0_322], %532 {strides = array<i32>} : memref<2x32xf32, #tpu.memory_space<vmem>>, vector<2x32xf32>,
    %535 = vector.extract_strided_slice %532 {offsets = [0, 0], sizes = [2, 16], strides = [1, 1]} : vector<2x32xf32> to vector<2x16xf32>
    %c2_323 = arith.constant 2 : index
    %c0_324 = arith.constant 0 : index
    %c0_325 = arith.constant 0 : index
    %536 = vector.load %arg9[%c2_323, %c0_324, %c0_325] : memref<8x2x16xf32, #tpu.memory_space<vmem>>, vector<1x2x16xf32>
    %537 = vector.shape_cast %536 : vector<1x2x16xf32> to vector<2x16xf32>
    %538 = vector.shape_cast %535 : vector<2x16xf32> to vector<1x2x16xf32>
    tpu.vector_store %arg9[%c2_323, %c0_324, %c0_325], %538 {strides = array<i32>} : memref<8x2x16xf32, #tpu.memory_space<vmem>>, vector<1x2x16xf32>,
    %539 = vector.extract_strided_slice %532 {offsets = [0, 16], sizes = [2, 16], strides = [1, 1]} : vector<2x32xf32> to vector<2x16xf32>
    %c5_326 = arith.constant 5 : index
    %c0_327 = arith.constant 0 : index
    %c0_328 = arith.constant 0 : index
    %540 = vector.load %arg10[%c5_326, %c0_327, %c0_328] : memref<8x2x16xf32, #tpu.memory_space<vmem>>, vector<1x2x16xf32>
    %541 = vector.shape_cast %540 : vector<1x2x16xf32> to vector<2x16xf32>
    %542 = vector.shape_cast %539 : vector<2x16xf32> to vector<1x2x16xf32>
    tpu.vector_store %arg10[%c5_326, %c0_327, %c0_328], %542 {strides = array<i32>} : memref<8x2x16xf32, #tpu.memory_space<vmem>>, vector<1x2x16xf32>,
    %c3_329 = arith.constant 3 : index
    %c0_330 = arith.constant 0 : index
    %c0_331 = arith.constant 0 : index
    %543 = vector.load %arg7[%c3_329, %c0_330, %c0_331] : memref<8x2x16xf32, #tpu.memory_space<vmem>>, vector<1x2x16xf32>
    %544 = vector.shape_cast %543 : vector<1x2x16xf32> to vector<2x16xf32>
    %c3_332 = arith.constant 3 : index
    %c0_333 = arith.constant 0 : index
    %c0_334 = arith.constant 0 : index
    %545 = vector.load %arg8[%c3_332, %c0_333, %c0_334] : memref<8x2x16xf32, #tpu.memory_space<vmem>>, vector<1x2x16xf32>
    %546 = vector.shape_cast %545 : vector<1x2x16xf32> to vector<2x16xf32>
    %547 = tpu.concatenate %544, %546 in 1 : vector<2x16xf32>, vector<2x16xf32> -> vector<2x32xf32>
    %c4_335 = arith.constant 4 : index
    %c0_336 = arith.constant 0 : index
    %c0_337 = arith.constant 0 : index
    %548 = vector.load %arg7[%c4_335, %c0_336, %c0_337] : memref<8x2x16xf32, #tpu.memory_space<vmem>>, vector<1x2x16xf32>
    %549 = vector.shape_cast %548 : vector<1x2x16xf32> to vector<2x16xf32>
    %c4_338 = arith.constant 4 : index
    %c0_339 = arith.constant 0 : index
    %c0_340 = arith.constant 0 : index
    %550 = vector.load %arg8[%c4_338, %c0_339, %c0_340] : memref<8x2x16xf32, #tpu.memory_space<vmem>>, vector<1x2x16xf32>
    %551 = vector.shape_cast %550 : vector<1x2x16xf32> to vector<2x16xf32>
    %552 = tpu.concatenate %549, %551 in 1 : vector<2x16xf32>, vector<2x16xf32> -> vector<2x32xf32>
    %c0_341 = arith.constant 0 : index
    %c0_342 = arith.constant 0 : index
    %553 = vector.load %arg11[%c0_341, %c0_342] : memref<2x32xf32, #tpu.memory_space<vmem>>, vector<2x32xf32>
    %554 = tpu.concatenate %547, %552, %553 in 1 : vector<2x32xf32>, vector<2x32xf32>, vector<2x32xf32> -> vector<2x96xf32>
    %c0_343 = arith.constant 0 : index
    %c0_344 = arith.constant 0 : index
    %555 = vector.load %arg4[%c0_343, %c0_344] : memref<96x128xf32, #tpu.memory_space<vmem>>, vector<96x128xf32>
    %cst_345 = arith.constant dense<0.000000e+00> : vector<2x128xf32>
    %556 = tpu.matmul %554, %555, %cst_345 {dimension_numbers = #tpu.dot_dimension_numbers<[1], [0], [0], [1], [0, 0, 1, 1], [], []>} : vector<2x96xf32>, vector<96x128xf32>, vector<2x128xf32> -> vector<2x128xf32>
    %c0_346 = arith.constant 0 : index
    %c0_347 = arith.constant 0 : index
    %557 = vector.load %arg5[%c0_346, %c0_347] : memref<1x128xf32, #tpu.memory_space<vmem>>, vector<1x128xf32>
    %558 = vector.broadcast %557 : vector<1x128xf32> to vector<2x128xf32>
    %559 = arith.addf %556, %558 : vector<2x128xf32>
    %560 = vector.extract_strided_slice %559 {offsets = [0, 0], sizes = [2, 32], strides = [1, 1]} : vector<2x128xf32> to vector<2x32xf32>
    %561 = arith.negf %560 : vector<2x32xf32>
    %562 = math.exp %561 : vector<2x32xf32>
    %cst_348 = arith.constant 1.000000e+00 : f32
    %563 = vector.broadcast %cst_348 : f32 to vector<2x32xf32>
    %564 = arith.addf %563, %562 : vector<2x32xf32>
    %565 = arith.divf %563, %564 : vector<2x32xf32>
    %566 = vector.extract_strided_slice %559 {offsets = [0, 32], sizes = [2, 32], strides = [1, 1]} : vector<2x128xf32> to vector<2x32xf32>
    %567 = arith.negf %566 : vector<2x32xf32>
    %568 = math.exp %567 : vector<2x32xf32>
    %cst_349 = arith.constant 1.000000e+00 : f32
    %569 = vector.broadcast %cst_349 : f32 to vector<2x32xf32>
    %570 = arith.addf %569, %568 : vector<2x32xf32>
    %571 = arith.divf %569, %570 : vector<2x32xf32>
    %572 = vector.extract_strided_slice %559 {offsets = [0, 64], sizes = [2, 32], strides = [1, 1]} : vector<2x128xf32> to vector<2x32xf32>
    %573 = math.tanh %572 : vector<2x32xf32>
    %574 = vector.extract_strided_slice %559 {offsets = [0, 96], sizes = [2, 32], strides = [1, 1]} : vector<2x128xf32> to vector<2x32xf32>
    %575 = arith.negf %574 : vector<2x32xf32>
    %576 = math.exp %575 : vector<2x32xf32>
    %cst_350 = arith.constant 1.000000e+00 : f32
    %577 = vector.broadcast %cst_350 : f32 to vector<2x32xf32>
    %578 = arith.addf %577, %576 : vector<2x32xf32>
    %579 = arith.divf %577, %578 : vector<2x32xf32>
    %c0_351 = arith.constant 0 : index
    %c0_352 = arith.constant 0 : index
    %580 = vector.load %arg12[%c0_351, %c0_352] : memref<2x32xf32, #tpu.memory_space<vmem>>, vector<2x32xf32>
    %581 = arith.mulf %571, %580 : vector<2x32xf32>
    %582 = arith.mulf %565, %573 : vector<2x32xf32>
    %583 = arith.addf %581, %582 : vector<2x32xf32>
    %584 = math.tanh %583 : vector<2x32xf32>
    %585 = arith.mulf %579, %584 : vector<2x32xf32>
    %c0_353 = arith.constant 0 : index
    %c0_354 = arith.constant 0 : index
    %586 = vector.load %arg12[%c0_353, %c0_354] : memref<2x32xf32, #tpu.memory_space<vmem>>, vector<2x32xf32>
    tpu.vector_store %arg12[%c0_353, %c0_354], %583 {strides = array<i32>} : memref<2x32xf32, #tpu.memory_space<vmem>>, vector<2x32xf32>,
    %c0_355 = arith.constant 0 : index
    %c0_356 = arith.constant 0 : index
    %587 = vector.load %arg11[%c0_355, %c0_356] : memref<2x32xf32, #tpu.memory_space<vmem>>, vector<2x32xf32>
    tpu.vector_store %arg11[%c0_355, %c0_356], %585 {strides = array<i32>} : memref<2x32xf32, #tpu.memory_space<vmem>>, vector<2x32xf32>,
    %588 = vector.extract_strided_slice %585 {offsets = [0, 0], sizes = [2, 16], strides = [1, 1]} : vector<2x32xf32> to vector<2x16xf32>
    %c3_357 = arith.constant 3 : index
    %c0_358 = arith.constant 0 : index
    %c0_359 = arith.constant 0 : index
    %589 = vector.load %arg9[%c3_357, %c0_358, %c0_359] : memref<8x2x16xf32, #tpu.memory_space<vmem>>, vector<1x2x16xf32>
    %590 = vector.shape_cast %589 : vector<1x2x16xf32> to vector<2x16xf32>
    %591 = vector.shape_cast %588 : vector<2x16xf32> to vector<1x2x16xf32>
    tpu.vector_store %arg9[%c3_357, %c0_358, %c0_359], %591 {strides = array<i32>} : memref<8x2x16xf32, #tpu.memory_space<vmem>>, vector<1x2x16xf32>,
    %592 = vector.extract_strided_slice %585 {offsets = [0, 16], sizes = [2, 16], strides = [1, 1]} : vector<2x32xf32> to vector<2x16xf32>
    %c4_360 = arith.constant 4 : index
    %c0_361 = arith.constant 0 : index
    %c0_362 = arith.constant 0 : index
    %593 = vector.load %arg10[%c4_360, %c0_361, %c0_362] : memref<8x2x16xf32, #tpu.memory_space<vmem>>, vector<1x2x16xf32>
    %594 = vector.shape_cast %593 : vector<1x2x16xf32> to vector<2x16xf32>
    %595 = vector.shape_cast %592 : vector<2x16xf32> to vector<1x2x16xf32>
    tpu.vector_store %arg10[%c4_360, %c0_361, %c0_362], %595 {strides = array<i32>} : memref<8x2x16xf32, #tpu.memory_space<vmem>>, vector<1x2x16xf32>,
    %c4_363 = arith.constant 4 : index
    %c0_364 = arith.constant 0 : index
    %c0_365 = arith.constant 0 : index
    %596 = vector.load %arg7[%c4_363, %c0_364, %c0_365] : memref<8x2x16xf32, #tpu.memory_space<vmem>>, vector<1x2x16xf32>
    %597 = vector.shape_cast %596 : vector<1x2x16xf32> to vector<2x16xf32>
    %c4_366 = arith.constant 4 : index
    %c0_367 = arith.constant 0 : index
    %c0_368 = arith.constant 0 : index
    %598 = vector.load %arg8[%c4_366, %c0_367, %c0_368] : memref<8x2x16xf32, #tpu.memory_space<vmem>>, vector<1x2x16xf32>
    %599 = vector.shape_cast %598 : vector<1x2x16xf32> to vector<2x16xf32>
    %600 = tpu.concatenate %597, %599 in 1 : vector<2x16xf32>, vector<2x16xf32> -> vector<2x32xf32>
    %c3_369 = arith.constant 3 : index
    %c0_370 = arith.constant 0 : index
    %c0_371 = arith.constant 0 : index
    %601 = vector.load %arg7[%c3_369, %c0_370, %c0_371] : memref<8x2x16xf32, #tpu.memory_space<vmem>>, vector<1x2x16xf32>
    %602 = vector.shape_cast %601 : vector<1x2x16xf32> to vector<2x16xf32>
    %c3_372 = arith.constant 3 : index
    %c0_373 = arith.constant 0 : index
    %c0_374 = arith.constant 0 : index
    %603 = vector.load %arg8[%c3_372, %c0_373, %c0_374] : memref<8x2x16xf32, #tpu.memory_space<vmem>>, vector<1x2x16xf32>
    %604 = vector.shape_cast %603 : vector<1x2x16xf32> to vector<2x16xf32>
    %605 = tpu.concatenate %602, %604 in 1 : vector<2x16xf32>, vector<2x16xf32> -> vector<2x32xf32>
    %c0_375 = arith.constant 0 : index
    %c0_376 = arith.constant 0 : index
    %606 = vector.load %arg11[%c0_375, %c0_376] : memref<2x32xf32, #tpu.memory_space<vmem>>, vector<2x32xf32>
    %607 = tpu.concatenate %600, %605, %606 in 1 : vector<2x32xf32>, vector<2x32xf32>, vector<2x32xf32> -> vector<2x96xf32>
    %c0_377 = arith.constant 0 : index
    %c0_378 = arith.constant 0 : index
    %608 = vector.load %arg4[%c0_377, %c0_378] : memref<96x128xf32, #tpu.memory_space<vmem>>, vector<96x128xf32>
    %cst_379 = arith.constant dense<0.000000e+00> : vector<2x128xf32>
    %609 = tpu.matmul %607, %608, %cst_379 {dimension_numbers = #tpu.dot_dimension_numbers<[1], [0], [0], [1], [0, 0, 1, 1], [], []>} : vector<2x96xf32>, vector<96x128xf32>, vector<2x128xf32> -> vector<2x128xf32>
    %c0_380 = arith.constant 0 : index
    %c0_381 = arith.constant 0 : index
    %610 = vector.load %arg5[%c0_380, %c0_381] : memref<1x128xf32, #tpu.memory_space<vmem>>, vector<1x128xf32>
    %611 = vector.broadcast %610 : vector<1x128xf32> to vector<2x128xf32>
    %612 = arith.addf %609, %611 : vector<2x128xf32>
    %613 = vector.extract_strided_slice %612 {offsets = [0, 0], sizes = [2, 32], strides = [1, 1]} : vector<2x128xf32> to vector<2x32xf32>
    %614 = arith.negf %613 : vector<2x32xf32>
    %615 = math.exp %614 : vector<2x32xf32>
    %cst_382 = arith.constant 1.000000e+00 : f32
    %616 = vector.broadcast %cst_382 : f32 to vector<2x32xf32>
    %617 = arith.addf %616, %615 : vector<2x32xf32>
    %618 = arith.divf %616, %617 : vector<2x32xf32>
    %619 = vector.extract_strided_slice %612 {offsets = [0, 32], sizes = [2, 32], strides = [1, 1]} : vector<2x128xf32> to vector<2x32xf32>
    %620 = arith.negf %619 : vector<2x32xf32>
    %621 = math.exp %620 : vector<2x32xf32>
    %cst_383 = arith.constant 1.000000e+00 : f32
    %622 = vector.broadcast %cst_383 : f32 to vector<2x32xf32>
    %623 = arith.addf %622, %621 : vector<2x32xf32>
    %624 = arith.divf %622, %623 : vector<2x32xf32>
    %625 = vector.extract_strided_slice %612 {offsets = [0, 64], sizes = [2, 32], strides = [1, 1]} : vector<2x128xf32> to vector<2x32xf32>
    %626 = math.tanh %625 : vector<2x32xf32>
    %627 = vector.extract_strided_slice %612 {offsets = [0, 96], sizes = [2, 32], strides = [1, 1]} : vector<2x128xf32> to vector<2x32xf32>
    %628 = arith.negf %627 : vector<2x32xf32>
    %629 = math.exp %628 : vector<2x32xf32>
    %cst_384 = arith.constant 1.000000e+00 : f32
    %630 = vector.broadcast %cst_384 : f32 to vector<2x32xf32>
    %631 = arith.addf %630, %629 : vector<2x32xf32>
    %632 = arith.divf %630, %631 : vector<2x32xf32>
    %c0_385 = arith.constant 0 : index
    %c0_386 = arith.constant 0 : index
    %633 = vector.load %arg12[%c0_385, %c0_386] : memref<2x32xf32, #tpu.memory_space<vmem>>, vector<2x32xf32>
    %634 = arith.mulf %624, %633 : vector<2x32xf32>
    %635 = arith.mulf %618, %626 : vector<2x32xf32>
    %636 = arith.addf %634, %635 : vector<2x32xf32>
    %637 = math.tanh %636 : vector<2x32xf32>
    %638 = arith.mulf %632, %637 : vector<2x32xf32>
    %c0_387 = arith.constant 0 : index
    %c0_388 = arith.constant 0 : index
    %639 = vector.load %arg12[%c0_387, %c0_388] : memref<2x32xf32, #tpu.memory_space<vmem>>, vector<2x32xf32>
    tpu.vector_store %arg12[%c0_387, %c0_388], %636 {strides = array<i32>} : memref<2x32xf32, #tpu.memory_space<vmem>>, vector<2x32xf32>,
    %c0_389 = arith.constant 0 : index
    %c0_390 = arith.constant 0 : index
    %640 = vector.load %arg11[%c0_389, %c0_390] : memref<2x32xf32, #tpu.memory_space<vmem>>, vector<2x32xf32>
    tpu.vector_store %arg11[%c0_389, %c0_390], %638 {strides = array<i32>} : memref<2x32xf32, #tpu.memory_space<vmem>>, vector<2x32xf32>,
    %641 = vector.extract_strided_slice %638 {offsets = [0, 0], sizes = [2, 16], strides = [1, 1]} : vector<2x32xf32> to vector<2x16xf32>
    %c4_391 = arith.constant 4 : index
    %c0_392 = arith.constant 0 : index
    %c0_393 = arith.constant 0 : index
    %642 = vector.load %arg9[%c4_391, %c0_392, %c0_393] : memref<8x2x16xf32, #tpu.memory_space<vmem>>, vector<1x2x16xf32>
    %643 = vector.shape_cast %642 : vector<1x2x16xf32> to vector<2x16xf32>
    %644 = vector.shape_cast %641 : vector<2x16xf32> to vector<1x2x16xf32>
    tpu.vector_store %arg9[%c4_391, %c0_392, %c0_393], %644 {strides = array<i32>} : memref<8x2x16xf32, #tpu.memory_space<vmem>>, vector<1x2x16xf32>,
    %645 = vector.extract_strided_slice %638 {offsets = [0, 16], sizes = [2, 16], strides = [1, 1]} : vector<2x32xf32> to vector<2x16xf32>
    %c3_394 = arith.constant 3 : index
    %c0_395 = arith.constant 0 : index
    %c0_396 = arith.constant 0 : index
    %646 = vector.load %arg10[%c3_394, %c0_395, %c0_396] : memref<8x2x16xf32, #tpu.memory_space<vmem>>, vector<1x2x16xf32>
    %647 = vector.shape_cast %646 : vector<1x2x16xf32> to vector<2x16xf32>
    %648 = vector.shape_cast %645 : vector<2x16xf32> to vector<1x2x16xf32>
    tpu.vector_store %arg10[%c3_394, %c0_395, %c0_396], %648 {strides = array<i32>} : memref<8x2x16xf32, #tpu.memory_space<vmem>>, vector<1x2x16xf32>,
    %c5_397 = arith.constant 5 : index
    %c0_398 = arith.constant 0 : index
    %c0_399 = arith.constant 0 : index
    %649 = vector.load %arg7[%c5_397, %c0_398, %c0_399] : memref<8x2x16xf32, #tpu.memory_space<vmem>>, vector<1x2x16xf32>
    %650 = vector.shape_cast %649 : vector<1x2x16xf32> to vector<2x16xf32>
    %c5_400 = arith.constant 5 : index
    %c0_401 = arith.constant 0 : index
    %c0_402 = arith.constant 0 : index
    %651 = vector.load %arg8[%c5_400, %c0_401, %c0_402] : memref<8x2x16xf32, #tpu.memory_space<vmem>>, vector<1x2x16xf32>
    %652 = vector.shape_cast %651 : vector<1x2x16xf32> to vector<2x16xf32>
    %653 = tpu.concatenate %650, %652 in 1 : vector<2x16xf32>, vector<2x16xf32> -> vector<2x32xf32>
    %c2_403 = arith.constant 2 : index
    %c0_404 = arith.constant 0 : index
    %c0_405 = arith.constant 0 : index
    %654 = vector.load %arg7[%c2_403, %c0_404, %c0_405] : memref<8x2x16xf32, #tpu.memory_space<vmem>>, vector<1x2x16xf32>
    %655 = vector.shape_cast %654 : vector<1x2x16xf32> to vector<2x16xf32>
    %c2_406 = arith.constant 2 : index
    %c0_407 = arith.constant 0 : index
    %c0_408 = arith.constant 0 : index
    %656 = vector.load %arg8[%c2_406, %c0_407, %c0_408] : memref<8x2x16xf32, #tpu.memory_space<vmem>>, vector<1x2x16xf32>
    %657 = vector.shape_cast %656 : vector<1x2x16xf32> to vector<2x16xf32>
    %658 = tpu.concatenate %655, %657 in 1 : vector<2x16xf32>, vector<2x16xf32> -> vector<2x32xf32>
    %c0_409 = arith.constant 0 : index
    %c0_410 = arith.constant 0 : index
    %659 = vector.load %arg11[%c0_409, %c0_410] : memref<2x32xf32, #tpu.memory_space<vmem>>, vector<2x32xf32>
    %660 = tpu.concatenate %653, %658, %659 in 1 : vector<2x32xf32>, vector<2x32xf32>, vector<2x32xf32> -> vector<2x96xf32>
    %c0_411 = arith.constant 0 : index
    %c0_412 = arith.constant 0 : index
    %661 = vector.load %arg4[%c0_411, %c0_412] : memref<96x128xf32, #tpu.memory_space<vmem>>, vector<96x128xf32>
    %cst_413 = arith.constant dense<0.000000e+00> : vector<2x128xf32>
    %662 = tpu.matmul %660, %661, %cst_413 {dimension_numbers = #tpu.dot_dimension_numbers<[1], [0], [0], [1], [0, 0, 1, 1], [], []>} : vector<2x96xf32>, vector<96x128xf32>, vector<2x128xf32> -> vector<2x128xf32>
    %c0_414 = arith.constant 0 : index
    %c0_415 = arith.constant 0 : index
    %663 = vector.load %arg5[%c0_414, %c0_415] : memref<1x128xf32, #tpu.memory_space<vmem>>, vector<1x128xf32>
    %664 = vector.broadcast %663 : vector<1x128xf32> to vector<2x128xf32>
    %665 = arith.addf %662, %664 : vector<2x128xf32>
    %666 = vector.extract_strided_slice %665 {offsets = [0, 0], sizes = [2, 32], strides = [1, 1]} : vector<2x128xf32> to vector<2x32xf32>
    %667 = arith.negf %666 : vector<2x32xf32>
    %668 = math.exp %667 : vector<2x32xf32>
    %cst_416 = arith.constant 1.000000e+00 : f32
    %669 = vector.broadcast %cst_416 : f32 to vector<2x32xf32>
    %670 = arith.addf %669, %668 : vector<2x32xf32>
    %671 = arith.divf %669, %670 : vector<2x32xf32>
    %672 = vector.extract_strided_slice %665 {offsets = [0, 32], sizes = [2, 32], strides = [1, 1]} : vector<2x128xf32> to vector<2x32xf32>
    %673 = arith.negf %672 : vector<2x32xf32>
    %674 = math.exp %673 : vector<2x32xf32>
    %cst_417 = arith.constant 1.000000e+00 : f32
    %675 = vector.broadcast %cst_417 : f32 to vector<2x32xf32>
    %676 = arith.addf %675, %674 : vector<2x32xf32>
    %677 = arith.divf %675, %676 : vector<2x32xf32>
    %678 = vector.extract_strided_slice %665 {offsets = [0, 64], sizes = [2, 32], strides = [1, 1]} : vector<2x128xf32> to vector<2x32xf32>
    %679 = math.tanh %678 : vector<2x32xf32>
    %680 = vector.extract_strided_slice %665 {offsets = [0, 96], sizes = [2, 32], strides = [1, 1]} : vector<2x128xf32> to vector<2x32xf32>
    %681 = arith.negf %680 : vector<2x32xf32>
    %682 = math.exp %681 : vector<2x32xf32>
    %cst_418 = arith.constant 1.000000e+00 : f32
    %683 = vector.broadcast %cst_418 : f32 to vector<2x32xf32>
    %684 = arith.addf %683, %682 : vector<2x32xf32>
    %685 = arith.divf %683, %684 : vector<2x32xf32>
    %c0_419 = arith.constant 0 : index
    %c0_420 = arith.constant 0 : index
    %686 = vector.load %arg12[%c0_419, %c0_420] : memref<2x32xf32, #tpu.memory_space<vmem>>, vector<2x32xf32>
    %687 = arith.mulf %677, %686 : vector<2x32xf32>
    %688 = arith.mulf %671, %679 : vector<2x32xf32>
    %689 = arith.addf %687, %688 : vector<2x32xf32>
    %690 = math.tanh %689 : vector<2x32xf32>
    %691 = arith.mulf %685, %690 : vector<2x32xf32>
    %c0_421 = arith.constant 0 : index
    %c0_422 = arith.constant 0 : index
    %692 = vector.load %arg12[%c0_421, %c0_422] : memref<2x32xf32, #tpu.memory_space<vmem>>, vector<2x32xf32>
    tpu.vector_store %arg12[%c0_421, %c0_422], %689 {strides = array<i32>} : memref<2x32xf32, #tpu.memory_space<vmem>>, vector<2x32xf32>,
    %c0_423 = arith.constant 0 : index
    %c0_424 = arith.constant 0 : index
    %693 = vector.load %arg11[%c0_423, %c0_424] : memref<2x32xf32, #tpu.memory_space<vmem>>, vector<2x32xf32>
    tpu.vector_store %arg11[%c0_423, %c0_424], %691 {strides = array<i32>} : memref<2x32xf32, #tpu.memory_space<vmem>>, vector<2x32xf32>,
    %694 = vector.extract_strided_slice %691 {offsets = [0, 0], sizes = [2, 16], strides = [1, 1]} : vector<2x32xf32> to vector<2x16xf32>
    %c5_425 = arith.constant 5 : index
    %c0_426 = arith.constant 0 : index
    %c0_427 = arith.constant 0 : index
    %695 = vector.load %arg9[%c5_425, %c0_426, %c0_427] : memref<8x2x16xf32, #tpu.memory_space<vmem>>, vector<1x2x16xf32>
    %696 = vector.shape_cast %695 : vector<1x2x16xf32> to vector<2x16xf32>
    %697 = vector.shape_cast %694 : vector<2x16xf32> to vector<1x2x16xf32>
    tpu.vector_store %arg9[%c5_425, %c0_426, %c0_427], %697 {strides = array<i32>} : memref<8x2x16xf32, #tpu.memory_space<vmem>>, vector<1x2x16xf32>,
    %698 = vector.extract_strided_slice %691 {offsets = [0, 16], sizes = [2, 16], strides = [1, 1]} : vector<2x32xf32> to vector<2x16xf32>
    %c2_428 = arith.constant 2 : index
    %c0_429 = arith.constant 0 : index
    %c0_430 = arith.constant 0 : index
    %699 = vector.load %arg10[%c2_428, %c0_429, %c0_430] : memref<8x2x16xf32, #tpu.memory_space<vmem>>, vector<1x2x16xf32>
    %700 = vector.shape_cast %699 : vector<1x2x16xf32> to vector<2x16xf32>
    %701 = vector.shape_cast %698 : vector<2x16xf32> to vector<1x2x16xf32>
    tpu.vector_store %arg10[%c2_428, %c0_429, %c0_430], %701 {strides = array<i32>} : memref<8x2x16xf32, #tpu.memory_space<vmem>>, vector<1x2x16xf32>,
    %c6_431 = arith.constant 6 : index
    %c0_432 = arith.constant 0 : index
    %c0_433 = arith.constant 0 : index
    %702 = vector.load %arg7[%c6_431, %c0_432, %c0_433] : memref<8x2x16xf32, #tpu.memory_space<vmem>>, vector<1x2x16xf32>
    %703 = vector.shape_cast %702 : vector<1x2x16xf32> to vector<2x16xf32>
    %c6_434 = arith.constant 6 : index
    %c0_435 = arith.constant 0 : index
    %c0_436 = arith.constant 0 : index
    %704 = vector.load %arg8[%c6_434, %c0_435, %c0_436] : memref<8x2x16xf32, #tpu.memory_space<vmem>>, vector<1x2x16xf32>
    %705 = vector.shape_cast %704 : vector<1x2x16xf32> to vector<2x16xf32>
    %706 = tpu.concatenate %703, %705 in 1 : vector<2x16xf32>, vector<2x16xf32> -> vector<2x32xf32>
    %c1_437 = arith.constant 1 : index
    %c0_438 = arith.constant 0 : index
    %c0_439 = arith.constant 0 : index
    %707 = vector.load %arg7[%c1_437, %c0_438, %c0_439] : memref<8x2x16xf32, #tpu.memory_space<vmem>>, vector<1x2x16xf32>
    %708 = vector.shape_cast %707 : vector<1x2x16xf32> to vector<2x16xf32>
    %c1_440 = arith.constant 1 : index
    %c0_441 = arith.constant 0 : index
    %c0_442 = arith.constant 0 : index
    %709 = vector.load %arg8[%c1_440, %c0_441, %c0_442] : memref<8x2x16xf32, #tpu.memory_space<vmem>>, vector<1x2x16xf32>
    %710 = vector.shape_cast %709 : vector<1x2x16xf32> to vector<2x16xf32>
    %711 = tpu.concatenate %708, %710 in 1 : vector<2x16xf32>, vector<2x16xf32> -> vector<2x32xf32>
    %c0_443 = arith.constant 0 : index
    %c0_444 = arith.constant 0 : index
    %712 = vector.load %arg11[%c0_443, %c0_444] : memref<2x32xf32, #tpu.memory_space<vmem>>, vector<2x32xf32>
    %713 = tpu.concatenate %706, %711, %712 in 1 : vector<2x32xf32>, vector<2x32xf32>, vector<2x32xf32> -> vector<2x96xf32>
    %c0_445 = arith.constant 0 : index
    %c0_446 = arith.constant 0 : index
    %714 = vector.load %arg4[%c0_445, %c0_446] : memref<96x128xf32, #tpu.memory_space<vmem>>, vector<96x128xf32>
    %cst_447 = arith.constant dense<0.000000e+00> : vector<2x128xf32>
    %715 = tpu.matmul %713, %714, %cst_447 {dimension_numbers = #tpu.dot_dimension_numbers<[1], [0], [0], [1], [0, 0, 1, 1], [], []>} : vector<2x96xf32>, vector<96x128xf32>, vector<2x128xf32> -> vector<2x128xf32>
    %c0_448 = arith.constant 0 : index
    %c0_449 = arith.constant 0 : index
    %716 = vector.load %arg5[%c0_448, %c0_449] : memref<1x128xf32, #tpu.memory_space<vmem>>, vector<1x128xf32>
    %717 = vector.broadcast %716 : vector<1x128xf32> to vector<2x128xf32>
    %718 = arith.addf %715, %717 : vector<2x128xf32>
    %719 = vector.extract_strided_slice %718 {offsets = [0, 0], sizes = [2, 32], strides = [1, 1]} : vector<2x128xf32> to vector<2x32xf32>
    %720 = arith.negf %719 : vector<2x32xf32>
    %721 = math.exp %720 : vector<2x32xf32>
    %cst_450 = arith.constant 1.000000e+00 : f32
    %722 = vector.broadcast %cst_450 : f32 to vector<2x32xf32>
    %723 = arith.addf %722, %721 : vector<2x32xf32>
    %724 = arith.divf %722, %723 : vector<2x32xf32>
    %725 = vector.extract_strided_slice %718 {offsets = [0, 32], sizes = [2, 32], strides = [1, 1]} : vector<2x128xf32> to vector<2x32xf32>
    %726 = arith.negf %725 : vector<2x32xf32>
    %727 = math.exp %726 : vector<2x32xf32>
    %cst_451 = arith.constant 1.000000e+00 : f32
    %728 = vector.broadcast %cst_451 : f32 to vector<2x32xf32>
    %729 = arith.addf %728, %727 : vector<2x32xf32>
    %730 = arith.divf %728, %729 : vector<2x32xf32>
    %731 = vector.extract_strided_slice %718 {offsets = [0, 64], sizes = [2, 32], strides = [1, 1]} : vector<2x128xf32> to vector<2x32xf32>
    %732 = math.tanh %731 : vector<2x32xf32>
    %733 = vector.extract_strided_slice %718 {offsets = [0, 96], sizes = [2, 32], strides = [1, 1]} : vector<2x128xf32> to vector<2x32xf32>
    %734 = arith.negf %733 : vector<2x32xf32>
    %735 = math.exp %734 : vector<2x32xf32>
    %cst_452 = arith.constant 1.000000e+00 : f32
    %736 = vector.broadcast %cst_452 : f32 to vector<2x32xf32>
    %737 = arith.addf %736, %735 : vector<2x32xf32>
    %738 = arith.divf %736, %737 : vector<2x32xf32>
    %c0_453 = arith.constant 0 : index
    %c0_454 = arith.constant 0 : index
    %739 = vector.load %arg12[%c0_453, %c0_454] : memref<2x32xf32, #tpu.memory_space<vmem>>, vector<2x32xf32>
    %740 = arith.mulf %730, %739 : vector<2x32xf32>
    %741 = arith.mulf %724, %732 : vector<2x32xf32>
    %742 = arith.addf %740, %741 : vector<2x32xf32>
    %743 = math.tanh %742 : vector<2x32xf32>
    %744 = arith.mulf %738, %743 : vector<2x32xf32>
    %c0_455 = arith.constant 0 : index
    %c0_456 = arith.constant 0 : index
    %745 = vector.load %arg12[%c0_455, %c0_456] : memref<2x32xf32, #tpu.memory_space<vmem>>, vector<2x32xf32>
    tpu.vector_store %arg12[%c0_455, %c0_456], %742 {strides = array<i32>} : memref<2x32xf32, #tpu.memory_space<vmem>>, vector<2x32xf32>,
    %c0_457 = arith.constant 0 : index
    %c0_458 = arith.constant 0 : index
    %746 = vector.load %arg11[%c0_457, %c0_458] : memref<2x32xf32, #tpu.memory_space<vmem>>, vector<2x32xf32>
    tpu.vector_store %arg11[%c0_457, %c0_458], %744 {strides = array<i32>} : memref<2x32xf32, #tpu.memory_space<vmem>>, vector<2x32xf32>,
    %747 = vector.extract_strided_slice %744 {offsets = [0, 0], sizes = [2, 16], strides = [1, 1]} : vector<2x32xf32> to vector<2x16xf32>
    %c6_459 = arith.constant 6 : index
    %c0_460 = arith.constant 0 : index
    %c0_461 = arith.constant 0 : index
    %748 = vector.load %arg9[%c6_459, %c0_460, %c0_461] : memref<8x2x16xf32, #tpu.memory_space<vmem>>, vector<1x2x16xf32>
    %749 = vector.shape_cast %748 : vector<1x2x16xf32> to vector<2x16xf32>
    %750 = vector.shape_cast %747 : vector<2x16xf32> to vector<1x2x16xf32>
    tpu.vector_store %arg9[%c6_459, %c0_460, %c0_461], %750 {strides = array<i32>} : memref<8x2x16xf32, #tpu.memory_space<vmem>>, vector<1x2x16xf32>,
    %751 = vector.extract_strided_slice %744 {offsets = [0, 16], sizes = [2, 16], strides = [1, 1]} : vector<2x32xf32> to vector<2x16xf32>
    %c1_462 = arith.constant 1 : index
    %c0_463 = arith.constant 0 : index
    %c0_464 = arith.constant 0 : index
    %752 = vector.load %arg10[%c1_462, %c0_463, %c0_464] : memref<8x2x16xf32, #tpu.memory_space<vmem>>, vector<1x2x16xf32>
    %753 = vector.shape_cast %752 : vector<1x2x16xf32> to vector<2x16xf32>
    %754 = vector.shape_cast %751 : vector<2x16xf32> to vector<1x2x16xf32>
    tpu.vector_store %arg10[%c1_462, %c0_463, %c0_464], %754 {strides = array<i32>} : memref<8x2x16xf32, #tpu.memory_space<vmem>>, vector<1x2x16xf32>,
    %c7_465 = arith.constant 7 : index
    %c0_466 = arith.constant 0 : index
    %c0_467 = arith.constant 0 : index
    %755 = vector.load %arg7[%c7_465, %c0_466, %c0_467] : memref<8x2x16xf32, #tpu.memory_space<vmem>>, vector<1x2x16xf32>
    %756 = vector.shape_cast %755 : vector<1x2x16xf32> to vector<2x16xf32>
    %c7_468 = arith.constant 7 : index
    %c0_469 = arith.constant 0 : index
    %c0_470 = arith.constant 0 : index
    %757 = vector.load %arg8[%c7_468, %c0_469, %c0_470] : memref<8x2x16xf32, #tpu.memory_space<vmem>>, vector<1x2x16xf32>
    %758 = vector.shape_cast %757 : vector<1x2x16xf32> to vector<2x16xf32>
    %759 = tpu.concatenate %756, %758 in 1 : vector<2x16xf32>, vector<2x16xf32> -> vector<2x32xf32>
    %c0_471 = arith.constant 0 : index
    %c0_472 = arith.constant 0 : index
    %c0_473 = arith.constant 0 : index
    %760 = vector.load %arg7[%c0_471, %c0_472, %c0_473] : memref<8x2x16xf32, #tpu.memory_space<vmem>>, vector<1x2x16xf32>
    %761 = vector.shape_cast %760 : vector<1x2x16xf32> to vector<2x16xf32>
    %c0_474 = arith.constant 0 : index
    %c0_475 = arith.constant 0 : index
    %c0_476 = arith.constant 0 : index
    %762 = vector.load %arg8[%c0_474, %c0_475, %c0_476] : memref<8x2x16xf32, #tpu.memory_space<vmem>>, vector<1x2x16xf32>
    %763 = vector.shape_cast %762 : vector<1x2x16xf32> to vector<2x16xf32>
    %764 = tpu.concatenate %761, %763 in 1 : vector<2x16xf32>, vector<2x16xf32> -> vector<2x32xf32>
    %c0_477 = arith.constant 0 : index
    %c0_478 = arith.constant 0 : index
    %765 = vector.load %arg11[%c0_477, %c0_478] : memref<2x32xf32, #tpu.memory_space<vmem>>, vector<2x32xf32>
    %766 = tpu.concatenate %759, %764, %765 in 1 : vector<2x32xf32>, vector<2x32xf32>, vector<2x32xf32> -> vector<2x96xf32>
    %c0_479 = arith.constant 0 : index
    %c0_480 = arith.constant 0 : index
    %767 = vector.load %arg4[%c0_479, %c0_480] : memref<96x128xf32, #tpu.memory_space<vmem>>, vector<96x128xf32>
    %cst_481 = arith.constant dense<0.000000e+00> : vector<2x128xf32>
    %768 = tpu.matmul %766, %767, %cst_481 {dimension_numbers = #tpu.dot_dimension_numbers<[1], [0], [0], [1], [0, 0, 1, 1], [], []>} : vector<2x96xf32>, vector<96x128xf32>, vector<2x128xf32> -> vector<2x128xf32>
    %c0_482 = arith.constant 0 : index
    %c0_483 = arith.constant 0 : index
    %769 = vector.load %arg5[%c0_482, %c0_483] : memref<1x128xf32, #tpu.memory_space<vmem>>, vector<1x128xf32>
    %770 = vector.broadcast %769 : vector<1x128xf32> to vector<2x128xf32>
    %771 = arith.addf %768, %770 : vector<2x128xf32>
    %772 = vector.extract_strided_slice %771 {offsets = [0, 0], sizes = [2, 32], strides = [1, 1]} : vector<2x128xf32> to vector<2x32xf32>
    %773 = arith.negf %772 : vector<2x32xf32>
    %774 = math.exp %773 : vector<2x32xf32>
    %cst_484 = arith.constant 1.000000e+00 : f32
    %775 = vector.broadcast %cst_484 : f32 to vector<2x32xf32>
    %776 = arith.addf %775, %774 : vector<2x32xf32>
    %777 = arith.divf %775, %776 : vector<2x32xf32>
    %778 = vector.extract_strided_slice %771 {offsets = [0, 32], sizes = [2, 32], strides = [1, 1]} : vector<2x128xf32> to vector<2x32xf32>
    %779 = arith.negf %778 : vector<2x32xf32>
    %780 = math.exp %779 : vector<2x32xf32>
    %cst_485 = arith.constant 1.000000e+00 : f32
    %781 = vector.broadcast %cst_485 : f32 to vector<2x32xf32>
    %782 = arith.addf %781, %780 : vector<2x32xf32>
    %783 = arith.divf %781, %782 : vector<2x32xf32>
    %784 = vector.extract_strided_slice %771 {offsets = [0, 64], sizes = [2, 32], strides = [1, 1]} : vector<2x128xf32> to vector<2x32xf32>
    %785 = math.tanh %784 : vector<2x32xf32>
    %786 = vector.extract_strided_slice %771 {offsets = [0, 96], sizes = [2, 32], strides = [1, 1]} : vector<2x128xf32> to vector<2x32xf32>
    %787 = arith.negf %786 : vector<2x32xf32>
    %788 = math.exp %787 : vector<2x32xf32>
    %cst_486 = arith.constant 1.000000e+00 : f32
    %789 = vector.broadcast %cst_486 : f32 to vector<2x32xf32>
    %790 = arith.addf %789, %788 : vector<2x32xf32>
    %791 = arith.divf %789, %790 : vector<2x32xf32>
    %c0_487 = arith.constant 0 : index
    %c0_488 = arith.constant 0 : index
    %792 = vector.load %arg12[%c0_487, %c0_488] : memref<2x32xf32, #tpu.memory_space<vmem>>, vector<2x32xf32>
    %793 = arith.mulf %783, %792 : vector<2x32xf32>
    %794 = arith.mulf %777, %785 : vector<2x32xf32>
    %795 = arith.addf %793, %794 : vector<2x32xf32>
    %796 = math.tanh %795 : vector<2x32xf32>
    %797 = arith.mulf %791, %796 : vector<2x32xf32>
    %c0_489 = arith.constant 0 : index
    %c0_490 = arith.constant 0 : index
    %798 = vector.load %arg12[%c0_489, %c0_490] : memref<2x32xf32, #tpu.memory_space<vmem>>, vector<2x32xf32>
    tpu.vector_store %arg12[%c0_489, %c0_490], %795 {strides = array<i32>} : memref<2x32xf32, #tpu.memory_space<vmem>>, vector<2x32xf32>,
    %c0_491 = arith.constant 0 : index
    %c0_492 = arith.constant 0 : index
    %799 = vector.load %arg11[%c0_491, %c0_492] : memref<2x32xf32, #tpu.memory_space<vmem>>, vector<2x32xf32>
    tpu.vector_store %arg11[%c0_491, %c0_492], %797 {strides = array<i32>} : memref<2x32xf32, #tpu.memory_space<vmem>>, vector<2x32xf32>,
    %800 = vector.extract_strided_slice %797 {offsets = [0, 0], sizes = [2, 16], strides = [1, 1]} : vector<2x32xf32> to vector<2x16xf32>
    %c7_493 = arith.constant 7 : index
    %c0_494 = arith.constant 0 : index
    %c0_495 = arith.constant 0 : index
    %801 = vector.load %arg9[%c7_493, %c0_494, %c0_495] : memref<8x2x16xf32, #tpu.memory_space<vmem>>, vector<1x2x16xf32>
    %802 = vector.shape_cast %801 : vector<1x2x16xf32> to vector<2x16xf32>
    %803 = vector.shape_cast %800 : vector<2x16xf32> to vector<1x2x16xf32>
    tpu.vector_store %arg9[%c7_493, %c0_494, %c0_495], %803 {strides = array<i32>} : memref<8x2x16xf32, #tpu.memory_space<vmem>>, vector<1x2x16xf32>,
    %804 = vector.extract_strided_slice %797 {offsets = [0, 16], sizes = [2, 16], strides = [1, 1]} : vector<2x32xf32> to vector<2x16xf32>
    %c0_496 = arith.constant 0 : index
    %c0_497 = arith.constant 0 : index
    %c0_498 = arith.constant 0 : index
    %805 = vector.load %arg10[%c0_496, %c0_497, %c0_498] : memref<8x2x16xf32, #tpu.memory_space<vmem>>, vector<1x2x16xf32>
    %806 = vector.shape_cast %805 : vector<1x2x16xf32> to vector<2x16xf32>
    %807 = vector.shape_cast %804 : vector<2x16xf32> to vector<1x2x16xf32>
    tpu.vector_store %arg10[%c0_496, %c0_497, %c0_498], %807 {strides = array<i32>} : memref<8x2x16xf32, #tpu.memory_space<vmem>>, vector<1x2x16xf32>,
    %c0_499 = arith.constant 0 : index
    %c0_500 = arith.constant 0 : index
    %c0_501 = arith.constant 0 : index
    %808 = vector.load %arg9[%c0_499, %c0_500, %c0_501] : memref<8x2x16xf32, #tpu.memory_space<vmem>>, vector<8x2x16xf32>
    %c0_502 = arith.constant 0 : index
    %c0_503 = arith.constant 0 : index
    %c0_504 = arith.constant 0 : index
    %809 = vector.load %arg10[%c0_502, %c0_503, %c0_504] : memref<8x2x16xf32, #tpu.memory_space<vmem>>, vector<8x2x16xf32>
    %810 = tpu.concatenate %808, %809 in 2 : vector<8x2x16xf32>, vector<8x2x16xf32> -> vector<8x2x32xf32>
    %c0_505 = arith.constant 0 : index
    %c0_506 = arith.constant 0 : index
    %c0_507 = arith.constant 0 : index
    %811 = vector.load %arg6[%c0_505, %c0_506, %c0_507] : memref<8x2x32xf32, #tpu.memory_space<vmem>>, vector<8x2x32xf32>
    tpu.vector_store %arg6[%c0_505, %c0_506, %c0_507], %810 {strides = array<i32>} : memref<8x2x32xf32, #tpu.memory_space<vmem>>, vector<8x2x32xf32>,
    return
  }
  func.func @transform_0(%arg0: i32) -> (i32, i32, i32) {
    %c0_i32 = arith.constant 0 : i32
    %c0_i32_0 = arith.constant 0 : i32
    %c0_i32_1 = arith.constant 0 : i32
    %c0_i32_2 = arith.constant 0 : i32
    return %c0_i32, %c0_i32_0, %c0_i32_1 : i32, i32, i32
  }
  func.func @transform_1(%arg0: i32) -> (i32, i32) {
    %c0_i32 = arith.constant 0 : i32
    %c0_i32_0 = arith.constant 0 : i32
    %c0_i32_1 = arith.constant 0 : i32
    return %c0_i32, %c0_i32_0 : i32, i32
  }
  func.func @transform_2(%arg0: i32) -> (i32, i32) {
    %c0_i32 = arith.constant 0 : i32
    %c0_i32_0 = arith.constant 0 : i32
    %c0_i32_1 = arith.constant 0 : i32
    return %c0_i32, %c0_i32_0 : i32, i32
  }
  func.func @transform_3(%arg0: i32) -> (i32, i32) {
    %c0_i32 = arith.constant 0 : i32
    %c0_i32_0 = arith.constant 0 : i32
    %c0_i32_1 = arith.constant 0 : i32
    return %c0_i32, %c0_i32_0 : i32, i32
  }
  func.func @transform_4(%arg0: i32) -> (i32, i32) {
    %c0_i32 = arith.constant 0 : i32
    %c0_i32_0 = arith.constant 0 : i32
    %c0_i32_1 = arith.constant 0 : i32
    return %c0_i32, %c0_i32_0 : i32, i32
  }
  func.func @transform_5(%arg0: i32) -> (i32, i32, i32) {
    %c0_i32 = arith.constant 0 : i32
    %c0_i32_0 = arith.constant 0 : i32
    %c0_i32_1 = arith.constant 0 : i32
    %c0_i32_2 = arith.constant 0 : i32
    return %c0_i32, %c0_i32_0, %c0_i32_1 : i32, i32, i32
  }
}

module attributes {stable_mosaic.version = 11 : i64} {
  func.func @_graphnet_kernel(%arg0: i32, %arg1: memref<14x32xf32, #tpu.memory_space<vmem>>, %arg2: memref<8x14x14xf32, #tpu.memory_space<vmem>>, %arg3: memref<32x256xf32, #tpu.memory_space<vmem>>, %arg4: memref<32x32xf32, #tpu.memory_space<vmem>>, %arg5: memref<1x32xf32, #tpu.memory_space<vmem>>, %arg6: memref<14x1xf32, #tpu.memory_space<vmem>>, %arg7: memref<14x14xf32, #tpu.memory_space<vmem>>, %arg8: memref<32x32xf32, #tpu.memory_space<vmem>>, %arg9: memref<32x32xf32, #tpu.memory_space<vmem>>, %arg10: memref<1x32xf32, #tpu.memory_space<vmem>>, %arg11: memref<14x32xf32, #tpu.memory_space<vmem>>) attributes {dimension_semantics = [#tpu.dimension_semantics<arbitrary>], iteration_bounds = array<i64: 1>, scalar_prefetch = 0 : i64, scratch_operands = 0 : i64, tpu.core_type = #tpu.core_type<tc>, window_params = [{pipeline_mode = #tpu.pipeline_mode<synchronous>, transform_indices = @transform_0, window_bounds = array<i64: 14, 32>}, {pipeline_mode = #tpu.pipeline_mode<synchronous>, transform_indices = @transform_1, window_bounds = array<i64: 8, 14, 14>}, {pipeline_mode = #tpu.pipeline_mode<synchronous>, transform_indices = @transform_2, window_bounds = array<i64: 32, 256>}, {pipeline_mode = #tpu.pipeline_mode<synchronous>, transform_indices = @transform_3, window_bounds = array<i64: 32, 32>}, {pipeline_mode = #tpu.pipeline_mode<synchronous>, transform_indices = @transform_4, window_bounds = array<i64: 1, 32>}, {pipeline_mode = #tpu.pipeline_mode<synchronous>, transform_indices = @transform_5, window_bounds = array<i64: 14, 1>}, {pipeline_mode = #tpu.pipeline_mode<synchronous>, transform_indices = @transform_6, window_bounds = array<i64: 14, 14>}, {pipeline_mode = #tpu.pipeline_mode<synchronous>, transform_indices = @transform_7, window_bounds = array<i64: 32, 32>}, {pipeline_mode = #tpu.pipeline_mode<synchronous>, transform_indices = @transform_8, window_bounds = array<i64: 32, 32>}, {pipeline_mode = #tpu.pipeline_mode<synchronous>, transform_indices = @transform_9, window_bounds = array<i64: 1, 32>}, {pipeline_mode = #tpu.pipeline_mode<synchronous>, transform_indices = @transform_10, window_bounds = array<i64: 14, 32>}]} {
    %c0 = arith.constant 0 : index
    %c0_0 = arith.constant 0 : index
    %0 = vector.load %arg1[%c0, %c0_0] : memref<14x32xf32, #tpu.memory_space<vmem>>, vector<14x32xf32>
    %c0_1 = arith.constant 0 : index
    %c0_2 = arith.constant 0 : index
    %1 = vector.load %arg3[%c0_1, %c0_2] : memref<32x256xf32, #tpu.memory_space<vmem>>, vector<32x256xf32>
    %cst = arith.constant dense<0.000000e+00> : vector<14x256xf32>
    %2 = tpu.matmul %0, %1, %cst {dimension_numbers = #tpu.dot_dimension_numbers<[1], [0], [0], [1], [0, 0, 1, 1], [], []>} : vector<14x32xf32>, vector<32x256xf32>, vector<14x256xf32> -> vector<14x256xf32>
    %c0_3 = arith.constant 0 : index
    %c0_4 = arith.constant 0 : index
    %c0_5 = arith.constant 0 : index
    %3 = vector.load %arg2[%c0_3, %c0_4, %c0_5] : memref<8x14x14xf32, #tpu.memory_space<vmem>>, vector<1x14x14xf32>
    %4 = vector.shape_cast %3 : vector<1x14x14xf32> to vector<14x14xf32>
    %5 = vector.extract_strided_slice %2 {offsets = [0, 0], sizes = [14, 32], strides = [1, 1]} : vector<14x256xf32> to vector<14x32xf32>
    %cst_6 = arith.constant dense<0.000000e+00> : vector<14x32xf32>
    %6 = tpu.matmul %4, %5, %cst_6 {dimension_numbers = #tpu.dot_dimension_numbers<[1], [0], [0], [1], [0, 0, 1, 1], [], []>} : vector<14x14xf32>, vector<14x32xf32>, vector<14x32xf32> -> vector<14x32xf32>
    %c1 = arith.constant 1 : index
    %c0_7 = arith.constant 0 : index
    %c0_8 = arith.constant 0 : index
    %7 = vector.load %arg2[%c1, %c0_7, %c0_8] : memref<8x14x14xf32, #tpu.memory_space<vmem>>, vector<1x14x14xf32>
    %8 = vector.shape_cast %7 : vector<1x14x14xf32> to vector<14x14xf32>
    %9 = vector.extract_strided_slice %2 {offsets = [0, 32], sizes = [14, 32], strides = [1, 1]} : vector<14x256xf32> to vector<14x32xf32>
    %cst_9 = arith.constant dense<0.000000e+00> : vector<14x32xf32>
    %10 = tpu.matmul %8, %9, %cst_9 {dimension_numbers = #tpu.dot_dimension_numbers<[1], [0], [0], [1], [0, 0, 1, 1], [], []>} : vector<14x14xf32>, vector<14x32xf32>, vector<14x32xf32> -> vector<14x32xf32>
    %11 = arith.addf %6, %10 : vector<14x32xf32>
    %c2 = arith.constant 2 : index
    %c0_10 = arith.constant 0 : index
    %c0_11 = arith.constant 0 : index
    %12 = vector.load %arg2[%c2, %c0_10, %c0_11] : memref<8x14x14xf32, #tpu.memory_space<vmem>>, vector<1x14x14xf32>
    %13 = vector.shape_cast %12 : vector<1x14x14xf32> to vector<14x14xf32>
    %14 = vector.extract_strided_slice %2 {offsets = [0, 64], sizes = [14, 32], strides = [1, 1]} : vector<14x256xf32> to vector<14x32xf32>
    %cst_12 = arith.constant dense<0.000000e+00> : vector<14x32xf32>
    %15 = tpu.matmul %13, %14, %cst_12 {dimension_numbers = #tpu.dot_dimension_numbers<[1], [0], [0], [1], [0, 0, 1, 1], [], []>} : vector<14x14xf32>, vector<14x32xf32>, vector<14x32xf32> -> vector<14x32xf32>
    %16 = arith.addf %11, %15 : vector<14x32xf32>
    %c3 = arith.constant 3 : index
    %c0_13 = arith.constant 0 : index
    %c0_14 = arith.constant 0 : index
    %17 = vector.load %arg2[%c3, %c0_13, %c0_14] : memref<8x14x14xf32, #tpu.memory_space<vmem>>, vector<1x14x14xf32>
    %18 = vector.shape_cast %17 : vector<1x14x14xf32> to vector<14x14xf32>
    %19 = vector.extract_strided_slice %2 {offsets = [0, 96], sizes = [14, 32], strides = [1, 1]} : vector<14x256xf32> to vector<14x32xf32>
    %cst_15 = arith.constant dense<0.000000e+00> : vector<14x32xf32>
    %20 = tpu.matmul %18, %19, %cst_15 {dimension_numbers = #tpu.dot_dimension_numbers<[1], [0], [0], [1], [0, 0, 1, 1], [], []>} : vector<14x14xf32>, vector<14x32xf32>, vector<14x32xf32> -> vector<14x32xf32>
    %21 = arith.addf %16, %20 : vector<14x32xf32>
    %c4 = arith.constant 4 : index
    %c0_16 = arith.constant 0 : index
    %c0_17 = arith.constant 0 : index
    %22 = vector.load %arg2[%c4, %c0_16, %c0_17] : memref<8x14x14xf32, #tpu.memory_space<vmem>>, vector<1x14x14xf32>
    %23 = vector.shape_cast %22 : vector<1x14x14xf32> to vector<14x14xf32>
    %24 = vector.extract_strided_slice %2 {offsets = [0, 128], sizes = [14, 32], strides = [1, 1]} : vector<14x256xf32> to vector<14x32xf32>
    %cst_18 = arith.constant dense<0.000000e+00> : vector<14x32xf32>
    %25 = tpu.matmul %23, %24, %cst_18 {dimension_numbers = #tpu.dot_dimension_numbers<[1], [0], [0], [1], [0, 0, 1, 1], [], []>} : vector<14x14xf32>, vector<14x32xf32>, vector<14x32xf32> -> vector<14x32xf32>
    %26 = arith.addf %21, %25 : vector<14x32xf32>
    %c5 = arith.constant 5 : index
    %c0_19 = arith.constant 0 : index
    %c0_20 = arith.constant 0 : index
    %27 = vector.load %arg2[%c5, %c0_19, %c0_20] : memref<8x14x14xf32, #tpu.memory_space<vmem>>, vector<1x14x14xf32>
    %28 = vector.shape_cast %27 : vector<1x14x14xf32> to vector<14x14xf32>
    %29 = vector.extract_strided_slice %2 {offsets = [0, 160], sizes = [14, 32], strides = [1, 1]} : vector<14x256xf32> to vector<14x32xf32>
    %cst_21 = arith.constant dense<0.000000e+00> : vector<14x32xf32>
    %30 = tpu.matmul %28, %29, %cst_21 {dimension_numbers = #tpu.dot_dimension_numbers<[1], [0], [0], [1], [0, 0, 1, 1], [], []>} : vector<14x14xf32>, vector<14x32xf32>, vector<14x32xf32> -> vector<14x32xf32>
    %31 = arith.addf %26, %30 : vector<14x32xf32>
    %c6 = arith.constant 6 : index
    %c0_22 = arith.constant 0 : index
    %c0_23 = arith.constant 0 : index
    %32 = vector.load %arg2[%c6, %c0_22, %c0_23] : memref<8x14x14xf32, #tpu.memory_space<vmem>>, vector<1x14x14xf32>
    %33 = vector.shape_cast %32 : vector<1x14x14xf32> to vector<14x14xf32>
    %34 = vector.extract_strided_slice %2 {offsets = [0, 192], sizes = [14, 32], strides = [1, 1]} : vector<14x256xf32> to vector<14x32xf32>
    %cst_24 = arith.constant dense<0.000000e+00> : vector<14x32xf32>
    %35 = tpu.matmul %33, %34, %cst_24 {dimension_numbers = #tpu.dot_dimension_numbers<[1], [0], [0], [1], [0, 0, 1, 1], [], []>} : vector<14x14xf32>, vector<14x32xf32>, vector<14x32xf32> -> vector<14x32xf32>
    %36 = arith.addf %31, %35 : vector<14x32xf32>
    %c7 = arith.constant 7 : index
    %c0_25 = arith.constant 0 : index
    %c0_26 = arith.constant 0 : index
    %37 = vector.load %arg2[%c7, %c0_25, %c0_26] : memref<8x14x14xf32, #tpu.memory_space<vmem>>, vector<1x14x14xf32>
    %38 = vector.shape_cast %37 : vector<1x14x14xf32> to vector<14x14xf32>
    %39 = vector.extract_strided_slice %2 {offsets = [0, 224], sizes = [14, 32], strides = [1, 1]} : vector<14x256xf32> to vector<14x32xf32>
    %cst_27 = arith.constant dense<0.000000e+00> : vector<14x32xf32>
    %40 = tpu.matmul %38, %39, %cst_27 {dimension_numbers = #tpu.dot_dimension_numbers<[1], [0], [0], [1], [0, 0, 1, 1], [], []>} : vector<14x14xf32>, vector<14x32xf32>, vector<14x32xf32> -> vector<14x32xf32>
    %41 = arith.addf %36, %40 : vector<14x32xf32>
    %c0_28 = arith.constant 0 : index
    %c0_29 = arith.constant 0 : index
    %42 = vector.load %arg6[%c0_28, %c0_29] : memref<14x1xf32, #tpu.memory_space<vmem>>, vector<14x1xf32>
    %43 = vector.broadcast %42 : vector<14x1xf32> to vector<14x32xf32>
    %44 = arith.mulf %43, %41 : vector<14x32xf32>
    %c0_30 = arith.constant 0 : index
    %c0_31 = arith.constant 0 : index
    %45 = vector.load %arg4[%c0_30, %c0_31] : memref<32x32xf32, #tpu.memory_space<vmem>>, vector<32x32xf32>
    %cst_32 = arith.constant dense<0.000000e+00> : vector<14x32xf32>
    %46 = tpu.matmul %0, %45, %cst_32 {dimension_numbers = #tpu.dot_dimension_numbers<[1], [0], [0], [1], [0, 0, 1, 1], [], []>} : vector<14x32xf32>, vector<32x32xf32>, vector<14x32xf32> -> vector<14x32xf32>
    %47 = arith.addf %44, %46 : vector<14x32xf32>
    %c0_33 = arith.constant 0 : index
    %c0_34 = arith.constant 0 : index
    %48 = vector.load %arg5[%c0_33, %c0_34] : memref<1x32xf32, #tpu.memory_space<vmem>>, vector<1x32xf32>
    %49 = vector.broadcast %48 : vector<1x32xf32> to vector<14x32xf32>
    %50 = arith.addf %47, %49 : vector<14x32xf32>
    %c0_35 = arith.constant 0 : index
    %c0_36 = arith.constant 0 : index
    %51 = vector.load %arg8[%c0_35, %c0_36] : memref<32x32xf32, #tpu.memory_space<vmem>>, vector<32x32xf32>
    %cst_37 = arith.constant dense<0.000000e+00> : vector<14x32xf32>
    %52 = tpu.matmul %50, %51, %cst_37 {dimension_numbers = #tpu.dot_dimension_numbers<[1], [0], [0], [1], [0, 0, 1, 1], [], []>} : vector<14x32xf32>, vector<32x32xf32>, vector<14x32xf32> -> vector<14x32xf32>
    %c0_38 = arith.constant 0 : index
    %c0_39 = arith.constant 0 : index
    %53 = vector.load %arg7[%c0_38, %c0_39] : memref<14x14xf32, #tpu.memory_space<vmem>>, vector<14x14xf32>
    %cst_40 = arith.constant dense<0.000000e+00> : vector<14x32xf32>
    %54 = tpu.matmul %53, %52, %cst_40 {dimension_numbers = #tpu.dot_dimension_numbers<[1], [0], [0], [1], [0, 0, 1, 1], [], []>} : vector<14x14xf32>, vector<14x32xf32>, vector<14x32xf32> -> vector<14x32xf32>
    %c0_41 = arith.constant 0 : index
    %c0_42 = arith.constant 0 : index
    %55 = vector.load %arg9[%c0_41, %c0_42] : memref<32x32xf32, #tpu.memory_space<vmem>>, vector<32x32xf32>
    %cst_43 = arith.constant dense<0.000000e+00> : vector<14x32xf32>
    %56 = tpu.matmul %50, %55, %cst_43 {dimension_numbers = #tpu.dot_dimension_numbers<[1], [0], [0], [1], [0, 0, 1, 1], [], []>} : vector<14x32xf32>, vector<32x32xf32>, vector<14x32xf32> -> vector<14x32xf32>
    %57 = arith.addf %54, %56 : vector<14x32xf32>
    %c0_44 = arith.constant 0 : index
    %c0_45 = arith.constant 0 : index
    %58 = vector.load %arg10[%c0_44, %c0_45] : memref<1x32xf32, #tpu.memory_space<vmem>>, vector<1x32xf32>
    %59 = vector.broadcast %58 : vector<1x32xf32> to vector<14x32xf32>
    %60 = arith.addf %57, %59 : vector<14x32xf32>
    %c0_46 = arith.constant 0 : index
    %c0_47 = arith.constant 0 : index
    %61 = vector.load %arg11[%c0_46, %c0_47] : memref<14x32xf32, #tpu.memory_space<vmem>>, vector<14x32xf32>
    tpu.vector_store %arg11[%c0_46, %c0_47], %60 {strides = array<i32>} : memref<14x32xf32, #tpu.memory_space<vmem>>, vector<14x32xf32>,
    return
  }
  func.func @transform_0(%arg0: i32) -> (i32, i32) {
    %c0_i32 = arith.constant 0 : i32
    %c0_i32_0 = arith.constant 0 : i32
    %c0_i32_1 = arith.constant 0 : i32
    return %c0_i32, %c0_i32_0 : i32, i32
  }
  func.func @transform_1(%arg0: i32) -> (i32, i32, i32) {
    %c0_i32 = arith.constant 0 : i32
    %c0_i32_0 = arith.constant 0 : i32
    %c0_i32_1 = arith.constant 0 : i32
    %c0_i32_2 = arith.constant 0 : i32
    return %c0_i32, %c0_i32_0, %c0_i32_1 : i32, i32, i32
  }
  func.func @transform_2(%arg0: i32) -> (i32, i32) {
    %c0_i32 = arith.constant 0 : i32
    %c0_i32_0 = arith.constant 0 : i32
    %c0_i32_1 = arith.constant 0 : i32
    return %c0_i32, %c0_i32_0 : i32, i32
  }
  func.func @transform_3(%arg0: i32) -> (i32, i32) {
    %c0_i32 = arith.constant 0 : i32
    %c0_i32_0 = arith.constant 0 : i32
    %c0_i32_1 = arith.constant 0 : i32
    return %c0_i32, %c0_i32_0 : i32, i32
  }
  func.func @transform_4(%arg0: i32) -> (i32, i32) {
    %c0_i32 = arith.constant 0 : i32
    %c0_i32_0 = arith.constant 0 : i32
    %c0_i32_1 = arith.constant 0 : i32
    return %c0_i32, %c0_i32_0 : i32, i32
  }
  func.func @transform_5(%arg0: i32) -> (i32, i32) {
    %c0_i32 = arith.constant 0 : i32
    %c0_i32_0 = arith.constant 0 : i32
    %c0_i32_1 = arith.constant 0 : i32
    return %c0_i32, %c0_i32_0 : i32, i32
  }
  func.func @transform_6(%arg0: i32) -> (i32, i32) {
    %c0_i32 = arith.constant 0 : i32
    %c0_i32_0 = arith.constant 0 : i32
    %c0_i32_1 = arith.constant 0 : i32
    return %c0_i32, %c0_i32_0 : i32, i32
  }
  func.func @transform_7(%arg0: i32) -> (i32, i32) {
    %c0_i32 = arith.constant 0 : i32
    %c0_i32_0 = arith.constant 0 : i32
    %c0_i32_1 = arith.constant 0 : i32
    return %c0_i32, %c0_i32_0 : i32, i32
  }
  func.func @transform_8(%arg0: i32) -> (i32, i32) {
    %c0_i32 = arith.constant 0 : i32
    %c0_i32_0 = arith.constant 0 : i32
    %c0_i32_1 = arith.constant 0 : i32
    return %c0_i32, %c0_i32_0 : i32, i32
  }
  func.func @transform_9(%arg0: i32) -> (i32, i32) {
    %c0_i32 = arith.constant 0 : i32
    %c0_i32_0 = arith.constant 0 : i32
    %c0_i32_1 = arith.constant 0 : i32
    return %c0_i32, %c0_i32_0 : i32, i32
  }
  func.func @transform_10(%arg0: i32) -> (i32, i32) {
    %c0_i32 = arith.constant 0 : i32
    %c0_i32_0 = arith.constant 0 : i32
    %c0_i32_1 = arith.constant 0 : i32
    return %c0_i32, %c0_i32_0 : i32, i32
  }
}

module attributes {stable_mosaic.version = 11 : i64} {
  func.func @_matchatt_classify_kernel(%arg0: i32, %arg1: memref<2x8x64xf32, #tpu.memory_space<vmem>>, %arg2: memref<2x1x8xf32, #tpu.memory_space<vmem>>, %arg3: memref<2x8x1xf32, #tpu.memory_space<vmem>>, %arg4: memref<64x64xf32, #tpu.memory_space<vmem>>, %arg5: memref<1x64xf32, #tpu.memory_space<vmem>>, %arg6: memref<64x32xf32, #tpu.memory_space<vmem>>, %arg7: memref<1x32xf32, #tpu.memory_space<vmem>>, %arg8: memref<32x128xf32, #tpu.memory_space<vmem>>, %arg9: memref<1x128xf32, #tpu.memory_space<vmem>>, %arg10: memref<2x8x128xf32, #tpu.memory_space<vmem>>) attributes {dimension_semantics = [#tpu.dimension_semantics<arbitrary>], iteration_bounds = array<i64: 1>, scalar_prefetch = 0 : i64, scratch_operands = 0 : i64, tpu.core_type = #tpu.core_type<tc>, window_params = [{pipeline_mode = #tpu.pipeline_mode<synchronous>, transform_indices = @transform_0, window_bounds = array<i64: 2, 8, 64>}, {pipeline_mode = #tpu.pipeline_mode<synchronous>, transform_indices = @transform_1, window_bounds = array<i64: 2, 1, 8>}, {pipeline_mode = #tpu.pipeline_mode<synchronous>, transform_indices = @transform_2, window_bounds = array<i64: 2, 8, 1>}, {pipeline_mode = #tpu.pipeline_mode<synchronous>, transform_indices = @transform_3, window_bounds = array<i64: 64, 64>}, {pipeline_mode = #tpu.pipeline_mode<synchronous>, transform_indices = @transform_4, window_bounds = array<i64: 1, 64>}, {pipeline_mode = #tpu.pipeline_mode<synchronous>, transform_indices = @transform_5, window_bounds = array<i64: 64, 32>}, {pipeline_mode = #tpu.pipeline_mode<synchronous>, transform_indices = @transform_6, window_bounds = array<i64: 1, 32>}, {pipeline_mode = #tpu.pipeline_mode<synchronous>, transform_indices = @transform_7, window_bounds = array<i64: 32, 128>}, {pipeline_mode = #tpu.pipeline_mode<synchronous>, transform_indices = @transform_8, window_bounds = array<i64: 1, 128>}, {pipeline_mode = #tpu.pipeline_mode<synchronous>, transform_indices = @transform_9, window_bounds = array<i64: 2, 8, 128>}]} {
    %c0 = arith.constant 0 : index
    %c0_0 = arith.constant 0 : index
    %0 = vector.load %arg4[%c0, %c0_0] : memref<64x64xf32, #tpu.memory_space<vmem>>, vector<64x64xf32>
    %c0_1 = arith.constant 0 : index
    %c0_2 = arith.constant 0 : index
    %1 = vector.load %arg5[%c0_1, %c0_2] : memref<1x64xf32, #tpu.memory_space<vmem>>, vector<1x64xf32>
    %c0_3 = arith.constant 0 : index
    %c0_4 = arith.constant 0 : index
    %2 = vector.load %arg6[%c0_3, %c0_4] : memref<64x32xf32, #tpu.memory_space<vmem>>, vector<64x32xf32>
    %c0_5 = arith.constant 0 : index
    %c0_6 = arith.constant 0 : index
    %3 = vector.load %arg7[%c0_5, %c0_6] : memref<1x32xf32, #tpu.memory_space<vmem>>, vector<1x32xf32>
    %c0_7 = arith.constant 0 : index
    %c0_8 = arith.constant 0 : index
    %4 = vector.load %arg8[%c0_7, %c0_8] : memref<32x128xf32, #tpu.memory_space<vmem>>, vector<32x128xf32>
    %c0_9 = arith.constant 0 : index
    %c0_10 = arith.constant 0 : index
    %5 = vector.load %arg9[%c0_9, %c0_10] : memref<1x128xf32, #tpu.memory_space<vmem>>, vector<1x128xf32>
    %c0_11 = arith.constant 0 : index
    %c0_12 = arith.constant 0 : index
    %c0_13 = arith.constant 0 : index
    %6 = vector.load %arg1[%c0_11, %c0_12, %c0_13] : memref<2x8x64xf32, #tpu.memory_space<vmem>>, vector<1x8x64xf32>
    %7 = vector.shape_cast %6 : vector<1x8x64xf32> to vector<8x64xf32>
    %c0_14 = arith.constant 0 : index
    %c0_15 = arith.constant 0 : index
    %c0_16 = arith.constant 0 : index
    %8 = vector.load %arg2[%c0_14, %c0_15, %c0_16] : memref<2x1x8xf32, #tpu.memory_space<vmem>>, vector<1x1x8xf32>
    %9 = vector.shape_cast %8 : vector<1x1x8xf32> to vector<1x8xf32>
    %c0_17 = arith.constant 0 : index
    %c0_18 = arith.constant 0 : index
    %c0_19 = arith.constant 0 : index
    %10 = vector.load %arg3[%c0_17, %c0_18, %c0_19] : memref<2x8x1xf32, #tpu.memory_space<vmem>>, vector<1x8x1xf32>
    %11 = vector.shape_cast %10 : vector<1x8x1xf32> to vector<8x1xf32>
    %cst = arith.constant dense<0.000000e+00> : vector<8x64xf32>
    %12 = tpu.matmul %7, %0, %cst {dimension_numbers = #tpu.dot_dimension_numbers<[1], [0], [0], [1], [0, 0, 1, 1], [], []>} : vector<8x64xf32>, vector<64x64xf32>, vector<8x64xf32> -> vector<8x64xf32>
    %13 = vector.broadcast %1 : vector<1x64xf32> to vector<8x64xf32>
    %14 = arith.addf %12, %13 : vector<8x64xf32>
    %15 = vector.broadcast %11 : vector<8x1xf32> to vector<8x64xf32>
    %16 = arith.mulf %7, %15 : vector<8x64xf32>
    %17 = tpu.transpose %16, [1, 0] : vector<8x64xf32> -> vector<64x8xf32>
    %cst_20 = arith.constant dense<0.000000e+00> : vector<8x8xf32>
    %18 = tpu.matmul %14, %17, %cst_20 {dimension_numbers = #tpu.dot_dimension_numbers<[1], [0], [0], [1], [0, 0, 1, 1], [], []>} : vector<8x64xf32>, vector<64x8xf32>, vector<8x8xf32> -> vector<8x8xf32>
    %19 = vector.broadcast %9 : vector<1x8xf32> to vector<8x8xf32>
    %20 = arith.mulf %18, %19 : vector<8x8xf32>
    %21 = math.tanh %20 : vector<8x8xf32>
    %cst_21 = arith.constant dense<0xFF800000> : vector<8xf32>
    %22 = vector.multi_reduction <maximumf>, %21, %cst_21 [1] : vector<8x8xf32> to vector<8xf32>
    %23 = vector.shape_cast %22 : vector<8xf32> to vector<8x1xf32>
    %24 = vector.broadcast %23 : vector<8x1xf32> to vector<8x8xf32>
    %25 = arith.subf %21, %24 : vector<8x8xf32>
    %26 = math.exp %25 : vector<8x8xf32>
    %cst_22 = arith.constant dense<0.000000e+00> : vector<8xf32>
    %27 = vector.multi_reduction <add>, %26, %cst_22 [1] : vector<8x8xf32> to vector<8xf32>
    %28 = vector.shape_cast %27 : vector<8xf32> to vector<8x1xf32>
    %29 = tpu.reciprocal %28 {approx = true} : vector<8x1xf32> -> vector<8x1xf32>
    %30 = vector.broadcast %29 : vector<8x1xf32> to vector<8x8xf32>
    %31 = arith.mulf %26, %30 : vector<8x8xf32>
    %32 = vector.broadcast %9 : vector<1x8xf32> to vector<8x8xf32>
    %33 = arith.mulf %31, %32 : vector<8x8xf32>
    %cst_23 = arith.constant dense<0.000000e+00> : vector<8xf32>
    %34 = vector.multi_reduction <add>, %33, %cst_23 [1] : vector<8x8xf32> to vector<8xf32>
    %35 = vector.shape_cast %34 : vector<8xf32> to vector<8x1xf32>
    %36 = tpu.reciprocal %35 {approx = true} : vector<8x1xf32> -> vector<8x1xf32>
    %37 = vector.broadcast %36 : vector<8x1xf32> to vector<8x8xf32>
    %38 = arith.mulf %33, %37 : vector<8x8xf32>
    %cst_24 = arith.constant dense<0.000000e+00> : vector<8x64xf32>
    %39 = tpu.matmul %38, %7, %cst_24 {dimension_numbers = #tpu.dot_dimension_numbers<[1], [0], [0], [1], [0, 0, 1, 1], [], []>} : vector<8x8xf32>, vector<8x64xf32>, vector<8x64xf32> -> vector<8x64xf32>
    %cst_25 = arith.constant dense<0.000000e+00> : vector<8x32xf32>
    %40 = tpu.matmul %39, %2, %cst_25 {dimension_numbers = #tpu.dot_dimension_numbers<[1], [0], [0], [1], [0, 0, 1, 1], [], []>} : vector<8x64xf32>, vector<64x32xf32>, vector<8x32xf32> -> vector<8x32xf32>
    %41 = vector.broadcast %3 : vector<1x32xf32> to vector<8x32xf32>
    %42 = arith.addf %40, %41 : vector<8x32xf32>
    %cst_26 = arith.constant 0.000000e+00 : f32
    %43 = vector.broadcast %cst_26 : f32 to vector<8x32xf32>
    %44 = arith.maximumf %42, %43 : vector<8x32xf32>
    %cst_27 = arith.constant dense<0.000000e+00> : vector<8x128xf32>
    %45 = tpu.matmul %44, %4, %cst_27 {dimension_numbers = #tpu.dot_dimension_numbers<[1], [0], [0], [1], [0, 0, 1, 1], [], []>} : vector<8x32xf32>, vector<32x128xf32>, vector<8x128xf32> -> vector<8x128xf32>
    %46 = vector.broadcast %5 : vector<1x128xf32> to vector<8x128xf32>
    %47 = arith.addf %45, %46 : vector<8x128xf32>
    %cst_28 = arith.constant dense<0xFF800000> : vector<8xf32>
    %48 = vector.multi_reduction <maximumf>, %47, %cst_28 [1] : vector<8x128xf32> to vector<8xf32>
    %49 = vector.shape_cast %48 : vector<8xf32> to vector<8x1xf32>
    %50 = vector.broadcast %49 : vector<8x1xf32> to vector<8x128xf32>
    %51 = arith.subf %47, %50 : vector<8x128xf32>
    %52 = math.exp %51 : vector<8x128xf32>
    %cst_29 = arith.constant dense<0.000000e+00> : vector<8xf32>
    %53 = vector.multi_reduction <add>, %52, %cst_29 [1] : vector<8x128xf32> to vector<8xf32>
    %54 = vector.shape_cast %53 : vector<8xf32> to vector<8x1xf32>
    %55 = math.log %54 : vector<8x1xf32>
    %56 = arith.addf %49, %55 : vector<8x1xf32>
    %57 = vector.broadcast %56 : vector<8x1xf32> to vector<8x128xf32>
    %58 = arith.subf %47, %57 : vector<8x128xf32>
    %c0_30 = arith.constant 0 : index
    %c0_31 = arith.constant 0 : index
    %c0_32 = arith.constant 0 : index
    %59 = vector.load %arg10[%c0_30, %c0_31, %c0_32] : memref<2x8x128xf32, #tpu.memory_space<vmem>>, vector<1x8x128xf32>
    %60 = vector.shape_cast %59 : vector<1x8x128xf32> to vector<8x128xf32>
    %61 = vector.shape_cast %58 : vector<8x128xf32> to vector<1x8x128xf32>
    tpu.vector_store %arg10[%c0_30, %c0_31, %c0_32], %61 {strides = array<i32>} : memref<2x8x128xf32, #tpu.memory_space<vmem>>, vector<1x8x128xf32>,
    %c1 = arith.constant 1 : index
    %c0_33 = arith.constant 0 : index
    %c0_34 = arith.constant 0 : index
    %62 = vector.load %arg1[%c1, %c0_33, %c0_34] : memref<2x8x64xf32, #tpu.memory_space<vmem>>, vector<1x8x64xf32>
    %63 = vector.shape_cast %62 : vector<1x8x64xf32> to vector<8x64xf32>
    %c1_35 = arith.constant 1 : index
    %c0_36 = arith.constant 0 : index
    %c0_37 = arith.constant 0 : index
    %64 = vector.load %arg2[%c1_35, %c0_36, %c0_37] : memref<2x1x8xf32, #tpu.memory_space<vmem>>, vector<1x1x8xf32>
    %65 = vector.shape_cast %64 : vector<1x1x8xf32> to vector<1x8xf32>
    %c1_38 = arith.constant 1 : index
    %c0_39 = arith.constant 0 : index
    %c0_40 = arith.constant 0 : index
    %66 = vector.load %arg3[%c1_38, %c0_39, %c0_40] : memref<2x8x1xf32, #tpu.memory_space<vmem>>, vector<1x8x1xf32>
    %67 = vector.shape_cast %66 : vector<1x8x1xf32> to vector<8x1xf32>
    %cst_41 = arith.constant dense<0.000000e+00> : vector<8x64xf32>
    %68 = tpu.matmul %63, %0, %cst_41 {dimension_numbers = #tpu.dot_dimension_numbers<[1], [0], [0], [1], [0, 0, 1, 1], [], []>} : vector<8x64xf32>, vector<64x64xf32>, vector<8x64xf32> -> vector<8x64xf32>
    %69 = vector.broadcast %1 : vector<1x64xf32> to vector<8x64xf32>
    %70 = arith.addf %68, %69 : vector<8x64xf32>
    %71 = vector.broadcast %67 : vector<8x1xf32> to vector<8x64xf32>
    %72 = arith.mulf %63, %71 : vector<8x64xf32>
    %73 = tpu.transpose %72, [1, 0] : vector<8x64xf32> -> vector<64x8xf32>
    %cst_42 = arith.constant dense<0.000000e+00> : vector<8x8xf32>
    %74 = tpu.matmul %70, %73, %cst_42 {dimension_numbers = #tpu.dot_dimension_numbers<[1], [0], [0], [1], [0, 0, 1, 1], [], []>} : vector<8x64xf32>, vector<64x8xf32>, vector<8x8xf32> -> vector<8x8xf32>
    %75 = vector.broadcast %65 : vector<1x8xf32> to vector<8x8xf32>
    %76 = arith.mulf %74, %75 : vector<8x8xf32>
    %77 = math.tanh %76 : vector<8x8xf32>
    %cst_43 = arith.constant dense<0xFF800000> : vector<8xf32>
    %78 = vector.multi_reduction <maximumf>, %77, %cst_43 [1] : vector<8x8xf32> to vector<8xf32>
    %79 = vector.shape_cast %78 : vector<8xf32> to vector<8x1xf32>
    %80 = vector.broadcast %79 : vector<8x1xf32> to vector<8x8xf32>
    %81 = arith.subf %77, %80 : vector<8x8xf32>
    %82 = math.exp %81 : vector<8x8xf32>
    %cst_44 = arith.constant dense<0.000000e+00> : vector<8xf32>
    %83 = vector.multi_reduction <add>, %82, %cst_44 [1] : vector<8x8xf32> to vector<8xf32>
    %84 = vector.shape_cast %83 : vector<8xf32> to vector<8x1xf32>
    %85 = tpu.reciprocal %84 {approx = true} : vector<8x1xf32> -> vector<8x1xf32>
    %86 = vector.broadcast %85 : vector<8x1xf32> to vector<8x8xf32>
    %87 = arith.mulf %82, %86 : vector<8x8xf32>
    %88 = vector.broadcast %65 : vector<1x8xf32> to vector<8x8xf32>
    %89 = arith.mulf %87, %88 : vector<8x8xf32>
    %cst_45 = arith.constant dense<0.000000e+00> : vector<8xf32>
    %90 = vector.multi_reduction <add>, %89, %cst_45 [1] : vector<8x8xf32> to vector<8xf32>
    %91 = vector.shape_cast %90 : vector<8xf32> to vector<8x1xf32>
    %92 = tpu.reciprocal %91 {approx = true} : vector<8x1xf32> -> vector<8x1xf32>
    %93 = vector.broadcast %92 : vector<8x1xf32> to vector<8x8xf32>
    %94 = arith.mulf %89, %93 : vector<8x8xf32>
    %cst_46 = arith.constant dense<0.000000e+00> : vector<8x64xf32>
    %95 = tpu.matmul %94, %63, %cst_46 {dimension_numbers = #tpu.dot_dimension_numbers<[1], [0], [0], [1], [0, 0, 1, 1], [], []>} : vector<8x8xf32>, vector<8x64xf32>, vector<8x64xf32> -> vector<8x64xf32>
    %cst_47 = arith.constant dense<0.000000e+00> : vector<8x32xf32>
    %96 = tpu.matmul %95, %2, %cst_47 {dimension_numbers = #tpu.dot_dimension_numbers<[1], [0], [0], [1], [0, 0, 1, 1], [], []>} : vector<8x64xf32>, vector<64x32xf32>, vector<8x32xf32> -> vector<8x32xf32>
    %97 = vector.broadcast %3 : vector<1x32xf32> to vector<8x32xf32>
    %98 = arith.addf %96, %97 : vector<8x32xf32>
    %cst_48 = arith.constant 0.000000e+00 : f32
    %99 = vector.broadcast %cst_48 : f32 to vector<8x32xf32>
    %100 = arith.maximumf %98, %99 : vector<8x32xf32>
    %cst_49 = arith.constant dense<0.000000e+00> : vector<8x128xf32>
    %101 = tpu.matmul %100, %4, %cst_49 {dimension_numbers = #tpu.dot_dimension_numbers<[1], [0], [0], [1], [0, 0, 1, 1], [], []>} : vector<8x32xf32>, vector<32x128xf32>, vector<8x128xf32> -> vector<8x128xf32>
    %102 = vector.broadcast %5 : vector<1x128xf32> to vector<8x128xf32>
    %103 = arith.addf %101, %102 : vector<8x128xf32>
    %cst_50 = arith.constant dense<0xFF800000> : vector<8xf32>
    %104 = vector.multi_reduction <maximumf>, %103, %cst_50 [1] : vector<8x128xf32> to vector<8xf32>
    %105 = vector.shape_cast %104 : vector<8xf32> to vector<8x1xf32>
    %106 = vector.broadcast %105 : vector<8x1xf32> to vector<8x128xf32>
    %107 = arith.subf %103, %106 : vector<8x128xf32>
    %108 = math.exp %107 : vector<8x128xf32>
    %cst_51 = arith.constant dense<0.000000e+00> : vector<8xf32>
    %109 = vector.multi_reduction <add>, %108, %cst_51 [1] : vector<8x128xf32> to vector<8xf32>
    %110 = vector.shape_cast %109 : vector<8xf32> to vector<8x1xf32>
    %111 = math.log %110 : vector<8x1xf32>
    %112 = arith.addf %105, %111 : vector<8x1xf32>
    %113 = vector.broadcast %112 : vector<8x1xf32> to vector<8x128xf32>
    %114 = arith.subf %103, %113 : vector<8x128xf32>
    %c1_52 = arith.constant 1 : index
    %c0_53 = arith.constant 0 : index
    %c0_54 = arith.constant 0 : index
    %115 = vector.load %arg10[%c1_52, %c0_53, %c0_54] : memref<2x8x128xf32, #tpu.memory_space<vmem>>, vector<1x8x128xf32>
    %116 = vector.shape_cast %115 : vector<1x8x128xf32> to vector<8x128xf32>
    %117 = vector.shape_cast %114 : vector<8x128xf32> to vector<1x8x128xf32>
    tpu.vector_store %arg10[%c1_52, %c0_53, %c0_54], %117 {strides = array<i32>} : memref<2x8x128xf32, #tpu.memory_space<vmem>>, vector<1x8x128xf32>,
    return
  }
  func.func @transform_0(%arg0: i32) -> (i32, i32, i32) {
    %c0_i32 = arith.constant 0 : i32
    %c0_i32_0 = arith.constant 0 : i32
    %c0_i32_1 = arith.constant 0 : i32
    %c0_i32_2 = arith.constant 0 : i32
    return %c0_i32, %c0_i32_0, %c0_i32_1 : i32, i32, i32
  }
  func.func @transform_1(%arg0: i32) -> (i32, i32, i32) {
    %c0_i32 = arith.constant 0 : i32
    %c0_i32_0 = arith.constant 0 : i32
    %c0_i32_1 = arith.constant 0 : i32
    %c0_i32_2 = arith.constant 0 : i32
    return %c0_i32, %c0_i32_0, %c0_i32_1 : i32, i32, i32
  }
  func.func @transform_2(%arg0: i32) -> (i32, i32, i32) {
    %c0_i32 = arith.constant 0 : i32
    %c0_i32_0 = arith.constant 0 : i32
    %c0_i32_1 = arith.constant 0 : i32
    %c0_i32_2 = arith.constant 0 : i32
    return %c0_i32, %c0_i32_0, %c0_i32_1 : i32, i32, i32
  }
  func.func @transform_3(%arg0: i32) -> (i32, i32) {
    %c0_i32 = arith.constant 0 : i32
    %c0_i32_0 = arith.constant 0 : i32
    %c0_i32_1 = arith.constant 0 : i32
    return %c0_i32, %c0_i32_0 : i32, i32
  }
  func.func @transform_4(%arg0: i32) -> (i32, i32) {
    %c0_i32 = arith.constant 0 : i32
    %c0_i32_0 = arith.constant 0 : i32
    %c0_i32_1 = arith.constant 0 : i32
    return %c0_i32, %c0_i32_0 : i32, i32
  }
  func.func @transform_5(%arg0: i32) -> (i32, i32) {
    %c0_i32 = arith.constant 0 : i32
    %c0_i32_0 = arith.constant 0 : i32
    %c0_i32_1 = arith.constant 0 : i32
    return %c0_i32, %c0_i32_0 : i32, i32
  }
  func.func @transform_6(%arg0: i32) -> (i32, i32) {
    %c0_i32 = arith.constant 0 : i32
    %c0_i32_0 = arith.constant 0 : i32
    %c0_i32_1 = arith.constant 0 : i32
    return %c0_i32, %c0_i32_0 : i32, i32
  }
  func.func @transform_7(%arg0: i32) -> (i32, i32) {
    %c0_i32 = arith.constant 0 : i32
    %c0_i32_0 = arith.constant 0 : i32
    %c0_i32_1 = arith.constant 0 : i32
    return %c0_i32, %c0_i32_0 : i32, i32
  }
  func.func @transform_8(%arg0: i32) -> (i32, i32) {
    %c0_i32 = arith.constant 0 : i32
    %c0_i32_0 = arith.constant 0 : i32
    %c0_i32_1 = arith.constant 0 : i32
    return %c0_i32, %c0_i32_0 : i32, i32
  }
  func.func @transform_9(%arg0: i32) -> (i32, i32, i32) {
    %c0_i32 = arith.constant 0 : i32
    %c0_i32_0 = arith.constant 0 : i32
    %c0_i32_1 = arith.constant 0 : i32
    %c0_i32_2 = arith.constant 0 : i32
    return %c0_i32, %c0_i32_0, %c0_i32_1 : i32, i32, i32
  }
}

module attributes {stable_mosaic.version = 11 : i64} {
  func.func @_edge_attn_kernel(%arg0: i32, %arg1: memref<2x32x8xf32, #tpu.memory_space<vmem>>, %arg2: memref<8x32xf32, #tpu.memory_space<vmem>>, %arg3: memref<2x8x8xf32, #tpu.memory_space<vmem>>, %arg4: memref<2x8x8xf32, #tpu.memory_space<vmem>>, %arg5: memref<2x8x8xf32, #tpu.memory_space<vmem>>) attributes {dimension_semantics = [#tpu.dimension_semantics<arbitrary>], iteration_bounds = array<i64: 1>, scalar_prefetch = 0 : i64, scratch_operands = 0 : i64, tpu.core_type = #tpu.core_type<tc>, window_params = [{pipeline_mode = #tpu.pipeline_mode<synchronous>, transform_indices = @transform_0, window_bounds = array<i64: 2, 32, 8>}, {pipeline_mode = #tpu.pipeline_mode<synchronous>, transform_indices = @transform_1, window_bounds = array<i64: 8, 32>}, {pipeline_mode = #tpu.pipeline_mode<synchronous>, transform_indices = @transform_2, window_bounds = array<i64: 2, 8, 8>}, {pipeline_mode = #tpu.pipeline_mode<synchronous>, transform_indices = @transform_3, window_bounds = array<i64: 2, 8, 8>}, {pipeline_mode = #tpu.pipeline_mode<synchronous>, transform_indices = @transform_4, window_bounds = array<i64: 2, 8, 8>}]} {
    %c0 = arith.constant 0 : index
    %c0_0 = arith.constant 0 : index
    %0 = vector.load %arg2[%c0, %c0_0] : memref<8x32xf32, #tpu.memory_space<vmem>>, vector<8x32xf32>
    %c0_1 = arith.constant 0 : index
    %c0_2 = arith.constant 0 : index
    %c0_3 = arith.constant 0 : index
    %1 = vector.load %arg1[%c0_1, %c0_2, %c0_3] : memref<2x32x8xf32, #tpu.memory_space<vmem>>, vector<1x32x8xf32>
    %2 = vector.shape_cast %1 : vector<1x32x8xf32> to vector<32x8xf32>
    %cst = arith.constant dense<0.000000e+00> : vector<8x8xf32>
    %3 = tpu.matmul %0, %2, %cst {dimension_numbers = #tpu.dot_dimension_numbers<[1], [0], [0], [1], [0, 0, 1, 1], [], []>} : vector<8x32xf32>, vector<32x8xf32>, vector<8x8xf32> -> vector<8x8xf32>
    %cst_4 = arith.constant dense<0xFF800000> : vector<8xf32>
    %4 = vector.multi_reduction <maximumf>, %3, %cst_4 [1] : vector<8x8xf32> to vector<8xf32>
    %5 = vector.shape_cast %4 : vector<8xf32> to vector<8x1xf32>
    %6 = vector.broadcast %5 : vector<8x1xf32> to vector<8x8xf32>
    %7 = arith.subf %3, %6 : vector<8x8xf32>
    %8 = math.exp %7 : vector<8x8xf32>
    %cst_5 = arith.constant dense<0.000000e+00> : vector<8xf32>
    %9 = vector.multi_reduction <add>, %8, %cst_5 [1] : vector<8x8xf32> to vector<8xf32>
    %10 = vector.shape_cast %9 : vector<8xf32> to vector<8x1xf32>
    %11 = tpu.reciprocal %10 {approx = true} : vector<8x1xf32> -> vector<8x1xf32>
    %12 = vector.broadcast %11 : vector<8x1xf32> to vector<8x8xf32>
    %13 = arith.mulf %8, %12 : vector<8x8xf32>
    %c0_6 = arith.constant 0 : index
    %c0_7 = arith.constant 0 : index
    %c0_8 = arith.constant 0 : index
    %14 = vector.load %arg3[%c0_6, %c0_7, %c0_8] : memref<2x8x8xf32, #tpu.memory_space<vmem>>, vector<1x8x8xf32>
    %15 = vector.shape_cast %14 : vector<1x8x8xf32> to vector<8x8xf32>
    %16 = arith.mulf %13, %15 : vector<8x8xf32>
    %cst_9 = arith.constant dense<0.000000e+00> : vector<8xf32>
    %17 = vector.multi_reduction <add>, %16, %cst_9 [1] : vector<8x8xf32> to vector<8xf32>
    %18 = vector.shape_cast %17 : vector<8xf32> to vector<8x1xf32>
    %19 = tpu.reciprocal %18 {approx = true} : vector<8x1xf32> -> vector<8x1xf32>
    %20 = vector.broadcast %19 : vector<8x1xf32> to vector<8x8xf32>
    %21 = arith.mulf %16, %20 : vector<8x8xf32>
    %c0_10 = arith.constant 0 : index
    %c0_11 = arith.constant 0 : index
    %c0_12 = arith.constant 0 : index
    %22 = vector.load %arg4[%c0_10, %c0_11, %c0_12] : memref<2x8x8xf32, #tpu.memory_space<vmem>>, vector<1x8x8xf32>
    %23 = vector.shape_cast %22 : vector<1x8x8xf32> to vector<8x8xf32>
    %24 = arith.mulf %21, %23 : vector<8x8xf32>
    %c0_13 = arith.constant 0 : index
    %c0_14 = arith.constant 0 : index
    %c0_15 = arith.constant 0 : index
    %25 = vector.load %arg5[%c0_13, %c0_14, %c0_15] : memref<2x8x8xf32, #tpu.memory_space<vmem>>, vector<1x8x8xf32>
    %26 = vector.shape_cast %25 : vector<1x8x8xf32> to vector<8x8xf32>
    %27 = vector.shape_cast %24 : vector<8x8xf32> to vector<1x8x8xf32>
    tpu.vector_store %arg5[%c0_13, %c0_14, %c0_15], %27 {strides = array<i32>} : memref<2x8x8xf32, #tpu.memory_space<vmem>>, vector<1x8x8xf32>,
    %c1 = arith.constant 1 : index
    %c0_16 = arith.constant 0 : index
    %c0_17 = arith.constant 0 : index
    %28 = vector.load %arg1[%c1, %c0_16, %c0_17] : memref<2x32x8xf32, #tpu.memory_space<vmem>>, vector<1x32x8xf32>
    %29 = vector.shape_cast %28 : vector<1x32x8xf32> to vector<32x8xf32>
    %cst_18 = arith.constant dense<0.000000e+00> : vector<8x8xf32>
    %30 = tpu.matmul %0, %29, %cst_18 {dimension_numbers = #tpu.dot_dimension_numbers<[1], [0], [0], [1], [0, 0, 1, 1], [], []>} : vector<8x32xf32>, vector<32x8xf32>, vector<8x8xf32> -> vector<8x8xf32>
    %cst_19 = arith.constant dense<0xFF800000> : vector<8xf32>
    %31 = vector.multi_reduction <maximumf>, %30, %cst_19 [1] : vector<8x8xf32> to vector<8xf32>
    %32 = vector.shape_cast %31 : vector<8xf32> to vector<8x1xf32>
    %33 = vector.broadcast %32 : vector<8x1xf32> to vector<8x8xf32>
    %34 = arith.subf %30, %33 : vector<8x8xf32>
    %35 = math.exp %34 : vector<8x8xf32>
    %cst_20 = arith.constant dense<0.000000e+00> : vector<8xf32>
    %36 = vector.multi_reduction <add>, %35, %cst_20 [1] : vector<8x8xf32> to vector<8xf32>
    %37 = vector.shape_cast %36 : vector<8xf32> to vector<8x1xf32>
    %38 = tpu.reciprocal %37 {approx = true} : vector<8x1xf32> -> vector<8x1xf32>
    %39 = vector.broadcast %38 : vector<8x1xf32> to vector<8x8xf32>
    %40 = arith.mulf %35, %39 : vector<8x8xf32>
    %c1_21 = arith.constant 1 : index
    %c0_22 = arith.constant 0 : index
    %c0_23 = arith.constant 0 : index
    %41 = vector.load %arg3[%c1_21, %c0_22, %c0_23] : memref<2x8x8xf32, #tpu.memory_space<vmem>>, vector<1x8x8xf32>
    %42 = vector.shape_cast %41 : vector<1x8x8xf32> to vector<8x8xf32>
    %43 = arith.mulf %40, %42 : vector<8x8xf32>
    %cst_24 = arith.constant dense<0.000000e+00> : vector<8xf32>
    %44 = vector.multi_reduction <add>, %43, %cst_24 [1] : vector<8x8xf32> to vector<8xf32>
    %45 = vector.shape_cast %44 : vector<8xf32> to vector<8x1xf32>
    %46 = tpu.reciprocal %45 {approx = true} : vector<8x1xf32> -> vector<8x1xf32>
    %47 = vector.broadcast %46 : vector<8x1xf32> to vector<8x8xf32>
    %48 = arith.mulf %43, %47 : vector<8x8xf32>
    %c1_25 = arith.constant 1 : index
    %c0_26 = arith.constant 0 : index
    %c0_27 = arith.constant 0 : index
    %49 = vector.load %arg4[%c1_25, %c0_26, %c0_27] : memref<2x8x8xf32, #tpu.memory_space<vmem>>, vector<1x8x8xf32>
    %50 = vector.shape_cast %49 : vector<1x8x8xf32> to vector<8x8xf32>
    %51 = arith.mulf %48, %50 : vector<8x8xf32>
    %c1_28 = arith.constant 1 : index
    %c0_29 = arith.constant 0 : index
    %c0_30 = arith.constant 0 : index
    %52 = vector.load %arg5[%c1_28, %c0_29, %c0_30] : memref<2x8x8xf32, #tpu.memory_space<vmem>>, vector<1x8x8xf32>
    %53 = vector.shape_cast %52 : vector<1x8x8xf32> to vector<8x8xf32>
    %54 = vector.shape_cast %51 : vector<8x8xf32> to vector<1x8x8xf32>
    tpu.vector_store %arg5[%c1_28, %c0_29, %c0_30], %54 {strides = array<i32>} : memref<2x8x8xf32, #tpu.memory_space<vmem>>, vector<1x8x8xf32>,
    return
  }
  func.func @transform_0(%arg0: i32) -> (i32, i32, i32) {
    %c0_i32 = arith.constant 0 : i32
    %c0_i32_0 = arith.constant 0 : i32
    %c0_i32_1 = arith.constant 0 : i32
    %c0_i32_2 = arith.constant 0 : i32
    return %c0_i32, %c0_i32_0, %c0_i32_1 : i32, i32, i32
  }
  func.func @transform_1(%arg0: i32) -> (i32, i32) {
    %c0_i32 = arith.constant 0 : i32
    %c0_i32_0 = arith.constant 0 : i32
    %c0_i32_1 = arith.constant 0 : i32
    return %c0_i32, %c0_i32_0 : i32, i32
  }
  func.func @transform_2(%arg0: i32) -> (i32, i32, i32) {
    %c0_i32 = arith.constant 0 : i32
    %c0_i32_0 = arith.constant 0 : i32
    %c0_i32_1 = arith.constant 0 : i32
    %c0_i32_2 = arith.constant 0 : i32
    return %c0_i32, %c0_i32_0, %c0_i32_1 : i32, i32, i32
  }
  func.func @transform_3(%arg0: i32) -> (i32, i32, i32) {
    %c0_i32 = arith.constant 0 : i32
    %c0_i32_0 = arith.constant 0 : i32
    %c0_i32_1 = arith.constant 0 : i32
    %c0_i32_2 = arith.constant 0 : i32
    return %c0_i32, %c0_i32_0, %c0_i32_1 : i32, i32, i32
  }
  func.func @transform_4(%arg0: i32) -> (i32, i32, i32) {
    %c0_i32 = arith.constant 0 : i32
    %c0_i32_0 = arith.constant 0 : i32
    %c0_i32_1 = arith.constant 0 : i32
    %c0_i32_2 = arith.constant 0 : i32
    return %c0_i32, %c0_i32_0, %c0_i32_1 : i32, i32, i32
  }
}

</mosaic_0001>

<llo_original>
// kernel: _forward_device.5
$region0: #{_forward_device.5}
  #allocation0 [shape = 'u32[]', space=smem, size = 0x4, offset = 0x4, fixed_abs, tag = 'smem constant byte address 0x4 - core index']
  #allocation1 [shape = 'u32[144,128]{1,0:T(1,128)}', space=vmem, size = 0x12000, scoped, tag = 'internal scratch']
  %s0 = inlined_call_operand.vmem [shape: f32[2,32,8], index: 0, kind: input, shape index: {}]
  %s1 = inlined_call_operand.vmem [shape: f32[8,32], index: 1, kind: input, shape index: {}]
  %s2 = inlined_call_operand.vmem [shape: f32[2,8,8], index: 2, kind: input, shape index: {}]
  %s3 = inlined_call_operand.vmem [shape: f32[2,8,8], index: 3, kind: input, shape index: {}]
  %s4 = inlined_call_operand.vmem [shape: f32[2,8,8], index: 4, kind: output, shape index: {}]
  %s5 = sld [smem:[#allocation0]]
  $region26: #{_forward_device.5} parent=0
    _
  %s7 = ssub.s32 1, %s5
  %s8 = scalar_select 0, %s7, %s5
  // Predicated region
  $region2: #{_forward_device.5} parent=0 // pred_check
    _
  $region3: #{_forward_device.5} parent=0 // pred_check_branch
    %10 = sbr.rel (0) target = $region5
  $region4: #{_forward_device.5} parent=0 // pred_region
    _
  $region5: #{_forward_device.5} parent=0 // pred_fallthru
    _
  // Predicated region
  $region6: #{_forward_device.5} parent=0 // pred_check
    _
  $region7: #{_forward_device.5} parent=0 // pred_check_branch
    %12 = sbr.rel (0) target = $region9
  $region8: #{_forward_device.5} parent=0 // pred_region
    _
  $region9: #{_forward_device.5} parent=0 // pred_fallthru
    _
  // Predicated region
  $region10: #{_forward_device.5} parent=0 // pred_check
    _
  $region11: #{_forward_device.5} parent=0 // pred_check_branch
    %14 = sbr.rel (0) target = $region13
  $region12: #{_forward_device.5} parent=0 // pred_region
    _
  $region13: #{_forward_device.5} parent=0 // pred_fallthru
    _
  // Predicated region
  $region14: #{_forward_device.5} parent=0 // pred_check
    _
  $region15: #{_forward_device.5} parent=0 // pred_check_branch
    %16 = sbr.rel (0) target = $region17
  $region16: #{_forward_device.5} parent=0 // pred_region
    _
  $region17: #{_forward_device.5} parent=0 // pred_fallthru
    _
  %v17 = vld [vmem:[%s1] sm:$0xff]
  %v18 = vld [vmem:[%s0] sm:$0xff]
  %v19 = vld [vmem:[%s0 + $0x8] sm:$0xff]
  %v20 = vld [vmem:[%s0 + $0x10] sm:$0xff]
  %v21 = vld [vmem:[%s0 + $0x18] sm:$0xff]
  %vm22 = vcmask 261120
  %v24 = vsel %vm22, %v17, 0
  %26 = vmatprep.subr.mxu0 0.0
  %27 = vmatpush1.msra.mxu0 %v18
  %28 = vmatprep.subr.mxu0 0.0
  %29 = vmatpush1.msra.mxu0 %v19
  %30 = vmatprep.subr.mxu0 0.0
  %31 = vmatpush1.msra.mxu0 %v20
  %32 = vmatprep.subr.mxu0 0.0
  %33 = vmatpush1.msra.mxu0 %v21
  %34 = vmatprep.subr.mxu0 0.0
  %35 = vmatpush1.msra.mxu0 0.0
  %36 = vmatprep.subr.mxu0 0.0
  %37 = vmatpush1.msra.mxu0 0.0
  %38 = vmatprep.subr.mxu0 0.0
  %39 = vmatpush1.msra.mxu0 0.0
  %40 = vmatprep.subr.mxu0 0.0
  %41 = vmatpush1.msra.mxu0 0.0
  %42 = vmatprep.subr.mxu0 0.0
  %43 = vmatpush1.msra.mxu0 0.0
  %44 = vmatprep.subr.mxu0 0.0
  %45 = vmatpush1.msra.mxu0 0.0
  %46 = vmatprep.subr.mxu0 0.0
  %47 = vmatpush1.msra.mxu0 0.0
  %48 = vmatprep.subr.mxu0 0.0
  %49 = vmatpush1.msra.mxu0 0.0
  %50 = vmatprep.subr.mxu0 0.0
  %51 = vmatpush1.msra.mxu0 0.0
  %52 = vmatprep.subr.mxu0 0.0
  %53 = vmatpush1.msra.mxu0 0.0
  %54 = vmatprep.subr.mxu0 0.0
  %55 = vmatpush1.msra.mxu0 0.0
  %56 = vmatprep.subr.mxu0 0.0
  %57 = vmatpush1.msra.mxu0 0.0
  %58 = vmatprep.subr.mxu0 0.0
  %59 = vmatpush1.msra.mxu0 0.0
  %60 = vmatprep.subr.mxu0 0.0
  %61 = vmatpush1.msra.mxu0 0.0
  %62 = vmatprep.subr.mxu0 0.0
  %63 = vmatpush1.msra.mxu0 0.0
  %64 = vmatprep.subr.mxu0 0.0
  %65 = vmatpush1.msra.mxu0 0.0
  %66 = vmatprep.subr.mxu0 0.0
  %67 = vmatpush1.msra.mxu0 0.0
  %68 = vmatprep.subr.mxu0 0.0
  %69 = vmatpush1.msra.mxu0 0.0
  %70 = vmatprep.subr.mxu0 0.0
  %71 = vmatpush1.msra.mxu0 0.0
  %72 = vmatprep.subr.mxu0 0.0
  %73 = vmatpush1.msra.mxu0 0.0
  %74 = vmatprep.subr.mxu0 0.0
  %75 = vmatpush1.msra.mxu0 0.0
  %76 = vmatprep.subr.mxu0 0.0
  %77 = vmatpush1.msra.mxu0 0.0
  %78 = vmatprep.subr.mxu0 0.0
  %79 = vmatpush1.msra.mxu0 0.0
  %80 = vmatprep.subr.mxu0 0.0
  %81 = vmatpush1.msra.mxu0 0.0
  %82 = vmatprep.subr.mxu0 0.0
  %83 = vmatpush1.msra.mxu0 0.0
  %84 = vmatprep.subr.mxu0 0.0
  %85 = vmatpush1.msra.mxu0 0.0
  %86 = vmatprep.subr.mxu0 0.0
  %87 = vmatpush1.msra.mxu0 0.0
  %88 = vmatprep.subr.mxu0 0.0
  %89 = vmatpush1.msra.mxu0 0.0
  %90 = vmatprep.mubr.f32.mxu0 0.0
  %91 = vmatmul.mubr.f32.gmra.mrb[0].mxu0 %v24
  %v92 = vpop.f32.mrb[0].mxu0
  %v93 = vadd.f32 0.0, %v92
  %v94 = vpop.f32.mrb[0].mxu0
  %95 = vdwg.mxu0
  %vm96 = vcmask 64512
  %v97 = vsel %vm96, %v93, -inf
  %98 = vmax.xlane.f32.xlu0 %v97
  %v99 = vpop.xlane.xlu0 %98
  %v100 = vsub.f32 %v93, %v99
  %v101 = vmul.f32 %v100, 1.442695
  %v102 = vpow.pop %v101
  %v103 = vsel %vm96, %v102, 0.0
  %104 = vadd.xlane.f32.xlu0 %v103
  %v105 = vpop.xlane.xlu0 %104
  %v106 = vrcp.pop %v105
  %v107 = vmul.f32 %v102, %v106
  %v108 = vld [vmem:[%s2] sm:$0xff]
  %v109 = vmul.f32 %v107, %v108
  %v110 = vsel %vm96, %v109, 0.0
  %111 = vadd.xlane.f32.xlu0 %v110
  %v112 = vpop.xlane.xlu0 %111
  %v113 = vrcp.pop %v112
  %v114 = vmul.f32 %v109, %v113
  %v115 = vld [vmem:[%s3] sm:$0xff]
  %v116 = vmul.f32 %v114, %v115
  %117 = vst.msk [vmem:[%s4] sm:$0xff] %vm96, %v116
  %s118 = scalar_lea.vmem %s0, 32
  %v119 = vld [vmem:[%s118] sm:$0xff]
  %v120 = vld [vmem:[%s118 + $0x8] sm:$0xff]
  %v121 = vld [vmem:[%s118 + $0x10] sm:$0xff]
  %v122 = vld [vmem:[%s118 + $0x18] sm:$0xff]
  %123 = vmatprep.subr.mxu0 0.0
  %124 = vmatpush1.msra.mxu0 %v119
  %125 = vmatprep.subr.mxu0 0.0
  %126 = vmatpush1.msra.mxu0 %v120
  %127 = vmatprep.subr.mxu0 0.0
  %128 = vmatpush1.msra.mxu0 %v121
  %129 = vmatprep.subr.mxu0 0.0
  %130 = vmatpush1.msra.mxu0 %v122
  %131 = vmatprep.subr.mxu0 0.0
  %132 = vmatpush1.msra.mxu0 0.0
  %133 = vmatprep.subr.mxu0 0.0
  %134 = vmatpush1.msra.mxu0 0.0
  %135 = vmatprep.subr.mxu0 0.0
  %136 = vmatpush1.msra.mxu0 0.0
  %137 = vmatprep.subr.mxu0 0.0
  %138 = vmatpush1.msra.mxu0 0.0
  %139 = vmatprep.subr.mxu0 0.0
  %140 = vmatpush1.msra.mxu0 0.0
  %141 = vmatprep.subr.mxu0 0.0
  %142 = vmatpush1.msra.mxu0 0.0
  %143 = vmatprep.subr.mxu0 0.0
  %144 = vmatpush1.msra.mxu0 0.0
  %145 = vmatprep.subr.mxu0 0.0
  %146 = vmatpush1.msra.mxu0 0.0
  %147 = vmatprep.subr.mxu0 0.0
  %148 = vmatpush1.msra.mxu0 0.0
  %149 = vmatprep.subr.mxu0 0.0
  %150 = vmatpush1.msra.mxu0 0.0
  %151 = vmatprep.subr.mxu0 0.0
  %152 = vmatpush1.msra.mxu0 0.0
  %153 = vmatprep.subr.mxu0 0.0
  %154 = vmatpush1.msra.mxu0 0.0
  %155 = vmatprep.subr.mxu0 0.0
  %156 = vmatpush1.msra.mxu0 0.0
  %157 = vmatprep.subr.mxu0 0.0
  %158 = vmatpush1.msra.mxu0 0.0
  %159 = vmatprep.subr.mxu0 0.0
  %160 = vmatpush1.msra.mxu0 0.0
  %161 = vmatprep.subr.mxu0 0.0
  %162 = vmatpush1.msra.mxu0 0.0
  %163 = vmatprep.subr.mxu0 0.0
  %164 = vmatpush1.msra.mxu0 0.0
  %165 = vmatprep.subr.mxu0 0.0
  %166 = vmatpush1.msra.mxu0 0.0
  %167 = vmatprep.subr.mxu0 0.0
  %168 = vmatpush1.msra.mxu0 0.0
  %169 = vmatprep.subr.mxu0 0.0
  %170 = vmatpush1.msra.mxu0 0.0
  %171 = vmatprep.subr.mxu0 0.0
  %172 = vmatpush1.msra.mxu0 0.0
  %173 = vmatprep.subr.mxu0 0.0
  %174 = vmatpush1.msra.mxu0 0.0
  %175 = vmatprep.subr.mxu0 0.0
  %176 = vmatpush1.msra.mxu0 0.0
  %177 = vmatprep.subr.mxu0 0.0
  %178 = vmatpush1.msra.mxu0 0.0
  %179 = vmatprep.subr.mxu0 0.0
  %180 = vmatpush1.msra.mxu0 0.0
  %181 = vmatprep.subr.mxu0 0.0
  %182 = vmatpush1.msra.mxu0 0.0
  %183 = vmatprep.subr.mxu0 0.0
  %184 = vmatpush1.msra.mxu0 0.0
  %185 = vmatprep.subr.mxu0 0.0
  %186 = vmatpush1.msra.mxu0 0.0
  %187 = vmatprep.mubr.f32.mxu0 0.0
  %188 = vmatmul.mubr.f32.gmra.mrb[0].mxu0 %v24
  %v189 = vpop.f32.mrb[0].mxu0
  %v190 = vadd.f32 0.0, %v189
  %v191 = vpop.f32.mrb[0].mxu0
  %192 = vdwg.mxu0
  %v193 = vsel %vm96, %v190, -inf
  %194 = vmax.xlane.f32.xlu0 %v193
  %v195 = vpop.xlane.xlu0 %194
  %v196 = vsub.f32 %v190, %v195
  %v197 = vmul.f32 %v196, 1.442695
  %v198 = vpow.pop %v197
  %v199 = vsel %vm96, %v198, 0.0
  %200 = vadd.xlane.f32.xlu0 %v199
  %v201 = vpop.xlane.xlu0 %200
  %v202 = vrcp.pop %v201
  %v203 = vmul.f32 %v198, %v202
  %s204 = scalar_lea.vmem %s2, 8
  %v205 = vld [vmem:[%s204] sm:$0xff]
  %v206 = vmul.f32 %v203, %v205
  %v207 = vsel %vm96, %v206, 0.0
  %208 = vadd.xlane.f32.xlu0 %v207
  %v209 = vpop.xlane.xlu0 %208
  %v210 = vrcp.pop %v209
  %v211 = vmul.f32 %v206, %v210
  %s212 = scalar_lea.vmem %s3, 8
  %v213 = vld [vmem:[%s212] sm:$0xff]
  %v214 = vmul.f32 %v211, %v213
  %s215 = scalar_lea.vmem %s4, 8
  %216 = vst.msk [vmem:[%s215] sm:$0xff] %vm96, %v214
  // Predicated region
  $region18: #{_forward_device.5} parent=0 // pred_check
    _
  $region19: #{_forward_device.5} parent=0 // pred_check_branch
    %218 = sbr.rel (0) target = $region21
  $region20: #{_forward_device.5} parent=0 // pred_region
    _
  $region21: #{_forward_device.5} parent=0 // pred_fallthru
    _
  // Predicated region
  $region22: #{_forward_device.5} parent=0 // pred_check
    _
  $region23: #{_forward_device.5} parent=0 // pred_check_branch
    %220 = sbr.rel (0) target = $region25
  $region24: #{_forward_device.5} parent=0 // pred_region
    _
  $region25: #{_forward_device.5} parent=0 // pred_fallthru
    _

// kernel: _forward_device.7
$region0: #{_forward_device.7}
  #allocation0 [shape = 'u32[]', space=smem, size = 0x4, offset = 0x4, fixed_abs, tag = 'smem constant byte address 0x4 - core index']
  #allocation1 [shape = 'u32[144,128]{1,0:T(1,128)}', space=vmem, size = 0x12000, scoped, tag = 'internal scratch']
  %s0 = inlined_call_operand.vmem [shape: f32[2,8,64], index: 0, kind: input, shape index: {}]
  %s1 = inlined_call_operand.vmem [shape: f32[2,1,8], index: 1, kind: input, shape index: {}]
  %s2 = inlined_call_operand.vmem [shape: f32[2,8,1], index: 2, kind: input, shape index: {}]
  %s3 = inlined_call_operand.vmem [shape: f32[64,64], index: 3, kind: input, shape index: {}]
  %s4 = inlined_call_operand.vmem [shape: f32[1,64], index: 4, kind: input, shape index: {}]
  %s5 = inlined_call_operand.vmem [shape: f32[64,32], index: 5, kind: input, shape index: {}]
  %s6 = inlined_call_operand.vmem [shape: f32[1,32], index: 6, kind: input, shape index: {}]
  %s7 = inlined_call_operand.vmem [shape: f32[32,128], index: 7, kind: input, shape index: {}]
  %s8 = inlined_call_operand.vmem [shape: f32[1,128], index: 8, kind: input, shape index: {}]
  %s9 = inlined_call_operand.vmem [shape: f32[2,8,128], index: 9, kind: output, shape index: {}]
  %s10 = sld [smem:[#allocation0]]
  $region46: #{_forward_device.7} parent=0
    _
  %s12 = ssub.s32 1, %s10
  %s13 = scalar_select 0, %s12, %s10
  // Predicated region
  $region2: #{_forward_device.7} parent=0 // pred_check
    _
  $region3: #{_forward_device.7} parent=0 // pred_check_branch
    %15 = sbr.rel (0) target = $region5
  $region4: #{_forward_device.7} parent=0 // pred_region
    _
  $region5: #{_forward_device.7} parent=0 // pred_fallthru
    _
  // Predicated region
  $region6: #{_forward_device.7} parent=0 // pred_check
    _
  $region7: #{_forward_device.7} parent=0 // pred_check_branch
    %17 = sbr.rel (0) target = $region9
  $region8: #{_forward_device.7} parent=0 // pred_region
    _
  $region9: #{_forward_device.7} parent=0 // pred_fallthru
    _
  // Predicated region
  $region10: #{_forward_device.7} parent=0 // pred_check
    _
  $region11: #{_forward_device.7} parent=0 // pred_check_branch
    %19 = sbr.rel (0) target = $region13
  $region12: #{_forward_device.7} parent=0 // pred_region
    _
  $region13: #{_forward_device.7} parent=0 // pred_fallthru
    _
  // Predicated region
  $region14: #{_forward_device.7} parent=0 // pred_check
    _
  $region15: #{_forward_device.7} parent=0 // pred_check_branch
    %21 = sbr.rel (0) target = $region17
  $region16: #{_forward_device.7} parent=0 // pred_region
    _
  $region17: #{_forward_device.7} parent=0 // pred_fallthru
    _
  // Predicated region
  $region18: #{_forward_device.7} parent=0 // pred_check
    _
  $region19: #{_forward_device.7} parent=0 // pred_check_branch
    %23 = sbr.rel (0) target = $region21
  $region20: #{_forward_device.7} parent=0 // pred_region
    _
  $region21: #{_forward_device.7} parent=0 // pred_fallthru
    _
  // Predicated region
  $region22: #{_forward_device.7} parent=0 // pred_check
    _
  $region23: #{_forward_device.7} parent=0 // pred_check_branch
    %25 = sbr.rel (0) target = $region25
  $region24: #{_forward_device.7} parent=0 // pred_region
    _
  $region25: #{_forward_device.7} parent=0 // pred_fallthru
    _
  // Predicated region
  $region26: #{_forward_device.7} parent=0 // pred_check
    _
  $region27: #{_forward_device.7} parent=0 // pred_check_branch
    %27 = sbr.rel (0) target = $region29
  $region28: #{_forward_device.7} parent=0 // pred_region
    _
  $region29: #{_forward_device.7} parent=0 // pred_fallthru
    _
  // Predicated region
  $region30: #{_forward_device.7} parent=0 // pred_check
    _
  $region31: #{_forward_device.7} parent=0 // pred_check_branch
    %29 = sbr.rel (0) target = $region33
  $region32: #{_forward_device.7} parent=0 // pred_region
    _
  $region33: #{_forward_device.7} parent=0 // pred_fallthru
    _
  // Predicated region
  $region34: #{_forward_device.7} parent=0 // pred_check
    _
  $region35: #{_forward_device.7} parent=0 // pred_check_branch
    %31 = sbr.rel (0) target = $region37
  $region36: #{_forward_device.7} parent=0 // pred_region
    _
  $region37: #{_forward_device.7} parent=0 // pred_fallthru
    _
  %v32 = vld [vmem:[%s3] sm:$0xff]
  %v33 = vld [vmem:[%s3 + $0x8] sm:$0xff]
  %v34 = vld [vmem:[%s3 + $0x10] sm:$0xff]
  %v35 = vld [vmem:[%s3 + $0x18] sm:$0xff]
  %v36 = vld [vmem:[%s3 + $0x20] sm:$0xff]
  %v37 = vld [vmem:[%s3 + $0x28] sm:$0xff]
  %v38 = vld [vmem:[%s3 + $0x30] sm:$0xff]
  %v39 = vld [vmem:[%s3 + $0x38] sm:$0xff]
  %v40 = vld [vmem:[%s4] sm:$0x1]
  %v41 = vld [vmem:[%s5] sm:$0xff]
  %v42 = vld [vmem:[%s5 + $0x8] sm:$0xff]
  %v43 = vld [vmem:[%s5 + $0x10] sm:$0xff]
  %v44 = vld [vmem:[%s5 + $0x18] sm:$0xff]
  %v45 = vld [vmem:[%s5 + $0x20] sm:$0xff]
  %v46 = vld [vmem:[%s5 + $0x28] sm:$0xff]
  %v47 = vld [vmem:[%s5 + $0x30] sm:$0xff]
  %v48 = vld [vmem:[%s5 + $0x38] sm:$0xff]
  %v49 = vld [vmem:[%s6] sm:$0x1]
  %v50 = vld [vmem:[%s7] sm:$0xff]
  %v51 = vld [vmem:[%s7 + $0x8] sm:$0xff]
  %v52 = vld [vmem:[%s7 + $0x10] sm:$0xff]
  %v53 = vld [vmem:[%s7 + $0x18] sm:$0xff]
  %v54 = vld [vmem:[%s8] sm:$0x1]
  %v55 = vld [vmem:[%s0] sm:$0xff]
  %v56 = vld [vmem:[%s1] sm:$0x1]
  %v57 = vld [vmem:[%s2] sm:$0xff]
  %v59 = vlaneseq
  %v60 = vshrl.u32 %v59, 7
  %v61 = vsub.s32 0, %v60
  %v62 = vrot.slane %v40, %v61
  %vm64 = vcmask 523264
  %v66 = vsel %vm64, %v55, 0
  %68 = vmatprep.subr.mxu0 0.0
  %69 = vmatpush1.msra.mxu0 %v32
  %70 = vmatprep.subr.mxu0 0.0
  %71 = vmatpush1.msra.mxu0 %v33
  %72 = vmatprep.subr.mxu0 0.0
  %73 = vmatpush1.msra.mxu0 %v34
  %74 = vmatprep.subr.mxu0 0.0
  %75 = vmatpush1.msra.mxu0 %v35
  %76 = vmatprep.subr.mxu0 0.0
  %77 = vmatpush1.msra.mxu0 %v36
  %78 = vmatprep.subr.mxu0 0.0
  %79 = vmatpush1.msra.mxu0 %v37
  %80 = vmatprep.subr.mxu0 0.0
  %81 = vmatpush1.msra.mxu0 %v38
  %82 = vmatprep.subr.mxu0 0.0
  %83 = vmatpush1.msra.mxu0 %v39
  %84 = vmatprep.subr.mxu0 0.0
  %85 = vmatpush1.msra.mxu0 0.0
  %86 = vmatprep.subr.mxu0 0.0
  %87 = vmatpush1.msra.mxu0 0.0
  %88 = vmatprep.subr.mxu0 0.0
  %89 = vmatpush1.msra.mxu0 0.0
  %90 = vmatprep.subr.mxu0 0.0
  %91 = vmatpush1.msra.mxu0 0.0
  %92 = vmatprep.subr.mxu0 0.0
  %93 = vmatpush1.msra.mxu0 0.0
  %94 = vmatprep.subr.mxu0 0.0
  %95 = vmatpush1.msra.mxu0 0.0
  %96 = vmatprep.subr.mxu0 0.0
  %97 = vmatpush1.msra.mxu0 0.0
  %98 = vmatprep.subr.mxu0 0.0
  %99 = vmatpush1.msra.mxu0 0.0
  %100 = vmatprep.subr.mxu0 0.0
  %101 = vmatpush1.msra.mxu0 0.0
  %102 = vmatprep.subr.mxu0 0.0
  %103 = vmatpush1.msra.mxu0 0.0
  %104 = vmatprep.subr.mxu0 0.0
  %105 = vmatpush1.msra.mxu0 0.0
  %106 = vmatprep.subr.mxu0 0.0
  %107 = vmatpush1.msra.mxu0 0.0
  %108 = vmatprep.subr.mxu0 0.0
  %109 = vmatpush1.msra.mxu0 0.0
  %110 = vmatprep.subr.mxu0 0.0
  %111 = vmatpush1.msra.mxu0 0.0
  %112 = vmatprep.subr.mxu0 0.0
  %113 = vmatpush1.msra.mxu0 0.0
  %114 = vmatprep.subr.mxu0 0.0
  %115 = vmatpush1.msra.mxu0 0.0
  %116 = vmatprep.subr.mxu0 0.0
  %117 = vmatpush1.msra.mxu0 0.0
  %118 = vmatprep.subr.mxu0 0.0
  %119 = vmatpush1.msra.mxu0 0.0
  %120 = vmatprep.subr.mxu0 0.0
  %121 = vmatpush1.msra.mxu0 0.0
  %122 = vmatprep.subr.mxu0 0.0
  %123 = vmatpush1.msra.mxu0 0.0
  %124 = vmatprep.subr.mxu0 0.0
  %125 = vmatpush1.msra.mxu0 0.0
  %126 = vmatprep.subr.mxu0 0.0
  %127 = vmatpush1.msra.mxu0 0.0
  %128 = vmatprep.subr.mxu0 0.0
  %129 = vmatpush1.msra.mxu0 0.0
  %130 = vmatprep.subr.mxu0 0.0
  %131 = vmatpush1.msra.mxu0 0.0
  %132 = vmatprep.mubr.f32.mxu0 0.0
  %133 = vmatmul.mubr.f32.gmra.mrb[0].mxu0 %v66
  %v134 = vpop.f32.mrb[0].mxu0
  %v135 = vadd.f32 %v62, %v134
  %v136 = vpop.f32.mrb[0].mxu0
  %137 = vdwg.mxu0
  %139 = vset.pattern.permute.xlu0 0
  %140 = vperm.xlu0 %139, %v57
  %v141 = vpop.permute.xlu0 %140
  %v143 = vmul.f32 %v55, %v141
  %v145 = vsel %vm64, %v135, 0
  %v148 = vsel %vm64, %v143, 0
  %150 = vmatprep.subr.mxu0 0.0
  %151 = vmatpush1.xpose.msra.mxu0 %v148
  %152 = vmatprep.subr.mxu0 0.0
  %153 = vmatpush1.xpose.msra.mxu0 0.0
  %154 = vmatprep.subr.mxu0 0.0
  %155 = vmatpush1.xpose.msra.mxu0 0.0
  %156 = vmatprep.subr.mxu0 0.0
  %157 = vmatpush1.xpose.msra.mxu0 0.0
  %158 = vmatprep.subr.mxu0 0.0
  %159 = vmatpush1.xpose.msra.mxu0 0.0
  %160 = vmatprep.subr.mxu0 0.0
  %161 = vmatpush1.xpose.msra.mxu0 0.0
  %162 = vmatprep.subr.mxu0 0.0
  %163 = vmatpush1.xpose.msra.mxu0 0.0
  %164 = vmatprep.subr.mxu0 0.0
  %165 = vmatpush1.xpose.msra.mxu0 0.0
  %166 = vmatprep.subr.mxu0 0.0
  %167 = vmatpush1.xpose.msra.mxu0 0.0
  %168 = vmatprep.subr.mxu0 0.0
  %169 = vmatpush1.xpose.msra.mxu0 0.0
  %170 = vmatprep.subr.mxu0 0.0
  %171 = vmatpush1.xpose.msra.mxu0 0.0
  %172 = vmatprep.subr.mxu0 0.0
  %173 = vmatpush1.xpose.msra.mxu0 0.0
  %174 = vmatprep.subr.mxu0 0.0
  %175 = vmatpush1.xpose.msra.mxu0 0.0
  %176 = vmatprep.subr.mxu0 0.0
  %177 = vmatpush1.xpose.msra.mxu0 0.0
  %178 = vmatprep.subr.mxu0 0.0
  %179 = vmatpush1.xpose.msra.mxu0 0.0
  %180 = vmatprep.subr.mxu0 0.0
  %181 = vmatpush1.xpose.msra.mxu0 0.0
  %182 = vmatprep.subr.mxu0 0.0
  %183 = vmatpush1.xpose.msra.mxu0 0.0
  %184 = vmatprep.subr.mxu0 0.0
  %185 = vmatpush1.xpose.msra.mxu0 0.0
  %186 = vmatprep.subr.mxu0 0.0
  %187 = vmatpush1.xpose.msra.mxu0 0.0
  %188 = vmatprep.subr.mxu0 0.0
  %189 = vmatpush1.xpose.msra.mxu0 0.0
  %190 = vmatprep.subr.mxu0 0.0
  %191 = vmatpush1.xpose.msra.mxu0 0.0
  %192 = vmatprep.subr.mxu0 0.0
  %193 = vmatpush1.xpose.msra.mxu0 0.0
  %194 = vmatprep.subr.mxu0 0.0
  %195 = vmatpush1.xpose.msra.mxu0 0.0
  %196 = vmatprep.subr.mxu0 0.0
  %197 = vmatpush1.xpose.msra.mxu0 0.0
  %198 = vmatprep.subr.mxu0 0.0
  %199 = vmatpush1.xpose.msra.mxu0 0.0
  %200 = vmatprep.subr.mxu0 0.0
  %201 = vmatpush1.xpose.msra.mxu0 0.0
  %202 = vmatprep.subr.mxu0 0.0
  %203 = vmatpush1.xpose.msra.mxu0 0.0
  %204 = vmatprep.subr.mxu0 0.0
  %205 = vmatpush1.xpose.msra.mxu0 0.0
  %206 = vmatprep.subr.mxu0 0.0
  %207 = vmatpush1.xpose.msra.mxu0 0.0
  %208 = vmatprep.subr.mxu0 0.0
  %209 = vmatpush1.xpose.msra.mxu0 0.0
  %210 = vmatprep.subr.mxu0 0.0
  %211 = vmatpush1.xpose.msra.mxu0 0.0
  %212 = vmatprep.subr.mxu0 0.0
  %213 = vmatpush1.xpose.msra.mxu0 0.0
  %214 = vmatprep.mubr.f32.mxu0 0.0
  %215 = vmatmul.mubr.f32.gmra.mrb[0].mxu0 %v145
  %v216 = vpop.f32.mrb[0].mxu0
  %v217 = vadd.f32 0.0, %v216
  %v218 = vpop.f32.mrb[0].mxu0
  %219 = vdwg.mxu0
  %v221 = vlaneseq
  %v222 = vshrl.u32 %v221, 7
  %v223 = vsub.s32 0, %v222
  %v224 = vrot.slane %v56, %v223
  %v226 = vmul.f32 %v217, %v224
  %v227 = vtanh.pop %v226
  %vm228 = vcmask 64512
  %v229 = vsel %vm228, %v227, -inf
  %230 = vmax.xlane.f32.xlu0 %v229
  %v231 = vpop.xlane.xlu0 %230
  %v232 = vsub.f32 %v227, %v231
  %v233 = vmul.f32 %v232, 1.442695
  %v234 = vpow.pop %v233
  %v235 = vsel %vm228, %v234, 0.0
  %236 = vadd.xlane.f32.xlu0 %v235
  %v237 = vpop.xlane.xlu0 %236
  %v238 = vrcp.pop %v237
  %v239 = vmul.f32 %v234, %v238
  %v240 = vmul.f32 %v239, %v224
  %v241 = vsel %vm228, %v240, 0.0
  %242 = vadd.xlane.f32.xlu0 %v241
  %v243 = vpop.xlane.xlu0 %242
  %v244 = vrcp.pop %v243
  %v245 = vmul.f32 %v240, %v244
  %v247 = vsel %vm228, %v245, 0
  %249 = vmatprep.subr.mxu0 0.0
  %250 = vmatpush1.msra.mxu0 %v55
  %251 = vmatprep.subr.mxu0 0.0
  %252 = vmatpush1.msra.mxu0 0.0
  %253 = vmatprep.subr.mxu0 0.0
  %254 = vmatpush1.msra.mxu0 0.0
  %255 = vmatprep.subr.mxu0 0.0
  %256 = vmatpush1.msra.mxu0 0.0
  %257 = vmatprep.subr.mxu0 0.0
  %258 = vmatpush1.msra.mxu0 0.0
  %259 = vmatprep.subr.mxu0 0.0
  %260 = vmatpush1.msra.mxu0 0.0
  %261 = vmatprep.subr.mxu0 0.0
  %262 = vmatpush1.msra.mxu0 0.0
  %263 = vmatprep.subr.mxu0 0.0
  %264 = vmatpush1.msra.mxu0 0.0
  %265 = vmatprep.subr.mxu0 0.0
  %266 = vmatpush1.msra.mxu0 0.0
  %267 = vmatprep.subr.mxu0 0.0
  %268 = vmatpush1.msra.mxu0 0.0
  %269 = vmatprep.subr.mxu0 0.0
  %270 = vmatpush1.msra.mxu0 0.0
  %271 = vmatprep.subr.mxu0 0.0
  %272 = vmatpush1.msra.mxu0 0.0
  %273 = vmatprep.subr.mxu0 0.0
  %274 = vmatpush1.msra.mxu0 0.0
  %275 = vmatprep.subr.mxu0 0.0
  %276 = vmatpush1.msra.mxu0 0.0
  %277 = vmatprep.subr.mxu0 0.0
  %278 = vmatpush1.msra.mxu0 0.0
  %279 = vmatprep.subr.mxu0 0.0
  %280 = vmatpush1.msra.mxu0 0.0
  %281 = vmatprep.subr.mxu0 0.0
  %282 = vmatpush1.msra.mxu0 0.0
  %283 = vmatprep.subr.mxu0 0.0
  %284 = vmatpush1.msra.mxu0 0.0
  %285 = vmatprep.subr.mxu0 0.0
  %286 = vmatpush1.msra.mxu0 0.0
  %287 = vmatprep.subr.mxu0 0.0
  %288 = vmatpush1.msra.mxu0 0.0
  %289 = vmatprep.subr.mxu0 0.0
  %290 = vmatpush1.msra.mxu0 0.0
  %291 = vmatprep.subr.mxu0 0.0
  %292 = vmatpush1.msra.mxu0 0.0
  %293 = vmatprep.subr.mxu0 0.0
  %294 = vmatpush1.msra.mxu0 0.0
  %295 = vmatprep.subr.mxu0 0.0
  %296 = vmatpush1.msra.mxu0 0.0
  %297 = vmatprep.subr.mxu0 0.0
  %298 = vmatpush1.msra.mxu0 0.0
  %299 = vmatprep.subr.mxu0 0.0
  %300 = vmatpush1.msra.mxu0 0.0
  %301 = vmatprep.subr.mxu0 0.0
  %302 = vmatpush1.msra.mxu0 0.0
  %303 = vmatprep.subr.mxu0 0.0
  %304 = vmatpush1.msra.mxu0 0.0
  %305 = vmatprep.subr.mxu0 0.0
  %306 = vmatpush1.msra.mxu0 0.0
  %307 = vmatprep.subr.mxu0 0.0
  %308 = vmatpush1.msra.mxu0 0.0
  %309 = vmatprep.subr.mxu0 0.0
  %310 = vmatpush1.msra.mxu0 0.0
  %311 = vmatprep.subr.mxu0 0.0
  %312 = vmatpush1.msra.mxu0 0.0
  %313 = vmatprep.mubr.f32.mxu0 0.0
  %314 = vmatmul.mubr.f32.gmra.mrb[0].mxu0 %v247
  %v315 = vpop.f32.mrb[0].mxu0
  %v316 = vadd.f32 0.0, %v315
  %v317 = vpop.f32.mrb[0].mxu0
  %318 = vdwg.mxu0
  %v320 = vlaneseq
  %v321 = vshrl.u32 %v320, 7
  %v322 = vsub.s32 0, %v321
  %v323 = vrot.slane %v49, %v322
  %v326 = vsel %vm64, %v316, 0
  %328 = vmatprep.subr.mxu0 0.0
  %329 = vmatpush1.msra.mxu0 %v41
  %330 = vmatprep.subr.mxu0 0.0
  %331 = vmatpush1.msra.mxu0 %v42
  %332 = vmatprep.subr.mxu0 0.0
  %333 = vmatpush1.msra.mxu0 %v43
  %334 = vmatprep.subr.mxu0 0.0
  %335 = vmatpush1.msra.mxu0 %v44
  %336 = vmatprep.subr.mxu0 0.0
  %337 = vmatpush1.msra.mxu0 %v45
  %338 = vmatprep.subr.mxu0 0.0
  %339 = vmatpush1.msra.mxu0 %v46
  %340 = vmatprep.subr.mxu0 0.0
  %341 = vmatpush1.msra.mxu0 %v47
  %342 = vmatprep.subr.mxu0 0.0
  %343 = vmatpush1.msra.mxu0 %v48
  %344 = vmatprep.subr.mxu0 0.0
  %345 = vmatpush1.msra.mxu0 0.0
  %346 = vmatprep.subr.mxu0 0.0
  %347 = vmatpush1.msra.mxu0 0.0
  %348 = vmatprep.subr.mxu0 0.0
  %349 = vmatpush1.msra.mxu0 0.0
  %350 = vmatprep.subr.mxu0 0.0
  %351 = vmatpush1.msra.mxu0 0.0
  %352 = vmatprep.subr.mxu0 0.0
  %353 = vmatpush1.msra.mxu0 0.0
  %354 = vmatprep.subr.mxu0 0.0
  %355 = vmatpush1.msra.mxu0 0.0
  %356 = vmatprep.subr.mxu0 0.0
  %357 = vmatpush1.msra.mxu0 0.0
  %358 = vmatprep.subr.mxu0 0.0
  %359 = vmatpush1.msra.mxu0 0.0
  %360 = vmatprep.subr.mxu0 0.0
  %361 = vmatpush1.msra.mxu0 0.0
  %362 = vmatprep.subr.mxu0 0.0
  %363 = vmatpush1.msra.mxu0 0.0
  %364 = vmatprep.subr.mxu0 0.0
  %365 = vmatpush1.msra.mxu0 0.0
  %366 = vmatprep.subr.mxu0 0.0
  %367 = vmatpush1.msra.mxu0 0.0
  %368 = vmatprep.subr.mxu0 0.0
  %369 = vmatpush1.msra.mxu0 0.0
  %370 = vmatprep.subr.mxu0 0.0
  %371 = vmatpush1.msra.mxu0 0.0
  %372 = vmatprep.subr.mxu0 0.0
  %373 = vmatpush1.msra.mxu0 0.0
  %374 = vmatprep.subr.mxu0 0.0
  %375 = vmatpush1.msra.mxu0 0.0
  %376 = vmatprep.subr.mxu0 0.0
  %377 = vmatpush1.msra.mxu0 0.0
  %378 = vmatprep.subr.mxu0 0.0
  %379 = vmatpush1.msra.mxu0 0.0
  %380 = vmatprep.subr.mxu0 0.0
  %381 = vmatpush1.msra.mxu0 0.0
  %382 = vmatprep.subr.mxu0 0.0
  %383 = vmatpush1.msra.mxu0 0.0
  %384 = vmatprep.subr.mxu0 0.0
  %385 = vmatpush1.msra.mxu0 0.0
  %386 = vmatprep.subr.mxu0 0.0
  %387 = vmatpush1.msra.mxu0 0.0
  %388 = vmatprep.subr.mxu0 0.0
  %389 = vmatpush1.msra.mxu0 0.0
  %390 = vmatprep.subr.mxu0 0.0
  %391 = vmatpush1.msra.mxu0 0.0
  %392 = vmatprep.mubr.f32.mxu0 0.0
  %393 = vmatmul.mubr.f32.gmra.mrb[0].mxu0 %v326
  %v394 = vpop.f32.mrb[0].mxu0
  %v395 = vadd.f32 %v323, %v394
  %v396 = vpop.f32.mrb[0].mxu0
  %397 = vdwg.mxu0
  %v398 = vmax.f32 %v395, 0.0
  %v400 = vlaneseq
  %v401 = vshrl.u32 %v400, 7
  %v402 = vsub.s32 0, %v401
  %v403 = vrot.slane %v54, %v402
  %vm405 = vcmask 261120
  %v407 = vsel %vm405, %v398, 0
  %409 = vmatprep.subr.mxu0 0.0
  %410 = vmatpush1.msra.mxu0 %v50
  %411 = vmatprep.subr.mxu0 0.0
  %412 = vmatpush1.msra.mxu0 %v51
  %413 = vmatprep.subr.mxu0 0.0
  %414 = vmatpush1.msra.mxu0 %v52
  %415 = vmatprep.subr.mxu0 0.0
  %416 = vmatpush1.msra.mxu0 %v53
  %417 = vmatprep.subr.mxu0 0.0
  %418 = vmatpush1.msra.mxu0 0.0
  %419 = vmatprep.subr.mxu0 0.0
  %420 = vmatpush1.msra.mxu0 0.0
  %421 = vmatprep.subr.mxu0 0.0
  %422 = vmatpush1.msra.mxu0 0.0
  %423 = vmatprep.subr.mxu0 0.0
  %424 = vmatpush1.msra.mxu0 0.0
  %425 = vmatprep.subr.mxu0 0.0
  %426 = vmatpush1.msra.mxu0 0.0
  %427 = vmatprep.subr.mxu0 0.0
  %428 = vmatpush1.msra.mxu0 0.0
  %429 = vmatprep.subr.mxu0 0.0
  %430 = vmatpush1.msra.mxu0 0.0
  %431 = vmatprep.subr.mxu0 0.0
  %432 = vmatpush1.msra.mxu0 0.0
  %433 = vmatprep.subr.mxu0 0.0
  %434 = vmatpush1.msra.mxu0 0.0
  %435 = vmatprep.subr.mxu0 0.0
  %436 = vmatpush1.msra.mxu0 0.0
  %437 = vmatprep.subr.mxu0 0.0
  %438 = vmatpush1.msra.mxu0 0.0
  %439 = vmatprep.subr.mxu0 0.0
  %440 = vmatpush1.msra.mxu0 0.0
  %441 = vmatprep.subr.mxu0 0.0
  %442 = vmatpush1.msra.mxu0 0.0
  %443 = vmatprep.subr.mxu0 0.0
  %444 = vmatpush1.msra.mxu0 0.0
  %445 = vmatprep.subr.mxu0 0.0
  %446 = vmatpush1.msra.mxu0 0.0
  %447 = vmatprep.subr.mxu0 0.0
  %448 = vmatpush1.msra.mxu0 0.0
  %449 = vmatprep.subr.mxu0 0.0
  %450 = vmatpush1.msra.mxu0 0.0
  %451 = vmatprep.subr.mxu0 0.0
  %452 = vmatpush1.msra.mxu0 0.0
  %453 = vmatprep.subr.mxu0 0.0
  %454 = vmatpush1.msra.mxu0 0.0
  %455 = vmatprep.subr.mxu0 0.0
  %456 = vmatpush1.msra.mxu0 0.0
  %457 = vmatprep.subr.mxu0 0.0
  %458 = vmatpush1.msra.mxu0 0.0
  %459 = vmatprep.subr.mxu0 0.0
  %460 = vmatpush1.msra.mxu0 0.0
  %461 = vmatprep.subr.mxu0 0.0
  %462 = vmatpush1.msra.mxu0 0.0
  %463 = vmatprep.subr.mxu0 0.0
  %464 = vmatpush1.msra.mxu0 0.0
  %465 = vmatprep.subr.mxu0 0.0
  %466 = vmatpush1.msra.mxu0 0.0
  %467 = vmatprep.subr.mxu0 0.0
  %468 = vmatpush1.msra.mxu0 0.0
  %469 = vmatprep.subr.mxu0 0.0
  %470 = vmatpush1.msra.mxu0 0.0
  %471 = vmatprep.subr.mxu0 0.0
  %472 = vmatpush1.msra.mxu0 0.0
  %473 = vmatprep.mubr.f32.mxu0 0.0
  %474 = vmatmul.mubr.f32.gmra.mrb[0].mxu0 %v407
  %v475 = vpop.f32.mrb[0].mxu0
  %v476 = vadd.f32 %v403, %v475
  %v477 = vpop.f32.mrb[0].mxu0
  %478 = vdwg.mxu0
  %479 = vmax.xlane.f32.xlu0 %v476
  %v480 = vpop.xlane.xlu0 %479
  %v481 = vsub.f32 %v476, %v480
  %v482 = vmul.f32 %v481, 1.442695
  %v483 = vpow.pop %v482
  %484 = vadd.xlane.f32.xlu0 %v483
  %v485 = vpop.xlane.xlu0 %484
  %v486 = vlog2.pop %v485
  %v487 = vmul.f32 %v486, 0.6931472
  %v488 = vadd.f32 %v480, %v487
  %v489 = vsub.f32 %v476, %v488
  %490 = vst [vmem:[%s9] sm:$0xff] %v489
  %s491 = scalar_lea.vmem %s0, 8
  %v492 = vld [vmem:[%s491] sm:$0xff]
  %s493 = scalar_lea.vmem %s1, 1
  %v494 = vld [vmem:[%s493] sm:$0x1]
  %s495 = scalar_lea.vmem %s2, 8
  %v496 = vld [vmem:[%s495] sm:$0xff]
  %v498 = vsel %vm64, %v492, 0
  %500 = vmatprep.subr.mxu0 0.0
  %501 = vmatpush1.msra.mxu0 %v32
  %502 = vmatprep.subr.mxu0 0.0
  %503 = vmatpush1.msra.mxu0 %v33
  %504 = vmatprep.subr.mxu0 0.0
  %505 = vmatpush1.msra.mxu0 %v34
  %506 = vmatprep.subr.mxu0 0.0
  %507 = vmatpush1.msra.mxu0 %v35
  %508 = vmatprep.subr.mxu0 0.0
  %509 = vmatpush1.msra.mxu0 %v36
  %510 = vmatprep.subr.mxu0 0.0
  %511 = vmatpush1.msra.mxu0 %v37
  %512 = vmatprep.subr.mxu0 0.0
  %513 = vmatpush1.msra.mxu0 %v38
  %514 = vmatprep.subr.mxu0 0.0
  %515 = vmatpush1.msra.mxu0 %v39
  %516 = vmatprep.subr.mxu0 0.0
  %517 = vmatpush1.msra.mxu0 0.0
  %518 = vmatprep.subr.mxu0 0.0
  %519 = vmatpush1.msra.mxu0 0.0
  %520 = vmatprep.subr.mxu0 0.0
  %521 = vmatpush1.msra.mxu0 0.0
  %522 = vmatprep.subr.mxu0 0.0
  %523 = vmatpush1.msra.mxu0 0.0
  %524 = vmatprep.subr.mxu0 0.0
  %525 = vmatpush1.msra.mxu0 0.0
  %526 = vmatprep.subr.mxu0 0.0
  %527 = vmatpush1.msra.mxu0 0.0
  %528 = vmatprep.subr.mxu0 0.0
  %529 = vmatpush1.msra.mxu0 0.0
  %530 = vmatprep.subr.mxu0 0.0
  %531 = vmatpush1.msra.mxu0 0.0
  %532 = vmatprep.subr.mxu0 0.0
  %533 = vmatpush1.msra.mxu0 0.0
  %534 = vmatprep.subr.mxu0 0.0
  %535 = vmatpush1.msra.mxu0 0.0
  %536 = vmatprep.subr.mxu0 0.0
  %537 = vmatpush1.msra.mxu0 0.0
  %538 = vmatprep.subr.mxu0 0.0
  %539 = vmatpush1.msra.mxu0 0.0
  %540 = vmatprep.subr.mxu0 0.0
  %541 = vmatpush1.msra.mxu0 0.0
  %542 = vmatprep.subr.mxu0 0.0
  %543 = vmatpush1.msra.mxu0 0.0
  %544 = vmatprep.subr.mxu0 0.0
  %545 = vmatpush1.msra.mxu0 0.0
  %546 = vmatprep.subr.mxu0 0.0
  %547 = vmatpush1.msra.mxu0 0.0
  %548 = vmatprep.subr.mxu0 0.0
  %549 = vmatpush1.msra.mxu0 0.0
  %550 = vmatprep.subr.mxu0 0.0
  %551 = vmatpush1.msra.mxu0 0.0
  %552 = vmatprep.subr.mxu0 0.0
  %553 = vmatpush1.msra.mxu0 0.0
  %554 = vmatprep.subr.mxu0 0.0
  %555 = vmatpush1.msra.mxu0 0.0
  %556 = vmatprep.subr.mxu0 0.0
  %557 = vmatpush1.msra.mxu0 0.0
  %558 = vmatprep.subr.mxu0 0.0
  %559 = vmatpush1.msra.mxu0 0.0
  %560 = vmatprep.subr.mxu0 0.0
  %561 = vmatpush1.msra.mxu0 0.0
  %562 = vmatprep.subr.mxu0 0.0
  %563 = vmatpush1.msra.mxu0 0.0
  %564 = vmatprep.mubr.f32.mxu0 0.0
  %565 = vmatmul.mubr.f32.gmra.mrb[0].mxu0 %v498
  %v566 = vpop.f32.mrb[0].mxu0
  %v567 = vadd.f32 %v62, %v566
  %v568 = vpop.f32.mrb[0].mxu0
  %569 = vdwg.mxu0
  %571 = vset.pattern.permute.xlu0 0
  %572 = vperm.xlu0 %571, %v496
  %v573 = vpop.permute.xlu0 %572
  %v575 = vmul.f32 %v492, %v573
  %v577 = vsel %vm64, %v567, 0
  %v580 = vsel %vm64, %v575, 0
  %582 = vmatprep.subr.mxu0 0.0
  %583 = vmatpush1.xpose.msra.mxu0 %v580
  %584 = vmatprep.subr.mxu0 0.0
  %585 = vmatpush1.xpose.msra.mxu0 0.0
  %586 = vmatprep.subr.mxu0 0.0
  %587 = vmatpush1.xpose.msra.mxu0 0.0
  %588 = vmatprep.subr.mxu0 0.0
  %589 = vmatpush1.xpose.msra.mxu0 0.0
  %590 = vmatprep.subr.mxu0 0.0
  %591 = vmatpush1.xpose.msra.mxu0 0.0
  %592 = vmatprep.subr.mxu0 0.0
  %593 = vmatpush1.xpose.msra.mxu0 0.0
  %594 = vmatprep.subr.mxu0 0.0
  %595 = vmatpush1.xpose.msra.mxu0 0.0
  %596 = vmatprep.subr.mxu0 0.0
  %597 = vmatpush1.xpose.msra.mxu0 0.0
  %598 = vmatprep.subr.mxu0 0.0
  %599 = vmatpush1.xpose.msra.mxu0 0.0
  %600 = vmatprep.subr.mxu0 0.0
  %601 = vmatpush1.xpose.msra.mxu0 0.0
  %602 = vmatprep.subr.mxu0 0.0
  %603 = vmatpush1.xpose.msra.mxu0 0.0
  %604 = vmatprep.subr.mxu0 0.0
  %605 = vmatpush1.xpose.msra.mxu0 0.0
  %606 = vmatprep.subr.mxu0 0.0
  %607 = vmatpush1.xpose.msra.mxu0 0.0
  %608 = vmatprep.subr.mxu0 0.0
  %609 = vmatpush1.xpose.msra.mxu0 0.0
  %610 = vmatprep.subr.mxu0 0.0
  %611 = vmatpush1.xpose.msra.mxu0 0.0
  %612 = vmatprep.subr.mxu0 0.0
  %613 = vmatpush1.xpose.msra.mxu0 0.0
  %614 = vmatprep.subr.mxu0 0.0
  %615 = vmatpush1.xpose.msra.mxu0 0.0
  %616 = vmatprep.subr.mxu0 0.0
  %617 = vmatpush1.xpose.msra.mxu0 0.0
  %618 = vmatprep.subr.mxu0 0.0
  %619 = vmatpush1.xpose.msra.mxu0 0.0
  %620 = vmatprep.subr.mxu0 0.0
  %621 = vmatpush1.xpose.msra.mxu0 0.0
  %622 = vmatprep.subr.mxu0 0.0
  %623 = vmatpush1.xpose.msra.mxu0 0.0
  %624 = vmatprep.subr.mxu0 0.0
  %625 = vmatpush1.xpose.msra.mxu0 0.0
  %626 = vmatprep.subr.mxu0 0.0
  %627 = vmatpush1.xpose.msra.mxu0 0.0
  %628 = vmatprep.subr.mxu0 0.0
  %629 = vmatpush1.xpose.msra.mxu0 0.0
  %630 = vmatprep.subr.mxu0 0.0
  %631 = vmatpush1.xpose.msra.mxu0 0.0
  %632 = vmatprep.subr.mxu0 0.0
  %633 = vmatpush1.xpose.msra.mxu0 0.0
  %634 = vmatprep.subr.mxu0 0.0
  %635 = vmatpush1.xpose.msra.mxu0 0.0
  %636 = vmatprep.subr.mxu0 0.0
  %637 = vmatpush1.xpose.msra.mxu0 0.0
  %638 = vmatprep.subr.mxu0 0.0
  %639 = vmatpush1.xpose.msra.mxu0 0.0
  %640 = vmatprep.subr.mxu0 0.0
  %641 = vmatpush1.xpose.msra.mxu0 0.0
  %642 = vmatprep.subr.mxu0 0.0
  %643 = vmatpush1.xpose.msra.mxu0 0.0
  %644 = vmatprep.subr.mxu0 0.0
  %645 = vmatpush1.xpose.msra.mxu0 0.0
  %646 = vmatprep.mubr.f32.mxu0 0.0
  %647 = vmatmul.mubr.f32.gmra.mrb[0].mxu0 %v577
  %v648 = vpop.f32.mrb[0].mxu0
  %v649 = vadd.f32 0.0, %v648
  %v650 = vpop.f32.mrb[0].mxu0
  %651 = vdwg.mxu0
  %v653 = vlaneseq
  %v654 = vshrl.u32 %v653, 7
  %v655 = vsub.s32 0, %v654
  %v656 = vrot.slane %v494, %v655
  %v658 = vmul.f32 %v649, %v656
  %v659 = vtanh.pop %v658
  %v660 = vsel %vm228, %v659, -inf
  %661 = vmax.xlane.f32.xlu0 %v660
  %v662 = vpop.xlane.xlu0 %661
  %v663 = vsub.f32 %v659, %v662
  %v664 = vmul.f32 %v663, 1.442695
  %v665 = vpow.pop %v664
  %v666 = vsel %vm228, %v665, 0.0
  %667 = vadd.xlane.f32.xlu0 %v666
  %v668 = vpop.xlane.xlu0 %667
  %v669 = vrcp.pop %v668
  %v670 = vmul.f32 %v665, %v669
  %v671 = vmul.f32 %v670, %v656
  %v672 = vsel %vm228, %v671, 0.0
  %673 = vadd.xlane.f32.xlu0 %v672
  %v674 = vpop.xlane.xlu0 %673
  %v675 = vrcp.pop %v674
  %v676 = vmul.f32 %v671, %v675
  %v678 = vsel %vm228, %v676, 0
  %680 = vmatprep.subr.mxu0 0.0
  %681 = vmatpush1.msra.mxu0 %v492
  %682 = vmatprep.subr.mxu0 0.0
  %683 = vmatpush1.msra.mxu0 0.0
  %684 = vmatprep.subr.mxu0 0.0
  %685 = vmatpush1.msra.mxu0 0.0
  %686 = vmatprep.subr.mxu0 0.0
  %687 = vmatpush1.msra.mxu0 0.0
  %688 = vmatprep.subr.mxu0 0.0
  %689 = vmatpush1.msra.mxu0 0.0
  %690 = vmatprep.subr.mxu0 0.0
  %691 = vmatpush1.msra.mxu0 0.0
  %692 = vmatprep.subr.mxu0 0.0
  %693 = vmatpush1.msra.mxu0 0.0
  %694 = vmatprep.subr.mxu0 0.0
  %695 = vmatpush1.msra.mxu0 0.0
  %696 = vmatprep.subr.mxu0 0.0
  %697 = vmatpush1.msra.mxu0 0.0
  %698 = vmatprep.subr.mxu0 0.0
  %699 = vmatpush1.msra.mxu0 0.0
  %700 = vmatprep.subr.mxu0 0.0
  %701 = vmatpush1.msra.mxu0 0.0
  %702 = vmatprep.subr.mxu0 0.0
  %703 = vmatpush1.msra.mxu0 0.0
  %704 = vmatprep.subr.mxu0 0.0
  %705 = vmatpush1.msra.mxu0 0.0
  %706 = vmatprep.subr.mxu0 0.0
  %707 = vmatpush1.msra.mxu0 0.0
  %708 = vmatprep.subr.mxu0 0.0
  %709 = vmatpush1.msra.mxu0 0.0
  %710 = vmatprep.subr.mxu0 0.0
  %711 = vmatpush1.msra.mxu0 0.0
  %712 = vmatprep.subr.mxu0 0.0
  %713 = vmatpush1.msra.mxu0 0.0
  %714 = vmatprep.subr.mxu0 0.0
  %715 = vmatpush1.msra.mxu0 0.0
  %716 = vmatprep.subr.mxu0 0.0
  %717 = vmatpush1.msra.mxu0 0.0
  %718 = vmatprep.subr.mxu0 0.0
  %719 = vmatpush1.msra.mxu0 0.0
  %720 = vmatprep.subr.mxu0 0.0
  %721 = vmatpush1.msra.mxu0 0.0
  %722 = vmatprep.subr.mxu0 0.0
  %723 = vmatpush1.msra.mxu0 0.0
  %724 = vmatprep.subr.mxu0 0.0
  %725 = vmatpush1.msra.mxu0 0.0
  %726 = vmatprep.subr.mxu0 0.0
  %727 = vmatpush1.msra.mxu0 0.0
  %728 = vmatprep.subr.mxu0 0.0
  %729 = vmatpush1.msra.mxu0 0.0
  %730 = vmatprep.subr.mxu0 0.0
  %731 = vmatpush1.msra.mxu0 0.0
  %732 = vmatprep.subr.mxu0 0.0
  %733 = vmatpush1.msra.mxu0 0.0
  %734 = vmatprep.subr.mxu0 0.0
  %735 = vmatpush1.msra.mxu0 0.0
  %736 = vmatprep.subr.mxu0 0.0
  %737 = vmatpush1.msra.mxu0 0.0
  %738 = vmatprep.subr.mxu0 0.0
  %739 = vmatpush1.msra.mxu0 0.0
  %740 = vmatprep.subr.mxu0 0.0
  %741 = vmatpush1.msra.mxu0 0.0
  %742 = vmatprep.subr.mxu0 0.0
  %743 = vmatpush1.msra.mxu0 0.0
  %744 = vmatprep.mubr.f32.mxu0 0.0
  %745 = vmatmul.mubr.f32.gmra.mrb[0].mxu0 %v678
  %v746 = vpop.f32.mrb[0].mxu0
  %v747 = vadd.f32 0.0, %v746
  %v748 = vpop.f32.mrb[0].mxu0
  %749 = vdwg.mxu0
  %v751 = vsel %vm64, %v747, 0
  %753 = vmatprep.subr.mxu0 0.0
  %754 = vmatpush1.msra.mxu0 %v41
  %755 = vmatprep.subr.mxu0 0.0
  %756 = vmatpush1.msra.mxu0 %v42
  %757 = vmatprep.subr.mxu0 0.0
  %758 = vmatpush1.msra.mxu0 %v43
  %759 = vmatprep.subr.mxu0 0.0
  %760 = vmatpush1.msra.mxu0 %v44
  %761 = vmatprep.subr.mxu0 0.0
  %762 = vmatpush1.msra.mxu0 %v45
  %763 = vmatprep.subr.mxu0 0.0
  %764 = vmatpush1.msra.mxu0 %v46
  %765 = vmatprep.subr.mxu0 0.0
  %766 = vmatpush1.msra.mxu0 %v47
  %767 = vmatprep.subr.mxu0 0.0
  %768 = vmatpush1.msra.mxu0 %v48
  %769 = vmatprep.subr.mxu0 0.0
  %770 = vmatpush1.msra.mxu0 0.0
  %771 = vmatprep.subr.mxu0 0.0
  %772 = vmatpush1.msra.mxu0 0.0
  %773 = vmatprep.subr.mxu0 0.0
  %774 = vmatpush1.msra.mxu0 0.0
  %775 = vmatprep.subr.mxu0 0.0
  %776 = vmatpush1.msra.mxu0 0.0
  %777 = vmatprep.subr.mxu0 0.0
  %778 = vmatpush1.msra.mxu0 0.0
  %779 = vmatprep.subr.mxu0 0.0
  %780 = vmatpush1.msra.mxu0 0.0
  %781 = vmatprep.subr.mxu0 0.0
  %782 = vmatpush1.msra.mxu0 0.0
  %783 = vmatprep.subr.mxu0 0.0
  %784 = vmatpush1.msra.mxu0 0.0
  %785 = vmatprep.subr.mxu0 0.0
  %786 = vmatpush1.msra.mxu0 0.0
  %787 = vmatprep.subr.mxu0 0.0
  %788 = vmatpush1.msra.mxu0 0.0
  %789 = vmatprep.subr.mxu0 0.0
  %790 = vmatpush1.msra.mxu0 0.0
  %791 = vmatprep.subr.mxu0 0.0
  %792 = vmatpush1.msra.mxu0 0.0
  %793 = vmatprep.subr.mxu0 0.0
  %794 = vmatpush1.msra.mxu0 0.0
  %795 = vmatprep.subr.mxu0 0.0
  %796 = vmatpush1.msra.mxu0 0.0
  %797 = vmatprep.subr.mxu0 0.0
  %798 = vmatpush1.msra.mxu0 0.0
  %799 = vmatprep.subr.mxu0 0.0
  %800 = vmatpush1.msra.mxu0 0.0
  %801 = vmatprep.subr.mxu0 0.0
  %802 = vmatpush1.msra.mxu0 0.0
  %803 = vmatprep.subr.mxu0 0.0
  %804 = vmatpush1.msra.mxu0 0.0
  %805 = vmatprep.subr.mxu0 0.0
  %806 = vmatpush1.msra.mxu0 0.0
  %807 = vmatprep.subr.mxu0 0.0
  %808 = vmatpush1.msra.mxu0 0.0
  %809 = vmatprep.subr.mxu0 0.0
  %810 = vmatpush1.msra.mxu0 0.0
  %811 = vmatprep.subr.mxu0 0.0
  %812 = vmatpush1.msra.mxu0 0.0
  %813 = vmatprep.subr.mxu0 0.0
  %814 = vmatpush1.msra.mxu0 0.0
  %815 = vmatprep.subr.mxu0 0.0
  %816 = vmatpush1.msra.mxu0 0.0
  %817 = vmatprep.mubr.f32.mxu0 0.0
  %818 = vmatmul.mubr.f32.gmra.mrb[0].mxu0 %v751
  %v819 = vpop.f32.mrb[0].mxu0
  %v820 = vadd.f32 %v323, %v819
  %v821 = vpop.f32.mrb[0].mxu0
  %822 = vdwg.mxu0
  %v823 = vmax.f32 %v820, 0.0
  %v825 = vsel %vm405, %v823, 0
  %827 = vmatprep.subr.mxu0 0.0
  %828 = vmatpush1.msra.mxu0 %v50
  %829 = vmatprep.subr.mxu0 0.0
  %830 = vmatpush1.msra.mxu0 %v51
  %831 = vmatprep.subr.mxu0 0.0
  %832 = vmatpush1.msra.mxu0 %v52
  %833 = vmatprep.subr.mxu0 0.0
  %834 = vmatpush1.msra.mxu0 %v53
  %835 = vmatprep.subr.mxu0 0.0
  %836 = vmatpush1.msra.mxu0 0.0
  %837 = vmatprep.subr.mxu0 0.0
  %838 = vmatpush1.msra.mxu0 0.0
  %839 = vmatprep.subr.mxu0 0.0
  %840 = vmatpush1.msra.mxu0 0.0
  %841 = vmatprep.subr.mxu0 0.0
  %842 = vmatpush1.msra.mxu0 0.0
  %843 = vmatprep.subr.mxu0 0.0
  %844 = vmatpush1.msra.mxu0 0.0
  %845 = vmatprep.subr.mxu0 0.0
  %846 = vmatpush1.msra.mxu0 0.0
  %847 = vmatprep.subr.mxu0 0.0
  %848 = vmatpush1.msra.mxu0 0.0
  %849 = vmatprep.subr.mxu0 0.0
  %850 = vmatpush1.msra.mxu0 0.0
  %851 = vmatprep.subr.mxu0 0.0
  %852 = vmatpush1.msra.mxu0 0.0
  %853 = vmatprep.subr.mxu0 0.0
  %854 = vmatpush1.msra.mxu0 0.0
  %855 = vmatprep.subr.mxu0 0.0
  %856 = vmatpush1.msra.mxu0 0.0
  %857 = vmatprep.subr.mxu0 0.0
  %858 = vmatpush1.msra.mxu0 0.0
  %859 = vmatprep.subr.mxu0 0.0
  %860 = vmatpush1.msra.mxu0 0.0
  %861 = vmatprep.subr.mxu0 0.0
  %862 = vmatpush1.msra.mxu0 0.0
  %863 = vmatprep.subr.mxu0 0.0
  %864 = vmatpush1.msra.mxu0 0.0
  %865 = vmatprep.subr.mxu0 0.0
  %866 = vmatpush1.msra.mxu0 0.0
  %867 = vmatprep.subr.mxu0 0.0
  %868 = vmatpush1.msra.mxu0 0.0
  %869 = vmatprep.subr.mxu0 0.0
  %870 = vmatpush1.msra.mxu0 0.0
  %871 = vmatprep.subr.mxu0 0.0
  %872 = vmatpush1.msra.mxu0 0.0
  %873 = vmatprep.subr.mxu0 0.0
  %874 = vmatpush1.msra.mxu0 0.0
  %875 = vmatprep.subr.mxu0 0.0
  %876 = vmatpush1.msra.mxu0 0.0
  %877 = vmatprep.subr.mxu0 0.0
  %878 = vmatpush1.msra.mxu0 0.0
  %879 = vmatprep.subr.mxu0 0.0
  %880 = vmatpush1.msra.mxu0 0.0
  %881 = vmatprep.subr.mxu0 0.0
  %882 = vmatpush1.msra.mxu0 0.0
  %883 = vmatprep.subr.mxu0 0.0
  %884 = vmatpush1.msra.mxu0 0.0
  %885 = vmatprep.subr.mxu0 0.0
  %886 = vmatpush1.msra.mxu0 0.0
  %887 = vmatprep.subr.mxu0 0.0
  %888 = vmatpush1.msra.mxu0 0.0
  %889 = vmatprep.subr.mxu0 0.0
  %890 = vmatpush1.msra.mxu0 0.0
  %891 = vmatprep.mubr.f32.mxu0 0.0
  %892 = vmatmul.mubr.f32.gmra.mrb[0].mxu0 %v825
  %v893 = vpop.f32.mrb[0].mxu0
  %v894 = vadd.f32 %v403, %v893
  %v895 = vpop.f32.mrb[0].mxu0
  %896 = vdwg.mxu0
  %897 = vmax.xlane.f32.xlu0 %v894
  %v898 = vpop.xlane.xlu0 %897
  %v899 = vsub.f32 %v894, %v898
  %v900 = vmul.f32 %v899, 1.442695
  %v901 = vpow.pop %v900
  %902 = vadd.xlane.f32.xlu0 %v901
  %v903 = vpop.xlane.xlu0 %902
  %v904 = vlog2.pop %v903
  %v905 = vmul.f32 %v904, 0.6931472
  %v906 = vadd.f32 %v898, %v905
  %v907 = vsub.f32 %v894, %v906
  %s908 = scalar_lea.vmem %s9, 8
  %909 = vst [vmem:[%s908] sm:$0xff] %v907
  // Predicated region
  $region38: #{_forward_device.7} parent=0 // pred_check
    _
  $region39: #{_forward_device.7} parent=0 // pred_check_branch
    %911 = sbr.rel (0) target = $region41
  $region40: #{_forward_device.7} parent=0 // pred_region
    _
  $region41: #{_forward_device.7} parent=0 // pred_fallthru
    _
  // Predicated region
  $region42: #{_forward_device.7} parent=0 // pred_check
    _
  $region43: #{_forward_device.7} parent=0 // pred_check_branch
    %913 = sbr.rel (0) target = $region45
  $region44: #{_forward_device.7} parent=0 // pred_region
    _
  $region45: #{_forward_device.7} parent=0 // pred_fallthru
    _

// kernel: _forward_device.6
$region0: #{_forward_device.6}
  #allocation0 [shape = 'u32[]', space=smem, size = 0x4, offset = 0x4, fixed_abs, tag = 'smem constant byte address 0x4 - core index']
  #allocation1 [shape = 'u32[144,128]{1,0:T(1,128)}', space=vmem, size = 0x12000, scoped, tag = 'internal scratch']
  %s0 = inlined_call_operand.vmem [shape: f32[14,32], index: 0, kind: input, shape index: {}]
  %s1 = inlined_call_operand.vmem [shape: f32[8,14,14], index: 1, kind: input, shape index: {}]
  %s2 = inlined_call_operand.vmem [shape: f32[32,256], index: 2, kind: input, shape index: {}]
  %s3 = inlined_call_operand.vmem [shape: f32[32,32], index: 3, kind: input, shape index: {}]
  %s4 = inlined_call_operand.vmem [shape: f32[1,32], index: 4, kind: input, shape index: {}]
  %s5 = inlined_call_operand.vmem [shape: f32[14,1], index: 5, kind: input, shape index: {}]
  %s6 = inlined_call_operand.vmem [shape: f32[14,14], index: 6, kind: input, shape index: {}]
  %s7 = inlined_call_operand.vmem [shape: f32[32,32], index: 7, kind: input, shape index: {}]
  %s8 = inlined_call_operand.vmem [shape: f32[32,32], index: 8, kind: input, shape index: {}]
  %s9 = inlined_call_operand.vmem [shape: f32[1,32], index: 9, kind: input, shape index: {}]
  %s10 = inlined_call_operand.vmem [shape: f32[14,32], index: 10, kind: output, shape index: {}]
  %s11 = sld [smem:[#allocation0]]
  $region50: #{_forward_device.6} parent=0
    _
  %s13 = ssub.s32 1, %s11
  %s14 = scalar_select 0, %s13, %s11
  // Predicated region
  $region2: #{_forward_device.6} parent=0 // pred_check
    _
  $region3: #{_forward_device.6} parent=0 // pred_check_branch
    %16 = sbr.rel (0) target = $region5
  $region4: #{_forward_device.6} parent=0 // pred_region
    _
  $region5: #{_forward_device.6} parent=0 // pred_fallthru
    _
  // Predicated region
  $region6: #{_forward_device.6} parent=0 // pred_check
    _
  $region7: #{_forward_device.6} parent=0 // pred_check_branch
    %18 = sbr.rel (0) target = $region9
  $region8: #{_forward_device.6} parent=0 // pred_region
    _
  $region9: #{_forward_device.6} parent=0 // pred_fallthru
    _
  // Predicated region
  $region10: #{_forward_device.6} parent=0 // pred_check
    _
  $region11: #{_forward_device.6} parent=0 // pred_check_branch
    %20 = sbr.rel (0) target = $region13
  $region12: #{_forward_device.6} parent=0 // pred_region
    _
  $region13: #{_forward_device.6} parent=0 // pred_fallthru
    _
  // Predicated region
  $region14: #{_forward_device.6} parent=0 // pred_check
    _
  $region15: #{_forward_device.6} parent=0 // pred_check_branch
    %22 = sbr.rel (0) target = $region17
  $region16: #{_forward_device.6} parent=0 // pred_region
    _
  $region17: #{_forward_device.6} parent=0 // pred_fallthru
    _
  // Predicated region
  $region18: #{_forward_device.6} parent=0 // pred_check
    _
  $region19: #{_forward_device.6} parent=0 // pred_check_branch
    %24 = sbr.rel (0) target = $region21
  $region20: #{_forward_device.6} parent=0 // pred_region
    _
  $region21: #{_forward_device.6} parent=0 // pred_fallthru
    _
  // Predicated region
  $region22: #{_forward_device.6} parent=0 // pred_check
    _
  $region23: #{_forward_device.6} parent=0 // pred_check_branch
    %26 = sbr.rel (0) target = $region25
  $region24: #{_forward_device.6} parent=0 // pred_region
    _
  $region25: #{_forward_device.6} parent=0 // pred_fallthru
    _
  // Predicated region
  $region26: #{_forward_device.6} parent=0 // pred_check
    _
  $region27: #{_forward_device.6} parent=0 // pred_check_branch
    %28 = sbr.rel (0) target = $region29
  $region28: #{_forward_device.6} parent=0 // pred_region
    _
  $region29: #{_forward_device.6} parent=0 // pred_fallthru
    _
  // Predicated region
  $region30: #{_forward_device.6} parent=0 // pred_check
    _
  $region31: #{_forward_device.6} parent=0 // pred_check_branch
    %30 = sbr.rel (0) target = $region33
  $region32: #{_forward_device.6} parent=0 // pred_region
    _
  $region33: #{_forward_device.6} parent=0 // pred_fallthru
    _
  // Predicated region
  $region34: #{_forward_device.6} parent=0 // pred_check
    _
  $region35: #{_forward_device.6} parent=0 // pred_check_branch
    %32 = sbr.rel (0) target = $region37
  $region36: #{_forward_device.6} parent=0 // pred_region
    _
  $region37: #{_forward_device.6} parent=0 // pred_fallthru
    _
  // Predicated region
  $region38: #{_forward_device.6} parent=0 // pred_check
    _
  $region39: #{_forward_device.6} parent=0 // pred_check_branch
    %34 = sbr.rel (0) target = $region41
  $region40: #{_forward_device.6} parent=0 // pred_region
    _
  $region41: #{_forward_device.6} parent=0 // pred_fallthru
    _
  %v35 = vld [vmem:[%s0] sm:$0xff]
  %v36 = vld [vmem:[%s0 + $0x8] sm:$0x3f]
  %v37 = vld [vmem:[%s2] sm:$0xff]
  %v38 = vld [vmem:[%s2 + $0x8] sm:$0xff]
  %v39 = vld [vmem:[%s2 + $0x10] sm:$0xff]
  %v40 = vld [vmem:[%s2 + $0x18] sm:$0xff]
  %v41 = vld [vmem:[%s2 + $0x20] sm:$0xff]
  %v42 = vld [vmem:[%s2 + $0x28] sm:$0xff]
  %v43 = vld [vmem:[%s2 + $0x30] sm:$0xff]
  %v44 = vld [vmem:[%s2 + $0x38] sm:$0xff]
  %vm45 = vcmask 261120
  %v47 = vsel %vm45, %v35, 0
  %v50 = vsel %vm45, %v36, 0
  %52 = vmatprep.subr.mxu0 %v38
  %53 = vmatpush1.msra.mxu0 %v37
  %54 = vmatprep.subr.mxu0 %v40
  %55 = vmatpush1.msra.mxu0 %v39
  %56 = vmatprep.subr.mxu0 %v42
  %57 = vmatpush1.msra.mxu0 %v41
  %58 = vmatprep.subr.mxu0 %v44
  %59 = vmatpush1.msra.mxu0 %v43
  %60 = vmatprep.subr.mxu0 0.0
  %61 = vmatpush1.msra.mxu0 0.0
  %62 = vmatprep.subr.mxu0 0.0
  %63 = vmatpush1.msra.mxu0 0.0
  %64 = vmatprep.subr.mxu0 0.0
  %65 = vmatpush1.msra.mxu0 0.0
  %66 = vmatprep.subr.mxu0 0.0
  %67 = vmatpush1.msra.mxu0 0.0
  %68 = vmatprep.subr.mxu0 0.0
  %69 = vmatpush1.msra.mxu0 0.0
  %70 = vmatprep.subr.mxu0 0.0
  %71 = vmatpush1.msra.mxu0 0.0
  %72 = vmatprep.subr.mxu0 0.0
  %73 = vmatpush1.msra.mxu0 0.0
  %74 = vmatprep.subr.mxu0 0.0
  %75 = vmatpush1.msra.mxu0 0.0
  %76 = vmatprep.subr.mxu0 0.0
  %77 = vmatpush1.msra.mxu0 0.0
  %78 = vmatprep.subr.mxu0 0.0
  %79 = vmatpush1.msra.mxu0 0.0
  %80 = vmatprep.subr.mxu0 0.0
  %81 = vmatpush1.msra.mxu0 0.0
  %82 = vmatprep.subr.mxu0 0.0
  %83 = vmatpush1.msra.mxu0 0.0
  %84 = vmatprep.subr.mxu0 0.0
  %85 = vmatpush1.msra.mxu0 0.0
  %86 = vmatprep.subr.mxu0 0.0
  %87 = vmatpush1.msra.mxu0 0.0
  %88 = vmatprep.subr.mxu0 0.0
  %89 = vmatpush1.msra.mxu0 0.0
  %90 = vmatprep.subr.mxu0 0.0
  %91 = vmatpush1.msra.mxu0 0.0
  %92 = vmatprep.subr.mxu0 0.0
  %93 = vmatpush1.msra.mxu0 0.0
  %94 = vmatprep.subr.mxu0 0.0
  %95 = vmatpush1.msra.mxu0 0.0
  %96 = vmatprep.subr.mxu0 0.0
  %97 = vmatpush1.msra.mxu0 0.0
  %98 = vmatprep.subr.mxu0 0.0
  %99 = vmatpush1.msra.mxu0 0.0
  %100 = vmatprep.subr.mxu0 0.0
  %101 = vmatpush1.msra.mxu0 0.0
  %102 = vmatprep.subr.mxu0 0.0
  %103 = vmatpush1.msra.mxu0 0.0
  %104 = vmatprep.subr.mxu0 0.0
  %105 = vmatpush1.msra.mxu0 0.0
  %106 = vmatprep.subr.mxu0 0.0
  %107 = vmatpush1.msra.mxu0 0.0
  %108 = vmatprep.subr.mxu0 0.0
  %109 = vmatpush1.msra.mxu0 0.0
  %110 = vmatprep.subr.mxu0 0.0
  %111 = vmatpush1.msra.mxu0 0.0
  %112 = vmatprep.subr.mxu0 0.0
  %113 = vmatpush1.msra.mxu0 0.0
  %114 = vmatprep.subr.mxu0 0.0
  %115 = vmatpush1.msra.mxu0 0.0
  %116 = vmatprep.mubr.f32.mxu0 0.0
  %117 = vmatmul.mubr.f32.gmra.mrb[0].mxu0 %v47
  %v118 = vpop.f32.mrb[0].mxu0
  %v119 = vadd.f32 0.0, %v118
  %v120 = vpop.f32.mrb[0].mxu0
  %v121 = vadd.f32 0.0, %v120
  %122 = vmatprep.mubr.f32.mxu0 0.0
  %123 = vmatmul.mubr.f32.gmra.mrb[0].mxu0 %v50
  %v124 = vpop.f32.mrb[0].mxu0
  %v125 = vadd.f32 0.0, %v124
  %v126 = vpop.f32.mrb[0].mxu0
  %v127 = vadd.f32 0.0, %v126
  %128 = vdwg.mxu0
  %v129 = vld [vmem:[%s1] sm:$0xff]
  %v130 = vld [vmem:[%s1 + $0x8] sm:$0x3f]
  %s131 = scalar_lea.vmem %s1, 16
  %v132 = vld [vmem:[%s131] sm:$0xff]
  %v133 = vld [vmem:[%s131 + $0x8] sm:$0x3f]
  %136 = vrot.lane.b32.xlu0 %v119, 96
  %v137 = vpop.permute.xlu0 %136
  %138 = vrot.lane.b32.xlu0 %v125, 96
  %v139 = vpop.permute.xlu0 %138
  %vm141 = vcmask 113664
  %v143 = vsel %vm141, %v132, 0
  %v146 = vsel %vm141, %v133, 0
  %vm148 = vcmask 1045504
  %v149 = vsel %vm148, %v139, 0
  %151 = vmatprep.subr.mxu0 0.0
  %152 = vmatpush1.msra.mxu0 %v137
  %153 = vmatprep.subr.mxu0 0.0
  %154 = vmatpush1.msra.mxu0 %v149
  %155 = vmatprep.subr.mxu0 0.0
  %156 = vmatpush1.msra.mxu0 0.0
  %157 = vmatprep.subr.mxu0 0.0
  %158 = vmatpush1.msra.mxu0 0.0
  %159 = vmatprep.subr.mxu0 0.0
  %160 = vmatpush1.msra.mxu0 0.0
  %161 = vmatprep.subr.mxu0 0.0
  %162 = vmatpush1.msra.mxu0 0.0
  %163 = vmatprep.subr.mxu0 0.0
  %164 = vmatpush1.msra.mxu0 0.0
  %165 = vmatprep.subr.mxu0 0.0
  %166 = vmatpush1.msra.mxu0 0.0
  %167 = vmatprep.subr.mxu0 0.0
  %168 = vmatpush1.msra.mxu0 0.0
  %169 = vmatprep.subr.mxu0 0.0
  %170 = vmatpush1.msra.mxu0 0.0
  %171 = vmatprep.subr.mxu0 0.0
  %172 = vmatpush1.msra.mxu0 0.0
  %173 = vmatprep.subr.mxu0 0.0
  %174 = vmatpush1.msra.mxu0 0.0
  %175 = vmatprep.subr.mxu0 0.0
  %176 = vmatpush1.msra.mxu0 0.0
  %177 = vmatprep.subr.mxu0 0.0
  %178 = vmatpush1.msra.mxu0 0.0
  %179 = vmatprep.subr.mxu0 0.0
  %180 = vmatpush1.msra.mxu0 0.0
  %181 = vmatprep.subr.mxu0 0.0
  %182 = vmatpush1.msra.mxu0 0.0
  %183 = vmatprep.subr.mxu0 0.0
  %184 = vmatpush1.msra.mxu0 0.0
  %185 = vmatprep.subr.mxu0 0.0
  %186 = vmatpush1.msra.mxu0 0.0
  %187 = vmatprep.subr.mxu0 0.0
  %188 = vmatpush1.msra.mxu0 0.0
  %189 = vmatprep.subr.mxu0 0.0
  %190 = vmatpush1.msra.mxu0 0.0
  %191 = vmatprep.subr.mxu0 0.0
  %192 = vmatpush1.msra.mxu0 0.0
  %193 = vmatprep.subr.mxu0 0.0
  %194 = vmatpush1.msra.mxu0 0.0
  %195 = vmatprep.subr.mxu0 0.0
  %196 = vmatpush1.msra.mxu0 0.0
  %197 = vmatprep.subr.mxu0 0.0
  %198 = vmatpush1.msra.mxu0 0.0
  %199 = vmatprep.subr.mxu0 0.0
  %200 = vmatpush1.msra.mxu0 0.0
  %201 = vmatprep.subr.mxu0 0.0
  %202 = vmatpush1.msra.mxu0 0.0
  %203 = vmatprep.subr.mxu0 0.0
  %204 = vmatpush1.msra.mxu0 0.0
  %205 = vmatprep.subr.mxu0 0.0
  %206 = vmatpush1.msra.mxu0 0.0
  %207 = vmatprep.subr.mxu0 0.0
  %208 = vmatpush1.msra.mxu0 0.0
  %209 = vmatprep.subr.mxu0 0.0
  %210 = vmatpush1.msra.mxu0 0.0
  %211 = vmatprep.subr.mxu0 0.0
  %212 = vmatpush1.msra.mxu0 0.0
  %213 = vmatprep.subr.mxu0 0.0
  %214 = vmatpush1.msra.mxu0 0.0
  %215 = vmatprep.mubr.f32.mxu0 0.0
  %216 = vmatmul.mubr.f32.gmra.mrb[0].mxu0 %v143
  %v217 = vpop.f32.mrb[0].mxu0
  %v218 = vadd.f32 0.0, %v217
  %v219 = vpop.f32.mrb[0].mxu0
  %220 = vmatprep.mubr.f32.mxu0 0.0
  %221 = vmatmul.mubr.f32.gmra.mrb[0].mxu0 %v146
  %v222 = vpop.f32.mrb[0].mxu0
  %v223 = vadd.f32 0.0, %v222
  %v224 = vpop.f32.mrb[0].mxu0
  %225 = vdwg.mxu0
  %v227 = vsel %vm141, %v129, 0
  %v230 = vsel %vm141, %v130, 0
  %v232 = vsel %vm148, %v125, 0
  %234 = vmatprep.subr.mxu0 0.0
  %235 = vmatpush1.msra.mxu0 %v119
  %236 = vmatprep.subr.mxu0 0.0
  %237 = vmatpush1.msra.mxu0 %v232
  %238 = vmatprep.subr.mxu0 0.0
  %239 = vmatpush1.msra.mxu0 0.0
  %240 = vmatprep.subr.mxu0 0.0
  %241 = vmatpush1.msra.mxu0 0.0
  %242 = vmatprep.subr.mxu0 0.0
  %243 = vmatpush1.msra.mxu0 0.0
  %244 = vmatprep.subr.mxu0 0.0
  %245 = vmatpush1.msra.mxu0 0.0
  %246 = vmatprep.subr.mxu0 0.0
  %247 = vmatpush1.msra.mxu0 0.0
  %248 = vmatprep.subr.mxu0 0.0
  %249 = vmatpush1.msra.mxu0 0.0
  %250 = vmatprep.subr.mxu0 0.0
  %251 = vmatpush1.msra.mxu0 0.0
  %252 = vmatprep.subr.mxu0 0.0
  %253 = vmatpush1.msra.mxu0 0.0
  %254 = vmatprep.subr.mxu0 0.0
  %255 = vmatpush1.msra.mxu0 0.0
  %256 = vmatprep.subr.mxu0 0.0
  %257 = vmatpush1.msra.mxu0 0.0
  %258 = vmatprep.subr.mxu0 0.0
  %259 = vmatpush1.msra.mxu0 0.0
  %260 = vmatprep.subr.mxu0 0.0
  %261 = vmatpush1.msra.mxu0 0.0
  %262 = vmatprep.subr.mxu0 0.0
  %263 = vmatpush1.msra.mxu0 0.0
  %264 = vmatprep.subr.mxu0 0.0
  %265 = vmatpush1.msra.mxu0 0.0
  %266 = vmatprep.subr.mxu0 0.0
  %267 = vmatpush1.msra.mxu0 0.0
  %268 = vmatprep.subr.mxu0 0.0
  %269 = vmatpush1.msra.mxu0 0.0
  %270 = vmatprep.subr.mxu0 0.0
  %271 = vmatpush1.msra.mxu0 0.0
  %272 = vmatprep.subr.mxu0 0.0
  %273 = vmatpush1.msra.mxu0 0.0
  %274 = vmatprep.subr.mxu0 0.0
  %275 = vmatpush1.msra.mxu0 0.0
  %276 = vmatprep.subr.mxu0 0.0
  %277 = vmatpush1.msra.mxu0 0.0
  %278 = vmatprep.subr.mxu0 0.0
  %279 = vmatpush1.msra.mxu0 0.0
  %280 = vmatprep.subr.mxu0 0.0
  %281 = vmatpush1.msra.mxu0 0.0
  %282 = vmatprep.subr.mxu0 0.0
  %283 = vmatpush1.msra.mxu0 0.0
  %284 = vmatprep.subr.mxu0 0.0
  %285 = vmatpush1.msra.mxu0 0.0
  %286 = vmatprep.subr.mxu0 0.0
  %287 = vmatpush1.msra.mxu0 0.0
  %288 = vmatprep.subr.mxu0 0.0
  %289 = vmatpush1.msra.mxu0 0.0
  %290 = vmatprep.subr.mxu0 0.0
  %291 = vmatpush1.msra.mxu0 0.0
  %292 = vmatprep.subr.mxu0 0.0
  %293 = vmatpush1.msra.mxu0 0.0
  %294 = vmatprep.subr.mxu0 0.0
  %295 = vmatpush1.msra.mxu0 0.0
  %296 = vmatprep.subr.mxu0 0.0
  %297 = vmatpush1.msra.mxu0 0.0
  %298 = vmatprep.mubr.f32.mxu0 0.0
  %299 = vmatmul.mubr.f32.gmra.mrb[0].mxu0 %v227
  %v300 = vpop.f32.mrb[0].mxu0
  %v301 = vadd.f32 %v218, %v300
  %v302 = vpop.f32.mrb[0].mxu0
  %303 = vmatprep.mubr.f32.mxu0 0.0
  %304 = vmatmul.mubr.f32.gmra.mrb[0].mxu0 %v230
  %v305 = vpop.f32.mrb[0].mxu0
  %v306 = vadd.f32 %v223, %v305
  %v307 = vpop.f32.mrb[0].mxu0
  %308 = vdwg.mxu0
  %s309 = scalar_lea.vmem %s1, 32
  %v310 = vld [vmem:[%s309] sm:$0xff]
  %v311 = vld [vmem:[%s309 + $0x8] sm:$0x3f]
  %312 = vrot.lane.b32.xlu0 %v119, 64
  %v313 = vpop.permute.xlu0 %312
  %314 = vrot.lane.b32.xlu0 %v125, 64
  %v315 = vpop.permute.xlu0 %314
  %v318 = vsel %vm141, %v310, 0
  %v321 = vsel %vm141, %v311, 0
  %v323 = vsel %vm148, %v315, 0
  %325 = vmatprep.subr.mxu0 0.0
  %326 = vmatpush1.msra.mxu0 %v313
  %327 = vmatprep.subr.mxu0 0.0
  %328 = vmatpush1.msra.mxu0 %v323
  %329 = vmatprep.subr.mxu0 0.0
  %330 = vmatpush1.msra.mxu0 0.0
  %331 = vmatprep.subr.mxu0 0.0
  %332 = vmatpush1.msra.mxu0 0.0
  %333 = vmatprep.subr.mxu0 0.0
  %334 = vmatpush1.msra.mxu0 0.0
  %335 = vmatprep.subr.mxu0 0.0
  %336 = vmatpush1.msra.mxu0 0.0
  %337 = vmatprep.subr.mxu0 0.0
  %338 = vmatpush1.msra.mxu0 0.0
  %339 = vmatprep.subr.mxu0 0.0
  %340 = vmatpush1.msra.mxu0 0.0
  %341 = vmatprep.subr.mxu0 0.0
  %342 = vmatpush1.msra.mxu0 0.0
  %343 = vmatprep.subr.mxu0 0.0
  %344 = vmatpush1.msra.mxu0 0.0
  %345 = vmatprep.subr.mxu0 0.0
  %346 = vmatpush1.msra.mxu0 0.0
  %347 = vmatprep.subr.mxu0 0.0
  %348 = vmatpush1.msra.mxu0 0.0
  %349 = vmatprep.subr.mxu0 0.0
  %350 = vmatpush1.msra.mxu0 0.0
  %351 = vmatprep.subr.mxu0 0.0
  %352 = vmatpush1.msra.mxu0 0.0
  %353 = vmatprep.subr.mxu0 0.0
  %354 = vmatpush1.msra.mxu0 0.0
  %355 = vmatprep.subr.mxu0 0.0
  %356 = vmatpush1.msra.mxu0 0.0
  %357 = vmatprep.subr.mxu0 0.0
  %358 = vmatpush1.msra.mxu0 0.0
  %359 = vmatprep.subr.mxu0 0.0
  %360 = vmatpush1.msra.mxu0 0.0
  %361 = vmatprep.subr.mxu0 0.0
  %362 = vmatpush1.msra.mxu0 0.0
  %363 = vmatprep.subr.mxu0 0.0
  %364 = vmatpush1.msra.mxu0 0.0
  %365 = vmatprep.subr.mxu0 0.0
  %366 = vmatpush1.msra.mxu0 0.0
  %367 = vmatprep.subr.mxu0 0.0
  %368 = vmatpush1.msra.mxu0 0.0
  %369 = vmatprep.subr.mxu0 0.0
  %370 = vmatpush1.msra.mxu0 0.0
  %371 = vmatprep.subr.mxu0 0.0
  %372 = vmatpush1.msra.mxu0 0.0
  %373 = vmatprep.subr.mxu0 0.0
  %374 = vmatpush1.msra.mxu0 0.0
  %375 = vmatprep.subr.mxu0 0.0
  %376 = vmatpush1.msra.mxu0 0.0
  %377 = vmatprep.subr.mxu0 0.0
  %378 = vmatpush1.msra.mxu0 0.0
  %379 = vmatprep.subr.mxu0 0.0
  %380 = vmatpush1.msra.mxu0 0.0
  %381 = vmatprep.subr.mxu0 0.0
  %382 = vmatpush1.msra.mxu0 0.0
  %383 = vmatprep.subr.mxu0 0.0
  %384 = vmatpush1.msra.mxu0 0.0
  %385 = vmatprep.subr.mxu0 0.0
  %386 = vmatpush1.msra.mxu0 0.0
  %387 = vmatprep.subr.mxu0 0.0
  %388 = vmatpush1.msra.mxu0 0.0
  %389 = vmatprep.mubr.f32.mxu0 0.0
  %390 = vmatmul.mubr.f32.gmra.mrb[0].mxu0 %v318
  %v391 = vpop.f32.mrb[0].mxu0
  %v392 = vadd.f32 0.0, %v391
  %v393 = vpop.f32.mrb[0].mxu0
  %394 = vmatprep.mubr.f32.mxu0 0.0
  %395 = vmatmul.mubr.f32.gmra.mrb[0].mxu0 %v321
  %v396 = vpop.f32.mrb[0].mxu0
  %v397 = vadd.f32 0.0, %v396
  %v398 = vpop.f32.mrb[0].mxu0
  %399 = vdwg.mxu0
  %v400 = vadd.f32 %v301, %v392
  %v401 = vadd.f32 %v306, %v397
  %s402 = scalar_lea.vmem %s1, 48
  %v403 = vld [vmem:[%s402] sm:$0xff]
  %v404 = vld [vmem:[%s402 + $0x8] sm:$0x3f]
  %405 = vrot.lane.b32.xlu0 %v119, 32
  %v406 = vpop.permute.xlu0 %405
  %407 = vrot.lane.b32.xlu0 %v125, 32
  %v408 = vpop.permute.xlu0 %407
  %v411 = vsel %vm141, %v403, 0
  %v414 = vsel %vm141, %v404, 0
  %v416 = vsel %vm148, %v408, 0
  %418 = vmatprep.subr.mxu0 0.0
  %419 = vmatpush1.msra.mxu0 %v406
  %420 = vmatprep.subr.mxu0 0.0
  %421 = vmatpush1.msra.mxu0 %v416
  %422 = vmatprep.subr.mxu0 0.0
  %423 = vmatpush1.msra.mxu0 0.0
  %424 = vmatprep.subr.mxu0 0.0
  %425 = vmatpush1.msra.mxu0 0.0
  %426 = vmatprep.subr.mxu0 0.0
  %427 = vmatpush1.msra.mxu0 0.0
  %428 = vmatprep.subr.mxu0 0.0
  %429 = vmatpush1.msra.mxu0 0.0
  %430 = vmatprep.subr.mxu0 0.0
  %431 = vmatpush1.msra.mxu0 0.0
  %432 = vmatprep.subr.mxu0 0.0
  %433 = vmatpush1.msra.mxu0 0.0
  %434 = vmatprep.subr.mxu0 0.0
  %435 = vmatpush1.msra.mxu0 0.0
  %436 = vmatprep.subr.mxu0 0.0
  %437 = vmatpush1.msra.mxu0 0.0
  %438 = vmatprep.subr.mxu0 0.0
  %439 = vmatpush1.msra.mxu0 0.0
  %440 = vmatprep.subr.mxu0 0.0
  %441 = vmatpush1.msra.mxu0 0.0
  %442 = vmatprep.subr.mxu0 0.0
  %443 = vmatpush1.msra.mxu0 0.0
  %444 = vmatprep.subr.mxu0 0.0
  %445 = vmatpush1.msra.mxu0 0.0
  %446 = vmatprep.subr.mxu0 0.0
  %447 = vmatpush1.msra.mxu0 0.0
  %448 = vmatprep.subr.mxu0 0.0
  %449 = vmatpush1.msra.mxu0 0.0
  %450 = vmatprep.subr.mxu0 0.0
  %451 = vmatpush1.msra.mxu0 0.0
  %452 = vmatprep.subr.mxu0 0.0
  %453 = vmatpush1.msra.mxu0 0.0
  %454 = vmatprep.subr.mxu0 0.0
  %455 = vmatpush1.msra.mxu0 0.0
  %456 = vmatprep.subr.mxu0 0.0
  %457 = vmatpush1.msra.mxu0 0.0
  %458 = vmatprep.subr.mxu0 0.0
  %459 = vmatpush1.msra.mxu0 0.0
  %460 = vmatprep.subr.mxu0 0.0
  %461 = vmatpush1.msra.mxu0 0.0
  %462 = vmatprep.subr.mxu0 0.0
  %463 = vmatpush1.msra.mxu0 0.0
  %464 = vmatprep.subr.mxu0 0.0
  %465 = vmatpush1.msra.mxu0 0.0
  %466 = vmatprep.subr.mxu0 0.0
  %467 = vmatpush1.msra.mxu0 0.0
  %468 = vmatprep.subr.mxu0 0.0
  %469 = vmatpush1.msra.mxu0 0.0
  %470 = vmatprep.subr.mxu0 0.0
  %471 = vmatpush1.msra.mxu0 0.0
  %472 = vmatprep.subr.mxu0 0.0
  %473 = vmatpush1.msra.mxu0 0.0
  %474 = vmatprep.subr.mxu0 0.0
  %475 = vmatpush1.msra.mxu0 0.0
  %476 = vmatprep.subr.mxu0 0.0
  %477 = vmatpush1.msra.mxu0 0.0
  %478 = vmatprep.subr.mxu0 0.0
  %479 = vmatpush1.msra.mxu0 0.0
  %480 = vmatprep.subr.mxu0 0.0
  %481 = vmatpush1.msra.mxu0 0.0
  %482 = vmatprep.mubr.f32.mxu0 0.0
  %483 = vmatmul.mubr.f32.gmra.mrb[0].mxu0 %v411
  %v484 = vpop.f32.mrb[0].mxu0
  %v485 = vadd.f32 0.0, %v484
  %v486 = vpop.f32.mrb[0].mxu0
  %487 = vmatprep.mubr.f32.mxu0 0.0
  %488 = vmatmul.mubr.f32.gmra.mrb[0].mxu0 %v414
  %v489 = vpop.f32.mrb[0].mxu0
  %v490 = vadd.f32 0.0, %v489
  %v491 = vpop.f32.mrb[0].mxu0
  %492 = vdwg.mxu0
  %v493 = vadd.f32 %v400, %v485
  %v494 = vadd.f32 %v401, %v490
  %s495 = scalar_lea.vmem %s1, 64
  %v496 = vld [vmem:[%s495] sm:$0xff]
  %v497 = vld [vmem:[%s495 + $0x8] sm:$0x3f]
  %v499 = vsel %vm141, %v496, 0
  %v502 = vsel %vm141, %v497, 0
  %v505 = vsel %vm148, %v127, 0
  %507 = vmatprep.subr.mxu0 0.0
  %508 = vmatpush1.msra.mxu0 %v121
  %509 = vmatprep.subr.mxu0 0.0
  %510 = vmatpush1.msra.mxu0 %v505
  %511 = vmatprep.subr.mxu0 0.0
  %512 = vmatpush1.msra.mxu0 0.0
  %513 = vmatprep.subr.mxu0 0.0
  %514 = vmatpush1.msra.mxu0 0.0
  %515 = vmatprep.subr.mxu0 0.0
  %516 = vmatpush1.msra.mxu0 0.0
  %517 = vmatprep.subr.mxu0 0.0
  %518 = vmatpush1.msra.mxu0 0.0
  %519 = vmatprep.subr.mxu0 0.0
  %520 = vmatpush1.msra.mxu0 0.0
  %521 = vmatprep.subr.mxu0 0.0
  %522 = vmatpush1.msra.mxu0 0.0
  %523 = vmatprep.subr.mxu0 0.0
  %524 = vmatpush1.msra.mxu0 0.0
  %525 = vmatprep.subr.mxu0 0.0
  %526 = vmatpush1.msra.mxu0 0.0
  %527 = vmatprep.subr.mxu0 0.0
  %528 = vmatpush1.msra.mxu0 0.0
  %529 = vmatprep.subr.mxu0 0.0
  %530 = vmatpush1.msra.mxu0 0.0
  %531 = vmatprep.subr.mxu0 0.0
  %532 = vmatpush1.msra.mxu0 0.0
  %533 = vmatprep.subr.mxu0 0.0
  %534 = vmatpush1.msra.mxu0 0.0
  %535 = vmatprep.subr.mxu0 0.0
  %536 = vmatpush1.msra.mxu0 0.0
  %537 = vmatprep.subr.mxu0 0.0
  %538 = vmatpush1.msra.mxu0 0.0
  %539 = vmatprep.subr.mxu0 0.0
  %540 = vmatpush1.msra.mxu0 0.0
  %541 = vmatprep.subr.mxu0 0.0
  %542 = vmatpush1.msra.mxu0 0.0
  %543 = vmatprep.subr.mxu0 0.0
  %544 = vmatpush1.msra.mxu0 0.0
  %545 = vmatprep.subr.mxu0 0.0
  %546 = vmatpush1.msra.mxu0 0.0
  %547 = vmatprep.subr.mxu0 0.0
  %548 = vmatpush1.msra.mxu0 0.0
  %549 = vmatprep.subr.mxu0 0.0
  %550 = vmatpush1.msra.mxu0 0.0
  %551 = vmatprep.subr.mxu0 0.0
  %552 = vmatpush1.msra.mxu0 0.0
  %553 = vmatprep.subr.mxu0 0.0
  %554 = vmatpush1.msra.mxu0 0.0
  %555 = vmatprep.subr.mxu0 0.0
  %556 = vmatpush1.msra.mxu0 0.0
  %557 = vmatprep.subr.mxu0 0.0
  %558 = vmatpush1.msra.mxu0 0.0
  %559 = vmatprep.subr.mxu0 0.0
  %560 = vmatpush1.msra.mxu0 0.0
  %561 = vmatprep.subr.mxu0 0.0
  %562 = vmatpush1.msra.mxu0 0.0
  %563 = vmatprep.subr.mxu0 0.0
  %564 = vmatpush1.msra.mxu0 0.0
  %565 = vmatprep.subr.mxu0 0.0
  %566 = vmatpush1.msra.mxu0 0.0
  %567 = vmatprep.subr.mxu0 0.0
  %568 = vmatpush1.msra.mxu0 0.0
  %569 = vmatprep.subr.mxu0 0.0
  %570 = vmatpush1.msra.mxu0 0.0
  %571 = vmatprep.mubr.f32.mxu0 0.0
  %572 = vmatmul.mubr.f32.gmra.mrb[0].mxu0 %v499
  %v573 = vpop.f32.mrb[0].mxu0
  %v574 = vadd.f32 0.0, %v573
  %v575 = vpop.f32.mrb[0].mxu0
  %576 = vmatprep.mubr.f32.mxu0 0.0
  %577 = vmatmul.mubr.f32.gmra.mrb[0].mxu0 %v502
  %v578 = vpop.f32.mrb[0].mxu0
  %v579 = vadd.f32 0.0, %v578
  %v580 = vpop.f32.mrb[0].mxu0
  %581 = vdwg.mxu0
  %v582 = vadd.f32 %v493, %v574
  %v583 = vadd.f32 %v494, %v579
  %s584 = scalar_lea.vmem %s1, 80
  %v585 = vld [vmem:[%s584] sm:$0xff]
  %v586 = vld [vmem:[%s584 + $0x8] sm:$0x3f]
  %588 = vrot.lane.b32.xlu0 %v121, 96
  %v589 = vpop.permute.xlu0 %588
  %590 = vrot.lane.b32.xlu0 %v127, 96
  %v591 = vpop.permute.xlu0 %590
  %v594 = vsel %vm141, %v585, 0
  %v597 = vsel %vm141, %v586, 0
  %v599 = vsel %vm148, %v591, 0
  %601 = vmatprep.subr.mxu0 0.0
  %602 = vmatpush1.msra.mxu0 %v589
  %603 = vmatprep.subr.mxu0 0.0
  %604 = vmatpush1.msra.mxu0 %v599
  %605 = vmatprep.subr.mxu0 0.0
  %606 = vmatpush1.msra.mxu0 0.0
  %607 = vmatprep.subr.mxu0 0.0
  %608 = vmatpush1.msra.mxu0 0.0
  %609 = vmatprep.subr.mxu0 0.0
  %610 = vmatpush1.msra.mxu0 0.0
  %611 = vmatprep.subr.mxu0 0.0
  %612 = vmatpush1.msra.mxu0 0.0
  %613 = vmatprep.subr.mxu0 0.0
  %614 = vmatpush1.msra.mxu0 0.0
  %615 = vmatprep.subr.mxu0 0.0
  %616 = vmatpush1.msra.mxu0 0.0
  %617 = vmatprep.subr.mxu0 0.0
  %618 = vmatpush1.msra.mxu0 0.0
  %619 = vmatprep.subr.mxu0 0.0
  %620 = vmatpush1.msra.mxu0 0.0
  %621 = vmatprep.subr.mxu0 0.0
  %622 = vmatpush1.msra.mxu0 0.0
  %623 = vmatprep.subr.mxu0 0.0
  %624 = vmatpush1.msra.mxu0 0.0
  %625 = vmatprep.subr.mxu0 0.0
  %626 = vmatpush1.msra.mxu0 0.0
  %627 = vmatprep.subr.mxu0 0.0
  %628 = vmatpush1.msra.mxu0 0.0
  %629 = vmatprep.subr.mxu0 0.0
  %630 = vmatpush1.msra.mxu0 0.0
  %631 = vmatprep.subr.mxu0 0.0
  %632 = vmatpush1.msra.mxu0 0.0
  %633 = vmatprep.subr.mxu0 0.0
  %634 = vmatpush1.msra.mxu0 0.0
  %635 = vmatprep.subr.mxu0 0.0
  %636 = vmatpush1.msra.mxu0 0.0
  %637 = vmatprep.subr.mxu0 0.0
  %638 = vmatpush1.msra.mxu0 0.0
  %639 = vmatprep.subr.mxu0 0.0
  %640 = vmatpush1.msra.mxu0 0.0
  %641 = vmatprep.subr.mxu0 0.0
  %642 = vmatpush1.msra.mxu0 0.0
  %643 = vmatprep.subr.mxu0 0.0
  %644 = vmatpush1.msra.mxu0 0.0
  %645 = vmatprep.subr.mxu0 0.0
  %646 = vmatpush1.msra.mxu0 0.0
  %647 = vmatprep.subr.mxu0 0.0
  %648 = vmatpush1.msra.mxu0 0.0
  %649 = vmatprep.subr.mxu0 0.0
  %650 = vmatpush1.msra.mxu0 0.0
  %651 = vmatprep.subr.mxu0 0.0
  %652 = vmatpush1.msra.mxu0 0.0
  %653 = vmatprep.subr.mxu0 0.0
  %654 = vmatpush1.msra.mxu0 0.0
  %655 = vmatprep.subr.mxu0 0.0
  %656 = vmatpush1.msra.mxu0 0.0
  %657 = vmatprep.subr.mxu0 0.0
  %658 = vmatpush1.msra.mxu0 0.0
  %659 = vmatprep.subr.mxu0 0.0
  %660 = vmatpush1.msra.mxu0 0.0
  %661 = vmatprep.subr.mxu0 0.0
  %662 = vmatpush1.msra.mxu0 0.0
  %663 = vmatprep.subr.mxu0 0.0
  %664 = vmatpush1.msra.mxu0 0.0
  %665 = vmatprep.mubr.f32.mxu0 0.0
  %666 = vmatmul.mubr.f32.gmra.mrb[0].mxu0 %v594
  %v667 = vpop.f32.mrb[0].mxu0
  %v668 = vadd.f32 0.0, %v667
  %v669 = vpop.f32.mrb[0].mxu0
  %670 = vmatprep.mubr.f32.mxu0 0.0
  %671 = vmatmul.mubr.f32.gmra.mrb[0].mxu0 %v597
  %v672 = vpop.f32.mrb[0].mxu0
  %v673 = vadd.f32 0.0, %v672
  %v674 = vpop.f32.mrb[0].mxu0
  %675 = vdwg.mxu0
  %v676 = vadd.f32 %v582, %v668
  %v677 = vadd.f32 %v583, %v673
  %s678 = scalar_lea.vmem %s1, 96
  %v679 = vld [vmem:[%s678] sm:$0xff]
  %v680 = vld [vmem:[%s678 + $0x8] sm:$0x3f]
  %681 = vrot.lane.b32.xlu0 %v121, 64
  %v682 = vpop.permute.xlu0 %681
  %683 = vrot.lane.b32.xlu0 %v127, 64
  %v684 = vpop.permute.xlu0 %683
  %v687 = vsel %vm141, %v679, 0
  %v690 = vsel %vm141, %v680, 0
  %v692 = vsel %vm148, %v684, 0
  %694 = vmatprep.subr.mxu0 0.0
  %695 = vmatpush1.msra.mxu0 %v682
  %696 = vmatprep.subr.mxu0 0.0
  %697 = vmatpush1.msra.mxu0 %v692
  %698 = vmatprep.subr.mxu0 0.0
  %699 = vmatpush1.msra.mxu0 0.0
  %700 = vmatprep.subr.mxu0 0.0
  %701 = vmatpush1.msra.mxu0 0.0
  %702 = vmatprep.subr.mxu0 0.0
  %703 = vmatpush1.msra.mxu0 0.0
  %704 = vmatprep.subr.mxu0 0.0
  %705 = vmatpush1.msra.mxu0 0.0
  %706 = vmatprep.subr.mxu0 0.0
  %707 = vmatpush1.msra.mxu0 0.0
  %708 = vmatprep.subr.mxu0 0.0
  %709 = vmatpush1.msra.mxu0 0.0
  %710 = vmatprep.subr.mxu0 0.0
  %711 = vmatpush1.msra.mxu0 0.0
  %712 = vmatprep.subr.mxu0 0.0
  %713 = vmatpush1.msra.mxu0 0.0
  %714 = vmatprep.subr.mxu0 0.0
  %715 = vmatpush1.msra.mxu0 0.0
  %716 = vmatprep.subr.mxu0 0.0
  %717 = vmatpush1.msra.mxu0 0.0
  %718 = vmatprep.subr.mxu0 0.0
  %719 = vmatpush1.msra.mxu0 0.0
  %720 = vmatprep.subr.mxu0 0.0
  %721 = vmatpush1.msra.mxu0 0.0
  %722 = vmatprep.subr.mxu0 0.0
  %723 = vmatpush1.msra.mxu0 0.0
  %724 = vmatprep.subr.mxu0 0.0
  %725 = vmatpush1.msra.mxu0 0.0
  %726 = vmatprep.subr.mxu0 0.0
  %727 = vmatpush1.msra.mxu0 0.0
  %728 = vmatprep.subr.mxu0 0.0
  %729 = vmatpush1.msra.mxu0 0.0
  %730 = vmatprep.subr.mxu0 0.0
  %731 = vmatpush1.msra.mxu0 0.0
  %732 = vmatprep.subr.mxu0 0.0
  %733 = vmatpush1.msra.mxu0 0.0
  %734 = vmatprep.subr.mxu0 0.0
  %735 = vmatpush1.msra.mxu0 0.0
  %736 = vmatprep.subr.mxu0 0.0
  %737 = vmatpush1.msra.mxu0 0.0
  %738 = vmatprep.subr.mxu0 0.0
  %739 = vmatpush1.msra.mxu0 0.0
  %740 = vmatprep.subr.mxu0 0.0
  %741 = vmatpush1.msra.mxu0 0.0
  %742 = vmatprep.subr.mxu0 0.0
  %743 = vmatpush1.msra.mxu0 0.0
  %744 = vmatprep.subr.mxu0 0.0
  %745 = vmatpush1.msra.mxu0 0.0
  %746 = vmatprep.subr.mxu0 0.0
  %747 = vmatpush1.msra.mxu0 0.0
  %748 = vmatprep.subr.mxu0 0.0
  %749 = vmatpush1.msra.mxu0 0.0
  %750 = vmatprep.subr.mxu0 0.0
  %751 = vmatpush1.msra.mxu0 0.0
  %752 = vmatprep.subr.mxu0 0.0
  %753 = vmatpush1.msra.mxu0 0.0
  %754 = vmatprep.subr.mxu0 0.0
  %755 = vmatpush1.msra.mxu0 0.0
  %756 = vmatprep.subr.mxu0 0.0
  %757 = vmatpush1.msra.mxu0 0.0
  %758 = vmatprep.mubr.f32.mxu0 0.0
  %759 = vmatmul.mubr.f32.gmra.mrb[0].mxu0 %v687
  %v760 = vpop.f32.mrb[0].mxu0
  %v761 = vadd.f32 0.0, %v760
  %v762 = vpop.f32.mrb[0].mxu0
  %763 = vmatprep.mubr.f32.mxu0 0.0
  %764 = vmatmul.mubr.f32.gmra.mrb[0].mxu0 %v690
  %v765 = vpop.f32.mrb[0].mxu0
  %v766 = vadd.f32 0.0, %v765
  %v767 = vpop.f32.mrb[0].mxu0
  %768 = vdwg.mxu0
  %v769 = vadd.f32 %v676, %v761
  %v770 = vadd.f32 %v677, %v766
  %s771 = scalar_lea.vmem %s1, 112
  %v772 = vld [vmem:[%s771] sm:$0xff]
  %v773 = vld [vmem:[%s771 + $0x8] sm:$0x3f]
  %774 = vrot.lane.b32.xlu0 %v121, 32
  %v775 = vpop.permute.xlu0 %774
  %776 = vrot.lane.b32.xlu0 %v127, 32
  %v777 = vpop.permute.xlu0 %776
  %v780 = vsel %vm141, %v772, 0
  %v783 = vsel %vm141, %v773, 0
  %v785 = vsel %vm148, %v777, 0
  %787 = vmatprep.subr.mxu0 0.0
  %788 = vmatpush1.msra.mxu0 %v775
  %789 = vmatprep.subr.mxu0 0.0
  %790 = vmatpush1.msra.mxu0 %v785
  %791 = vmatprep.subr.mxu0 0.0
  %792 = vmatpush1.msra.mxu0 0.0
  %793 = vmatprep.subr.mxu0 0.0
  %794 = vmatpush1.msra.mxu0 0.0
  %795 = vmatprep.subr.mxu0 0.0
  %796 = vmatpush1.msra.mxu0 0.0
  %797 = vmatprep.subr.mxu0 0.0
  %798 = vmatpush1.msra.mxu0 0.0
  %799 = vmatprep.subr.mxu0 0.0
  %800 = vmatpush1.msra.mxu0 0.0
  %801 = vmatprep.subr.mxu0 0.0
  %802 = vmatpush1.msra.mxu0 0.0
  %803 = vmatprep.subr.mxu0 0.0
  %804 = vmatpush1.msra.mxu0 0.0
  %805 = vmatprep.subr.mxu0 0.0
  %806 = vmatpush1.msra.mxu0 0.0
  %807 = vmatprep.subr.mxu0 0.0
  %808 = vmatpush1.msra.mxu0 0.0
  %809 = vmatprep.subr.mxu0 0.0
  %810 = vmatpush1.msra.mxu0 0.0
  %811 = vmatprep.subr.mxu0 0.0
  %812 = vmatpush1.msra.mxu0 0.0
  %813 = vmatprep.subr.mxu0 0.0
  %814 = vmatpush1.msra.mxu0 0.0
  %815 = vmatprep.subr.mxu0 0.0
  %816 = vmatpush1.msra.mxu0 0.0
  %817 = vmatprep.subr.mxu0 0.0
  %818 = vmatpush1.msra.mxu0 0.0
  %819 = vmatprep.subr.mxu0 0.0
  %820 = vmatpush1.msra.mxu0 0.0
  %821 = vmatprep.subr.mxu0 0.0
  %822 = vmatpush1.msra.mxu0 0.0
  %823 = vmatprep.subr.mxu0 0.0
  %824 = vmatpush1.msra.mxu0 0.0
  %825 = vmatprep.subr.mxu0 0.0
  %826 = vmatpush1.msra.mxu0 0.0
  %827 = vmatprep.subr.mxu0 0.0
  %828 = vmatpush1.msra.mxu0 0.0
  %829 = vmatprep.subr.mxu0 0.0
  %830 = vmatpush1.msra.mxu0 0.0
  %831 = vmatprep.subr.mxu0 0.0
  %832 = vmatpush1.msra.mxu0 0.0
  %833 = vmatprep.subr.mxu0 0.0
  %834 = vmatpush1.msra.mxu0 0.0
  %835 = vmatprep.subr.mxu0 0.0
  %836 = vmatpush1.msra.mxu0 0.0
  %837 = vmatprep.subr.mxu0 0.0
  %838 = vmatpush1.msra.mxu0 0.0
  %839 = vmatprep.subr.mxu0 0.0
  %840 = vmatpush1.msra.mxu0 0.0
  %841 = vmatprep.subr.mxu0 0.0
  %842 = vmatpush1.msra.mxu0 0.0
  %843 = vmatprep.subr.mxu0 0.0
  %844 = vmatpush1.msra.mxu0 0.0
  %845 = vmatprep.subr.mxu0 0.0
  %846 = vmatpush1.msra.mxu0 0.0
  %847 = vmatprep.subr.mxu0 0.0
  %848 = vmatpush1.msra.mxu0 0.0
  %849 = vmatprep.subr.mxu0 0.0
  %850 = vmatpush1.msra.mxu0 0.0
  %851 = vmatprep.mubr.f32.mxu0 0.0
  %852 = vmatmul.mubr.f32.gmra.mrb[0].mxu0 %v780
  %v853 = vpop.f32.mrb[0].mxu0
  %v854 = vadd.f32 0.0, %v853
  %v855 = vpop.f32.mrb[0].mxu0
  %856 = vmatprep.mubr.f32.mxu0 0.0
  %857 = vmatmul.mubr.f32.gmra.mrb[0].mxu0 %v783
  %v858 = vpop.f32.mrb[0].mxu0
  %v859 = vadd.f32 0.0, %v858
  %v860 = vpop.f32.mrb[0].mxu0
  %861 = vdwg.mxu0
  %v862 = vadd.f32 %v769, %v854
  %v863 = vadd.f32 %v770, %v859
  %v864 = vld [vmem:[%s5] sm:$0xff]
  %v865 = vld [vmem:[%s5 + $0x8] sm:$0x3f]
  %867 = vset.pattern.permute.xlu0 0
  %868 = vperm.xlu0 %867, %v864
  %v869 = vpop.permute.xlu0 %868
  %872 = vset.pattern.permute.xlu0 0
  %873 = vperm.xlu0 %872, %v865
  %v874 = vpop.permute.xlu0 %873
  %v876 = vmul.f32 %v869, %v862
  %v877 = vmul.f32 %v874, %v863
  %v878 = vld [vmem:[%s3] sm:$0xff]
  %v879 = vld [vmem:[%s3 + $0x8] sm:$0xff]
  %v880 = vld [vmem:[%s3 + $0x10] sm:$0xff]
  %v881 = vld [vmem:[%s3 + $0x18] sm:$0xff]
  %882 = vmatprep.subr.mxu0 0.0
  %883 = vmatpush1.msra.mxu0 %v878
  %884 = vmatprep.subr.mxu0 0.0
  %885 = vmatpush1.msra.mxu0 %v879
  %886 = vmatprep.subr.mxu0 0.0
  %887 = vmatpush1.msra.mxu0 %v880
  %888 = vmatprep.subr.mxu0 0.0
  %889 = vmatpush1.msra.mxu0 %v881
  %890 = vmatprep.subr.mxu0 0.0
  %891 = vmatpush1.msra.mxu0 0.0
  %892 = vmatprep.subr.mxu0 0.0
  %893 = vmatpush1.msra.mxu0 0.0
  %894 = vmatprep.subr.mxu0 0.0
  %895 = vmatpush1.msra.mxu0 0.0
  %896 = vmatprep.subr.mxu0 0.0
  %897 = vmatpush1.msra.mxu0 0.0
  %898 = vmatprep.subr.mxu0 0.0
  %899 = vmatpush1.msra.mxu0 0.0
  %900 = vmatprep.subr.mxu0 0.0
  %901 = vmatpush1.msra.mxu0 0.0
  %902 = vmatprep.subr.mxu0 0.0
  %903 = vmatpush1.msra.mxu0 0.0
  %904 = vmatprep.subr.mxu0 0.0
  %905 = vmatpush1.msra.mxu0 0.0
  %906 = vmatprep.subr.mxu0 0.0
  %907 = vmatpush1.msra.mxu0 0.0
  %908 = vmatprep.subr.mxu0 0.0
  %909 = vmatpush1.msra.mxu0 0.0
  %910 = vmatprep.subr.mxu0 0.0
  %911 = vmatpush1.msra.mxu0 0.0
  %912 = vmatprep.subr.mxu0 0.0
  %913 = vmatpush1.msra.mxu0 0.0
  %914 = vmatprep.subr.mxu0 0.0
  %915 = vmatpush1.msra.mxu0 0.0
  %916 = vmatprep.subr.mxu0 0.0
  %917 = vmatpush1.msra.mxu0 0.0
  %918 = vmatprep.subr.mxu0 0.0
  %919 = vmatpush1.msra.mxu0 0.0
  %920 = vmatprep.subr.mxu0 0.0
  %921 = vmatpush1.msra.mxu0 0.0
  %922 = vmatprep.subr.mxu0 0.0
  %923 = vmatpush1.msra.mxu0 0.0
  %924 = vmatprep.subr.mxu0 0.0
  %925 = vmatpush1.msra.mxu0 0.0
  %926 = vmatprep.subr.mxu0 0.0
  %927 = vmatpush1.msra.mxu0 0.0
  %928 = vmatprep.subr.mxu0 0.0
  %929 = vmatpush1.msra.mxu0 0.0
  %930 = vmatprep.subr.mxu0 0.0
  %931 = vmatpush1.msra.mxu0 0.0
  %932 = vmatprep.subr.mxu0 0.0
  %933 = vmatpush1.msra.mxu0 0.0
  %934 = vmatprep.subr.mxu0 0.0
  %935 = vmatpush1.msra.mxu0 0.0
  %936 = vmatprep.subr.mxu0 0.0
  %937 = vmatpush1.msra.mxu0 0.0
  %938 = vmatprep.subr.mxu0 0.0
  %939 = vmatpush1.msra.mxu0 0.0
  %940 = vmatprep.subr.mxu0 0.0
  %941 = vmatpush1.msra.mxu0 0.0
  %942 = vmatprep.subr.mxu0 0.0
  %943 = vmatpush1.msra.mxu0 0.0
  %944 = vmatprep.subr.mxu0 0.0
  %945 = vmatpush1.msra.mxu0 0.0
  %946 = vmatprep.mubr.f32.mxu0 0.0
  %947 = vmatmul.mubr.f32.gmra.mrb[0].mxu0 %v47
  %v948 = vpop.f32.mrb[0].mxu0
  %v949 = vadd.f32 0.0, %v948
  %v950 = vpop.f32.mrb[0].mxu0
  %951 = vmatprep.mubr.f32.mxu0 0.0
  %952 = vmatmul.mubr.f32.gmra.mrb[0].mxu0 %v50
  %v953 = vpop.f32.mrb[0].mxu0
  %v954 = vadd.f32 0.0, %v953
  %v955 = vpop.f32.mrb[0].mxu0
  %956 = vdwg.mxu0
  %v957 = vadd.f32 %v876, %v949
  %v958 = vadd.f32 %v877, %v954
  %v959 = vld [vmem:[%s4] sm:$0x1]
  %v961 = vlaneseq
  %v962 = vshrl.u32 %v961, 7
  %v963 = vsub.s32 0, %v962
  %v964 = vrot.slane %v959, %v963
  %v966 = vadd.f32 %v957, %v964
  %v967 = vadd.f32 %v958, %v964
  %v968 = vld [vmem:[%s7] sm:$0xff]
  %v969 = vld [vmem:[%s7 + $0x8] sm:$0xff]
  %v970 = vld [vmem:[%s7 + $0x10] sm:$0xff]
  %v971 = vld [vmem:[%s7 + $0x18] sm:$0xff]
  %v973 = vsel %vm45, %v966, 0
  %v976 = vsel %vm45, %v967, 0
  %978 = vmatprep.subr.mxu0 0.0
  %979 = vmatpush1.msra.mxu0 %v968
  %980 = vmatprep.subr.mxu0 0.0
  %981 = vmatpush1.msra.mxu0 %v969
  %982 = vmatprep.subr.mxu0 0.0
  %983 = vmatpush1.msra.mxu0 %v970
  %984 = vmatprep.subr.mxu0 0.0
  %985 = vmatpush1.msra.mxu0 %v971
  %986 = vmatprep.subr.mxu0 0.0
  %987 = vmatpush1.msra.mxu0 0.0
  %988 = vmatprep.subr.mxu0 0.0
  %989 = vmatpush1.msra.mxu0 0.0
  %990 = vmatprep.subr.mxu0 0.0
  %991 = vmatpush1.msra.mxu0 0.0
  %992 = vmatprep.subr.mxu0 0.0
  %993 = vmatpush1.msra.mxu0 0.0
  %994 = vmatprep.subr.mxu0 0.0
  %995 = vmatpush1.msra.mxu0 0.0
  %996 = vmatprep.subr.mxu0 0.0
  %997 = vmatpush1.msra.mxu0 0.0
  %998 = vmatprep.subr.mxu0 0.0
  %999 = vmatpush1.msra.mxu0 0.0
  %1000 = vmatprep.subr.mxu0 0.0
  %1001 = vmatpush1.msra.mxu0 0.0
  %1002 = vmatprep.subr.mxu0 0.0
  %1003 = vmatpush1.msra.mxu0 0.0
  %1004 = vmatprep.subr.mxu0 0.0
  %1005 = vmatpush1.msra.mxu0 0.0
  %1006 = vmatprep.subr.mxu0 0.0
  %1007 = vmatpush1.msra.mxu0 0.0
  %1008 = vmatprep.subr.mxu0 0.0
  %1009 = vmatpush1.msra.mxu0 0.0
  %1010 = vmatprep.subr.mxu0 0.0
  %1011 = vmatpush1.msra.mxu0 0.0
  %1012 = vmatprep.subr.mxu0 0.0
  %1013 = vmatpush1.msra.mxu0 0.0
  %1014 = vmatprep.subr.mxu0 0.0
  %1015 = vmatpush1.msra.mxu0 0.0
  %1016 = vmatprep.subr.mxu0 0.0
  %1017 = vmatpush1.msra.mxu0 0.0
  %1018 = vmatprep.subr.mxu0 0.0
  %1019 = vmatpush1.msra.mxu0 0.0
  %1020 = vmatprep.subr.mxu0 0.0
  %1021 = vmatpush1.msra.mxu0 0.0
  %1022 = vmatprep.subr.mxu0 0.0
  %1023 = vmatpush1.msra.mxu0 0.0
  %1024 = vmatprep.subr.mxu0 0.0
  %1025 = vmatpush1.msra.mxu0 0.0
  %1026 = vmatprep.subr.mxu0 0.0
  %1027 = vmatpush1.msra.mxu0 0.0
  %1028 = vmatprep.subr.mxu0 0.0
  %1029 = vmatpush1.msra.mxu0 0.0
  %1030 = vmatprep.subr.mxu0 0.0
  %1031 = vmatpush1.msra.mxu0 0.0
  %1032 = vmatprep.subr.mxu0 0.0
  %1033 = vmatpush1.msra.mxu0 0.0
  %1034 = vmatprep.subr.mxu0 0.0
  %1035 = vmatpush1.msra.mxu0 0.0
  %1036 = vmatprep.subr.mxu0 0.0
  %1037 = vmatpush1.msra.mxu0 0.0
  %1038 = vmatprep.subr.mxu0 0.0
  %1039 = vmatpush1.msra.mxu0 0.0
  %1040 = vmatprep.subr.mxu0 0.0
  %1041 = vmatpush1.msra.mxu0 0.0
  %1042 = vmatprep.mubr.f32.mxu0 0.0
  %1043 = vmatmul.mubr.f32.gmra.mrb[0].mxu0 %v973
  %v1044 = vpop.f32.mrb[0].mxu0
  %v1045 = vadd.f32 0.0, %v1044
  %v1046 = vpop.f32.mrb[0].mxu0
  %1047 = vmatprep.mubr.f32.mxu0 0.0
  %1048 = vmatmul.mubr.f32.gmra.mrb[0].mxu0 %v976
  %v1049 = vpop.f32.mrb[0].mxu0
  %v1050 = vadd.f32 0.0, %v1049
  %v1051 = vpop.f32.mrb[0].mxu0
  %1052 = vdwg.mxu0
  %v1053 = vld [vmem:[%s6] sm:$0xff]
  %v1054 = vld [vmem:[%s6 + $0x8] sm:$0x3f]
  %v1055 = vld [vmem:[%s8] sm:$0xff]
  %v1056 = vld [vmem:[%s8 + $0x8] sm:$0xff]
  %v1057 = vld [vmem:[%s8 + $0x10] sm:$0xff]
  %v1058 = vld [vmem:[%s8 + $0x18] sm:$0xff]
  %1059 = vmatprep.subr.mxu0 0.0
  %1060 = vmatpush1.msra.mxu0 %v1055
  %1061 = vmatprep.subr.mxu0 0.0
  %1062 = vmatpush1.msra.mxu0 %v1056
  %1063 = vmatprep.subr.mxu0 0.0
  %1064 = vmatpush1.msra.mxu0 %v1057
  %1065 = vmatprep.subr.mxu0 0.0
  %1066 = vmatpush1.msra.mxu0 %v1058
  %1067 = vmatprep.subr.mxu0 0.0
  %1068 = vmatpush1.msra.mxu0 0.0
  %1069 = vmatprep.subr.mxu0 0.0
  %1070 = vmatpush1.msra.mxu0 0.0
  %1071 = vmatprep.subr.mxu0 0.0
  %1072 = vmatpush1.msra.mxu0 0.0
  %1073 = vmatprep.subr.mxu0 0.0
  %1074 = vmatpush1.msra.mxu0 0.0
  %1075 = vmatprep.subr.mxu0 0.0
  %1076 = vmatpush1.msra.mxu0 0.0
  %1077 = vmatprep.subr.mxu0 0.0
  %1078 = vmatpush1.msra.mxu0 0.0
  %1079 = vmatprep.subr.mxu0 0.0
  %1080 = vmatpush1.msra.mxu0 0.0
  %1081 = vmatprep.subr.mxu0 0.0
  %1082 = vmatpush1.msra.mxu0 0.0
  %1083 = vmatprep.subr.mxu0 0.0
  %1084 = vmatpush1.msra.mxu0 0.0
  %1085 = vmatprep.subr.mxu0 0.0
  %1086 = vmatpush1.msra.mxu0 0.0
  %1087 = vmatprep.subr.mxu0 0.0
  %1088 = vmatpush1.msra.mxu0 0.0
  %1089 = vmatprep.subr.mxu0 0.0
  %1090 = vmatpush1.msra.mxu0 0.0
  %1091 = vmatprep.subr.mxu0 0.0
  %1092 = vmatpush1.msra.mxu0 0.0
  %1093 = vmatprep.subr.mxu0 0.0
  %1094 = vmatpush1.msra.mxu0 0.0
  %1095 = vmatprep.subr.mxu0 0.0
  %1096 = vmatpush1.msra.mxu0 0.0
  %1097 = vmatprep.subr.mxu0 0.0
  %1098 = vmatpush1.msra.mxu0 0.0
  %1099 = vmatprep.subr.mxu0 0.0
  %1100 = vmatpush1.msra.mxu0 0.0
  %1101 = vmatprep.subr.mxu0 0.0
  %1102 = vmatpush1.msra.mxu0 0.0
  %1103 = vmatprep.subr.mxu0 0.0
  %1104 = vmatpush1.msra.mxu0 0.0
  %1105 = vmatprep.subr.mxu0 0.0
  %1106 = vmatpush1.msra.mxu0 0.0
  %1107 = vmatprep.subr.mxu0 0.0
  %1108 = vmatpush1.msra.mxu0 0.0
  %1109 = vmatprep.subr.mxu0 0.0
  %1110 = vmatpush1.msra.mxu0 0.0
  %1111 = vmatprep.subr.mxu0 0.0
  %1112 = vmatpush1.msra.mxu0 0.0
  %1113 = vmatprep.subr.mxu0 0.0
  %1114 = vmatpush1.msra.mxu0 0.0
  %1115 = vmatprep.subr.mxu0 0.0
  %1116 = vmatpush1.msra.mxu0 0.0
  %1117 = vmatprep.subr.mxu0 0.0
  %1118 = vmatpush1.msra.mxu0 0.0
  %1119 = vmatprep.subr.mxu0 0.0
  %1120 = vmatpush1.msra.mxu0 0.0
  %1121 = vmatprep.subr.mxu0 0.0
  %1122 = vmatpush1.msra.mxu0 0.0
  %1123 = vmatprep.mubr.f32.mxu0 0.0
  %1124 = vmatmul.mubr.f32.gmra.mrb[0].mxu0 %v973
  %v1125 = vpop.f32.mrb[0].mxu0
  %v1126 = vadd.f32 0.0, %v1125
  %v1127 = vpop.f32.mrb[0].mxu0
  %1128 = vmatprep.mubr.f32.mxu0 0.0
  %1129 = vmatmul.mubr.f32.gmra.mrb[0].mxu0 %v976
  %v1130 = vpop.f32.mrb[0].mxu0
  %v1131 = vadd.f32 0.0, %v1130
  %v1132 = vpop.f32.mrb[0].mxu0
  %1133 = vdwg.mxu0
  %v1135 = vsel %vm141, %v1053, 0
  %v1138 = vsel %vm141, %v1054, 0
  %v1141 = vsel %vm148, %v1050, 0
  %1143 = vmatprep.subr.mxu0 0.0
  %1144 = vmatpush1.msra.mxu0 %v1045
  %1145 = vmatprep.subr.mxu0 0.0
  %1146 = vmatpush1.msra.mxu0 %v1141
  %1147 = vmatprep.subr.mxu0 0.0
  %1148 = vmatpush1.msra.mxu0 0.0
  %1149 = vmatprep.subr.mxu0 0.0
  %1150 = vmatpush1.msra.mxu0 0.0
  %1151 = vmatprep.subr.mxu0 0.0
  %1152 = vmatpush1.msra.mxu0 0.0
  %1153 = vmatprep.subr.mxu0 0.0
  %1154 = vmatpush1.msra.mxu0 0.0
  %1155 = vmatprep.subr.mxu0 0.0
  %1156 = vmatpush1.msra.mxu0 0.0
  %1157 = vmatprep.subr.mxu0 0.0
  %1158 = vmatpush1.msra.mxu0 0.0
  %1159 = vmatprep.subr.mxu0 0.0
  %1160 = vmatpush1.msra.mxu0 0.0
  %1161 = vmatprep.subr.mxu0 0.0
  %1162 = vmatpush1.msra.mxu0 0.0
  %1163 = vmatprep.subr.mxu0 0.0
  %1164 = vmatpush1.msra.mxu0 0.0
  %1165 = vmatprep.subr.mxu0 0.0
  %1166 = vmatpush1.msra.mxu0 0.0
  %1167 = vmatprep.subr.mxu0 0.0
  %1168 = vmatpush1.msra.mxu0 0.0
  %1169 = vmatprep.subr.mxu0 0.0
  %1170 = vmatpush1.msra.mxu0 0.0
  %1171 = vmatprep.subr.mxu0 0.0
  %1172 = vmatpush1.msra.mxu0 0.0
  %1173 = vmatprep.subr.mxu0 0.0
  %1174 = vmatpush1.msra.mxu0 0.0
  %1175 = vmatprep.subr.mxu0 0.0
  %1176 = vmatpush1.msra.mxu0 0.0
  %1177 = vmatprep.subr.mxu0 0.0
  %1178 = vmatpush1.msra.mxu0 0.0
  %1179 = vmatprep.subr.mxu0 0.0
  %1180 = vmatpush1.msra.mxu0 0.0
  %1181 = vmatprep.subr.mxu0 0.0
  %1182 = vmatpush1.msra.mxu0 0.0
  %1183 = vmatprep.subr.mxu0 0.0
  %1184 = vmatpush1.msra.mxu0 0.0
  %1185 = vmatprep.subr.mxu0 0.0
  %1186 = vmatpush1.msra.mxu0 0.0
  %1187 = vmatprep.subr.mxu0 0.0
  %1188 = vmatpush1.msra.mxu0 0.0
  %1189 = vmatprep.subr.mxu0 0.0
  %1190 = vmatpush1.msra.mxu0 0.0
  %1191 = vmatprep.subr.mxu0 0.0
  %1192 = vmatpush1.msra.mxu0 0.0
  %1193 = vmatprep.subr.mxu0 0.0
  %1194 = vmatpush1.msra.mxu0 0.0
  %1195 = vmatprep.subr.mxu0 0.0
  %1196 = vmatpush1.msra.mxu0 0.0
  %1197 = vmatprep.subr.mxu0 0.0
  %1198 = vmatpush1.msra.mxu0 0.0
  %1199 = vmatprep.subr.mxu0 0.0
  %1200 = vmatpush1.msra.mxu0 0.0
  %1201 = vmatprep.subr.mxu0 0.0
  %1202 = vmatpush1.msra.mxu0 0.0
  %1203 = vmatprep.subr.mxu0 0.0
  %1204 = vmatpush1.msra.mxu0 0.0
  %1205 = vmatprep.subr.mxu0 0.0
  %1206 = vmatpush1.msra.mxu0 0.0
  %1207 = vmatprep.mubr.f32.mxu0 0.0
  %1208 = vmatmul.mubr.f32.gmra.mrb[0].mxu0 %v1135
  %v1209 = vpop.f32.mrb[0].mxu0
  %v1210 = vadd.f32 %v1126, %v1209
  %v1211 = vpop.f32.mrb[0].mxu0
  %1212 = vmatprep.mubr.f32.mxu0 0.0
  %1213 = vmatmul.mubr.f32.gmra.mrb[0].mxu0 %v1138
  %v1214 = vpop.f32.mrb[0].mxu0
  %v1215 = vadd.f32 %v1131, %v1214
  %v1216 = vpop.f32.mrb[0].mxu0
  %1217 = vdwg.mxu0
  %v1218 = vld [vmem:[%s9] sm:$0x1]
  %v1220 = vlaneseq
  %v1221 = vshrl.u32 %v1220, 7
  %v1222 = vsub.s32 0, %v1221
  %v1223 = vrot.slane %v1218, %v1222
  %v1225 = vadd.f32 %v1210, %v1223
  %v1226 = vadd.f32 %v1215, %v1223
  %1227 = vst.msk [vmem:[%s10] sm:$0xff] %vm45, %v1225
  %vm1228 = vcmask 259072
  %1229 = vst.msk [vmem:[%s10 + $0x8] sm:$0x3f] %vm1228, %v1226
  // Predicated region
  $region42: #{_forward_device.6} parent=0 // pred_check
    _
  $region43: #{_forward_device.6} parent=0 // pred_check_branch
    %1231 = sbr.rel (0) target = $region45
  $region44: #{_forward_device.6} parent=0 // pred_region
    _
  $region45: #{_forward_device.6} parent=0 // pred_fallthru
    _
  // Predicated region
  $region46: #{_forward_device.6} parent=0 // pred_check
    _
  $region47: #{_forward_device.6} parent=0 // pred_check_branch
    %1233 = sbr.rel (0) target = $region49
  $region48: #{_forward_device.6} parent=0 // pred_region
    _
  $region49: #{_forward_device.6} parent=0 // pred_fallthru
    _

// kernel: _forward_device.4
$region0: #{_forward_device.4}
  #allocation0 [shape = 'u32[]', space=smem, size = 0x4, offset = 0x4, fixed_abs, tag = 'smem constant byte address 0x4 - core index']
  #allocation1 [shape = 'u32[144,128]{1,0:T(1,128)}', space=vmem, size = 0x12000, scoped, tag = 'internal scratch']
  #allocation2 [shape = 'f32[8,2,16]{2,1,0:T(2,128)}', space=vmem, size = 0x2000, scoped, tag = 'scratch operand']
  #allocation3 [shape = 'f32[8,2,16]{2,1,0:T(2,128)}', space=vmem, size = 0x2000, scoped, tag = 'scratch operand']
  #allocation4 [shape = 'f32[8,2,16]{2,1,0:T(2,128)}', space=vmem, size = 0x2000, scoped, tag = 'scratch operand']
  #allocation5 [shape = 'f32[8,2,16]{2,1,0:T(2,128)}', space=vmem, size = 0x2000, scoped, tag = 'scratch operand']
  #allocation6 [shape = 'f32[2,32]{1,0:T(2,128)}', space=vmem, size = 0x400, scoped, tag = 'scratch operand']
  #allocation7 [shape = 'f32[2,32]{1,0:T(2,128)}', space=vmem, size = 0x400, scoped, tag = 'scratch operand']
  %s0 = inlined_call_operand.vmem [shape: f32[8,2,16], index: 0, kind: input, shape index: {}]
  %s1 = inlined_call_operand.vmem [shape: f32[64,128], index: 1, kind: input, shape index: {}]
  %s2 = inlined_call_operand.vmem [shape: f32[1,128], index: 2, kind: input, shape index: {}]
  %s3 = inlined_call_operand.hbm [shape: f32[96,128], index: 3, kind: input, shape index: {}]
  %s4 = inlined_call_operand.vmem [shape: f32[1,128], index: 4, kind: input, shape index: {}]
  %s5 = inlined_call_operand.vmem [shape: f32[8,2,32], index: 5, kind: output, shape index: {}]
  %s6 = sld [smem:[#allocation0]]
  $region34: #{_forward_device.4} parent=0
    _
  %s8 = ssub.s32 1, %s6
  %s9 = scalar_select 0, %s8, %s6
  $region1: #{_forward_device.4} parent=0
    #allocation8 [shape = 'u8[49152]{0}', space=vmem, size = 0xc000, scoped, tag = 'input window, operand 3, single buffered']
    #allocation9 [shape = 's32[1]{0}', space=sflag, size = 0x4, scoped, tag = 'scoped memory for _forward_device.4']
    %10 = vsyncpa [#allocation9], 0
    // Predicated region
    $region2: #{_forward_device.4} parent=1 // pred_check
      _
    $region3: #{_forward_device.4} parent=1 // pred_check_branch
      %12 = sbr.rel (0) target = $region5
    $region4: #{_forward_device.4} parent=1 // pred_region
      _
    $region5: #{_forward_device.4} parent=1 // pred_fallthru
      _
    // Predicated region
    $region6: #{_forward_device.4} parent=1 // pred_check
      _
    $region7: #{_forward_device.4} parent=1 // pred_check_branch
      %14 = sbr.rel (0) target = $region9
    $region8: #{_forward_device.4} parent=1 // pred_region
      _
    $region9: #{_forward_device.4} parent=1 // pred_fallthru
      _
    // Predicated region
    $region10: #{_forward_device.4} parent=1 // pred_check
      _
    $region11: #{_forward_device.4} parent=1 // pred_check_branch
      %16 = sbr.rel (0) target = $region13
    $region12: #{_forward_device.4} parent=1 // pred_region
      _
    $region13: #{_forward_device.4} parent=1 // pred_fallthru
      _
    // Predicated region
    $region14: #{_forward_device.4} parent=1 // pred_check
      _
    $region15: #{_forward_device.4} parent=1 // pred_check_branch
      %18 = sbr.rel (0) target = $region17
    $region16: #{_forward_device.4} parent=1 // pred_region
      %s20 = ssub.s32 1536, 1536
      %21 = vsyncadd [#allocation9], %s20
      %s22 = sshll.u32 [#allocation8], 4
      %s23 = int_to_ptr.vmem [resolvable:$true] %s22
      %28 = dma.hbm_to_vmem [thread:$0]  %s3, 1536, %s23, [#allocation9], 128, 128, 8
    $region17: #{_forward_device.4} parent=1 // pred_fallthru
      _
    // Predicated region
    $region18: #{_forward_device.4} parent=1 // pred_check
      _
    $region19: #{_forward_device.4} parent=1 // pred_check_branch
      %30 = sbr.rel (0) target = $region21
    $region20: #{_forward_device.4} parent=1 // pred_region
      _
    $region21: #{_forward_device.4} parent=1 // pred_fallthru
      _
    // Predicated region
    $region22: #{_forward_device.4} parent=1 // pred_check
      _
    $region23: #{_forward_device.4} parent=1 // pred_check_branch
      %32 = sbr.rel (0) target = $region25
    $region24: #{_forward_device.4} parent=1 // pred_region
      %33 = dma.done [#allocation9], 1536
    $region25: #{_forward_device.4} parent=1 // pred_fallthru
      _
    %vm34 = vcmask 254976
    %35 = vst.msk [vmem:[#allocation6] sm:$0x3] %vm34, 0.0
    %36 = vst.msk [vmem:[#allocation7] sm:$0x3] %vm34, 0.0
    %v37 = vld [vmem:[%s0] sm:$0x3]
    %s38 = scalar_lea.vmem %s0, 14
    %v39 = vld [vmem:[%s38] sm:$0x3]
    %v40 = vld [vmem:[#allocation6] sm:$0x3]
    %42 = vrot.lane.b32.xlu0 %v39, 16
    %v43 = vpop.permute.xlu0 %42
    %46 = vrot.lane.b32.xlu0 %v40, 32
    %v47 = vpop.permute.xlu0 %46
    %vm49 = vcmask 130048
    %v50 = vsel %vm49, %v37, %v43
    %vm51 = vcmask 261120
    %v52 = vsel %vm51, %v50, %v47
    %v53 = vld [vmem:[%s1] sm:$0xff]
    %v54 = vld [vmem:[%s1 + $0x8] sm:$0xff]
    %v55 = vld [vmem:[%s1 + $0x10] sm:$0xff]
    %v56 = vld [vmem:[%s1 + $0x18] sm:$0xff]
    %v57 = vld [vmem:[%s1 + $0x20] sm:$0xff]
    %v58 = vld [vmem:[%s1 + $0x28] sm:$0xff]
    %v59 = vld [vmem:[%s1 + $0x30] sm:$0xff]
    %v60 = vld [vmem:[%s1 + $0x38] sm:$0xff]
    %v61 = vld [vmem:[%s2] sm:$0x1]
    %v63 = vlaneseq
    %v64 = vshrl.u32 %v63, 7
    %v65 = vsub.s32 0, %v64
    %v66 = vrot.slane %v61, %v65
    %vm68 = vcmask 523264
    %v70 = vsel %vm68, %v52, 0
    %72 = vmatprep.subr.mxu0 0.0
    %73 = vmatpush1.msra.mxu0 %v53
    %74 = vmatprep.subr.mxu0 0.0
    %75 = vmatpush1.msra.mxu0 %v54
    %76 = vmatprep.subr.mxu0 0.0
    %77 = vmatpush1.msra.mxu0 %v55
    %78 = vmatprep.subr.mxu0 0.0
    %79 = vmatpush1.msra.mxu0 %v56
    %80 = vmatprep.subr.mxu0 0.0
    %81 = vmatpush1.msra.mxu0 %v57
    %82 = vmatprep.subr.mxu0 0.0
    %83 = vmatpush1.msra.mxu0 %v58
    %84 = vmatprep.subr.mxu0 0.0
    %85 = vmatpush1.msra.mxu0 %v59
    %86 = vmatprep.subr.mxu0 0.0
    %87 = vmatpush1.msra.mxu0 %v60
    %88 = vmatprep.subr.mxu0 0.0
    %89 = vmatpush1.msra.mxu0 0.0
    %90 = vmatprep.subr.mxu0 0.0
    %91 = vmatpush1.msra.mxu0 0.0
    %92 = vmatprep.subr.mxu0 0.0
    %93 = vmatpush1.msra.mxu0 0.0
    %94 = vmatprep.subr.mxu0 0.0
    %95 = vmatpush1.msra.mxu0 0.0
    %96 = vmatprep.subr.mxu0 0.0
    %97 = vmatpush1.msra.mxu0 0.0
    %98 = vmatprep.subr.mxu0 0.0
    %99 = vmatpush1.msra.mxu0 0.0
    %100 = vmatprep.subr.mxu0 0.0
    %101 = vmatpush1.msra.mxu0 0.0
    %102 = vmatprep.subr.mxu0 0.0
    %103 = vmatpush1.msra.mxu0 0.0
    %104 = vmatprep.subr.mxu0 0.0
    %105 = vmatpush1.msra.mxu0 0.0
    %106 = vmatprep.subr.mxu0 0.0
    %107 = vmatpush1.msra.mxu0 0.0
    %108 = vmatprep.subr.mxu0 0.0
    %109 = vmatpush1.msra.mxu0 0.0
    %110 = vmatprep.subr.mxu0 0.0
    %111 = vmatpush1.msra.mxu0 0.0
    %112 = vmatprep.subr.mxu0 0.0
    %113 = vmatpush1.msra.mxu0 0.0
    %114 = vmatprep.subr.mxu0 0.0
    %115 = vmatpush1.msra.mxu0 0.0
    %116 = vmatprep.subr.mxu0 0.0
    %117 = vmatpush1.msra.mxu0 0.0
    %118 = vmatprep.subr.mxu0 0.0
    %119 = vmatpush1.msra.mxu0 0.0
    %120 = vmatprep.subr.mxu0 0.0
    %121 = vmatpush1.msra.mxu0 0.0
    %122 = vmatprep.subr.mxu0 0.0
    %123 = vmatpush1.msra.mxu0 0.0
    %124 = vmatprep.subr.mxu0 0.0
    %125 = vmatpush1.msra.mxu0 0.0
    %126 = vmatprep.subr.mxu0 0.0
    %127 = vmatpush1.msra.mxu0 0.0
    %128 = vmatprep.subr.mxu0 0.0
    %129 = vmatpush1.msra.mxu0 0.0
    %130 = vmatprep.subr.mxu0 0.0
    %131 = vmatpush1.msra.mxu0 0.0
    %132 = vmatprep.subr.mxu0 0.0
    %133 = vmatpush1.msra.mxu0 0.0
    %134 = vmatprep.subr.mxu0 0.0
    %135 = vmatpush1.msra.mxu0 0.0
    %136 = vmatprep.mubr.f32.mxu0 0.0
    %137 = vmatmul.mubr.f32.gmra.mrb[0].mxu0 %v70
    %v138 = vpop.f32.mrb[0].mxu0
    %v139 = vadd.f32 %v66, %v138
    %v140 = vpop.f32.mrb[0].mxu0
    %141 = vdwg.mxu0
    %v142 = vxor.u32 %v139, 2147483648
    %v143 = vmul.f32 %v142, 1.442695
    %v144 = vpow.pop %v143
    %v145 = vadd.f32 %v144, 1.0
    %v146 = vrcp.pop %v145
    %v147 = vmul.f32 1.0, %v146
    %v148 = vtanh.pop %v139
    %v149 = vld [vmem:[#allocation7] sm:$0x3]
    %151 = vrot.lane.b32.xlu0 %v149, 32
    %v152 = vpop.permute.xlu0 %151
    %v154 = vmul.f32 %v147, %v152
    %156 = vrot.lane.b32.xlu0 %v148, 64
    %v157 = vpop.permute.xlu0 %156
    %v159 = vmul.f32 %v147, %v157
    %161 = vrot.lane.b32.xlu0 %v159, 32
    %v162 = vpop.permute.xlu0 %161
    %v164 = vadd.f32 %v154, %v162
    %v165 = vtanh.pop %v164
    %167 = vrot.lane.b32.xlu0 %v165, 64
    %v168 = vpop.permute.xlu0 %167
    %v170 = vmul.f32 %v147, %v168
    %172 = vrot.lane.b32.xlu0 %v164, 96
    %v173 = vpop.permute.xlu0 %172
    %175 = vst.msk [vmem:[#allocation7] sm:$0x3] %vm34, %v173
    %177 = vrot.lane.b32.xlu0 %v170, 32
    %v178 = vpop.permute.xlu0 %177
    %180 = vst.msk [vmem:[#allocation6] sm:$0x3] %vm34, %v178
    %vm181 = vcmask 123904
    %182 = vst.msk [vmem:[#allocation2] sm:$0x3] %vm181, %v178
    %183 = vrot.lane.b32.xlu0 %v170, 16
    %v184 = vpop.permute.xlu0 %183
    %s186 = scalar_lea.vmem [#allocation3], 14
    %187 = vst.msk [vmem:[%s186] sm:$0x3] %vm181, %v184
    %s188 = scalar_lea.vmem %s0, 2
    %v189 = vld [vmem:[%s188] sm:$0x3]
    %s190 = scalar_lea.vmem %s0, 12
    %v191 = vld [vmem:[%s190] sm:$0x3]
    %v192 = vld [vmem:[#allocation6] sm:$0x3]
    %194 = vrot.lane.b32.xlu0 %v191, 16
    %v195 = vpop.permute.xlu0 %194
    %198 = vrot.lane.b32.xlu0 %v192, 32
    %v199 = vpop.permute.xlu0 %198
    %v201 = vsel %vm49, %v189, %v195
    %v202 = vsel %vm51, %v201, %v199
    %v203 = vld [vmem:[%s1] sm:$0xff]
    %v204 = vld [vmem:[%s1 + $0x8] sm:$0xff]
    %v205 = vld [vmem:[%s1 + $0x10] sm:$0xff]
    %v206 = vld [vmem:[%s1 + $0x18] sm:$0xff]
    %v207 = vld [vmem:[%s1 + $0x20] sm:$0xff]
    %v208 = vld [vmem:[%s1 + $0x28] sm:$0xff]
    %v209 = vld [vmem:[%s1 + $0x30] sm:$0xff]
    %v210 = vld [vmem:[%s1 + $0x38] sm:$0xff]
    %v211 = vld [vmem:[%s2] sm:$0x1]
    %v213 = vlaneseq
    %v214 = vshrl.u32 %v213, 7
    %v215 = vsub.s32 0, %v214
    %v216 = vrot.slane %v211, %v215
    %v219 = vsel %vm68, %v202, 0
    %221 = vmatprep.subr.mxu0 0.0
    %222 = vmatpush1.msra.mxu0 %v203
    %223 = vmatprep.subr.mxu0 0.0
    %224 = vmatpush1.msra.mxu0 %v204
    %225 = vmatprep.subr.mxu0 0.0
    %226 = vmatpush1.msra.mxu0 %v205
    %227 = vmatprep.subr.mxu0 0.0
    %228 = vmatpush1.msra.mxu0 %v206
    %229 = vmatprep.subr.mxu0 0.0
    %230 = vmatpush1.msra.mxu0 %v207
    %231 = vmatprep.subr.mxu0 0.0
    %232 = vmatpush1.msra.mxu0 %v208
    %233 = vmatprep.subr.mxu0 0.0
    %234 = vmatpush1.msra.mxu0 %v209
    %235 = vmatprep.subr.mxu0 0.0
    %236 = vmatpush1.msra.mxu0 %v210
    %237 = vmatprep.subr.mxu0 0.0
    %238 = vmatpush1.msra.mxu0 0.0
    %239 = vmatprep.subr.mxu0 0.0
    %240 = vmatpush1.msra.mxu0 0.0
    %241 = vmatprep.subr.mxu0 0.0
    %242 = vmatpush1.msra.mxu0 0.0
    %243 = vmatprep.subr.mxu0 0.0
    %244 = vmatpush1.msra.mxu0 0.0
    %245 = vmatprep.subr.mxu0 0.0
    %246 = vmatpush1.msra.mxu0 0.0
    %247 = vmatprep.subr.mxu0 0.0
    %248 = vmatpush1.msra.mxu0 0.0
    %249 = vmatprep.subr.mxu0 0.0
    %250 = vmatpush1.msra.mxu0 0.0
    %251 = vmatprep.subr.mxu0 0.0
    %252 = vmatpush1.msra.mxu0 0.0
    %253 = vmatprep.subr.mxu0 0.0
    %254 = vmatpush1.msra.mxu0 0.0
    %255 = vmatprep.subr.mxu0 0.0
    %256 = vmatpush1.msra.mxu0 0.0
    %257 = vmatprep.subr.mxu0 0.0
    %258 = vmatpush1.msra.mxu0 0.0
    %259 = vmatprep.subr.mxu0 0.0
    %260 = vmatpush1.msra.mxu0 0.0
    %261 = vmatprep.subr.mxu0 0.0
    %262 = vmatpush1.msra.mxu0 0.0
    %263 = vmatprep.subr.mxu0 0.0
    %264 = vmatpush1.msra.mxu0 0.0
    %265 = vmatprep.subr.mxu0 0.0
    %266 = vmatpush1.msra.mxu0 0.0
    %267 = vmatprep.subr.mxu0 0.0
    %268 = vmatpush1.msra.mxu0 0.0
    %269 = vmatprep.subr.mxu0 0.0
    %270 = vmatpush1.msra.mxu0 0.0
    %271 = vmatprep.subr.mxu0 0.0
    %272 = vmatpush1.msra.mxu0 0.0
    %273 = vmatprep.subr.mxu0 0.0
    %274 = vmatpush1.msra.mxu0 0.0
    %275 = vmatprep.subr.mxu0 0.0
    %276 = vmatpush1.msra.mxu0 0.0
    %277 = vmatprep.subr.mxu0 0.0
    %278 = vmatpush1.msra.mxu0 0.0
    %279 = vmatprep.subr.mxu0 0.0
    %280 = vmatpush1.msra.mxu0 0.0
    %281 = vmatprep.subr.mxu0 0.0
    %282 = vmatpush1.msra.mxu0 0.0
    %283 = vmatprep.subr.mxu0 0.0
    %284 = vmatpush1.msra.mxu0 0.0
    %285 = vmatprep.mubr.f32.mxu0 0.0
    %286 = vmatmul.mubr.f32.gmra.mrb[0].mxu0 %v219
    %v287 = vpop.f32.mrb[0].mxu0
    %v288 = vadd.f32 %v216, %v287
    %v289 = vpop.f32.mrb[0].mxu0
    %290 = vdwg.mxu0
    %v291 = vxor.u32 %v288, 2147483648
    %v292 = vmul.f32 %v291, 1.442695
    %v293 = vpow.pop %v292
    %v294 = vadd.f32 %v293, 1.0
    %v295 = vrcp.pop %v294
    %v296 = vmul.f32 1.0, %v295
    %v297 = vtanh.pop %v288
    %v298 = vld [vmem:[#allocation7] sm:$0x3]
    %300 = vrot.lane.b32.xlu0 %v298, 32
    %v301 = vpop.permute.xlu0 %300
    %v303 = vmul.f32 %v296, %v301
    %305 = vrot.lane.b32.xlu0 %v297, 64
    %v306 = vpop.permute.xlu0 %305
    %v308 = vmul.f32 %v296, %v306
    %310 = vrot.lane.b32.xlu0 %v308, 32
    %v311 = vpop.permute.xlu0 %310
    %v313 = vadd.f32 %v303, %v311
    %v314 = vtanh.pop %v313
    %316 = vrot.lane.b32.xlu0 %v314, 64
    %v317 = vpop.permute.xlu0 %316
    %v319 = vmul.f32 %v296, %v317
    %321 = vrot.lane.b32.xlu0 %v313, 96
    %v322 = vpop.permute.xlu0 %321
    %324 = vst.msk [vmem:[#allocation7] sm:$0x3] %vm34, %v322
    %326 = vrot.lane.b32.xlu0 %v319, 32
    %v327 = vpop.permute.xlu0 %326
    %329 = vst.msk [vmem:[#allocation6] sm:$0x3] %vm34, %v327
    %s330 = scalar_lea.vmem [#allocation2], 2
    %331 = vst.msk [vmem:[%s330] sm:$0x3] %vm181, %v327
    %332 = vrot.lane.b32.xlu0 %v319, 16
    %v333 = vpop.permute.xlu0 %332
    %s335 = scalar_lea.vmem [#allocation3], 12
    %336 = vst.msk [vmem:[%s335] sm:$0x3] %vm181, %v333
    %s337 = scalar_lea.vmem %s0, 4
    %v338 = vld [vmem:[%s337] sm:$0x3]
    %s339 = scalar_lea.vmem %s0, 10
    %v340 = vld [vmem:[%s339] sm:$0x3]
    %v341 = vld [vmem:[#allocation6] sm:$0x3]
    %343 = vrot.lane.b32.xlu0 %v340, 16
    %v344 = vpop.permute.xlu0 %343
    %347 = vrot.lane.b32.xlu0 %v341, 32
    %v348 = vpop.permute.xlu0 %347
    %v350 = vsel %vm49, %v338, %v344
    %v351 = vsel %vm51, %v350, %v348
    %v352 = vld [vmem:[%s1] sm:$0xff]
    %v353 = vld [vmem:[%s1 + $0x8] sm:$0xff]
    %v354 = vld [vmem:[%s1 + $0x10] sm:$0xff]
    %v355 = vld [vmem:[%s1 + $0x18] sm:$0xff]
    %v356 = vld [vmem:[%s1 + $0x20] sm:$0xff]
    %v357 = vld [vmem:[%s1 + $0x28] sm:$0xff]
    %v358 = vld [vmem:[%s1 + $0x30] sm:$0xff]
    %v359 = vld [vmem:[%s1 + $0x38] sm:$0xff]
    %v360 = vld [vmem:[%s2] sm:$0x1]
    %v362 = vlaneseq
    %v363 = vshrl.u32 %v362, 7
    %v364 = vsub.s32 0, %v363
    %v365 = vrot.slane %v360, %v364
    %v368 = vsel %vm68, %v351, 0
    %370 = vmatprep.subr.mxu0 0.0
    %371 = vmatpush1.msra.mxu0 %v352
    %372 = vmatprep.subr.mxu0 0.0
    %373 = vmatpush1.msra.mxu0 %v353
    %374 = vmatprep.subr.mxu0 0.0
    %375 = vmatpush1.msra.mxu0 %v354
    %376 = vmatprep.subr.mxu0 0.0
    %377 = vmatpush1.msra.mxu0 %v355
    %378 = vmatprep.subr.mxu0 0.0
    %379 = vmatpush1.msra.mxu0 %v356
    %380 = vmatprep.subr.mxu0 0.0
    %381 = vmatpush1.msra.mxu0 %v357
    %382 = vmatprep.subr.mxu0 0.0
    %383 = vmatpush1.msra.mxu0 %v358
    %384 = vmatprep.subr.mxu0 0.0
    %385 = vmatpush1.msra.mxu0 %v359
    %386 = vmatprep.subr.mxu0 0.0
    %387 = vmatpush1.msra.mxu0 0.0
    %388 = vmatprep.subr.mxu0 0.0
    %389 = vmatpush1.msra.mxu0 0.0
    %390 = vmatprep.subr.mxu0 0.0
    %391 = vmatpush1.msra.mxu0 0.0
    %392 = vmatprep.subr.mxu0 0.0
    %393 = vmatpush1.msra.mxu0 0.0
    %394 = vmatprep.subr.mxu0 0.0
    %395 = vmatpush1.msra.mxu0 0.0
    %396 = vmatprep.subr.mxu0 0.0
    %397 = vmatpush1.msra.mxu0 0.0
    %398 = vmatprep.subr.mxu0 0.0
    %399 = vmatpush1.msra.mxu0 0.0
    %400 = vmatprep.subr.mxu0 0.0
    %401 = vmatpush1.msra.mxu0 0.0
    %402 = vmatprep.subr.mxu0 0.0
    %403 = vmatpush1.msra.mxu0 0.0
    %404 = vmatprep.subr.mxu0 0.0
    %405 = vmatpush1.msra.mxu0 0.0
    %406 = vmatprep.subr.mxu0 0.0
    %407 = vmatpush1.msra.mxu0 0.0
    %408 = vmatprep.subr.mxu0 0.0
    %409 = vmatpush1.msra.mxu0 0.0
    %410 = vmatprep.subr.mxu0 0.0
    %411 = vmatpush1.msra.mxu0 0.0
    %412 = vmatprep.subr.mxu0 0.0
    %413 = vmatpush1.msra.mxu0 0.0
    %414 = vmatprep.subr.mxu0 0.0
    %415 = vmatpush1.msra.mxu0 0.0
    %416 = vmatprep.subr.mxu0 0.0
    %417 = vmatpush1.msra.mxu0 0.0
    %418 = vmatprep.subr.mxu0 0.0
    %419 = vmatpush1.msra.mxu0 0.0
    %420 = vmatprep.subr.mxu0 0.0
    %421 = vmatpush1.msra.mxu0 0.0
    %422 = vmatprep.subr.mxu0 0.0
    %423 = vmatpush1.msra.mxu0 0.0
    %424 = vmatprep.subr.mxu0 0.0
    %425 = vmatpush1.msra.mxu0 0.0
    %426 = vmatprep.subr.mxu0 0.0
    %427 = vmatpush1.msra.mxu0 0.0
    %428 = vmatprep.subr.mxu0 0.0
    %429 = vmatpush1.msra.mxu0 0.0
    %430 = vmatprep.subr.mxu0 0.0
    %431 = vmatpush1.msra.mxu0 0.0
    %432 = vmatprep.subr.mxu0 0.0
    %433 = vmatpush1.msra.mxu0 0.0
    %434 = vmatprep.mubr.f32.mxu0 0.0
    %435 = vmatmul.mubr.f32.gmra.mrb[0].mxu0 %v368
    %v436 = vpop.f32.mrb[0].mxu0
    %v437 = vadd.f32 %v365, %v436
    %v438 = vpop.f32.mrb[0].mxu0
    %439 = vdwg.mxu0
    %v440 = vxor.u32 %v437, 2147483648
    %v441 = vmul.f32 %v440, 1.442695
    %v442 = vpow.pop %v441
    %v443 = vadd.f32 %v442, 1.0
    %v444 = vrcp.pop %v443
    %v445 = vmul.f32 1.0, %v444
    %v446 = vtanh.pop %v437
    %v447 = vld [vmem:[#allocation7] sm:$0x3]
    %449 = vrot.lane.b32.xlu0 %v447, 32
    %v450 = vpop.permute.xlu0 %449
    %v452 = vmul.f32 %v445, %v450
    %454 = vrot.lane.b32.xlu0 %v446, 64
    %v455 = vpop.permute.xlu0 %454
    %v457 = vmul.f32 %v445, %v455
    %459 = vrot.lane.b32.xlu0 %v457, 32
    %v460 = vpop.permute.xlu0 %459
    %v462 = vadd.f32 %v452, %v460
    %v463 = vtanh.pop %v462
    %465 = vrot.lane.b32.xlu0 %v463, 64
    %v466 = vpop.permute.xlu0 %465
    %v468 = vmul.f32 %v445, %v466
    %470 = vrot.lane.b32.xlu0 %v462, 96
    %v471 = vpop.permute.xlu0 %470
    %473 = vst.msk [vmem:[#allocation7] sm:$0x3] %vm34, %v471
    %475 = vrot.lane.b32.xlu0 %v468, 32
    %v476 = vpop.permute.xlu0 %475
    %478 = vst.msk [vmem:[#allocation6] sm:$0x3] %vm34, %v476
    %s479 = scalar_lea.vmem [#allocation2], 4
    %480 = vst.msk [vmem:[%s479] sm:$0x3] %vm181, %v476
    %481 = vrot.lane.b32.xlu0 %v468, 16
    %v482 = vpop.permute.xlu0 %481
    %s484 = scalar_lea.vmem [#allocation3], 10
    %485 = vst.msk [vmem:[%s484] sm:$0x3] %vm181, %v482
    %s486 = scalar_lea.vmem %s0, 6
    %v487 = vld [vmem:[%s486] sm:$0x3]
    %s488 = scalar_lea.vmem %s0, 8
    %v489 = vld [vmem:[%s488] sm:$0x3]
    %v490 = vld [vmem:[#allocation6] sm:$0x3]
    %492 = vrot.lane.b32.xlu0 %v489, 16
    %v493 = vpop.permute.xlu0 %492
    %496 = vrot.lane.b32.xlu0 %v490, 32
    %v497 = vpop.permute.xlu0 %496
    %v499 = vsel %vm49, %v487, %v493
    %v500 = vsel %vm51, %v499, %v497
    %v501 = vld [vmem:[%s1] sm:$0xff]
    %v502 = vld [vmem:[%s1 + $0x8] sm:$0xff]
    %v503 = vld [vmem:[%s1 + $0x10] sm:$0xff]
    %v504 = vld [vmem:[%s1 + $0x18] sm:$0xff]
    %v505 = vld [vmem:[%s1 + $0x20] sm:$0xff]
    %v506 = vld [vmem:[%s1 + $0x28] sm:$0xff]
    %v507 = vld [vmem:[%s1 + $0x30] sm:$0xff]
    %v508 = vld [vmem:[%s1 + $0x38] sm:$0xff]
    %v509 = vld [vmem:[%s2] sm:$0x1]
    %v511 = vlaneseq
    %v512 = vshrl.u32 %v511, 7
    %v513 = vsub.s32 0, %v512
    %v514 = vrot.slane %v509, %v513
    %v517 = vsel %vm68, %v500, 0
    %519 = vmatprep.subr.mxu0 0.0
    %520 = vmatpush1.msra.mxu0 %v501
    %521 = vmatprep.subr.mxu0 0.0
    %522 = vmatpush1.msra.mxu0 %v502
    %523 = vmatprep.subr.mxu0 0.0
    %524 = vmatpush1.msra.mxu0 %v503
    %525 = vmatprep.subr.mxu0 0.0
    %526 = vmatpush1.msra.mxu0 %v504
    %527 = vmatprep.subr.mxu0 0.0
    %528 = vmatpush1.msra.mxu0 %v505
    %529 = vmatprep.subr.mxu0 0.0
    %530 = vmatpush1.msra.mxu0 %v506
    %531 = vmatprep.subr.mxu0 0.0
    %532 = vmatpush1.msra.mxu0 %v507
    %533 = vmatprep.subr.mxu0 0.0
    %534 = vmatpush1.msra.mxu0 %v508
    %535 = vmatprep.subr.mxu0 0.0
    %536 = vmatpush1.msra.mxu0 0.0
    %537 = vmatprep.subr.mxu0 0.0
    %538 = vmatpush1.msra.mxu0 0.0
    %539 = vmatprep.subr.mxu0 0.0
    %540 = vmatpush1.msra.mxu0 0.0
    %541 = vmatprep.subr.mxu0 0.0
    %542 = vmatpush1.msra.mxu0 0.0
    %543 = vmatprep.subr.mxu0 0.0
    %544 = vmatpush1.msra.mxu0 0.0
    %545 = vmatprep.subr.mxu0 0.0
    %546 = vmatpush1.msra.mxu0 0.0
    %547 = vmatprep.subr.mxu0 0.0
    %548 = vmatpush1.msra.mxu0 0.0
    %549 = vmatprep.subr.mxu0 0.0
    %550 = vmatpush1.msra.mxu0 0.0
    %551 = vmatprep.subr.mxu0 0.0
    %552 = vmatpush1.msra.mxu0 0.0
    %553 = vmatprep.subr.mxu0 0.0
    %554 = vmatpush1.msra.mxu0 0.0
    %555 = vmatprep.subr.mxu0 0.0
    %556 = vmatpush1.msra.mxu0 0.0
    %557 = vmatprep.subr.mxu0 0.0
    %558 = vmatpush1.msra.mxu0 0.0
    %559 = vmatprep.subr.mxu0 0.0
    %560 = vmatpush1.msra.mxu0 0.0
    %561 = vmatprep.subr.mxu0 0.0
    %562 = vmatpush1.msra.mxu0 0.0
    %563 = vmatprep.subr.mxu0 0.0
    %564 = vmatpush1.msra.mxu0 0.0
    %565 = vmatprep.subr.mxu0 0.0
    %566 = vmatpush1.msra.mxu0 0.0
    %567 = vmatprep.subr.mxu0 0.0
    %568 = vmatpush1.msra.mxu0 0.0
    %569 = vmatprep.subr.mxu0 0.0
    %570 = vmatpush1.msra.mxu0 0.0
    %571 = vmatprep.subr.mxu0 0.0
    %572 = vmatpush1.msra.mxu0 0.0
    %573 = vmatprep.subr.mxu0 0.0
    %574 = vmatpush1.msra.mxu0 0.0
    %575 = vmatprep.subr.mxu0 0.0
    %576 = vmatpush1.msra.mxu0 0.0
    %577 = vmatprep.subr.mxu0 0.0
    %578 = vmatpush1.msra.mxu0 0.0
    %579 = vmatprep.subr.mxu0 0.0
    %580 = vmatpush1.msra.mxu0 0.0
    %581 = vmatprep.subr.mxu0 0.0
    %582 = vmatpush1.msra.mxu0 0.0
    %583 = vmatprep.mubr.f32.mxu0 0.0
    %584 = vmatmul.mubr.f32.gmra.mrb[0].mxu0 %v517
    %v585 = vpop.f32.mrb[0].mxu0
    %v586 = vadd.f32 %v514, %v585
    %v587 = vpop.f32.mrb[0].mxu0
    %588 = vdwg.mxu0
    %v589 = vxor.u32 %v586, 2147483648
    %v590 = vmul.f32 %v589, 1.442695
    %v591 = vpow.pop %v590
    %v592 = vadd.f32 %v591, 1.0
    %v593 = vrcp.pop %v592
    %v594 = vmul.f32 1.0, %v593
    %v595 = vtanh.pop %v586
    %v596 = vld [vmem:[#allocation7] sm:$0x3]
    %598 = vrot.lane.b32.xlu0 %v596, 32
    %v599 = vpop.permute.xlu0 %598
    %v601 = vmul.f32 %v594, %v599
    %603 = vrot.lane.b32.xlu0 %v595, 64
    %v604 = vpop.permute.xlu0 %603
    %v606 = vmul.f32 %v594, %v604
    %608 = vrot.lane.b32.xlu0 %v606, 32
    %v609 = vpop.permute.xlu0 %608
    %v611 = vadd.f32 %v601, %v609
    %v612 = vtanh.pop %v611
    %614 = vrot.lane.b32.xlu0 %v612, 64
    %v615 = vpop.permute.xlu0 %614
    %v617 = vmul.f32 %v594, %v615
    %619 = vrot.lane.b32.xlu0 %v611, 96
    %v620 = vpop.permute.xlu0 %619
    %622 = vst.msk [vmem:[#allocation7] sm:$0x3] %vm34, %v620
    %624 = vrot.lane.b32.xlu0 %v617, 32
    %v625 = vpop.permute.xlu0 %624
    %627 = vst.msk [vmem:[#allocation6] sm:$0x3] %vm34, %v625
    %s628 = scalar_lea.vmem [#allocation2], 6
    %629 = vst.msk [vmem:[%s628] sm:$0x3] %vm181, %v625
    %630 = vrot.lane.b32.xlu0 %v617, 16
    %v631 = vpop.permute.xlu0 %630
    %s633 = scalar_lea.vmem [#allocation3], 8
    %634 = vst.msk [vmem:[%s633] sm:$0x3] %vm181, %v631
    %v635 = vld [vmem:[%s488] sm:$0x3]
    %v636 = vld [vmem:[%s486] sm:$0x3]
    %v637 = vld [vmem:[#allocation6] sm:$0x3]
    %639 = vrot.lane.b32.xlu0 %v636, 16
    %v640 = vpop.permute.xlu0 %639
    %643 = vrot.lane.b32.xlu0 %v637, 32
    %v644 = vpop.permute.xlu0 %643
    %v646 = vsel %vm49, %v635, %v640
    %v647 = vsel %vm51, %v646, %v644
    %v648 = vld [vmem:[%s1] sm:$0xff]
    %v649 = vld [vmem:[%s1 + $0x8] sm:$0xff]
    %v650 = vld [vmem:[%s1 + $0x10] sm:$0xff]
    %v651 = vld [vmem:[%s1 + $0x18] sm:$0xff]
    %v652 = vld [vmem:[%s1 + $0x20] sm:$0xff]
    %v653 = vld [vmem:[%s1 + $0x28] sm:$0xff]
    %v654 = vld [vmem:[%s1 + $0x30] sm:$0xff]
    %v655 = vld [vmem:[%s1 + $0x38] sm:$0xff]
    %v656 = vld [vmem:[%s2] sm:$0x1]
    %v658 = vlaneseq
    %v659 = vshrl.u32 %v658, 7
    %v660 = vsub.s32 0, %v659
    %v661 = vrot.slane %v656, %v660
    %v664 = vsel %vm68, %v647, 0
    %666 = vmatprep.subr.mxu0 0.0
    %667 = vmatpush1.msra.mxu0 %v648
    %668 = vmatprep.subr.mxu0 0.0
    %669 = vmatpush1.msra.mxu0 %v649
    %670 = vmatprep.subr.mxu0 0.0
    %671 = vmatpush1.msra.mxu0 %v650
    %672 = vmatprep.subr.mxu0 0.0
    %673 = vmatpush1.msra.mxu0 %v651
    %674 = vmatprep.subr.mxu0 0.0
    %675 = vmatpush1.msra.mxu0 %v652
    %676 = vmatprep.subr.mxu0 0.0
    %677 = vmatpush1.msra.mxu0 %v653
    %678 = vmatprep.subr.mxu0 0.0
    %679 = vmatpush1.msra.mxu0 %v654
    %680 = vmatprep.subr.mxu0 0.0
    %681 = vmatpush1.msra.mxu0 %v655
    %682 = vmatprep.subr.mxu0 0.0
    %683 = vmatpush1.msra.mxu0 0.0
    %684 = vmatprep.subr.mxu0 0.0
    %685 = vmatpush1.msra.mxu0 0.0
    %686 = vmatprep.subr.mxu0 0.0
    %687 = vmatpush1.msra.mxu0 0.0
    %688 = vmatprep.subr.mxu0 0.0
    %689 = vmatpush1.msra.mxu0 0.0
    %690 = vmatprep.subr.mxu0 0.0
    %691 = vmatpush1.msra.mxu0 0.0
    %692 = vmatprep.subr.mxu0 0.0
    %693 = vmatpush1.msra.mxu0 0.0
    %694 = vmatprep.subr.mxu0 0.0
    %695 = vmatpush1.msra.mxu0 0.0
    %696 = vmatprep.subr.mxu0 0.0
    %697 = vmatpush1.msra.mxu0 0.0
    %698 = vmatprep.subr.mxu0 0.0
    %699 = vmatpush1.msra.mxu0 0.0
    %700 = vmatprep.subr.mxu0 0.0
    %701 = vmatpush1.msra.mxu0 0.0
    %702 = vmatprep.subr.mxu0 0.0
    %703 = vmatpush1.msra.mxu0 0.0
    %704 = vmatprep.subr.mxu0 0.0
    %705 = vmatpush1.msra.mxu0 0.0
    %706 = vmatprep.subr.mxu0 0.0
    %707 = vmatpush1.msra.mxu0 0.0
    %708 = vmatprep.subr.mxu0 0.0
    %709 = vmatpush1.msra.mxu0 0.0
    %710 = vmatprep.subr.mxu0 0.0
    %711 = vmatpush1.msra.mxu0 0.0
    %712 = vmatprep.subr.mxu0 0.0
    %713 = vmatpush1.msra.mxu0 0.0
    %714 = vmatprep.subr.mxu0 0.0
    %715 = vmatpush1.msra.mxu0 0.0
    %716 = vmatprep.subr.mxu0 0.0
    %717 = vmatpush1.msra.mxu0 0.0
    %718 = vmatprep.subr.mxu0 0.0
    %719 = vmatpush1.msra.mxu0 0.0
    %720 = vmatprep.subr.mxu0 0.0
    %721 = vmatpush1.msra.mxu0 0.0
    %722 = vmatprep.subr.mxu0 0.0
    %723 = vmatpush1.msra.mxu0 0.0
    %724 = vmatprep.subr.mxu0 0.0
    %725 = vmatpush1.msra.mxu0 0.0
    %726 = vmatprep.subr.mxu0 0.0
    %727 = vmatpush1.msra.mxu0 0.0
    %728 = vmatprep.subr.mxu0 0.0
    %729 = vmatpush1.msra.mxu0 0.0
    %730 = vmatprep.mubr.f32.mxu0 0.0
    %731 = vmatmul.mubr.f32.gmra.mrb[0].mxu0 %v664
    %v732 = vpop.f32.mrb[0].mxu0
    %v733 = vadd.f32 %v661, %v732
    %v734 = vpop.f32.mrb[0].mxu0
    %735 = vdwg.mxu0
    %v736 = vxor.u32 %v733, 2147483648
    %v737 = vmul.f32 %v736, 1.442695
    %v738 = vpow.pop %v737
    %v739 = vadd.f32 %v738, 1.0
    %v740 = vrcp.pop %v739
    %v741 = vmul.f32 1.0, %v740
    %v742 = vtanh.pop %v733
    %v743 = vld [vmem:[#allocation7] sm:$0x3]
    %745 = vrot.lane.b32.xlu0 %v743, 32
    %v746 = vpop.permute.xlu0 %745
    %v748 = vmul.f32 %v741, %v746
    %750 = vrot.lane.b32.xlu0 %v742, 64
    %v751 = vpop.permute.xlu0 %750
    %v753 = vmul.f32 %v741, %v751
    %755 = vrot.lane.b32.xlu0 %v753, 32
    %v756 = vpop.permute.xlu0 %755
    %v758 = vadd.f32 %v748, %v756
    %v759 = vtanh.pop %v758
    %761 = vrot.lane.b32.xlu0 %v759, 64
    %v762 = vpop.permute.xlu0 %761
    %v764 = vmul.f32 %v741, %v762
    %766 = vrot.lane.b32.xlu0 %v758, 96
    %v767 = vpop.permute.xlu0 %766
    %769 = vst.msk [vmem:[#allocation7] sm:$0x3] %vm34, %v767
    %771 = vrot.lane.b32.xlu0 %v764, 32
    %v772 = vpop.permute.xlu0 %771
    %774 = vst.msk [vmem:[#allocation6] sm:$0x3] %vm34, %v772
    %s775 = scalar_lea.vmem [#allocation2], 8
    %776 = vst.msk [vmem:[%s775] sm:$0x3] %vm181, %v772
    %777 = vrot.lane.b32.xlu0 %v764, 16
    %v778 = vpop.permute.xlu0 %777
    %s780 = scalar_lea.vmem [#allocation3], 6
    %781 = vst.msk [vmem:[%s780] sm:$0x3] %vm181, %v778
    %v782 = vld [vmem:[%s339] sm:$0x3]
    %v783 = vld [vmem:[%s337] sm:$0x3]
    %v784 = vld [vmem:[#allocation6] sm:$0x3]
    %786 = vrot.lane.b32.xlu0 %v783, 16
    %v787 = vpop.permute.xlu0 %786
    %790 = vrot.lane.b32.xlu0 %v784, 32
    %v791 = vpop.permute.xlu0 %790
    %v793 = vsel %vm49, %v782, %v787
    %v794 = vsel %vm51, %v793, %v791
    %v795 = vld [vmem:[%s1] sm:$0xff]
    %v796 = vld [vmem:[%s1 + $0x8] sm:$0xff]
    %v797 = vld [vmem:[%s1 + $0x10] sm:$0xff]
    %v798 = vld [vmem:[%s1 + $0x18] sm:$0xff]
    %v799 = vld [vmem:[%s1 + $0x20] sm:$0xff]
    %v800 = vld [vmem:[%s1 + $0x28] sm:$0xff]
    %v801 = vld [vmem:[%s1 + $0x30] sm:$0xff]
    %v802 = vld [vmem:[%s1 + $0x38] sm:$0xff]
    %v803 = vld [vmem:[%s2] sm:$0x1]
    %v805 = vlaneseq
    %v806 = vshrl.u32 %v805, 7
    %v807 = vsub.s32 0, %v806
    %v808 = vrot.slane %v803, %v807
    %v811 = vsel %vm68, %v794, 0
    %813 = vmatprep.subr.mxu0 0.0
    %814 = vmatpush1.msra.mxu0 %v795
    %815 = vmatprep.subr.mxu0 0.0
    %816 = vmatpush1.msra.mxu0 %v796
    %817 = vmatprep.subr.mxu0 0.0
    %818 = vmatpush1.msra.mxu0 %v797
    %819 = vmatprep.subr.mxu0 0.0
    %820 = vmatpush1.msra.mxu0 %v798
    %821 = vmatprep.subr.mxu0 0.0
    %822 = vmatpush1.msra.mxu0 %v799
    %823 = vmatprep.subr.mxu0 0.0
    %824 = vmatpush1.msra.mxu0 %v800
    %825 = vmatprep.subr.mxu0 0.0
    %826 = vmatpush1.msra.mxu0 %v801
    %827 = vmatprep.subr.mxu0 0.0
    %828 = vmatpush1.msra.mxu0 %v802
    %829 = vmatprep.subr.mxu0 0.0
    %830 = vmatpush1.msra.mxu0 0.0
    %831 = vmatprep.subr.mxu0 0.0
    %832 = vmatpush1.msra.mxu0 0.0
    %833 = vmatprep.subr.mxu0 0.0
    %834 = vmatpush1.msra.mxu0 0.0
    %835 = vmatprep.subr.mxu0 0.0
    %836 = vmatpush1.msra.mxu0 0.0
    %837 = vmatprep.subr.mxu0 0.0
    %838 = vmatpush1.msra.mxu0 0.0
    %839 = vmatprep.subr.mxu0 0.0
    %840 = vmatpush1.msra.mxu0 0.0
    %841 = vmatprep.subr.mxu0 0.0
    %842 = vmatpush1.msra.mxu0 0.0
    %843 = vmatprep.subr.mxu0 0.0
    %844 = vmatpush1.msra.mxu0 0.0
    %845 = vmatprep.subr.mxu0 0.0
    %846 = vmatpush1.msra.mxu0 0.0
    %847 = vmatprep.subr.mxu0 0.0
    %848 = vmatpush1.msra.mxu0 0.0
    %849 = vmatprep.subr.mxu0 0.0
    %850 = vmatpush1.msra.mxu0 0.0
    %851 = vmatprep.subr.mxu0 0.0
    %852 = vmatpush1.msra.mxu0 0.0
    %853 = vmatprep.subr.mxu0 0.0
    %854 = vmatpush1.msra.mxu0 0.0
    %855 = vmatprep.subr.mxu0 0.0
    %856 = vmatpush1.msra.mxu0 0.0
    %857 = vmatprep.subr.mxu0 0.0
    %858 = vmatpush1.msra.mxu0 0.0
    %859 = vmatprep.subr.mxu0 0.0
    %860 = vmatpush1.msra.mxu0 0.0
    %861 = vmatprep.subr.mxu0 0.0
    %862 = vmatpush1.msra.mxu0 0.0
    %863 = vmatprep.subr.mxu0 0.0
    %864 = vmatpush1.msra.mxu0 0.0
    %865 = vmatprep.subr.mxu0 0.0
    %866 = vmatpush1.msra.mxu0 0.0
    %867 = vmatprep.subr.mxu0 0.0
    %868 = vmatpush1.msra.mxu0 0.0
    %869 = vmatprep.subr.mxu0 0.0
    %870 = vmatpush1.msra.mxu0 0.0
    %871 = vmatprep.subr.mxu0 0.0
    %872 = vmatpush1.msra.mxu0 0.0
    %873 = vmatprep.subr.mxu0 0.0
    %874 = vmatpush1.msra.mxu0 0.0
    %875 = vmatprep.subr.mxu0 0.0
    %876 = vmatpush1.msra.mxu0 0.0
    %877 = vmatprep.mubr.f32.mxu0 0.0
    %878 = vmatmul.mubr.f32.gmra.mrb[0].mxu0 %v811
    %v879 = vpop.f32.mrb[0].mxu0
    %v880 = vadd.f32 %v808, %v879
    %v881 = vpop.f32.mrb[0].mxu0
    %882 = vdwg.mxu0
    %v883 = vxor.u32 %v880, 2147483648
    %v884 = vmul.f32 %v883, 1.442695
    %v885 = vpow.pop %v884
    %v886 = vadd.f32 %v885, 1.0
    %v887 = vrcp.pop %v886
    %v888 = vmul.f32 1.0, %v887
    %v889 = vtanh.pop %v880
    %v890 = vld [vmem:[#allocation7] sm:$0x3]
    %892 = vrot.lane.b32.xlu0 %v890, 32
    %v893 = vpop.permute.xlu0 %892
    %v895 = vmul.f32 %v888, %v893
    %897 = vrot.lane.b32.xlu0 %v889, 64
    %v898 = vpop.permute.xlu0 %897
    %v900 = vmul.f32 %v888, %v898
    %902 = vrot.lane.b32.xlu0 %v900, 32
    %v903 = vpop.permute.xlu0 %902
    %v905 = vadd.f32 %v895, %v903
    %v906 = vtanh.pop %v905
    %908 = vrot.lane.b32.xlu0 %v906, 64
    %v909 = vpop.permute.xlu0 %908
    %v911 = vmul.f32 %v888, %v909
    %913 = vrot.lane.b32.xlu0 %v905, 96
    %v914 = vpop.permute.xlu0 %913
    %916 = vst.msk [vmem:[#allocation7] sm:$0x3] %vm34, %v914
    %918 = vrot.lane.b32.xlu0 %v911, 32
    %v919 = vpop.permute.xlu0 %918
    %921 = vst.msk [vmem:[#allocation6] sm:$0x3] %vm34, %v919
    %s922 = scalar_lea.vmem [#allocation2], 10
    %923 = vst.msk [vmem:[%s922] sm:$0x3] %vm181, %v919
    %924 = vrot.lane.b32.xlu0 %v911, 16
    %v925 = vpop.permute.xlu0 %924
    %s927 = scalar_lea.vmem [#allocation3], 4
    %928 = vst.msk [vmem:[%s927] sm:$0x3] %vm181, %v925
    %v929 = vld [vmem:[%s190] sm:$0x3]
    %v930 = vld [vmem:[%s188] sm:$0x3]
    %v931 = vld [vmem:[#allocation6] sm:$0x3]
    %933 = vrot.lane.b32.xlu0 %v930, 16
    %v934 = vpop.permute.xlu0 %933
    %937 = vrot.lane.b32.xlu0 %v931, 32
    %v938 = vpop.permute.xlu0 %937
    %v940 = vsel %vm49, %v929, %v934
    %v941 = vsel %vm51, %v940, %v938
    %v942 = vld [vmem:[%s1] sm:$0xff]
    %v943 = vld [vmem:[%s1 + $0x8] sm:$0xff]
    %v944 = vld [vmem:[%s1 + $0x10] sm:$0xff]
    %v945 = vld [vmem:[%s1 + $0x18] sm:$0xff]
    %v946 = vld [vmem:[%s1 + $0x20] sm:$0xff]
    %v947 = vld [vmem:[%s1 + $0x28] sm:$0xff]
    %v948 = vld [vmem:[%s1 + $0x30] sm:$0xff]
    %v949 = vld [vmem:[%s1 + $0x38] sm:$0xff]
    %v950 = vld [vmem:[%s2] sm:$0x1]
    %v952 = vlaneseq
    %v953 = vshrl.u32 %v952, 7
    %v954 = vsub.s32 0, %v953
    %v955 = vrot.slane %v950, %v954
    %v958 = vsel %vm68, %v941, 0
    %960 = vmatprep.subr.mxu0 0.0
    %961 = vmatpush1.msra.mxu0 %v942
    %962 = vmatprep.subr.mxu0 0.0
    %963 = vmatpush1.msra.mxu0 %v943
    %964 = vmatprep.subr.mxu0 0.0
    %965 = vmatpush1.msra.mxu0 %v944
    %966 = vmatprep.subr.mxu0 0.0
    %967 = vmatpush1.msra.mxu0 %v945
    %968 = vmatprep.subr.mxu0 0.0
    %969 = vmatpush1.msra.mxu0 %v946
    %970 = vmatprep.subr.mxu0 0.0
    %971 = vmatpush1.msra.mxu0 %v947
    %972 = vmatprep.subr.mxu0 0.0
    %973 = vmatpush1.msra.mxu0 %v948
    %974 = vmatprep.subr.mxu0 0.0
    %975 = vmatpush1.msra.mxu0 %v949
    %976 = vmatprep.subr.mxu0 0.0
    %977 = vmatpush1.msra.mxu0 0.0
    %978 = vmatprep.subr.mxu0 0.0
    %979 = vmatpush1.msra.mxu0 0.0
    %980 = vmatprep.subr.mxu0 0.0
    %981 = vmatpush1.msra.mxu0 0.0
    %982 = vmatprep.subr.mxu0 0.0
    %983 = vmatpush1.msra.mxu0 0.0
    %984 = vmatprep.subr.mxu0 0.0
    %985 = vmatpush1.msra.mxu0 0.0
    %986 = vmatprep.subr.mxu0 0.0
    %987 = vmatpush1.msra.mxu0 0.0
    %988 = vmatprep.subr.mxu0 0.0
    %989 = vmatpush1.msra.mxu0 0.0
    %990 = vmatprep.subr.mxu0 0.0
    %991 = vmatpush1.msra.mxu0 0.0
    %992 = vmatprep.subr.mxu0 0.0
    %993 = vmatpush1.msra.mxu0 0.0
    %994 = vmatprep.subr.mxu0 0.0
    %995 = vmatpush1.msra.mxu0 0.0
    %996 = vmatprep.subr.mxu0 0.0
    %997 = vmatpush1.msra.mxu0 0.0
    %998 = vmatprep.subr.mxu0 0.0
    %999 = vmatpush1.msra.mxu0 0.0
    %1000 = vmatprep.subr.mxu0 0.0
    %1001 = vmatpush1.msra.mxu0 0.0
    %1002 = vmatprep.subr.mxu0 0.0
    %1003 = vmatpush1.msra.mxu0 0.0
    %1004 = vmatprep.subr.mxu0 0.0
    %1005 = vmatpush1.msra.mxu0 0.0
    %1006 = vmatprep.subr.mxu0 0.0
    %1007 = vmatpush1.msra.mxu0 0.0
    %1008 = vmatprep.subr.mxu0 0.0
    %1009 = vmatpush1.msra.mxu0 0.0
    %1010 = vmatprep.subr.mxu0 0.0
    %1011 = vmatpush1.msra.mxu0 0.0
    %1012 = vmatprep.subr.mxu0 0.0
    %1013 = vmatpush1.msra.mxu0 0.0
    %1014 = vmatprep.subr.mxu0 0.0
    %1015 = vmatpush1.msra.mxu0 0.0
    %1016 = vmatprep.subr.mxu0 0.0
    %1017 = vmatpush1.msra.mxu0 0.0
    %1018 = vmatprep.subr.mxu0 0.0
    %1019 = vmatpush1.msra.mxu0 0.0
    %1020 = vmatprep.subr.mxu0 0.0
    %1021 = vmatpush1.msra.mxu0 0.0
    %1022 = vmatprep.subr.mxu0 0.0
    %1023 = vmatpush1.msra.mxu0 0.0
    %1024 = vmatprep.mubr.f32.mxu0 0.0
    %1025 = vmatmul.mubr.f32.gmra.mrb[0].mxu0 %v958
    %v1026 = vpop.f32.mrb[0].mxu0
    %v1027 = vadd.f32 %v955, %v1026
    %v1028 = vpop.f32.mrb[0].mxu0
    %1029 = vdwg.mxu0
    %v1030 = vxor.u32 %v1027, 2147483648
    %v1031 = vmul.f32 %v1030, 1.442695
    %v1032 = vpow.pop %v1031
    %v1033 = vadd.f32 %v1032, 1.0
    %v1034 = vrcp.pop %v1033
    %v1035 = vmul.f32 1.0, %v1034
    %v1036 = vtanh.pop %v1027
    %v1037 = vld [vmem:[#allocation7] sm:$0x3]
    %1039 = vrot.lane.b32.xlu0 %v1037, 32
    %v1040 = vpop.permute.xlu0 %1039
    %v1042 = vmul.f32 %v1035, %v1040
    %1044 = vrot.lane.b32.xlu0 %v1036, 64
    %v1045 = vpop.permute.xlu0 %1044
    %v1047 = vmul.f32 %v1035, %v1045
    %1049 = vrot.lane.b32.xlu0 %v1047, 32
    %v1050 = vpop.permute.xlu0 %1049
    %v1052 = vadd.f32 %v1042, %v1050
    %v1053 = vtanh.pop %v1052
    %1055 = vrot.lane.b32.xlu0 %v1053, 64
    %v1056 = vpop.permute.xlu0 %1055
    %v1058 = vmul.f32 %v1035, %v1056
    %1060 = vrot.lane.b32.xlu0 %v1052, 96
    %v1061 = vpop.permute.xlu0 %1060
    %1063 = vst.msk [vmem:[#allocation7] sm:$0x3] %vm34, %v1061
    %1065 = vrot.lane.b32.xlu0 %v1058, 32
    %v1066 = vpop.permute.xlu0 %1065
    %1068 = vst.msk [vmem:[#allocation6] sm:$0x3] %vm34, %v1066
    %s1069 = scalar_lea.vmem [#allocation2], 12
    %1070 = vst.msk [vmem:[%s1069] sm:$0x3] %vm181, %v1066
    %1071 = vrot.lane.b32.xlu0 %v1058, 16
    %v1072 = vpop.permute.xlu0 %1071
    %s1074 = scalar_lea.vmem [#allocation3], 2
    %1075 = vst.msk [vmem:[%s1074] sm:$0x3] %vm181, %v1072
    %v1076 = vld [vmem:[%s38] sm:$0x3]
    %v1077 = vld [vmem:[%s0] sm:$0x3]
    %v1078 = vld [vmem:[#allocation6] sm:$0x3]
    %1080 = vrot.lane.b32.xlu0 %v1077, 16
    %v1081 = vpop.permute.xlu0 %1080
    %1084 = vrot.lane.b32.xlu0 %v1078, 32
    %v1085 = vpop.permute.xlu0 %1084
    %v1087 = vsel %vm49, %v1076, %v1081
    %v1088 = vsel %vm51, %v1087, %v1085
    %v1089 = vld [vmem:[%s1] sm:$0xff]
    %v1090 = vld [vmem:[%s1 + $0x8] sm:$0xff]
    %v1091 = vld [vmem:[%s1 + $0x10] sm:$0xff]
    %v1092 = vld [vmem:[%s1 + $0x18] sm:$0xff]
    %v1093 = vld [vmem:[%s1 + $0x20] sm:$0xff]
    %v1094 = vld [vmem:[%s1 + $0x28] sm:$0xff]
    %v1095 = vld [vmem:[%s1 + $0x30] sm:$0xff]
    %v1096 = vld [vmem:[%s1 + $0x38] sm:$0xff]
    %v1097 = vld [vmem:[%s2] sm:$0x1]
    %v1099 = vlaneseq
    %v1100 = vshrl.u32 %v1099, 7
    %v1101 = vsub.s32 0, %v1100
    %v1102 = vrot.slane %v1097, %v1101
    %v1105 = vsel %vm68, %v1088, 0
    %1107 = vmatprep.subr.mxu0 0.0
    %1108 = vmatpush1.msra.mxu0 %v1089
    %1109 = vmatprep.subr.mxu0 0.0
    %1110 = vmatpush1.msra.mxu0 %v1090
    %1111 = vmatprep.subr.mxu0 0.0
    %1112 = vmatpush1.msra.mxu0 %v1091
    %1113 = vmatprep.subr.mxu0 0.0
    %1114 = vmatpush1.msra.mxu0 %v1092
    %1115 = vmatprep.subr.mxu0 0.0
    %1116 = vmatpush1.msra.mxu0 %v1093
    %1117 = vmatprep.subr.mxu0 0.0
    %1118 = vmatpush1.msra.mxu0 %v1094
    %1119 = vmatprep.subr.mxu0 0.0
    %1120 = vmatpush1.msra.mxu0 %v1095
    %1121 = vmatprep.subr.mxu0 0.0
    %1122 = vmatpush1.msra.mxu0 %v1096
    %1123 = vmatprep.subr.mxu0 0.0
    %1124 = vmatpush1.msra.mxu0 0.0
    %1125 = vmatprep.subr.mxu0 0.0
    %1126 = vmatpush1.msra.mxu0 0.0
    %1127 = vmatprep.subr.mxu0 0.0
    %1128 = vmatpush1.msra.mxu0 0.0
    %1129 = vmatprep.subr.mxu0 0.0
    %1130 = vmatpush1.msra.mxu0 0.0
    %1131 = vmatprep.subr.mxu0 0.0
    %1132 = vmatpush1.msra.mxu0 0.0
    %1133 = vmatprep.subr.mxu0 0.0
    %1134 = vmatpush1.msra.mxu0 0.0
    %1135 = vmatprep.subr.mxu0 0.0
    %1136 = vmatpush1.msra.mxu0 0.0
    %1137 = vmatprep.subr.mxu0 0.0
    %1138 = vmatpush1.msra.mxu0 0.0
    %1139 = vmatprep.subr.mxu0 0.0
    %1140 = vmatpush1.msra.mxu0 0.0
    %1141 = vmatprep.subr.mxu0 0.0
    %1142 = vmatpush1.msra.mxu0 0.0
    %1143 = vmatprep.subr.mxu0 0.0
    %1144 = vmatpush1.msra.mxu0 0.0
    %1145 = vmatprep.subr.mxu0 0.0
    %1146 = vmatpush1.msra.mxu0 0.0
    %1147 = vmatprep.subr.mxu0 0.0
    %1148 = vmatpush1.msra.mxu0 0.0
    %1149 = vmatprep.subr.mxu0 0.0
    %1150 = vmatpush1.msra.mxu0 0.0
    %1151 = vmatprep.subr.mxu0 0.0
    %1152 = vmatpush1.msra.mxu0 0.0
    %1153 = vmatprep.subr.mxu0 0.0
    %1154 = vmatpush1.msra.mxu0 0.0
    %1155 = vmatprep.subr.mxu0 0.0
    %1156 = vmatpush1.msra.mxu0 0.0
    %1157 = vmatprep.subr.mxu0 0.0
    %1158 = vmatpush1.msra.mxu0 0.0
    %1159 = vmatprep.subr.mxu0 0.0
    %1160 = vmatpush1.msra.mxu0 0.0
    %1161 = vmatprep.subr.mxu0 0.0
    %1162 = vmatpush1.msra.mxu0 0.0
    %1163 = vmatprep.subr.mxu0 0.0
    %1164 = vmatpush1.msra.mxu0 0.0
    %1165 = vmatprep.subr.mxu0 0.0
    %1166 = vmatpush1.msra.mxu0 0.0
    %1167 = vmatprep.subr.mxu0 0.0
    %1168 = vmatpush1.msra.mxu0 0.0
    %1169 = vmatprep.subr.mxu0 0.0
    %1170 = vmatpush1.msra.mxu0 0.0
    %1171 = vmatprep.mubr.f32.mxu0 0.0
    %1172 = vmatmul.mubr.f32.gmra.mrb[0].mxu0 %v1105
    %v1173 = vpop.f32.mrb[0].mxu0
    %v1174 = vadd.f32 %v1102, %v1173
    %v1175 = vpop.f32.mrb[0].mxu0
    %1176 = vdwg.mxu0
    %v1177 = vxor.u32 %v1174, 2147483648
    %v1178 = vmul.f32 %v1177, 1.442695
    %v1179 = vpow.pop %v1178
    %v1180 = vadd.f32 %v1179, 1.0
    %v1181 = vrcp.pop %v1180
    %v1182 = vmul.f32 1.0, %v1181
    %v1183 = vtanh.pop %v1174
    %v1184 = vld [vmem:[#allocation7] sm:$0x3]
    %1186 = vrot.lane.b32.xlu0 %v1184, 32
    %v1187 = vpop.permute.xlu0 %1186
    %v1189 = vmul.f32 %v1182, %v1187
    %1191 = vrot.lane.b32.xlu0 %v1183, 64
    %v1192 = vpop.permute.xlu0 %1191
    %v1194 = vmul.f32 %v1182, %v1192
    %1196 = vrot.lane.b32.xlu0 %v1194, 32
    %v1197 = vpop.permute.xlu0 %1196
    %v1199 = vadd.f32 %v1189, %v1197
    %v1200 = vtanh.pop %v1199
    %1202 = vrot.lane.b32.xlu0 %v1200, 64
    %v1203 = vpop.permute.xlu0 %1202
    %v1205 = vmul.f32 %v1182, %v1203
    %1207 = vrot.lane.b32.xlu0 %v1199, 96
    %v1208 = vpop.permute.xlu0 %1207
    %1210 = vst.msk [vmem:[#allocation7] sm:$0x3] %vm34, %v1208
    %1212 = vrot.lane.b32.xlu0 %v1205, 32
    %v1213 = vpop.permute.xlu0 %1212
    %1215 = vst.msk [vmem:[#allocation6] sm:$0x3] %vm34, %v1213
    %s1216 = scalar_lea.vmem [#allocation2], 14
    %1217 = vst.msk [vmem:[%s1216] sm:$0x3] %vm181, %v1213
    %1218 = vrot.lane.b32.xlu0 %v1205, 16
    %v1219 = vpop.permute.xlu0 %1218
    %1221 = vst.msk [vmem:[#allocation3] sm:$0x3] %vm181, %v1219
    %1222 = vst.msk [vmem:[#allocation6] sm:$0x3] %vm34, 0.0
    %1223 = vst.msk [vmem:[#allocation7] sm:$0x3] %vm34, 0.0
    %v1224 = vld [vmem:[#allocation2] sm:$0x3]
    %v1225 = vld [vmem:[#allocation3] sm:$0x3]
    %1227 = vrot.lane.b32.xlu0 %v1225, 16
    %v1228 = vpop.permute.xlu0 %1227
    %v1230 = vsel %vm49, %v1224, %v1228
    %v1231 = vld [vmem:[%s1216] sm:$0x3]
    %v1232 = vld [vmem:[%s186] sm:$0x3]
    %1234 = vrot.lane.b32.xlu0 %v1232, 16
    %v1235 = vpop.permute.xlu0 %1234
    %v1237 = vsel %vm49, %v1231, %v1235
    %v1238 = vld [vmem:[#allocation6] sm:$0x3]
    %1240 = vrot.lane.b32.xlu0 %v1237, 32
    %v1241 = vpop.permute.xlu0 %1240
    %1244 = vrot.lane.b32.xlu0 %v1238, 64
    %v1245 = vpop.permute.xlu0 %1244
    %v1247 = vsel %vm51, %v1230, %v1241
    %v1248 = vsel %vm68, %v1247, %v1245
    %v1249 = vld [vmem:[#allocation8] sm:$0xff]
    %v1250 = vld [vmem:[#allocation8 + $0x8] sm:$0xff]
    %v1251 = vld [vmem:[#allocation8 + $0x10] sm:$0xff]
    %v1252 = vld [vmem:[#allocation8 + $0x18] sm:$0xff]
    %v1253 = vld [vmem:[#allocation8 + $0x20] sm:$0xff]
    %v1254 = vld [vmem:[#allocation8 + $0x28] sm:$0xff]
    %v1255 = vld [vmem:[#allocation8 + $0x30] sm:$0xff]
    %v1256 = vld [vmem:[#allocation8 + $0x38] sm:$0xff]
    %v1257 = vld [vmem:[#allocation8 + $0x40] sm:$0xff]
    %v1258 = vld [vmem:[#allocation8 + $0x48] sm:$0xff]
    %v1259 = vld [vmem:[#allocation8 + $0x50] sm:$0xff]
    %v1260 = vld [vmem:[#allocation8 + $0x58] sm:$0xff]
    %v1261 = vld [vmem:[%s4] sm:$0x1]
    %v1263 = vlaneseq
    %v1264 = vshrl.u32 %v1263, 7
    %v1265 = vsub.s32 0, %v1264
    %v1266 = vrot.slane %v1261, %v1265
    %vm1268 = vcmask 785408
    %v1270 = vsel %vm1268, %v1248, 0
    %1272 = vmatprep.subr.mxu0 0.0
    %1273 = vmatpush1.msra.mxu0 %v1249
    %1274 = vmatprep.subr.mxu0 0.0
    %1275 = vmatpush1.msra.mxu0 %v1250
    %1276 = vmatprep.subr.mxu0 0.0
    %1277 = vmatpush1.msra.mxu0 %v1251
    %1278 = vmatprep.subr.mxu0 0.0
    %1279 = vmatpush1.msra.mxu0 %v1252
    %1280 = vmatprep.subr.mxu0 0.0
    %1281 = vmatpush1.msra.mxu0 %v1253
    %1282 = vmatprep.subr.mxu0 0.0
    %1283 = vmatpush1.msra.mxu0 %v1254
    %1284 = vmatprep.subr.mxu0 0.0
    %1285 = vmatpush1.msra.mxu0 %v1255
    %1286 = vmatprep.subr.mxu0 0.0
    %1287 = vmatpush1.msra.mxu0 %v1256
    %1288 = vmatprep.subr.mxu0 0.0
    %1289 = vmatpush1.msra.mxu0 %v1257
    %1290 = vmatprep.subr.mxu0 0.0
    %1291 = vmatpush1.msra.mxu0 %v1258
    %1292 = vmatprep.subr.mxu0 0.0
    %1293 = vmatpush1.msra.mxu0 %v1259
    %1294 = vmatprep.subr.mxu0 0.0
    %1295 = vmatpush1.msra.mxu0 %v1260
    %1296 = vmatprep.subr.mxu0 0.0
    %1297 = vmatpush1.msra.mxu0 0.0
    %1298 = vmatprep.subr.mxu0 0.0
    %1299 = vmatpush1.msra.mxu0 0.0
    %1300 = vmatprep.subr.mxu0 0.0
    %1301 = vmatpush1.msra.mxu0 0.0
    %1302 = vmatprep.subr.mxu0 0.0
    %1303 = vmatpush1.msra.mxu0 0.0
    %1304 = vmatprep.subr.mxu0 0.0
    %1305 = vmatpush1.msra.mxu0 0.0
    %1306 = vmatprep.subr.mxu0 0.0
    %1307 = vmatpush1.msra.mxu0 0.0
    %1308 = vmatprep.subr.mxu0 0.0
    %1309 = vmatpush1.msra.mxu0 0.0
    %1310 = vmatprep.subr.mxu0 0.0
    %1311 = vmatpush1.msra.mxu0 0.0
    %1312 = vmatprep.subr.mxu0 0.0
    %1313 = vmatpush1.msra.mxu0 0.0
    %1314 = vmatprep.subr.mxu0 0.0
    %1315 = vmatpush1.msra.mxu0 0.0
    %1316 = vmatprep.subr.mxu0 0.0
    %1317 = vmatpush1.msra.mxu0 0.0
    %1318 = vmatprep.subr.mxu0 0.0
    %1319 = vmatpush1.msra.mxu0 0.0
    %1320 = vmatprep.subr.mxu0 0.0
    %1321 = vmatpush1.msra.mxu0 0.0
    %1322 = vmatprep.subr.mxu0 0.0
    %1323 = vmatpush1.msra.mxu0 0.0
    %1324 = vmatprep.subr.mxu0 0.0
    %1325 = vmatpush1.msra.mxu0 0.0
    %1326 = vmatprep.subr.mxu0 0.0
    %1327 = vmatpush1.msra.mxu0 0.0
    %1328 = vmatprep.subr.mxu0 0.0
    %1329 = vmatpush1.msra.mxu0 0.0
    %1330 = vmatprep.subr.mxu0 0.0
    %1331 = vmatpush1.msra.mxu0 0.0
    %1332 = vmatprep.subr.mxu0 0.0
    %1333 = vmatpush1.msra.mxu0 0.0
    %1334 = vmatprep.subr.mxu0 0.0
    %1335 = vmatpush1.msra.mxu0 0.0
    %1336 = vmatprep.mubr.f32.mxu0 0.0
    %1337 = vmatmul.mubr.f32.gmra.mrb[0].mxu0 %v1270
    %v1338 = vpop.f32.mrb[0].mxu0
    %v1339 = vadd.f32 %v1266, %v1338
    %v1340 = vpop.f32.mrb[0].mxu0
    %1341 = vdwg.mxu0
    %v1342 = vxor.u32 %v1339, 2147483648
    %v1343 = vmul.f32 %v1342, 1.442695
    %v1344 = vpow.pop %v1343
    %v1345 = vadd.f32 %v1344, 1.0
    %v1346 = vrcp.pop %v1345
    %v1347 = vmul.f32 1.0, %v1346
    %v1348 = vtanh.pop %v1339
    %v1349 = vld [vmem:[#allocation7] sm:$0x3]
    %1351 = vrot.lane.b32.xlu0 %v1349, 32
    %v1352 = vpop.permute.xlu0 %1351
    %v1354 = vmul.f32 %v1347, %v1352
    %1356 = vrot.lane.b32.xlu0 %v1348, 64
    %v1357 = vpop.permute.xlu0 %1356
    %v1359 = vmul.f32 %v1347, %v1357
    %1361 = vrot.lane.b32.xlu0 %v1359, 32
    %v1362 = vpop.permute.xlu0 %1361
    %v1364 = vadd.f32 %v1354, %v1362
    %v1365 = vtanh.pop %v1364
    %1367 = vrot.lane.b32.xlu0 %v1365, 64
    %v1368 = vpop.permute.xlu0 %1367
    %v1370 = vmul.f32 %v1347, %v1368
    %1372 = vrot.lane.b32.xlu0 %v1364, 96
    %v1373 = vpop.permute.xlu0 %1372
    %1375 = vst.msk [vmem:[#allocation7] sm:$0x3] %vm34, %v1373
    %1377 = vrot.lane.b32.xlu0 %v1370, 32
    %v1378 = vpop.permute.xlu0 %1377
    %1380 = vst.msk [vmem:[#allocation6] sm:$0x3] %vm34, %v1378
    %1381 = vst.msk [vmem:[#allocation4] sm:$0x3] %vm181, %v1378
    %1382 = vrot.lane.b32.xlu0 %v1370, 16
    %v1383 = vpop.permute.xlu0 %1382
    %s1385 = scalar_lea.vmem [#allocation5], 14
    %1386 = vst.msk [vmem:[%s1385] sm:$0x3] %vm181, %v1383
    %v1387 = vld [vmem:[%s330] sm:$0x3]
    %v1388 = vld [vmem:[%s1074] sm:$0x3]
    %1390 = vrot.lane.b32.xlu0 %v1388, 16
    %v1391 = vpop.permute.xlu0 %1390
    %v1393 = vsel %vm49, %v1387, %v1391
    %v1394 = vld [vmem:[%s1069] sm:$0x3]
    %v1395 = vld [vmem:[%s335] sm:$0x3]
    %1397 = vrot.lane.b32.xlu0 %v1395, 16
    %v1398 = vpop.permute.xlu0 %1397
    %v1400 = vsel %vm49, %v1394, %v1398
    %v1401 = vld [vmem:[#allocation6] sm:$0x3]
    %1403 = vrot.lane.b32.xlu0 %v1400, 32
    %v1404 = vpop.permute.xlu0 %1403
    %1407 = vrot.lane.b32.xlu0 %v1401, 64
    %v1408 = vpop.permute.xlu0 %1407
    %v1410 = vsel %vm51, %v1393, %v1404
    %v1411 = vsel %vm68, %v1410, %v1408
    %v1412 = vld [vmem:[#allocation8] sm:$0xff]
    %v1413 = vld [vmem:[#allocation8 + $0x8] sm:$0xff]
    %v1414 = vld [vmem:[#allocation8 + $0x10] sm:$0xff]
    %v1415 = vld [vmem:[#allocation8 + $0x18] sm:$0xff]
    %v1416 = vld [vmem:[#allocation8 + $0x20] sm:$0xff]
    %v1417 = vld [vmem:[#allocation8 + $0x28] sm:$0xff]
    %v1418 = vld [vmem:[#allocation8 + $0x30] sm:$0xff]
    %v1419 = vld [vmem:[#allocation8 + $0x38] sm:$0xff]
    %v1420 = vld [vmem:[#allocation8 + $0x40] sm:$0xff]
    %v1421 = vld [vmem:[#allocation8 + $0x48] sm:$0xff]
    %v1422 = vld [vmem:[#allocation8 + $0x50] sm:$0xff]
    %v1423 = vld [vmem:[#allocation8 + $0x58] sm:$0xff]
    %v1424 = vld [vmem:[%s4] sm:$0x1]
    %v1426 = vlaneseq
    %v1427 = vshrl.u32 %v1426, 7
    %v1428 = vsub.s32 0, %v1427
    %v1429 = vrot.slane %v1424, %v1428
    %v1432 = vsel %vm1268, %v1411, 0
    %1434 = vmatprep.subr.mxu0 0.0
    %1435 = vmatpush1.msra.mxu0 %v1412
    %1436 = vmatprep.subr.mxu0 0.0
    %1437 = vmatpush1.msra.mxu0 %v1413
    %1438 = vmatprep.subr.mxu0 0.0
    %1439 = vmatpush1.msra.mxu0 %v1414
    %1440 = vmatprep.subr.mxu0 0.0
    %1441 = vmatpush1.msra.mxu0 %v1415
    %1442 = vmatprep.subr.mxu0 0.0
    %1443 = vmatpush1.msra.mxu0 %v1416
    %1444 = vmatprep.subr.mxu0 0.0
    %1445 = vmatpush1.msra.mxu0 %v1417
    %1446 = vmatprep.subr.mxu0 0.0
    %1447 = vmatpush1.msra.mxu0 %v1418
    %1448 = vmatprep.subr.mxu0 0.0
    %1449 = vmatpush1.msra.mxu0 %v1419
    %1450 = vmatprep.subr.mxu0 0.0
    %1451 = vmatpush1.msra.mxu0 %v1420
    %1452 = vmatprep.subr.mxu0 0.0
    %1453 = vmatpush1.msra.mxu0 %v1421
    %1454 = vmatprep.subr.mxu0 0.0
    %1455 = vmatpush1.msra.mxu0 %v1422
    %1456 = vmatprep.subr.mxu0 0.0
    %1457 = vmatpush1.msra.mxu0 %v1423
    %1458 = vmatprep.subr.mxu0 0.0
    %1459 = vmatpush1.msra.mxu0 0.0
    %1460 = vmatprep.subr.mxu0 0.0
    %1461 = vmatpush1.msra.mxu0 0.0
    %1462 = vmatprep.subr.mxu0 0.0
    %1463 = vmatpush1.msra.mxu0 0.0
    %1464 = vmatprep.subr.mxu0 0.0
    %1465 = vmatpush1.msra.mxu0 0.0
    %1466 = vmatprep.subr.mxu0 0.0
    %1467 = vmatpush1.msra.mxu0 0.0
    %1468 = vmatprep.subr.mxu0 0.0
    %1469 = vmatpush1.msra.mxu0 0.0
    %1470 = vmatprep.subr.mxu0 0.0
    %1471 = vmatpush1.msra.mxu0 0.0
    %1472 = vmatprep.subr.mxu0 0.0
    %1473 = vmatpush1.msra.mxu0 0.0
    %1474 = vmatprep.subr.mxu0 0.0
    %1475 = vmatpush1.msra.mxu0 0.0
    %1476 = vmatprep.subr.mxu0 0.0
    %1477 = vmatpush1.msra.mxu0 0.0
    %1478 = vmatprep.subr.mxu0 0.0
    %1479 = vmatpush1.msra.mxu0 0.0
    %1480 = vmatprep.subr.mxu0 0.0
    %1481 = vmatpush1.msra.mxu0 0.0
    %1482 = vmatprep.subr.mxu0 0.0
    %1483 = vmatpush1.msra.mxu0 0.0
    %1484 = vmatprep.subr.mxu0 0.0
    %1485 = vmatpush1.msra.mxu0 0.0
    %1486 = vmatprep.subr.mxu0 0.0
    %1487 = vmatpush1.msra.mxu0 0.0
    %1488 = vmatprep.subr.mxu0 0.0
    %1489 = vmatpush1.msra.mxu0 0.0
    %1490 = vmatprep.subr.mxu0 0.0
    %1491 = vmatpush1.msra.mxu0 0.0
    %1492 = vmatprep.subr.mxu0 0.0
    %1493 = vmatpush1.msra.mxu0 0.0
    %1494 = vmatprep.subr.mxu0 0.0
    %1495 = vmatpush1.msra.mxu0 0.0
    %1496 = vmatprep.subr.mxu0 0.0
    %1497 = vmatpush1.msra.mxu0 0.0
    %1498 = vmatprep.mubr.f32.mxu0 0.0
    %1499 = vmatmul.mubr.f32.gmra.mrb[0].mxu0 %v1432
    %v1500 = vpop.f32.mrb[0].mxu0
    %v1501 = vadd.f32 %v1429, %v1500
    %v1502 = vpop.f32.mrb[0].mxu0
    %1503 = vdwg.mxu0
    %v1504 = vxor.u32 %v1501, 2147483648
    %v1505 = vmul.f32 %v1504, 1.442695
    %v1506 = vpow.pop %v1505
    %v1507 = vadd.f32 %v1506, 1.0
    %v1508 = vrcp.pop %v1507
    %v1509 = vmul.f32 1.0, %v1508
    %v1510 = vtanh.pop %v1501
    %v1511 = vld [vmem:[#allocation7] sm:$0x3]
    %1513 = vrot.lane.b32.xlu0 %v1511, 32
    %v1514 = vpop.permute.xlu0 %1513
    %v1516 = vmul.f32 %v1509, %v1514
    %1518 = vrot.lane.b32.xlu0 %v1510, 64
    %v1519 = vpop.permute.xlu0 %1518
    %v1521 = vmul.f32 %v1509, %v1519
    %1523 = vrot.lane.b32.xlu0 %v1521, 32
    %v1524 = vpop.permute.xlu0 %1523
    %v1526 = vadd.f32 %v1516, %v1524
    %v1527 = vtanh.pop %v1526
    %1529 = vrot.lane.b32.xlu0 %v1527, 64
    %v1530 = vpop.permute.xlu0 %1529
    %v1532 = vmul.f32 %v1509, %v1530
    %1534 = vrot.lane.b32.xlu0 %v1526, 96
    %v1535 = vpop.permute.xlu0 %1534
    %1537 = vst.msk [vmem:[#allocation7] sm:$0x3] %vm34, %v1535
    %1539 = vrot.lane.b32.xlu0 %v1532, 32
    %v1540 = vpop.permute.xlu0 %1539
    %1542 = vst.msk [vmem:[#allocation6] sm:$0x3] %vm34, %v1540
    %s1543 = scalar_lea.vmem [#allocation4], 2
    %1544 = vst.msk [vmem:[%s1543] sm:$0x3] %vm181, %v1540
    %1545 = vrot.lane.b32.xlu0 %v1532, 16
    %v1546 = vpop.permute.xlu0 %1545
    %s1548 = scalar_lea.vmem [#allocation5], 12
    %1549 = vst.msk [vmem:[%s1548] sm:$0x3] %vm181, %v1546
    %v1550 = vld [vmem:[%s479] sm:$0x3]
    %v1551 = vld [vmem:[%s927] sm:$0x3]
    %1553 = vrot.lane.b32.xlu0 %v1551, 16
    %v1554 = vpop.permute.xlu0 %1553
    %v1556 = vsel %vm49, %v1550, %v1554
    %v1557 = vld [vmem:[%s922] sm:$0x3]
    %v1558 = vld [vmem:[%s484] sm:$0x3]
    %1560 = vrot.lane.b32.xlu0 %v1558, 16
    %v1561 = vpop.permute.xlu0 %1560
    %v1563 = vsel %vm49, %v1557, %v1561
    %v1564 = vld [vmem:[#allocation6] sm:$0x3]
    %1566 = vrot.lane.b32.xlu0 %v1563, 32
    %v1567 = vpop.permute.xlu0 %1566
    %1570 = vrot.lane.b32.xlu0 %v1564, 64
    %v1571 = vpop.permute.xlu0 %1570
    %v1573 = vsel %vm51, %v1556, %v1567
    %v1574 = vsel %vm68, %v1573, %v1571
    %v1575 = vld [vmem:[#allocation8] sm:$0xff]
    %v1576 = vld [vmem:[#allocation8 + $0x8] sm:$0xff]
    %v1577 = vld [vmem:[#allocation8 + $0x10] sm:$0xff]
    %v1578 = vld [vmem:[#allocation8 + $0x18] sm:$0xff]
    %v1579 = vld [vmem:[#allocation8 + $0x20] sm:$0xff]
    %v1580 = vld [vmem:[#allocation8 + $0x28] sm:$0xff]
    %v1581 = vld [vmem:[#allocation8 + $0x30] sm:$0xff]
    %v1582 = vld [vmem:[#allocation8 + $0x38] sm:$0xff]
    %v1583 = vld [vmem:[#allocation8 + $0x40] sm:$0xff]
    %v1584 = vld [vmem:[#allocation8 + $0x48] sm:$0xff]
    %v1585 = vld [vmem:[#allocation8 + $0x50] sm:$0xff]
    %v1586 = vld [vmem:[#allocation8 + $0x58] sm:$0xff]
    %v1587 = vld [vmem:[%s4] sm:$0x1]
    %v1589 = vlaneseq
    %v1590 = vshrl.u32 %v1589, 7
    %v1591 = vsub.s32 0, %v1590
    %v1592 = vrot.slane %v1587, %v1591
    %v1595 = vsel %vm1268, %v1574, 0
    %1597 = vmatprep.subr.mxu0 0.0
    %1598 = vmatpush1.msra.mxu0 %v1575
    %1599 = vmatprep.subr.mxu0 0.0
    %1600 = vmatpush1.msra.mxu0 %v1576
    %1601 = vmatprep.subr.mxu0 0.0
    %1602 = vmatpush1.msra.mxu0 %v1577
    %1603 = vmatprep.subr.mxu0 0.0
    %1604 = vmatpush1.msra.mxu0 %v1578
    %1605 = vmatprep.subr.mxu0 0.0
    %1606 = vmatpush1.msra.mxu0 %v1579
    %1607 = vmatprep.subr.mxu0 0.0
    %1608 = vmatpush1.msra.mxu0 %v1580
    %1609 = vmatprep.subr.mxu0 0.0
    %1610 = vmatpush1.msra.mxu0 %v1581
    %1611 = vmatprep.subr.mxu0 0.0
    %1612 = vmatpush1.msra.mxu0 %v1582
    %1613 = vmatprep.subr.mxu0 0.0
    %1614 = vmatpush1.msra.mxu0 %v1583
    %1615 = vmatprep.subr.mxu0 0.0
    %1616 = vmatpush1.msra.mxu0 %v1584
    %1617 = vmatprep.subr.mxu0 0.0
    %1618 = vmatpush1.msra.mxu0 %v1585
    %1619 = vmatprep.subr.mxu0 0.0
    %1620 = vmatpush1.msra.mxu0 %v1586
    %1621 = vmatprep.subr.mxu0 0.0
    %1622 = vmatpush1.msra.mxu0 0.0
    %1623 = vmatprep.subr.mxu0 0.0
    %1624 = vmatpush1.msra.mxu0 0.0
    %1625 = vmatprep.subr.mxu0 0.0
    %1626 = vmatpush1.msra.mxu0 0.0
    %1627 = vmatprep.subr.mxu0 0.0
    %1628 = vmatpush1.msra.mxu0 0.0
    %1629 = vmatprep.subr.mxu0 0.0
    %1630 = vmatpush1.msra.mxu0 0.0
    %1631 = vmatprep.subr.mxu0 0.0
    %1632 = vmatpush1.msra.mxu0 0.0
    %1633 = vmatprep.subr.mxu0 0.0
    %1634 = vmatpush1.msra.mxu0 0.0
    %1635 = vmatprep.subr.mxu0 0.0
    %1636 = vmatpush1.msra.mxu0 0.0
    %1637 = vmatprep.subr.mxu0 0.0
    %1638 = vmatpush1.msra.mxu0 0.0
    %1639 = vmatprep.subr.mxu0 0.0
    %1640 = vmatpush1.msra.mxu0 0.0
    %1641 = vmatprep.subr.mxu0 0.0
    %1642 = vmatpush1.msra.mxu0 0.0
    %1643 = vmatprep.subr.mxu0 0.0
    %1644 = vmatpush1.msra.mxu0 0.0
    %1645 = vmatprep.subr.mxu0 0.0
    %1646 = vmatpush1.msra.mxu0 0.0
    %1647 = vmatprep.subr.mxu0 0.0
    %1648 = vmatpush1.msra.mxu0 0.0
    %1649 = vmatprep.subr.mxu0 0.0
    %1650 = vmatpush1.msra.mxu0 0.0
    %1651 = vmatprep.subr.mxu0 0.0
    %1652 = vmatpush1.msra.mxu0 0.0
    %1653 = vmatprep.subr.mxu0 0.0
    %1654 = vmatpush1.msra.mxu0 0.0
    %1655 = vmatprep.subr.mxu0 0.0
    %1656 = vmatpush1.msra.mxu0 0.0
    %1657 = vmatprep.subr.mxu0 0.0
    %1658 = vmatpush1.msra.mxu0 0.0
    %1659 = vmatprep.subr.mxu0 0.0
    %1660 = vmatpush1.msra.mxu0 0.0
    %1661 = vmatprep.mubr.f32.mxu0 0.0
    %1662 = vmatmul.mubr.f32.gmra.mrb[0].mxu0 %v1595
    %v1663 = vpop.f32.mrb[0].mxu0
    %v1664 = vadd.f32 %v1592, %v1663
    %v1665 = vpop.f32.mrb[0].mxu0
    %1666 = vdwg.mxu0
    %v1667 = vxor.u32 %v1664, 2147483648
    %v1668 = vmul.f32 %v1667, 1.442695
    %v1669 = vpow.pop %v1668
    %v1670 = vadd.f32 %v1669, 1.0
    %v1671 = vrcp.pop %v1670
    %v1672 = vmul.f32 1.0, %v1671
    %v1673 = vtanh.pop %v1664
    %v1674 = vld [vmem:[#allocation7] sm:$0x3]
    %1676 = vrot.lane.b32.xlu0 %v1674, 32
    %v1677 = vpop.permute.xlu0 %1676
    %v1679 = vmul.f32 %v1672, %v1677
    %1681 = vrot.lane.b32.xlu0 %v1673, 64
    %v1682 = vpop.permute.xlu0 %1681
    %v1684 = vmul.f32 %v1672, %v1682
    %1686 = vrot.lane.b32.xlu0 %v1684, 32
    %v1687 = vpop.permute.xlu0 %1686
    %v1689 = vadd.f32 %v1679, %v1687
    %v1690 = vtanh.pop %v1689
    %1692 = vrot.lane.b32.xlu0 %v1690, 64
    %v1693 = vpop.permute.xlu0 %1692
    %v1695 = vmul.f32 %v1672, %v1693
    %1697 = vrot.lane.b32.xlu0 %v1689, 96
    %v1698 = vpop.permute.xlu0 %1697
    %1700 = vst.msk [vmem:[#allocation7] sm:$0x3] %vm34, %v1698
    %1702 = vrot.lane.b32.xlu0 %v1695, 32
    %v1703 = vpop.permute.xlu0 %1702
    %1705 = vst.msk [vmem:[#allocation6] sm:$0x3] %vm34, %v1703
    %s1706 = scalar_lea.vmem [#allocation4], 4
    %1707 = vst.msk [vmem:[%s1706] sm:$0x3] %vm181, %v1703
    %1708 = vrot.lane.b32.xlu0 %v1695, 16
    %v1709 = vpop.permute.xlu0 %1708
    %s1711 = scalar_lea.vmem [#allocation5], 10
    %1712 = vst.msk [vmem:[%s1711] sm:$0x3] %vm181, %v1709
    %v1713 = vld [vmem:[%s628] sm:$0x3]
    %v1714 = vld [vmem:[%s780] sm:$0x3]
    %1716 = vrot.lane.b32.xlu0 %v1714, 16
    %v1717 = vpop.permute.xlu0 %1716
    %v1719 = vsel %vm49, %v1713, %v1717
    %v1720 = vld [vmem:[%s775] sm:$0x3]
    %v1721 = vld [vmem:[%s633] sm:$0x3]
    %1723 = vrot.lane.b32.xlu0 %v1721, 16
    %v1724 = vpop.permute.xlu0 %1723
    %v1726 = vsel %vm49, %v1720, %v1724
    %v1727 = vld [vmem:[#allocation6] sm:$0x3]
    %1729 = vrot.lane.b32.xlu0 %v1726, 32
    %v1730 = vpop.permute.xlu0 %1729
    %1733 = vrot.lane.b32.xlu0 %v1727, 64
    %v1734 = vpop.permute.xlu0 %1733
    %v1736 = vsel %vm51, %v1719, %v1730
    %v1737 = vsel %vm68, %v1736, %v1734
    %v1738 = vld [vmem:[#allocation8] sm:$0xff]
    %v1739 = vld [vmem:[#allocation8 + $0x8] sm:$0xff]
    %v1740 = vld [vmem:[#allocation8 + $0x10] sm:$0xff]
    %v1741 = vld [vmem:[#allocation8 + $0x18] sm:$0xff]
    %v1742 = vld [vmem:[#allocation8 + $0x20] sm:$0xff]
    %v1743 = vld [vmem:[#allocation8 + $0x28] sm:$0xff]
    %v1744 = vld [vmem:[#allocation8 + $0x30] sm:$0xff]
    %v1745 = vld [vmem:[#allocation8 + $0x38] sm:$0xff]
    %v1746 = vld [vmem:[#allocation8 + $0x40] sm:$0xff]
    %v1747 = vld [vmem:[#allocation8 + $0x48] sm:$0xff]
    %v1748 = vld [vmem:[#allocation8 + $0x50] sm:$0xff]
    %v1749 = vld [vmem:[#allocation8 + $0x58] sm:$0xff]
    %v1750 = vld [vmem:[%s4] sm:$0x1]
    %v1752 = vlaneseq
    %v1753 = vshrl.u32 %v1752, 7
    %v1754 = vsub.s32 0, %v1753
    %v1755 = vrot.slane %v1750, %v1754
    %v1758 = vsel %vm1268, %v1737, 0
    %1760 = vmatprep.subr.mxu0 0.0
    %1761 = vmatpush1.msra.mxu0 %v1738
    %1762 = vmatprep.subr.mxu0 0.0
    %1763 = vmatpush1.msra.mxu0 %v1739
    %1764 = vmatprep.subr.mxu0 0.0
    %1765 = vmatpush1.msra.mxu0 %v1740
    %1766 = vmatprep.subr.mxu0 0.0
    %1767 = vmatpush1.msra.mxu0 %v1741
    %1768 = vmatprep.subr.mxu0 0.0
    %1769 = vmatpush1.msra.mxu0 %v1742
    %1770 = vmatprep.subr.mxu0 0.0
    %1771 = vmatpush1.msra.mxu0 %v1743
    %1772 = vmatprep.subr.mxu0 0.0
    %1773 = vmatpush1.msra.mxu0 %v1744
    %1774 = vmatprep.subr.mxu0 0.0
    %1775 = vmatpush1.msra.mxu0 %v1745
    %1776 = vmatprep.subr.mxu0 0.0
    %1777 = vmatpush1.msra.mxu0 %v1746
    %1778 = vmatprep.subr.mxu0 0.0
    %1779 = vmatpush1.msra.mxu0 %v1747
    %1780 = vmatprep.subr.mxu0 0.0
    %1781 = vmatpush1.msra.mxu0 %v1748
    %1782 = vmatprep.subr.mxu0 0.0
    %1783 = vmatpush1.msra.mxu0 %v1749
    %1784 = vmatprep.subr.mxu0 0.0
    %1785 = vmatpush1.msra.mxu0 0.0
    %1786 = vmatprep.subr.mxu0 0.0
    %1787 = vmatpush1.msra.mxu0 0.0
    %1788 = vmatprep.subr.mxu0 0.0
    %1789 = vmatpush1.msra.mxu0 0.0
    %1790 = vmatprep.subr.mxu0 0.0
    %1791 = vmatpush1.msra.mxu0 0.0
    %1792 = vmatprep.subr.mxu0 0.0
    %1793 = vmatpush1.msra.mxu0 0.0
    %1794 = vmatprep.subr.mxu0 0.0
    %1795 = vmatpush1.msra.mxu0 0.0
    %1796 = vmatprep.subr.mxu0 0.0
    %1797 = vmatpush1.msra.mxu0 0.0
    %1798 = vmatprep.subr.mxu0 0.0
    %1799 = vmatpush1.msra.mxu0 0.0
    %1800 = vmatprep.subr.mxu0 0.0
    %1801 = vmatpush1.msra.mxu0 0.0
    %1802 = vmatprep.subr.mxu0 0.0
    %1803 = vmatpush1.msra.mxu0 0.0
    %1804 = vmatprep.subr.mxu0 0.0
    %1805 = vmatpush1.msra.mxu0 0.0
    %1806 = vmatprep.subr.mxu0 0.0
    %1807 = vmatpush1.msra.mxu0 0.0
    %1808 = vmatprep.subr.mxu0 0.0
    %1809 = vmatpush1.msra.mxu0 0.0
    %1810 = vmatprep.subr.mxu0 0.0
    %1811 = vmatpush1.msra.mxu0 0.0
    %1812 = vmatprep.subr.mxu0 0.0
    %1813 = vmatpush1.msra.mxu0 0.0
    %1814 = vmatprep.subr.mxu0 0.0
    %1815 = vmatpush1.msra.mxu0 0.0
    %1816 = vmatprep.subr.mxu0 0.0
    %1817 = vmatpush1.msra.mxu0 0.0
    %1818 = vmatprep.subr.mxu0 0.0
    %1819 = vmatpush1.msra.mxu0 0.0
    %1820 = vmatprep.subr.mxu0 0.0
    %1821 = vmatpush1.msra.mxu0 0.0
    %1822 = vmatprep.subr.mxu0 0.0
    %1823 = vmatpush1.msra.mxu0 0.0
    %1824 = vmatprep.mubr.f32.mxu0 0.0
    %1825 = vmatmul.mubr.f32.gmra.mrb[0].mxu0 %v1758
    %v1826 = vpop.f32.mrb[0].mxu0
    %v1827 = vadd.f32 %v1755, %v1826
    %v1828 = vpop.f32.mrb[0].mxu0
    %1829 = vdwg.mxu0
    %v1830 = vxor.u32 %v1827, 2147483648
    %v1831 = vmul.f32 %v1830, 1.442695
    %v1832 = vpow.pop %v1831
    %v1833 = vadd.f32 %v1832, 1.0
    %v1834 = vrcp.pop %v1833
    %v1835 = vmul.f32 1.0, %v1834
    %v1836 = vtanh.pop %v1827
    %v1837 = vld [vmem:[#allocation7] sm:$0x3]
    %1839 = vrot.lane.b32.xlu0 %v1837, 32
    %v1840 = vpop.permute.xlu0 %1839
    %v1842 = vmul.f32 %v1835, %v1840
    %1844 = vrot.lane.b32.xlu0 %v1836, 64
    %v1845 = vpop.permute.xlu0 %1844
    %v1847 = vmul.f32 %v1835, %v1845
    %1849 = vrot.lane.b32.xlu0 %v1847, 32
    %v1850 = vpop.permute.xlu0 %1849
    %v1852 = vadd.f32 %v1842, %v1850
    %v1853 = vtanh.pop %v1852
    %1855 = vrot.lane.b32.xlu0 %v1853, 64
    %v1856 = vpop.permute.xlu0 %1855
    %v1858 = vmul.f32 %v1835, %v1856
    %1860 = vrot.lane.b32.xlu0 %v1852, 96
    %v1861 = vpop.permute.xlu0 %1860
    %1863 = vst.msk [vmem:[#allocation7] sm:$0x3] %vm34, %v1861
    %1865 = vrot.lane.b32.xlu0 %v1858, 32
    %v1866 = vpop.permute.xlu0 %1865
    %1868 = vst.msk [vmem:[#allocation6] sm:$0x3] %vm34, %v1866
    %s1869 = scalar_lea.vmem [#allocation4], 6
    %1870 = vst.msk [vmem:[%s1869] sm:$0x3] %vm181, %v1866
    %1871 = vrot.lane.b32.xlu0 %v1858, 16
    %v1872 = vpop.permute.xlu0 %1871
    %s1874 = scalar_lea.vmem [#allocation5], 8
    %1875 = vst.msk [vmem:[%s1874] sm:$0x3] %vm181, %v1872
    %v1876 = vld [vmem:[%s775] sm:$0x3]
    %v1877 = vld [vmem:[%s633] sm:$0x3]
    %1879 = vrot.lane.b32.xlu0 %v1877, 16
    %v1880 = vpop.permute.xlu0 %1879
    %v1882 = vsel %vm49, %v1876, %v1880
    %v1883 = vld [vmem:[%s628] sm:$0x3]
    %v1884 = vld [vmem:[%s780] sm:$0x3]
    %1886 = vrot.lane.b32.xlu0 %v1884, 16
    %v1887 = vpop.permute.xlu0 %1886
    %v1889 = vsel %vm49, %v1883, %v1887
    %v1890 = vld [vmem:[#allocation6] sm:$0x3]
    %1892 = vrot.lane.b32.xlu0 %v1889, 32
    %v1893 = vpop.permute.xlu0 %1892
    %1896 = vrot.lane.b32.xlu0 %v1890, 64
    %v1897 = vpop.permute.xlu0 %1896
    %v1899 = vsel %vm51, %v1882, %v1893
    %v1900 = vsel %vm68, %v1899, %v1897
    %v1901 = vld [vmem:[#allocation8] sm:$0xff]
    %v1902 = vld [vmem:[#allocation8 + $0x8] sm:$0xff]
    %v1903 = vld [vmem:[#allocation8 + $0x10] sm:$0xff]
    %v1904 = vld [vmem:[#allocation8 + $0x18] sm:$0xff]
    %v1905 = vld [vmem:[#allocation8 + $0x20] sm:$0xff]
    %v1906 = vld [vmem:[#allocation8 + $0x28] sm:$0xff]
    %v1907 = vld [vmem:[#allocation8 + $0x30] sm:$0xff]
    %v1908 = vld [vmem:[#allocation8 + $0x38] sm:$0xff]
    %v1909 = vld [vmem:[#allocation8 + $0x40] sm:$0xff]
    %v1910 = vld [vmem:[#allocation8 + $0x48] sm:$0xff]
    %v1911 = vld [vmem:[#allocation8 + $0x50] sm:$0xff]
    %v1912 = vld [vmem:[#allocation8 + $0x58] sm:$0xff]
    %v1913 = vld [vmem:[%s4] sm:$0x1]
    %v1915 = vlaneseq
    %v1916 = vshrl.u32 %v1915, 7
    %v1917 = vsub.s32 0, %v1916
    %v1918 = vrot.slane %v1913, %v1917
    %v1921 = vsel %vm1268, %v1900, 0
    %1923 = vmatprep.subr.mxu0 0.0
    %1924 = vmatpush1.msra.mxu0 %v1901
    %1925 = vmatprep.subr.mxu0 0.0
    %1926 = vmatpush1.msra.mxu0 %v1902
    %1927 = vmatprep.subr.mxu0 0.0
    %1928 = vmatpush1.msra.mxu0 %v1903
    %1929 = vmatprep.subr.mxu0 0.0
    %1930 = vmatpush1.msra.mxu0 %v1904
    %1931 = vmatprep.subr.mxu0 0.0
    %1932 = vmatpush1.msra.mxu0 %v1905
    %1933 = vmatprep.subr.mxu0 0.0
    %1934 = vmatpush1.msra.mxu0 %v1906
    %1935 = vmatprep.subr.mxu0 0.0
    %1936 = vmatpush1.msra.mxu0 %v1907
    %1937 = vmatprep.subr.mxu0 0.0
    %1938 = vmatpush1.msra.mxu0 %v1908
    %1939 = vmatprep.subr.mxu0 0.0
    %1940 = vmatpush1.msra.mxu0 %v1909
    %1941 = vmatprep.subr.mxu0 0.0
    %1942 = vmatpush1.msra.mxu0 %v1910
    %1943 = vmatprep.subr.mxu0 0.0
    %1944 = vmatpush1.msra.mxu0 %v1911
    %1945 = vmatprep.subr.mxu0 0.0
    %1946 = vmatpush1.msra.mxu0 %v1912
    %1947 = vmatprep.subr.mxu0 0.0
    %1948 = vmatpush1.msra.mxu0 0.0
    %1949 = vmatprep.subr.mxu0 0.0
    %1950 = vmatpush1.msra.mxu0 0.0
    %1951 = vmatprep.subr.mxu0 0.0
    %1952 = vmatpush1.msra.mxu0 0.0
    %1953 = vmatprep.subr.mxu0 0.0
    %1954 = vmatpush1.msra.mxu0 0.0
    %1955 = vmatprep.subr.mxu0 0.0
    %1956 = vmatpush1.msra.mxu0 0.0
    %1957 = vmatprep.subr.mxu0 0.0
    %1958 = vmatpush1.msra.mxu0 0.0
    %1959 = vmatprep.subr.mxu0 0.0
    %1960 = vmatpush1.msra.mxu0 0.0
    %1961 = vmatprep.subr.mxu0 0.0
    %1962 = vmatpush1.msra.mxu0 0.0
    %1963 = vmatprep.subr.mxu0 0.0
    %1964 = vmatpush1.msra.mxu0 0.0
    %1965 = vmatprep.subr.mxu0 0.0
    %1966 = vmatpush1.msra.mxu0 0.0
    %1967 = vmatprep.subr.mxu0 0.0
    %1968 = vmatpush1.msra.mxu0 0.0
    %1969 = vmatprep.subr.mxu0 0.0
    %1970 = vmatpush1.msra.mxu0 0.0
    %1971 = vmatprep.subr.mxu0 0.0
    %1972 = vmatpush1.msra.mxu0 0.0
    %1973 = vmatprep.subr.mxu0 0.0
    %1974 = vmatpush1.msra.mxu0 0.0
    %1975 = vmatprep.subr.mxu0 0.0
    %1976 = vmatpush1.msra.mxu0 0.0
    %1977 = vmatprep.subr.mxu0 0.0
    %1978 = vmatpush1.msra.mxu0 0.0
    %1979 = vmatprep.subr.mxu0 0.0
    %1980 = vmatpush1.msra.mxu0 0.0
    %1981 = vmatprep.subr.mxu0 0.0
    %1982 = vmatpush1.msra.mxu0 0.0
    %1983 = vmatprep.subr.mxu0 0.0
    %1984 = vmatpush1.msra.mxu0 0.0
    %1985 = vmatprep.subr.mxu0 0.0
    %1986 = vmatpush1.msra.mxu0 0.0
    %1987 = vmatprep.mubr.f32.mxu0 0.0
    %1988 = vmatmul.mubr.f32.gmra.mrb[0].mxu0 %v1921
    %v1989 = vpop.f32.mrb[0].mxu0
    %v1990 = vadd.f32 %v1918, %v1989
    %v1991 = vpop.f32.mrb[0].mxu0
    %1992 = vdwg.mxu0
    %v1993 = vxor.u32 %v1990, 2147483648
    %v1994 = vmul.f32 %v1993, 1.442695
    %v1995 = vpow.pop %v1994
    %v1996 = vadd.f32 %v1995, 1.0
    %v1997 = vrcp.pop %v1996
    %v1998 = vmul.f32 1.0, %v1997
    %v1999 = vtanh.pop %v1990
    %v2000 = vld [vmem:[#allocation7] sm:$0x3]
    %2002 = vrot.lane.b32.xlu0 %v2000, 32
    %v2003 = vpop.permute.xlu0 %2002
    %v2005 = vmul.f32 %v1998, %v2003
    %2007 = vrot.lane.b32.xlu0 %v1999, 64
    %v2008 = vpop.permute.xlu0 %2007
    %v2010 = vmul.f32 %v1998, %v2008
    %2012 = vrot.lane.b32.xlu0 %v2010, 32
    %v2013 = vpop.permute.xlu0 %2012
    %v2015 = vadd.f32 %v2005, %v2013
    %v2016 = vtanh.pop %v2015
    %2018 = vrot.lane.b32.xlu0 %v2016, 64
    %v2019 = vpop.permute.xlu0 %2018
    %v2021 = vmul.f32 %v1998, %v2019
    %2023 = vrot.lane.b32.xlu0 %v2015, 96
    %v2024 = vpop.permute.xlu0 %2023
    %2026 = vst.msk [vmem:[#allocation7] sm:$0x3] %vm34, %v2024
    %2028 = vrot.lane.b32.xlu0 %v2021, 32
    %v2029 = vpop.permute.xlu0 %2028
    %2031 = vst.msk [vmem:[#allocation6] sm:$0x3] %vm34, %v2029
    %s2032 = scalar_lea.vmem [#allocation4], 8
    %2033 = vst.msk [vmem:[%s2032] sm:$0x3] %vm181, %v2029
    %2034 = vrot.lane.b32.xlu0 %v2021, 16
    %v2035 = vpop.permute.xlu0 %2034
    %s2037 = scalar_lea.vmem [#allocation5], 6
    %2038 = vst.msk [vmem:[%s2037] sm:$0x3] %vm181, %v2035
    %v2039 = vld [vmem:[%s922] sm:$0x3]
    %v2040 = vld [vmem:[%s484] sm:$0x3]
    %2042 = vrot.lane.b32.xlu0 %v2040, 16
    %v2043 = vpop.permute.xlu0 %2042
    %v2045 = vsel %vm49, %v2039, %v2043
    %v2046 = vld [vmem:[%s479] sm:$0x3]
    %v2047 = vld [vmem:[%s927] sm:$0x3]
    %2049 = vrot.lane.b32.xlu0 %v2047, 16
    %v2050 = vpop.permute.xlu0 %2049
    %v2052 = vsel %vm49, %v2046, %v2050
    %v2053 = vld [vmem:[#allocation6] sm:$0x3]
    %2055 = vrot.lane.b32.xlu0 %v2052, 32
    %v2056 = vpop.permute.xlu0 %2055
    %2059 = vrot.lane.b32.xlu0 %v2053, 64
    %v2060 = vpop.permute.xlu0 %2059
    %v2062 = vsel %vm51, %v2045, %v2056
    %v2063 = vsel %vm68, %v2062, %v2060
    %v2064 = vld [vmem:[#allocation8] sm:$0xff]
    %v2065 = vld [vmem:[#allocation8 + $0x8] sm:$0xff]
    %v2066 = vld [vmem:[#allocation8 + $0x10] sm:$0xff]
    %v2067 = vld [vmem:[#allocation8 + $0x18] sm:$0xff]
    %v2068 = vld [vmem:[#allocation8 + $0x20] sm:$0xff]
    %v2069 = vld [vmem:[#allocation8 + $0x28] sm:$0xff]
    %v2070 = vld [vmem:[#allocation8 + $0x30] sm:$0xff]
    %v2071 = vld [vmem:[#allocation8 + $0x38] sm:$0xff]
    %v2072 = vld [vmem:[#allocation8 + $0x40] sm:$0xff]
    %v2073 = vld [vmem:[#allocation8 + $0x48] sm:$0xff]
    %v2074 = vld [vmem:[#allocation8 + $0x50] sm:$0xff]
    %v2075 = vld [vmem:[#allocation8 + $0x58] sm:$0xff]
    %v2076 = vld [vmem:[%s4] sm:$0x1]
    %v2078 = vlaneseq
    %v2079 = vshrl.u32 %v2078, 7
    %v2080 = vsub.s32 0, %v2079
    %v2081 = vrot.slane %v2076, %v2080
    %v2084 = vsel %vm1268, %v2063, 0
    %2086 = vmatprep.subr.mxu0 0.0
    %2087 = vmatpush1.msra.mxu0 %v2064
    %2088 = vmatprep.subr.mxu0 0.0
    %2089 = vmatpush1.msra.mxu0 %v2065
    %2090 = vmatprep.subr.mxu0 0.0
    %2091 = vmatpush1.msra.mxu0 %v2066
    %2092 = vmatprep.subr.mxu0 0.0
    %2093 = vmatpush1.msra.mxu0 %v2067
    %2094 = vmatprep.subr.mxu0 0.0
    %2095 = vmatpush1.msra.mxu0 %v2068
    %2096 = vmatprep.subr.mxu0 0.0
    %2097 = vmatpush1.msra.mxu0 %v2069
    %2098 = vmatprep.subr.mxu0 0.0
    %2099 = vmatpush1.msra.mxu0 %v2070
    %2100 = vmatprep.subr.mxu0 0.0
    %2101 = vmatpush1.msra.mxu0 %v2071
    %2102 = vmatprep.subr.mxu0 0.0
    %2103 = vmatpush1.msra.mxu0 %v2072
    %2104 = vmatprep.subr.mxu0 0.0
    %2105 = vmatpush1.msra.mxu0 %v2073
    %2106 = vmatprep.subr.mxu0 0.0
    %2107 = vmatpush1.msra.mxu0 %v2074
    %2108 = vmatprep.subr.mxu0 0.0
    %2109 = vmatpush1.msra.mxu0 %v2075
    %2110 = vmatprep.subr.mxu0 0.0
    %2111 = vmatpush1.msra.mxu0 0.0
    %2112 = vmatprep.subr.mxu0 0.0
    %2113 = vmatpush1.msra.mxu0 0.0
    %2114 = vmatprep.subr.mxu0 0.0
    %2115 = vmatpush1.msra.mxu0 0.0
    %2116 = vmatprep.subr.mxu0 0.0
    %2117 = vmatpush1.msra.mxu0 0.0
    %2118 = vmatprep.subr.mxu0 0.0
    %2119 = vmatpush1.msra.mxu0 0.0
    %2120 = vmatprep.subr.mxu0 0.0
    %2121 = vmatpush1.msra.mxu0 0.0
    %2122 = vmatprep.subr.mxu0 0.0
    %2123 = vmatpush1.msra.mxu0 0.0
    %2124 = vmatprep.subr.mxu0 0.0
    %2125 = vmatpush1.msra.mxu0 0.0
    %2126 = vmatprep.subr.mxu0 0.0
    %2127 = vmatpush1.msra.mxu0 0.0
    %2128 = vmatprep.subr.mxu0 0.0
    %2129 = vmatpush1.msra.mxu0 0.0
    %2130 = vmatprep.subr.mxu0 0.0
    %2131 = vmatpush1.msra.mxu0 0.0
    %2132 = vmatprep.subr.mxu0 0.0
    %2133 = vmatpush1.msra.mxu0 0.0
    %2134 = vmatprep.subr.mxu0 0.0
    %2135 = vmatpush1.msra.mxu0 0.0
    %2136 = vmatprep.subr.mxu0 0.0
    %2137 = vmatpush1.msra.mxu0 0.0
    %2138 = vmatprep.subr.mxu0 0.0
    %2139 = vmatpush1.msra.mxu0 0.0
    %2140 = vmatprep.subr.mxu0 0.0
    %2141 = vmatpush1.msra.mxu0 0.0
    %2142 = vmatprep.subr.mxu0 0.0
    %2143 = vmatpush1.msra.mxu0 0.0
    %2144 = vmatprep.subr.mxu0 0.0
    %2145 = vmatpush1.msra.mxu0 0.0
    %2146 = vmatprep.subr.mxu0 0.0
    %2147 = vmatpush1.msra.mxu0 0.0
    %2148 = vmatprep.subr.mxu0 0.0
    %2149 = vmatpush1.msra.mxu0 0.0
    %2150 = vmatprep.mubr.f32.mxu0 0.0
    %2151 = vmatmul.mubr.f32.gmra.mrb[0].mxu0 %v2084
    %v2152 = vpop.f32.mrb[0].mxu0
    %v2153 = vadd.f32 %v2081, %v2152
    %v2154 = vpop.f32.mrb[0].mxu0
    %2155 = vdwg.mxu0
    %v2156 = vxor.u32 %v2153, 2147483648
    %v2157 = vmul.f32 %v2156, 1.442695
    %v2158 = vpow.pop %v2157
    %v2159 = vadd.f32 %v2158, 1.0
    %v2160 = vrcp.pop %v2159
    %v2161 = vmul.f32 1.0, %v2160
    %v2162 = vtanh.pop %v2153
    %v2163 = vld [vmem:[#allocation7] sm:$0x3]
    %2165 = vrot.lane.b32.xlu0 %v2163, 32
    %v2166 = vpop.permute.xlu0 %2165
    %v2168 = vmul.f32 %v2161, %v2166
    %2170 = vrot.lane.b32.xlu0 %v2162, 64
    %v2171 = vpop.permute.xlu0 %2170
    %v2173 = vmul.f32 %v2161, %v2171
    %2175 = vrot.lane.b32.xlu0 %v2173, 32
    %v2176 = vpop.permute.xlu0 %2175
    %v2178 = vadd.f32 %v2168, %v2176
    %v2179 = vtanh.pop %v2178
    %2181 = vrot.lane.b32.xlu0 %v2179, 64
    %v2182 = vpop.permute.xlu0 %2181
    %v2184 = vmul.f32 %v2161, %v2182
    %2186 = vrot.lane.b32.xlu0 %v2178, 96
    %v2187 = vpop.permute.xlu0 %2186
    %2189 = vst.msk [vmem:[#allocation7] sm:$0x3] %vm34, %v2187
    %2191 = vrot.lane.b32.xlu0 %v2184, 32
    %v2192 = vpop.permute.xlu0 %2191
    %2194 = vst.msk [vmem:[#allocation6] sm:$0x3] %vm34, %v2192
    %s2195 = scalar_lea.vmem [#allocation4], 10
    %2196 = vst.msk [vmem:[%s2195] sm:$0x3] %vm181, %v2192
    %2197 = vrot.lane.b32.xlu0 %v2184, 16
    %v2198 = vpop.permute.xlu0 %2197
    %s2200 = scalar_lea.vmem [#allocation5], 4
    %2201 = vst.msk [vmem:[%s2200] sm:$0x3] %vm181, %v2198
    %v2202 = vld [vmem:[%s1069] sm:$0x3]
    %v2203 = vld [vmem:[%s335] sm:$0x3]
    %2205 = vrot.lane.b32.xlu0 %v2203, 16
    %v2206 = vpop.permute.xlu0 %2205
    %v2208 = vsel %vm49, %v2202, %v2206
    %v2209 = vld [vmem:[%s330] sm:$0x3]
    %v2210 = vld [vmem:[%s1074] sm:$0x3]
    %2212 = vrot.lane.b32.xlu0 %v2210, 16
    %v2213 = vpop.permute.xlu0 %2212
    %v2215 = vsel %vm49, %v2209, %v2213
    %v2216 = vld [vmem:[#allocation6] sm:$0x3]
    %2218 = vrot.lane.b32.xlu0 %v2215, 32
    %v2219 = vpop.permute.xlu0 %2218
    %2222 = vrot.lane.b32.xlu0 %v2216, 64
    %v2223 = vpop.permute.xlu0 %2222
    %v2225 = vsel %vm51, %v2208, %v2219
    %v2226 = vsel %vm68, %v2225, %v2223
    %v2227 = vld [vmem:[#allocation8] sm:$0xff]
    %v2228 = vld [vmem:[#allocation8 + $0x8] sm:$0xff]
    %v2229 = vld [vmem:[#allocation8 + $0x10] sm:$0xff]
    %v2230 = vld [vmem:[#allocation8 + $0x18] sm:$0xff]
    %v2231 = vld [vmem:[#allocation8 + $0x20] sm:$0xff]
    %v2232 = vld [vmem:[#allocation8 + $0x28] sm:$0xff]
    %v2233 = vld [vmem:[#allocation8 + $0x30] sm:$0xff]
    %v2234 = vld [vmem:[#allocation8 + $0x38] sm:$0xff]
    %v2235 = vld [vmem:[#allocation8 + $0x40] sm:$0xff]
    %v2236 = vld [vmem:[#allocation8 + $0x48] sm:$0xff]
    %v2237 = vld [vmem:[#allocation8 + $0x50] sm:$0xff]
    %v2238 = vld [vmem:[#allocation8 + $0x58] sm:$0xff]
    %v2239 = vld [vmem:[%s4] sm:$0x1]
    %v2241 = vlaneseq
    %v2242 = vshrl.u32 %v2241, 7
    %v2243 = vsub.s32 0, %v2242
    %v2244 = vrot.slane %v2239, %v2243
    %v2247 = vsel %vm1268, %v2226, 0
    %2249 = vmatprep.subr.mxu0 0.0
    %2250 = vmatpush1.msra.mxu0 %v2227
    %2251 = vmatprep.subr.mxu0 0.0
    %2252 = vmatpush1.msra.mxu0 %v2228
    %2253 = vmatprep.subr.mxu0 0.0
    %2254 = vmatpush1.msra.mxu0 %v2229
    %2255 = vmatprep.subr.mxu0 0.0
    %2256 = vmatpush1.msra.mxu0 %v2230
    %2257 = vmatprep.subr.mxu0 0.0
    %2258 = vmatpush1.msra.mxu0 %v2231
    %2259 = vmatprep.subr.mxu0 0.0
    %2260 = vmatpush1.msra.mxu0 %v2232
    %2261 = vmatprep.subr.mxu0 0.0
    %2262 = vmatpush1.msra.mxu0 %v2233
    %2263 = vmatprep.subr.mxu0 0.0
    %2264 = vmatpush1.msra.mxu0 %v2234
    %2265 = vmatprep.subr.mxu0 0.0
    %2266 = vmatpush1.msra.mxu0 %v2235
    %2267 = vmatprep.subr.mxu0 0.0
    %2268 = vmatpush1.msra.mxu0 %v2236
    %2269 = vmatprep.subr.mxu0 0.0
    %2270 = vmatpush1.msra.mxu0 %v2237
    %2271 = vmatprep.subr.mxu0 0.0
    %2272 = vmatpush1.msra.mxu0 %v2238
    %2273 = vmatprep.subr.mxu0 0.0
    %2274 = vmatpush1.msra.mxu0 0.0
    %2275 = vmatprep.subr.mxu0 0.0
    %2276 = vmatpush1.msra.mxu0 0.0
    %2277 = vmatprep.subr.mxu0 0.0
    %2278 = vmatpush1.msra.mxu0 0.0
    %2279 = vmatprep.subr.mxu0 0.0
    %2280 = vmatpush1.msra.mxu0 0.0
    %2281 = vmatprep.subr.mxu0 0.0
    %2282 = vmatpush1.msra.mxu0 0.0
    %2283 = vmatprep.subr.mxu0 0.0
    %2284 = vmatpush1.msra.mxu0 0.0
    %2285 = vmatprep.subr.mxu0 0.0
    %2286 = vmatpush1.msra.mxu0 0.0
    %2287 = vmatprep.subr.mxu0 0.0
    %2288 = vmatpush1.msra.mxu0 0.0
    %2289 = vmatprep.subr.mxu0 0.0
    %2290 = vmatpush1.msra.mxu0 0.0
    %2291 = vmatprep.subr.mxu0 0.0
    %2292 = vmatpush1.msra.mxu0 0.0
    %2293 = vmatprep.subr.mxu0 0.0
    %2294 = vmatpush1.msra.mxu0 0.0
    %2295 = vmatprep.subr.mxu0 0.0
    %2296 = vmatpush1.msra.mxu0 0.0
    %2297 = vmatprep.subr.mxu0 0.0
    %2298 = vmatpush1.msra.mxu0 0.0
    %2299 = vmatprep.subr.mxu0 0.0
    %2300 = vmatpush1.msra.mxu0 0.0
    %2301 = vmatprep.subr.mxu0 0.0
    %2302 = vmatpush1.msra.mxu0 0.0
    %2303 = vmatprep.subr.mxu0 0.0
    %2304 = vmatpush1.msra.mxu0 0.0
    %2305 = vmatprep.subr.mxu0 0.0
    %2306 = vmatpush1.msra.mxu0 0.0
    %2307 = vmatprep.subr.mxu0 0.0
    %2308 = vmatpush1.msra.mxu0 0.0
    %2309 = vmatprep.subr.mxu0 0.0
    %2310 = vmatpush1.msra.mxu0 0.0
    %2311 = vmatprep.subr.mxu0 0.0
    %2312 = vmatpush1.msra.mxu0 0.0
    %2313 = vmatprep.mubr.f32.mxu0 0.0
    %2314 = vmatmul.mubr.f32.gmra.mrb[0].mxu0 %v2247
    %v2315 = vpop.f32.mrb[0].mxu0
    %v2316 = vadd.f32 %v2244, %v2315
    %v2317 = vpop.f32.mrb[0].mxu0
    %2318 = vdwg.mxu0
    %v2319 = vxor.u32 %v2316, 2147483648
    %v2320 = vmul.f32 %v2319, 1.442695
    %v2321 = vpow.pop %v2320
    %v2322 = vadd.f32 %v2321, 1.0
    %v2323 = vrcp.pop %v2322
    %v2324 = vmul.f32 1.0, %v2323
    %v2325 = vtanh.pop %v2316
    %v2326 = vld [vmem:[#allocation7] sm:$0x3]
    %2328 = vrot.lane.b32.xlu0 %v2326, 32
    %v2329 = vpop.permute.xlu0 %2328
    %v2331 = vmul.f32 %v2324, %v2329
    %2333 = vrot.lane.b32.xlu0 %v2325, 64
    %v2334 = vpop.permute.xlu0 %2333
    %v2336 = vmul.f32 %v2324, %v2334
    %2338 = vrot.lane.b32.xlu0 %v2336, 32
    %v2339 = vpop.permute.xlu0 %2338
    %v2341 = vadd.f32 %v2331, %v2339
    %v2342 = vtanh.pop %v2341
    %2344 = vrot.lane.b32.xlu0 %v2342, 64
    %v2345 = vpop.permute.xlu0 %2344
    %v2347 = vmul.f32 %v2324, %v2345
    %2349 = vrot.lane.b32.xlu0 %v2341, 96
    %v2350 = vpop.permute.xlu0 %2349
    %2352 = vst.msk [vmem:[#allocation7] sm:$0x3] %vm34, %v2350
    %2354 = vrot.lane.b32.xlu0 %v2347, 32
    %v2355 = vpop.permute.xlu0 %2354
    %2357 = vst.msk [vmem:[#allocation6] sm:$0x3] %vm34, %v2355
    %s2358 = scalar_lea.vmem [#allocation4], 12
    %2359 = vst.msk [vmem:[%s2358] sm:$0x3] %vm181, %v2355
    %2360 = vrot.lane.b32.xlu0 %v2347, 16
    %v2361 = vpop.permute.xlu0 %2360
    %s2363 = scalar_lea.vmem [#allocation5], 2
    %2364 = vst.msk [vmem:[%s2363] sm:$0x3] %vm181, %v2361
    %v2365 = vld [vmem:[%s1216] sm:$0x3]
    %v2366 = vld [vmem:[%s186] sm:$0x3]
    %2368 = vrot.lane.b32.xlu0 %v2366, 16
    %v2369 = vpop.permute.xlu0 %2368
    %v2371 = vsel %vm49, %v2365, %v2369
    %v2372 = vld [vmem:[#allocation2] sm:$0x3]
    %v2373 = vld [vmem:[#allocation3] sm:$0x3]
    %2375 = vrot.lane.b32.xlu0 %v2373, 16
    %v2376 = vpop.permute.xlu0 %2375
    %v2378 = vsel %vm49, %v2372, %v2376
    %v2379 = vld [vmem:[#allocation6] sm:$0x3]
    %2381 = vrot.lane.b32.xlu0 %v2378, 32
    %v2382 = vpop.permute.xlu0 %2381
    %2385 = vrot.lane.b32.xlu0 %v2379, 64
    %v2386 = vpop.permute.xlu0 %2385
    %v2388 = vsel %vm51, %v2371, %v2382
    %v2389 = vsel %vm68, %v2388, %v2386
    %v2390 = vld [vmem:[#allocation8] sm:$0xff]
    %v2391 = vld [vmem:[#allocation8 + $0x8] sm:$0xff]
    %v2392 = vld [vmem:[#allocation8 + $0x10] sm:$0xff]
    %v2393 = vld [vmem:[#allocation8 + $0x18] sm:$0xff]
    %v2394 = vld [vmem:[#allocation8 + $0x20] sm:$0xff]
    %v2395 = vld [vmem:[#allocation8 + $0x28] sm:$0xff]
    %v2396 = vld [vmem:[#allocation8 + $0x30] sm:$0xff]
    %v2397 = vld [vmem:[#allocation8 + $0x38] sm:$0xff]
    %v2398 = vld [vmem:[#allocation8 + $0x40] sm:$0xff]
    %v2399 = vld [vmem:[#allocation8 + $0x48] sm:$0xff]
    %v2400 = vld [vmem:[#allocation8 + $0x50] sm:$0xff]
    %v2401 = vld [vmem:[#allocation8 + $0x58] sm:$0xff]
    %v2402 = vld [vmem:[%s4] sm:$0x1]
    %v2404 = vlaneseq
    %v2405 = vshrl.u32 %v2404, 7
    %v2406 = vsub.s32 0, %v2405
    %v2407 = vrot.slane %v2402, %v2406
    %v2410 = vsel %vm1268, %v2389, 0
    %2412 = vmatprep.subr.mxu0 0.0
    %2413 = vmatpush1.msra.mxu0 %v2390
    %2414 = vmatprep.subr.mxu0 0.0
    %2415 = vmatpush1.msra.mxu0 %v2391
    %2416 = vmatprep.subr.mxu0 0.0
    %2417 = vmatpush1.msra.mxu0 %v2392
    %2418 = vmatprep.subr.mxu0 0.0
    %2419 = vmatpush1.msra.mxu0 %v2393
    %2420 = vmatprep.subr.mxu0 0.0
    %2421 = vmatpush1.msra.mxu0 %v2394
    %2422 = vmatprep.subr.mxu0 0.0
    %2423 = vmatpush1.msra.mxu0 %v2395
    %2424 = vmatprep.subr.mxu0 0.0
    %2425 = vmatpush1.msra.mxu0 %v2396
    %2426 = vmatprep.subr.mxu0 0.0
    %2427 = vmatpush1.msra.mxu0 %v2397
    %2428 = vmatprep.subr.mxu0 0.0
    %2429 = vmatpush1.msra.mxu0 %v2398
    %2430 = vmatprep.subr.mxu0 0.0
    %2431 = vmatpush1.msra.mxu0 %v2399
    %2432 = vmatprep.subr.mxu0 0.0
    %2433 = vmatpush1.msra.mxu0 %v2400
    %2434 = vmatprep.subr.mxu0 0.0
    %2435 = vmatpush1.msra.mxu0 %v2401
    %2436 = vmatprep.subr.mxu0 0.0
    %2437 = vmatpush1.msra.mxu0 0.0
    %2438 = vmatprep.subr.mxu0 0.0
    %2439 = vmatpush1.msra.mxu0 0.0
    %2440 = vmatprep.subr.mxu0 0.0
    %2441 = vmatpush1.msra.mxu0 0.0
    %2442 = vmatprep.subr.mxu0 0.0
    %2443 = vmatpush1.msra.mxu0 0.0
    %2444 = vmatprep.subr.mxu0 0.0
    %2445 = vmatpush1.msra.mxu0 0.0
    %2446 = vmatprep.subr.mxu0 0.0
    %2447 = vmatpush1.msra.mxu0 0.0
    %2448 = vmatprep.subr.mxu0 0.0
    %2449 = vmatpush1.msra.mxu0 0.0
    %2450 = vmatprep.subr.mxu0 0.0
    %2451 = vmatpush1.msra.mxu0 0.0
    %2452 = vmatprep.subr.mxu0 0.0
    %2453 = vmatpush1.msra.mxu0 0.0
    %2454 = vmatprep.subr.mxu0 0.0
    %2455 = vmatpush1.msra.mxu0 0.0
    %2456 = vmatprep.subr.mxu0 0.0
    %2457 = vmatpush1.msra.mxu0 0.0
    %2458 = vmatprep.subr.mxu0 0.0
    %2459 = vmatpush1.msra.mxu0 0.0
    %2460 = vmatprep.subr.mxu0 0.0
    %2461 = vmatpush1.msra.mxu0 0.0
    %2462 = vmatprep.subr.mxu0 0.0
    %2463 = vmatpush1.msra.mxu0 0.0
    %2464 = vmatprep.subr.mxu0 0.0
    %2465 = vmatpush1.msra.mxu0 0.0
    %2466 = vmatprep.subr.mxu0 0.0
    %2467 = vmatpush1.msra.mxu0 0.0
    %2468 = vmatprep.subr.mxu0 0.0
    %2469 = vmatpush1.msra.mxu0 0.0
    %2470 = vmatprep.subr.mxu0 0.0
    %2471 = vmatpush1.msra.mxu0 0.0
    %2472 = vmatprep.subr.mxu0 0.0
    %2473 = vmatpush1.msra.mxu0 0.0
    %2474 = vmatprep.subr.mxu0 0.0
    %2475 = vmatpush1.msra.mxu0 0.0
    %2476 = vmatprep.mubr.f32.mxu0 0.0
    %2477 = vmatmul.mubr.f32.gmra.mrb[0].mxu0 %v2410
    %v2478 = vpop.f32.mrb[0].mxu0
    %v2479 = vadd.f32 %v2407, %v2478
    %v2480 = vpop.f32.mrb[0].mxu0
    %2481 = vdwg.mxu0
    %v2482 = vxor.u32 %v2479, 2147483648
    %v2483 = vmul.f32 %v2482, 1.442695
    %v2484 = vpow.pop %v2483
    %v2485 = vadd.f32 %v2484, 1.0
    %v2486 = vrcp.pop %v2485
    %v2487 = vmul.f32 1.0, %v2486
    %v2488 = vtanh.pop %v2479
    %v2489 = vld [vmem:[#allocation7] sm:$0x3]
    %2491 = vrot.lane.b32.xlu0 %v2489, 32
    %v2492 = vpop.permute.xlu0 %2491
    %v2494 = vmul.f32 %v2487, %v2492
    %2496 = vrot.lane.b32.xlu0 %v2488, 64
    %v2497 = vpop.permute.xlu0 %2496
    %v2499 = vmul.f32 %v2487, %v2497
    %2501 = vrot.lane.b32.xlu0 %v2499, 32
    %v2502 = vpop.permute.xlu0 %2501
    %v2504 = vadd.f32 %v2494, %v2502
    %v2505 = vtanh.pop %v2504
    %2507 = vrot.lane.b32.xlu0 %v2505, 64
    %v2508 = vpop.permute.xlu0 %2507
    %v2510 = vmul.f32 %v2487, %v2508
    %2512 = vrot.lane.b32.xlu0 %v2504, 96
    %v2513 = vpop.permute.xlu0 %2512
    %2515 = vst.msk [vmem:[#allocation7] sm:$0x3] %vm34, %v2513
    %2517 = vrot.lane.b32.xlu0 %v2510, 32
    %v2518 = vpop.permute.xlu0 %2517
    %2520 = vst.msk [vmem:[#allocation6] sm:$0x3] %vm34, %v2518
    %s2521 = scalar_lea.vmem [#allocation4], 14
    %2522 = vst.msk [vmem:[%s2521] sm:$0x3] %vm181, %v2518
    %2523 = vrot.lane.b32.xlu0 %v2510, 16
    %v2524 = vpop.permute.xlu0 %2523
    %2526 = vst.msk [vmem:[#allocation5] sm:$0x3] %vm181, %v2524
    %v2527 = vld [vmem:[#allocation4] sm:$0x3]
    %v2528 = vld [vmem:[#allocation4 + $0x2] sm:$0x3]
    %v2529 = vld [vmem:[#allocation4 + $0x4] sm:$0x3]
    %v2530 = vld [vmem:[#allocation4 + $0x6] sm:$0x3]
    %v2531 = vld [vmem:[#allocation4 + $0x8] sm:$0x3]
    %v2532 = vld [vmem:[#allocation4 + $0xa] sm:$0x3]
    %v2533 = vld [vmem:[#allocation4 + $0xc] sm:$0x3]
    %v2534 = vld [vmem:[#allocation4 + $0xe] sm:$0x3]
    %v2535 = vld [vmem:[#allocation5] sm:$0x3]
    %v2536 = vld [vmem:[#allocation5 + $0x2] sm:$0x3]
    %v2537 = vld [vmem:[#allocation5 + $0x4] sm:$0x3]
    %v2538 = vld [vmem:[#allocation5 + $0x6] sm:$0x3]
    %v2539 = vld [vmem:[#allocation5 + $0x8] sm:$0x3]
    %v2540 = vld [vmem:[#allocation5 + $0xa] sm:$0x3]
    %v2541 = vld [vmem:[#allocation5 + $0xc] sm:$0x3]
    %v2542 = vld [vmem:[#allocation5 + $0xe] sm:$0x3]
    %2551 = vrot.lane.b32.xlu0 %v2535, 16
    %v2552 = vpop.permute.xlu0 %2551
    %2553 = vrot.lane.b32.xlu0 %v2536, 16
    %v2554 = vpop.permute.xlu0 %2553
    %2555 = vrot.lane.b32.xlu0 %v2537, 16
    %v2556 = vpop.permute.xlu0 %2555
    %2557 = vrot.lane.b32.xlu0 %v2538, 16
    %v2558 = vpop.permute.xlu0 %2557
    %2559 = vrot.lane.b32.xlu0 %v2539, 16
    %v2560 = vpop.permute.xlu0 %2559
    %2561 = vrot.lane.b32.xlu0 %v2540, 16
    %v2562 = vpop.permute.xlu0 %2561
    %2563 = vrot.lane.b32.xlu0 %v2541, 16
    %v2564 = vpop.permute.xlu0 %2563
    %2565 = vrot.lane.b32.xlu0 %v2542, 16
    %v2566 = vpop.permute.xlu0 %2565
    %v2575 = vsel %vm49, %v2527, %v2552
    %v2576 = vsel %vm49, %v2528, %v2554
    %v2577 = vsel %vm49, %v2529, %v2556
    %v2578 = vsel %vm49, %v2530, %v2558
    %v2579 = vsel %vm49, %v2531, %v2560
    %v2580 = vsel %vm49, %v2532, %v2562
    %v2581 = vsel %vm49, %v2533, %v2564
    %v2582 = vsel %vm49, %v2534, %v2566
    %2583 = vst.msk [vmem:[%s5] sm:$0x3] %vm34, %v2575
    %2584 = vst.msk [vmem:[%s5 + $0x2] sm:$0x3] %vm34, %v2576
    %2585 = vst.msk [vmem:[%s5 + $0x4] sm:$0x3] %vm34, %v2577
    %2586 = vst.msk [vmem:[%s5 + $0x6] sm:$0x3] %vm34, %v2578
    %2587 = vst.msk [vmem:[%s5 + $0x8] sm:$0x3] %vm34, %v2579
    %2588 = vst.msk [vmem:[%s5 + $0xa] sm:$0x3] %vm34, %v2580
    %2589 = vst.msk [vmem:[%s5 + $0xc] sm:$0x3] %vm34, %v2581
    %2590 = vst.msk [vmem:[%s5 + $0xe] sm:$0x3] %vm34, %v2582
    // Predicated region
    $region26: #{_forward_device.4} parent=1 // pred_check
      _
    $region27: #{_forward_device.4} parent=1 // pred_check_branch
      %2592 = sbr.rel (0) target = $region29
    $region28: #{_forward_device.4} parent=1 // pred_region
      _
    $region29: #{_forward_device.4} parent=1 // pred_fallthru
      _
    // Predicated region
    $region30: #{_forward_device.4} parent=1 // pred_check
      _
    $region31: #{_forward_device.4} parent=1 // pred_check_branch
      %2594 = sbr.rel (0) target = $region33
    $region32: #{_forward_device.4} parent=1 // pred_region
      _
    $region33: #{_forward_device.4} parent=1 // pred_fallthru
      _
    %2595 = vsyncpa [#allocation9], 1

</llo_original>
